<compile_context>
chip_gen: v6e
topology: v6e:2x2x1
jax: 0.10.0
libtpu: 0.0.40
codegen_flags: <defaults>
</compile_context>

<pallas_src>
import jax
import jax.numpy as jnp
from jax.experimental import pallas as pl
from jax.experimental.pallas import tpu as pltpu

DIM_SCALE = 2
EPS = 1e-5  # torch.nn.LayerNorm default


def _make_kernel(rpr: int, unroll: bool):
    """Kernel over one tile of `timg` image rows.

    Refs:
      x_ref   : (timg, rpr, pack*C)     input pixels, rpr packed groups / image row
      w0_ref  : (pack*C, pack*C)        block-diag W^T columns for p1 = 0
      w1_ref  : (pack*C, pack*C)        block-diag W^T columns for p1 = 1
      s_ref   : (pack*C, n_ch)          per-chunk mean reduction (entries 1/c)
      bc_ref  : (n_ch, pack*C)          0/1 broadcast back to full chunk width
      bg_ref  : (n_ch, pack*C)          gamma folded into the inv-std broadcast
      beta_ref: (1, pack*C)             beta, tiled per chunk
      o_ref   : (timg, 2, rpr, pack*C)  fused-rearrange output block
    """

    def kernel(x_ref, w0_ref, w1_ref, s_ref, bc_ref, bg_ref, beta_ref, o_ref):
        w = (w0_ref[...], w1_ref[...])
        s = s_ref[...]
        bc = bc_ref[...]
        bg = bg_ref[...]
        timg = x_ref.shape[0]
        # hoist the beta broadcast out of the r/p1 loops
        beta_b = jnp.broadcast_to(beta_ref[...], (timg, beta_ref.shape[1]))
        hi = jax.lax.Precision.HIGHEST

        def do(r, p1, wm):
            xr = x_ref[:, r, :]                                   # (timg, pack*C)
            if xr.dtype != wm.dtype:
                xr = xr.astype(wm.dtype)                          # in-kernel bf16 cast
            y = jnp.dot(xr, wm, preferred_element_type=jnp.float32)       # MXU
            # factored per-chunk LayerNorm stats: narrow reduce -> broadcast back.
            # These dots are ~2/C of the main matmul's MACs, so HIGHEST (f32-exact
            # statistics) is essentially free.
            mu_n = jnp.dot(y, s, preferred_element_type=jnp.float32, precision=hi)
            mu = jnp.dot(mu_n, bc, preferred_element_type=jnp.float32, precision=hi)
            d = y - mu
            var_n = jnp.dot(d * d, s, preferred_element_type=jnp.float32, precision=hi)
            inv_n = jax.lax.rsqrt(var_n + EPS)                    # narrow EUP rsqrt
            scale = jnp.dot(inv_n, bg, preferred_element_type=jnp.float32, precision=hi)
            out = d * scale + beta_b
            o_ref[:, p1, r, :] = out.astype(o_ref.dtype)          # lane-dense store

        if unroll:
            for r in range(rpr):
                do(r, 0, w[0])
                do(r, 1, w[1])
        else:
            def body(r, carry):
                do(r, 0, w[0])
                do(r, 1, w[1])
                return carry
            jax.lax.fori_loop(0, rpr, body, 0)

    return kernel


def patch_expand_2d(x, weight, gamma, beta, *, matmul_dtype=None, out_dtype=None):
    """PatchExpand2D forward.

    x      : (B, H, W, C) channels-last activations, C == 2*dim
    weight : (2*C, C)     torch nn.Linear weight (y = x @ weight.T)
    gamma, beta : (C // 2,) LayerNorm affine
    returns (B, 2H, 2W, C // 2)
    """
    B, H, W, C = x.shape
    assert C % DIM_SCALE == 0
    c = C // DIM_SCALE
    assert weight.shape == (DIM_SCALE * C, C), weight.shape
    assert gamma.shape == (c,) and beta.shape == (c,)

    cdt = jnp.dtype(matmul_dtype) if matmul_dtype is not None else jnp.dtype(x.dtype)
    odt = jnp.dtype(out_dtype) if out_dtype is not None else cdt

    # Pixel packing: bounded by the 128-lane target (never grown further — the
    # block-diag weight wastes pack x MXU MACs) and must divide W so packed rows
    # never cross an image row (that is what lets the rearrange fuse into indexing).
    lane_target = max(1, 128 // C) if C < 128 else 1
    pack = max(d for d in range(1, min(W, lane_target) + 1) if W % d == 0)
    rpr = W // pack                      # packed groups per image row
    Kp = pack * C                        # matmul K width == per-p1 output width (2c == C)
    n_ch = DIM_SCALE * pack              # LayerNorm chunks per (group, p1)
    BH = B * H

    # ---- tiny resident constants (linear in C, built once per call) ----
    f32 = jnp.float32
    w_t = weight.T.astype(cdt)                                      # (C, 2C)
    eye_p = jnp.eye(pack, dtype=cdt)
    w0 = jnp.kron(eye_p, w_t[:, :C])                                # p1 = 0 half
    w1 = jnp.kron(eye_p, w_t[:, C:])                                # p1 = 1 half
    eye_n = jnp.eye(n_ch, dtype=f32)
    s_red = jnp.kron(eye_n, jnp.full((c, 1), 1.0 / c, dtype=f32))   # (Kp, n_ch)
    b_cast = jnp.kron(eye_n, jnp.ones((1, c), dtype=f32))           # (n_ch, Kp)
    b_gam = jnp.kron(eye_n, gamma.astype(f32).reshape(1, c))        # gamma folded
    beta_t = jnp.tile(beta.astype(f32), n_ch).reshape(1, Kp)

    # ---- free reshape only: no pad / astype / transpose passes on the activation ----
    x4 = x.reshape(BH, rpr, Kp)

    # ---- generation-aware VMEM budget & row tiling ----
    try:
        vmem_cap = int(getattr(pltpu.get_tpu_info(), "vmem_capacity_bytes", 0)) or (64 << 20)
    except Exception:
        vmem_cap = 64 << 20
    vmem_limit = min((vmem_cap * 3) // 4, 64 << 20)   # ~64 MiB on v5e/v6e, 48 MiB on v7x

    def rup(a, m):
        return -(-a // m) * m

    in_it = jnp.dtype(x.dtype).itemsize
    sub_in = 8 * max(1, 4 // in_it)
    sub_out = 8 * max(1, 4 // odt.itemsize)
    in_row = rup(rpr, sub_in) * Kp * in_it                    # VMEM incl. sublane padding
    out_row = DIM_SCALE * rup(rpr, sub_out) * Kp * odt.itemsize
    per_img_row = 2 * (in_row + out_row) + 8 * Kp * 4         # double-buffered blocks + f32 temps
    const_bytes = 2 * (2 * Kp * Kp * jnp.dtype(cdt).itemsize
                       + (Kp * n_ch + 2 * n_ch * Kp + Kp) * 4)
    usable = vmem_limit - const_bytes - (2 << 20)
    timg = int(max(1, min(BH, usable // per_img_row, 1024)))
    if BH >= 16:
        # keep >= ~8 grid steps (pipeline overlap; both v7x TensorCores fed)
        timg = min(timg, max(1, BH // 8))
    # largest divisor of BH -> exact grid, no wrapper-side padding pass
    timg = max(d for d in range(1, timg + 1) if BH % d == 0)

    kernel = _make_kernel(rpr=rpr, unroll=(rpr <= 8))

    out4 = pl.pallas_call(
        kernel,
        out_shape=jax.ShapeDtypeStruct((BH, DIM_SCALE, rpr, Kp), odt),
        grid_spec=pltpu.PrefetchScalarGridSpec(
            num_scalar_prefetch=0,
            grid=(BH // timg,),
            in_specs=[
                pl.BlockSpec((timg, rpr, Kp), lambda i: (i, 0, 0)),
                # Constant-index operands stay resident (Pallas skips re-DMA when the
                # block index does not change).
                # TODO(synk): pipeline_mode=pl.Buffered(1) on these constants once
                # single-buffered operands are supported by the implicit pipeline.
                pl.BlockSpec((Kp, Kp), lambda i: (0, 0)),
                pl.BlockSpec((Kp, Kp), lambda i: (0, 0)),
                pl.BlockSpec((Kp, n_ch), lambda i: (0, 0)),
                pl.BlockSpec((n_ch, Kp), lambda i: (0, 0)),
                pl.BlockSpec((n_ch, Kp), lambda i: (0, 0)),
                pl.BlockSpec((1, Kp), lambda i: (0, 0)),
            ],
            out_specs=pl.BlockSpec((timg, DIM_SCALE, rpr, Kp),
                                   lambda i: (i, 0, 0, 0)),
        ),
        compiler_params=pltpu.CompilerParams(
            dimension_semantics=("parallel",),
            vmem_limit_bytes=int(vmem_limit),
        ),
    )(x4, w0, w1, s_red, b_cast, b_gam, beta_t)

    # (BH, 2, rpr, pack*C) is row-major identical to (B, 2H, 2W, c): the PyTorch
    # rearrange costs zero extra HBM traffic.
    return out4.reshape(B, DIM_SCALE * H, DIM_SCALE * W, c)


def _reference(x, weight, gamma, beta):
    B, H, W, C = x.shape
    c = C // DIM_SCALE
    y = x.astype(jnp.float32) @ weight.T.astype(jnp.float32)
    y = y.reshape(B, H, W, DIM_SCALE, DIM_SCALE, c)
    y = y.transpose(0, 1, 3, 2, 4, 5).reshape(B, H * DIM_SCALE, W * DIM_SCALE, c)
    mean = y.mean(-1, keepdims=True)
    var = ((y - mean) ** 2).mean(-1, keepdims=True)
    return (y - mean) * jax.lax.rsqrt(var + EPS) * gamma + beta


if __name__ == "__main__":
    # Module config: PatchExpand2D(dim=16, dim_scale=2)
    #   -> self.dim = 32: input channels C = 32,
    #      expand: Linear(32, 64, bias=False), norm: LayerNorm(16)
    dim = 16
    C = 2 * dim
    B, H, W = 2, 8, 8

    key = jax.random.PRNGKey(0)
    kx, kw, kg, kb = jax.random.split(key, 4)

    x = jax.random.normal(kx, (B, H, W, C), dtype=jnp.float32)
    weight = jax.random.normal(kw, (DIM_SCALE * C, C), dtype=jnp.float32) * 0.05
    gamma = 1.0 + 0.1 * jax.random.normal(kg, (C // DIM_SCALE,), dtype=jnp.float32)
    beta = 0.1 * jax.random.normal(kb, (C // DIM_SCALE,), dtype=jnp.float32)

    ref = _reference(x, weight, gamma, beta)

    # f32 path (main matmul at the MXU's default f32 handling; LayerNorm statistics
    # are f32-exact, so the tolerance only has to cover main-matmul rounding).
    out = jax.block_until_ready(patch_expand_2d(x, weight, gamma, beta))
    assert out.shape == (B, DIM_SCALE * H, DIM_SCALE * W, C // DIM_SCALE), out.shape
    err = float(jnp.max(jnp.abs(out.astype(jnp.float32) - ref)))
    assert jnp.allclose(out.astype(jnp.float32), ref, atol=2e-2, rtol=2e-2), err

    # odd spatial shape -> pack = 1, single exact grid step, no padding pass
    x_odd = jax.random.normal(kx, (1, 5, 7, C), dtype=jnp.float32)
    out_odd = jax.block_until_ready(patch_expand_2d(x_odd, weight, gamma, beta))
    ref_odd = _reference(x_odd, weight, gamma, beta)
    assert out_odd.shape == (1, 10, 14, C // DIM_SCALE), out_odd.shape
    err_odd = float(jnp.max(jnp.abs(out_odd.astype(jnp.float32) - ref_odd)))
    assert jnp.allclose(out_odd.astype(jnp.float32), ref_odd, atol=2e-2, rtol=2e-2), err_odd

    # bf16 MXU + bf16 output path (cast happens inside the kernel; f32 LayerNorm math)
    out_bf16 = jax.block_until_ready(
        patch_expand_2d(x, weight, gamma, beta, matmul_dtype=jnp.bfloat16))
    err_bf16 = float(jnp.max(jnp.abs(out_bf16.astype(jnp.float32) - ref)))
    assert jnp.allclose(out_bf16.astype(jnp.float32), ref, atol=1e-1, rtol=1e-1), err_bf16

    print("KERNEL_OK")
</pallas_src>

<mosaic_0001>
module attributes {stable_mosaic.version = 11 : i64} {
  func.func @kernel(%arg0: i32, %arg1: memref<2x2x128xf32, #tpu.memory_space<vmem>>, %arg2: memref<128x128xf32, #tpu.memory_space<vmem>>, %arg3: memref<128x128xf32, #tpu.memory_space<vmem>>, %arg4: memref<128x8xf32, #tpu.memory_space<vmem>>, %arg5: memref<8x128xf32, #tpu.memory_space<vmem>>, %arg6: memref<8x128xf32, #tpu.memory_space<vmem>>, %arg7: memref<1x128xf32, #tpu.memory_space<vmem>>, %arg8: memref<2x2x2x128xf32, #tpu.memory_space<vmem>>) attributes {dimension_semantics = [#tpu.dimension_semantics<parallel>], iteration_bounds = array<i64: 8>, scalar_prefetch = 0 : i64, scratch_operands = 0 : i64, tpu.core_type = #tpu.core_type<tc>, window_params = [{transform_indices = @transform_0, window_bounds = array<i64: 2, 2, 128>}, {pipeline_mode = #tpu.pipeline_mode<synchronous>, transform_indices = @transform_1, window_bounds = array<i64: 128, 128>}, {pipeline_mode = #tpu.pipeline_mode<synchronous>, transform_indices = @transform_2, window_bounds = array<i64: 128, 128>}, {pipeline_mode = #tpu.pipeline_mode<synchronous>, transform_indices = @transform_3, window_bounds = array<i64: 128, 8>}, {pipeline_mode = #tpu.pipeline_mode<synchronous>, transform_indices = @transform_4, window_bounds = array<i64: 8, 128>}, {pipeline_mode = #tpu.pipeline_mode<synchronous>, transform_indices = @transform_5, window_bounds = array<i64: 8, 128>}, {pipeline_mode = #tpu.pipeline_mode<synchronous>, transform_indices = @transform_6, window_bounds = array<i64: 1, 128>}, {transform_indices = @transform_7, window_bounds = array<i64: 2, 2, 2, 128>}]} {
    %c0 = arith.constant 0 : index
    %c0_0 = arith.constant 0 : index
    %0 = vector.load %arg2[%c0, %c0_0] : memref<128x128xf32, #tpu.memory_space<vmem>>, vector<128x128xf32>
    %c0_1 = arith.constant 0 : index
    %c0_2 = arith.constant 0 : index
    %1 = vector.load %arg3[%c0_1, %c0_2] : memref<128x128xf32, #tpu.memory_space<vmem>>, vector<128x128xf32>
    %c0_3 = arith.constant 0 : index
    %c0_4 = arith.constant 0 : index
    %2 = vector.load %arg4[%c0_3, %c0_4] : memref<128x8xf32, #tpu.memory_space<vmem>>, vector<128x8xf32>
    %c0_5 = arith.constant 0 : index
    %c0_6 = arith.constant 0 : index
    %3 = vector.load %arg5[%c0_5, %c0_6] : memref<8x128xf32, #tpu.memory_space<vmem>>, vector<8x128xf32>
    %c0_7 = arith.constant 0 : index
    %c0_8 = arith.constant 0 : index
    %4 = vector.load %arg6[%c0_7, %c0_8] : memref<8x128xf32, #tpu.memory_space<vmem>>, vector<8x128xf32>
    %c0_9 = arith.constant 0 : index
    %c0_10 = arith.constant 0 : index
    %5 = vector.load %arg7[%c0_9, %c0_10] : memref<1x128xf32, #tpu.memory_space<vmem>>, vector<1x128xf32>
    %6 = vector.shape_cast %5 : vector<1x128xf32> to vector<1x128xf32>
    %7 = vector.broadcast %6 : vector<1x128xf32> to vector<2x128xf32>
    %c0_11 = arith.constant 0 : index
    %c0_12 = arith.constant 0 : index
    %c0_13 = arith.constant 0 : index
    %8 = vector.load %arg1[%c0_11, %c0_12, %c0_13] : memref<2x2x128xf32, #tpu.memory_space<vmem>>, vector<2x1x128xf32>
    %9 = vector.shape_cast %8 : vector<2x1x128xf32> to vector<2x128xf32>
    %cst = arith.constant dense<0.000000e+00> : vector<2x128xf32>
    %10 = tpu.matmul %9, %0, %cst {dimension_numbers = #tpu.dot_dimension_numbers<[1], [0], [0], [1], [0, 0, 1, 1], [], []>} : vector<2x128xf32>, vector<128x128xf32>, vector<2x128xf32> -> vector<2x128xf32>
    %cst_14 = arith.constant dense<0.000000e+00> : vector<2x8xf32>
    %11 = tpu.matmul %10, %2, %cst_14 {dimension_numbers = #tpu.dot_dimension_numbers<[1], [0], [0], [1], [0, 0, 1, 1], [], []>, precision = #tpu.contract_precision<fp32>} : vector<2x128xf32>, vector<128x8xf32>, vector<2x8xf32> -> vector<2x8xf32>
    %cst_15 = arith.constant dense<0.000000e+00> : vector<2x128xf32>
    %12 = tpu.matmul %11, %3, %cst_15 {dimension_numbers = #tpu.dot_dimension_numbers<[1], [0], [0], [1], [0, 0, 1, 1], [], []>, precision = #tpu.contract_precision<fp32>} : vector<2x8xf32>, vector<8x128xf32>, vector<2x128xf32> -> vector<2x128xf32>
    %13 = arith.subf %10, %12 : vector<2x128xf32>
    %14 = arith.mulf %13, %13 : vector<2x128xf32>
    %cst_16 = arith.constant dense<0.000000e+00> : vector<2x8xf32>
    %15 = tpu.matmul %14, %2, %cst_16 {dimension_numbers = #tpu.dot_dimension_numbers<[1], [0], [0], [1], [0, 0, 1, 1], [], []>, precision = #tpu.contract_precision<fp32>} : vector<2x128xf32>, vector<128x8xf32>, vector<2x8xf32> -> vector<2x8xf32>
    %cst_17 = arith.constant 9.99999974E-6 : f32
    %16 = vector.broadcast %cst_17 : f32 to vector<2x8xf32>
    %17 = arith.addf %15, %16 : vector<2x8xf32>
    %18 = math.rsqrt %17 : vector<2x8xf32>
    %cst_18 = arith.constant dense<0.000000e+00> : vector<2x128xf32>
    %19 = tpu.matmul %18, %4, %cst_18 {dimension_numbers = #tpu.dot_dimension_numbers<[1], [0], [0], [1], [0, 0, 1, 1], [], []>, precision = #tpu.contract_precision<fp32>} : vector<2x8xf32>, vector<8x128xf32>, vector<2x128xf32> -> vector<2x128xf32>
    %20 = arith.mulf %13, %19 : vector<2x128xf32>
    %21 = arith.addf %20, %7 : vector<2x128xf32>
    %c0_19 = arith.constant 0 : index
    %c0_20 = arith.constant 0 : index
    %c0_21 = arith.constant 0 : index
    %c0_22 = arith.constant 0 : index
    %22 = vector.load %arg8[%c0_19, %c0_20, %c0_21, %c0_22] : memref<2x2x2x128xf32, #tpu.memory_space<vmem>>, vector<2x1x1x128xf32>
    %23 = vector.shape_cast %22 : vector<2x1x1x128xf32> to vector<2x128xf32>
    %24 = vector.shape_cast %21 : vector<2x128xf32> to vector<2x1x1x128xf32>
    tpu.vector_store %arg8[%c0_19, %c0_20, %c0_21, %c0_22], %24 {strides = array<i32>} : memref<2x2x2x128xf32, #tpu.memory_space<vmem>>, vector<2x1x1x128xf32>,
    %c0_23 = arith.constant 0 : index
    %c0_24 = arith.constant 0 : index
    %c0_25 = arith.constant 0 : index
    %25 = vector.load %arg1[%c0_23, %c0_24, %c0_25] : memref<2x2x128xf32, #tpu.memory_space<vmem>>, vector<2x1x128xf32>
    %26 = vector.shape_cast %25 : vector<2x1x128xf32> to vector<2x128xf32>
    %cst_26 = arith.constant dense<0.000000e+00> : vector<2x128xf32>
    %27 = tpu.matmul %26, %1, %cst_26 {dimension_numbers = #tpu.dot_dimension_numbers<[1], [0], [0], [1], [0, 0, 1, 1], [], []>} : vector<2x128xf32>, vector<128x128xf32>, vector<2x128xf32> -> vector<2x128xf32>
    %cst_27 = arith.constant dense<0.000000e+00> : vector<2x8xf32>
    %28 = tpu.matmul %27, %2, %cst_27 {dimension_numbers = #tpu.dot_dimension_numbers<[1], [0], [0], [1], [0, 0, 1, 1], [], []>, precision = #tpu.contract_precision<fp32>} : vector<2x128xf32>, vector<128x8xf32>, vector<2x8xf32> -> vector<2x8xf32>
    %cst_28 = arith.constant dense<0.000000e+00> : vector<2x128xf32>
    %29 = tpu.matmul %28, %3, %cst_28 {dimension_numbers = #tpu.dot_dimension_numbers<[1], [0], [0], [1], [0, 0, 1, 1], [], []>, precision = #tpu.contract_precision<fp32>} : vector<2x8xf32>, vector<8x128xf32>, vector<2x128xf32> -> vector<2x128xf32>
    %30 = arith.subf %27, %29 : vector<2x128xf32>
    %31 = arith.mulf %30, %30 : vector<2x128xf32>
    %cst_29 = arith.constant dense<0.000000e+00> : vector<2x8xf32>
    %32 = tpu.matmul %31, %2, %cst_29 {dimension_numbers = #tpu.dot_dimension_numbers<[1], [0], [0], [1], [0, 0, 1, 1], [], []>, precision = #tpu.contract_precision<fp32>} : vector<2x128xf32>, vector<128x8xf32>, vector<2x8xf32> -> vector<2x8xf32>
    %cst_30 = arith.constant 9.99999974E-6 : f32
    %33 = vector.broadcast %cst_30 : f32 to vector<2x8xf32>
    %34 = arith.addf %32, %33 : vector<2x8xf32>
    %35 = math.rsqrt %34 : vector<2x8xf32>
    %cst_31 = arith.constant dense<0.000000e+00> : vector<2x128xf32>
    %36 = tpu.matmul %35, %4, %cst_31 {dimension_numbers = #tpu.dot_dimension_numbers<[1], [0], [0], [1], [0, 0, 1, 1], [], []>, precision = #tpu.contract_precision<fp32>} : vector<2x8xf32>, vector<8x128xf32>, vector<2x128xf32> -> vector<2x128xf32>
    %37 = arith.mulf %30, %36 : vector<2x128xf32>
    %38 = arith.addf %37, %7 : vector<2x128xf32>
    %c0_32 = arith.constant 0 : index
    %c1 = arith.constant 1 : index
    %c0_33 = arith.constant 0 : index
    %c0_34 = arith.constant 0 : index
    %39 = vector.load %arg8[%c0_32, %c1, %c0_33, %c0_34] : memref<2x2x2x128xf32, #tpu.memory_space<vmem>>, vector<2x1x1x128xf32>
    %40 = vector.shape_cast %39 : vector<2x1x1x128xf32> to vector<2x128xf32>
    %41 = vector.shape_cast %38 : vector<2x128xf32> to vector<2x1x1x128xf32>
    tpu.vector_store %arg8[%c0_32, %c1, %c0_33, %c0_34], %41 {strides = array<i32>} : memref<2x2x2x128xf32, #tpu.memory_space<vmem>>, vector<2x1x1x128xf32>,
    %c0_35 = arith.constant 0 : index
    %c1_36 = arith.constant 1 : index
    %c0_37 = arith.constant 0 : index
    %42 = vector.load %arg1[%c0_35, %c1_36, %c0_37] : memref<2x2x128xf32, #tpu.memory_space<vmem>>, vector<2x1x128xf32>
    %43 = vector.shape_cast %42 : vector<2x1x128xf32> to vector<2x128xf32>
    %cst_38 = arith.constant dense<0.000000e+00> : vector<2x128xf32>
    %44 = tpu.matmul %43, %0, %cst_38 {dimension_numbers = #tpu.dot_dimension_numbers<[1], [0], [0], [1], [0, 0, 1, 1], [], []>} : vector<2x128xf32>, vector<128x128xf32>, vector<2x128xf32> -> vector<2x128xf32>
    %cst_39 = arith.constant dense<0.000000e+00> : vector<2x8xf32>
    %45 = tpu.matmul %44, %2, %cst_39 {dimension_numbers = #tpu.dot_dimension_numbers<[1], [0], [0], [1], [0, 0, 1, 1], [], []>, precision = #tpu.contract_precision<fp32>} : vector<2x128xf32>, vector<128x8xf32>, vector<2x8xf32> -> vector<2x8xf32>
    %cst_40 = arith.constant dense<0.000000e+00> : vector<2x128xf32>
    %46 = tpu.matmul %45, %3, %cst_40 {dimension_numbers = #tpu.dot_dimension_numbers<[1], [0], [0], [1], [0, 0, 1, 1], [], []>, precision = #tpu.contract_precision<fp32>} : vector<2x8xf32>, vector<8x128xf32>, vector<2x128xf32> -> vector<2x128xf32>
    %47 = arith.subf %44, %46 : vector<2x128xf32>
    %48 = arith.mulf %47, %47 : vector<2x128xf32>
    %cst_41 = arith.constant dense<0.000000e+00> : vector<2x8xf32>
    %49 = tpu.matmul %48, %2, %cst_41 {dimension_numbers = #tpu.dot_dimension_numbers<[1], [0], [0], [1], [0, 0, 1, 1], [], []>, precision = #tpu.contract_precision<fp32>} : vector<2x128xf32>, vector<128x8xf32>, vector<2x8xf32> -> vector<2x8xf32>
    %cst_42 = arith.constant 9.99999974E-6 : f32
    %50 = vector.broadcast %cst_42 : f32 to vector<2x8xf32>
    %51 = arith.addf %49, %50 : vector<2x8xf32>
    %52 = math.rsqrt %51 : vector<2x8xf32>
    %cst_43 = arith.constant dense<0.000000e+00> : vector<2x128xf32>
    %53 = tpu.matmul %52, %4, %cst_43 {dimension_numbers = #tpu.dot_dimension_numbers<[1], [0], [0], [1], [0, 0, 1, 1], [], []>, precision = #tpu.contract_precision<fp32>} : vector<2x8xf32>, vector<8x128xf32>, vector<2x128xf32> -> vector<2x128xf32>
    %54 = arith.mulf %47, %53 : vector<2x128xf32>
    %55 = arith.addf %54, %7 : vector<2x128xf32>
    %c0_44 = arith.constant 0 : index
    %c0_45 = arith.constant 0 : index
    %c1_46 = arith.constant 1 : index
    %c0_47 = arith.constant 0 : index
    %56 = vector.load %arg8[%c0_44, %c0_45, %c1_46, %c0_47] : memref<2x2x2x128xf32, #tpu.memory_space<vmem>>, vector<2x1x1x128xf32>
    %57 = vector.shape_cast %56 : vector<2x1x1x128xf32> to vector<2x128xf32>
    %58 = vector.shape_cast %55 : vector<2x128xf32> to vector<2x1x1x128xf32>
    tpu.vector_store %arg8[%c0_44, %c0_45, %c1_46, %c0_47], %58 {strides = array<i32>} : memref<2x2x2x128xf32, #tpu.memory_space<vmem>>, vector<2x1x1x128xf32>,
    %c0_48 = arith.constant 0 : index
    %c1_49 = arith.constant 1 : index
    %c0_50 = arith.constant 0 : index
    %59 = vector.load %arg1[%c0_48, %c1_49, %c0_50] : memref<2x2x128xf32, #tpu.memory_space<vmem>>, vector<2x1x128xf32>
    %60 = vector.shape_cast %59 : vector<2x1x128xf32> to vector<2x128xf32>
    %cst_51 = arith.constant dense<0.000000e+00> : vector<2x128xf32>
    %61 = tpu.matmul %60, %1, %cst_51 {dimension_numbers = #tpu.dot_dimension_numbers<[1], [0], [0], [1], [0, 0, 1, 1], [], []>} : vector<2x128xf32>, vector<128x128xf32>, vector<2x128xf32> -> vector<2x128xf32>
    %cst_52 = arith.constant dense<0.000000e+00> : vector<2x8xf32>
    %62 = tpu.matmul %61, %2, %cst_52 {dimension_numbers = #tpu.dot_dimension_numbers<[1], [0], [0], [1], [0, 0, 1, 1], [], []>, precision = #tpu.contract_precision<fp32>} : vector<2x128xf32>, vector<128x8xf32>, vector<2x8xf32> -> vector<2x8xf32>
    %cst_53 = arith.constant dense<0.000000e+00> : vector<2x128xf32>
    %63 = tpu.matmul %62, %3, %cst_53 {dimension_numbers = #tpu.dot_dimension_numbers<[1], [0], [0], [1], [0, 0, 1, 1], [], []>, precision = #tpu.contract_precision<fp32>} : vector<2x8xf32>, vector<8x128xf32>, vector<2x128xf32> -> vector<2x128xf32>
    %64 = arith.subf %61, %63 : vector<2x128xf32>
    %65 = arith.mulf %64, %64 : vector<2x128xf32>
    %cst_54 = arith.constant dense<0.000000e+00> : vector<2x8xf32>
    %66 = tpu.matmul %65, %2, %cst_54 {dimension_numbers = #tpu.dot_dimension_numbers<[1], [0], [0], [1], [0, 0, 1, 1], [], []>, precision = #tpu.contract_precision<fp32>} : vector<2x128xf32>, vector<128x8xf32>, vector<2x8xf32> -> vector<2x8xf32>
    %cst_55 = arith.constant 9.99999974E-6 : f32
    %67 = vector.broadcast %cst_55 : f32 to vector<2x8xf32>
    %68 = arith.addf %66, %67 : vector<2x8xf32>
    %69 = math.rsqrt %68 : vector<2x8xf32>
    %cst_56 = arith.constant dense<0.000000e+00> : vector<2x128xf32>
    %70 = tpu.matmul %69, %4, %cst_56 {dimension_numbers = #tpu.dot_dimension_numbers<[1], [0], [0], [1], [0, 0, 1, 1], [], []>, precision = #tpu.contract_precision<fp32>} : vector<2x8xf32>, vector<8x128xf32>, vector<2x128xf32> -> vector<2x128xf32>
    %71 = arith.mulf %64, %70 : vector<2x128xf32>
    %72 = arith.addf %71, %7 : vector<2x128xf32>
    %c0_57 = arith.constant 0 : index
    %c1_58 = arith.constant 1 : index
    %c1_59 = arith.constant 1 : index
    %c0_60 = arith.constant 0 : index
    %73 = vector.load %arg8[%c0_57, %c1_58, %c1_59, %c0_60] : memref<2x2x2x128xf32, #tpu.memory_space<vmem>>, vector<2x1x1x128xf32>
    %74 = vector.shape_cast %73 : vector<2x1x1x128xf32> to vector<2x128xf32>
    %75 = vector.shape_cast %72 : vector<2x128xf32> to vector<2x1x1x128xf32>
    tpu.vector_store %arg8[%c0_57, %c1_58, %c1_59, %c0_60], %75 {strides = array<i32>} : memref<2x2x2x128xf32, #tpu.memory_space<vmem>>, vector<2x1x1x128xf32>,
    return
  }
  func.func @transform_0(%arg0: i32) -> (i32, i32, i32) {
    %c0_i32 = arith.constant 0 : i32
    %c0_i32_0 = arith.constant 0 : i32
    %c0_i32_1 = arith.constant 0 : i32
    return %arg0, %c0_i32, %c0_i32_0 : i32, i32, i32
  }
  func.func @transform_1(%arg0: i32) -> (i32, i32) {
    %c0_i32 = arith.constant 0 : i32
    %c0_i32_0 = arith.constant 0 : i32
    %c0_i32_1 = arith.constant 0 : i32
    return %c0_i32, %c0_i32_0 : i32, i32
  }
  func.func @transform_2(%arg0: i32) -> (i32, i32) {
    %c0_i32 = arith.constant 0 : i32
    %c0_i32_0 = arith.constant 0 : i32
    %c0_i32_1 = arith.constant 0 : i32
    return %c0_i32, %c0_i32_0 : i32, i32
  }
  func.func @transform_3(%arg0: i32) -> (i32, i32) {
    %c0_i32 = arith.constant 0 : i32
    %c0_i32_0 = arith.constant 0 : i32
    %c0_i32_1 = arith.constant 0 : i32
    return %c0_i32, %c0_i32_0 : i32, i32
  }
  func.func @transform_4(%arg0: i32) -> (i32, i32) {
    %c0_i32 = arith.constant 0 : i32
    %c0_i32_0 = arith.constant 0 : i32
    %c0_i32_1 = arith.constant 0 : i32
    return %c0_i32, %c0_i32_0 : i32, i32
  }
  func.func @transform_5(%arg0: i32) -> (i32, i32) {
    %c0_i32 = arith.constant 0 : i32
    %c0_i32_0 = arith.constant 0 : i32
    %c0_i32_1 = arith.constant 0 : i32
    return %c0_i32, %c0_i32_0 : i32, i32
  }
  func.func @transform_6(%arg0: i32) -> (i32, i32) {
    %c0_i32 = arith.constant 0 : i32
    %c0_i32_0 = arith.constant 0 : i32
    %c0_i32_1 = arith.constant 0 : i32
    return %c0_i32, %c0_i32_0 : i32, i32
  }
  func.func @transform_7(%arg0: i32) -> (i32, i32, i32, i32) {
    %c0_i32 = arith.constant 0 : i32
    %c0_i32_0 = arith.constant 0 : i32
    %c0_i32_1 = arith.constant 0 : i32
    %c0_i32_2 = arith.constant 0 : i32
    return %arg0, %c0_i32, %c0_i32_0, %c0_i32_1 : i32, i32, i32, i32
  }
}

</mosaic_0001>

<llo_original>
// kernel: tpu_custom_call.1
$region0: #{tpu_custom_call.1}
  #allocation0 [shape = 'u32[]', space=smem, size = 0x4, offset = 0x4, fixed_abs, tag = 'smem constant byte address 0x4 - core index']
  #allocation1 [shape = 'u32[144,128]{1,0:T(1,128)}', space=vmem, size = 0x12000, scoped, tag = 'internal scratch']
  %s0 = inlined_call_operand.hbm [shape: f32[16,2,128], index: 0, kind: input, shape index: {}]
  %s1 = inlined_call_operand.vmem [shape: f32[128,128], index: 1, kind: input, shape index: {}]
  %s2 = inlined_call_operand.hbm [shape: f32[128,128], index: 2, kind: input, shape index: {}]
  %s3 = inlined_call_operand.vmem [shape: f32[128,8], index: 3, kind: input, shape index: {}]
  %s4 = inlined_call_operand.vmem [shape: f32[8,128], index: 4, kind: input, shape index: {}]
  %s5 = inlined_call_operand.vmem [shape: f32[8,128], index: 5, kind: input, shape index: {}]
  %s6 = inlined_call_operand.vmem [shape: f32[1,128], index: 6, kind: input, shape index: {}]
  %s7 = inlined_call_operand.hbm [shape: f32[16,2,2,128], index: 7, kind: output, shape index: {}]
  %s8 = sld [smem:[#allocation0]]
  $region69: #{tpu_custom_call.1} parent=0
    _
  %s10 = ssub.s32 1, %s8
  %s11 = scalar_select 0, %s10, %s8
  $region1: #{tpu_custom_call.1} parent=0
    #allocation2 [shape = 'u8[4096]{0}', space=vmem, size = 0x1000, scoped, tag = 'input window, operand 0']
    #allocation3 [shape = 's32[2]{0}', space=sflag, size = 0x8, scoped, tag = 'scoped memory for tpu_custom_call.1']
    #allocation4 [shape = 's32[2]{0}', space=sflag, size = 0x8, scoped, tag = 'scoped memory for tpu_custom_call.1']
    #allocation5 [shape = 'u8[65536]{0}', space=vmem, size = 0x10000, scoped, tag = 'input window, operand 2, single buffered']
    #allocation6 [shape = 's32[1]{0}', space=sflag, size = 0x4, scoped, tag = 'scoped memory for tpu_custom_call.1']
    #allocation7 [shape = 'u8[8192]{0}', space=vmem, size = 0x2000, scoped, tag = 'output window, operand 0']
    %12 = vsyncpa [#allocation3], 0
    %s13 = scalar_lea.sflag [#allocation3], 1
    %14 = vsyncpa %s13, 0
    %15 = vsyncpa [#allocation6], 0
    %16 = vsyncpa [#allocation4], 0
    %s17 = scalar_lea.sflag [#allocation4], 1
    %18 = vsyncpa %s17, 0
    loop: start=0, step=1, limit=10
    $region2: #{tpu_custom_call.1} parent=1 // loop_pre_header
      _
    $region3: #{tpu_custom_call.1} parent=1 // loop_header
      %s20 = sphi 0, %s24
      %p21 = scmp.ge.s32.totalorder %s20, 10
      %s30 = sphi 0, %s32
      %s33 = sphi 0, %s30
      %s34 = sphi 0, %s33
      %s50 = sphi 0, %s34
      %s54 = sphi 0, %s54
      %s56 = sphi 0, %s54
      %s57 = sphi 0, %s56
      %s71 = sphi 0, %s57
      %s75 = sphi 0, %s75
      %s77 = sphi 0, %s75
      %s78 = sphi 0, %s77
      %s92 = sphi 0, %s78
      %s96 = sphi 0, %s96
      %s98 = sphi 0, %s96
      %s99 = sphi 0, %s98
      %s113 = sphi 0, %s99
      %s117 = sphi 0, %s117
      %s119 = sphi 0, %s117
      %s120 = sphi 0, %s119
      %s134 = sphi 0, %s120
      %s138 = sphi 0, %s138
      %s140 = sphi 0, %s138
      %s141 = sphi 0, %s140
      %s155 = sphi 0, %s141
      %s159 = sphi 0, %s159
      %s161 = sphi 0, %s159
      %s162 = sphi 0, %s161
      %s176 = sphi 0, %s162
      %s182 = sphi 0, %s184
      %s185 = sphi 0, %s182
      %s186 = sphi 0, %s185
      %s202 = sphi 0, %s186
    $region4: #{tpu_custom_call.1} parent=1 // loop_header_branch
      %23 = sbr.rel (%p21) target = $region8
    $region5: #{tpu_custom_call.1} parent=1 // loop_body
      %s25 = ssub.s32 %s20, 1
      %s26 = ssub.s32 %s20, 2
      %s27 = sadd.s32 %s20, 1
      %s28 = ssub.s32 %s20, %s27
      %p29 = scmp.eq.s32.totalorder %s28, 0
      %s31 = sadd.s32 %s30, 1
      %s32 = scalar_select %p29, %s30, %s31
      %p35 = pneg %p29
      %p36 = scmp.eq.s32.totalorder %s20, 7
      %p37 = por %p35, %p36
      %p38 = scmp.ne.s32.totalorder %s30, %s33
      %p39 = scmp.eq.s32.totalorder %s20, 0
      %p40 = por %p38, %p39
      %p41 = scmp.ne.s32.totalorder %s30, %s33
      %p42 = scmp.eq.s32.totalorder %s25, 7
      %p43 = por %p41, %p42
      %p44 = scmp.ne.s32.totalorder %s33, %s34
      %p45 = scmp.eq.s32.totalorder %s25, 0
      %p46 = por %p44, %p45
      %p47 = scmp.ne.s32.totalorder %s33, %s34
      %p48 = scmp.eq.s32.totalorder %s26, 7
      %p49 = por %p47, %p48
      %p51 = scmp.ne.s32.totalorder %s34, %s50
      %p52 = scmp.eq.s32.totalorder %s26, 0
      %p53 = por %p51, %p52
      %s55 = sadd.s32 %s54, 1
      %p58 = scmp.eq.s32.totalorder %s20, 7
      %p59 = scmp.ne.s32.totalorder %s54, %s56
      %p60 = scmp.eq.s32.totalorder %s20, 0
      %p61 = por %p59, %p60
      %p62 = scmp.ne.s32.totalorder %s54, %s56
      %p63 = scmp.eq.s32.totalorder %s25, 7
      %p64 = por %p62, %p63
      %p65 = scmp.ne.s32.totalorder %s56, %s57
      %p66 = scmp.eq.s32.totalorder %s25, 0
      %p67 = por %p65, %p66
      %p68 = scmp.ne.s32.totalorder %s56, %s57
      %p69 = scmp.eq.s32.totalorder %s26, 7
      %p70 = por %p68, %p69
      %p72 = scmp.ne.s32.totalorder %s57, %s71
      %p73 = scmp.eq.s32.totalorder %s26, 0
      %p74 = por %p72, %p73
      %s76 = sadd.s32 %s75, 1
      %p79 = scmp.eq.s32.totalorder %s20, 7
      %p80 = scmp.ne.s32.totalorder %s75, %s77
      %p81 = scmp.eq.s32.totalorder %s20, 0
      %p82 = por %p80, %p81
      %p83 = scmp.ne.s32.totalorder %s75, %s77
      %p84 = scmp.eq.s32.totalorder %s25, 7
      %p85 = por %p83, %p84
      %p86 = scmp.ne.s32.totalorder %s77, %s78
      %p87 = scmp.eq.s32.totalorder %s25, 0
      %p88 = por %p86, %p87
      %p89 = scmp.ne.s32.totalorder %s77, %s78
      %p90 = scmp.eq.s32.totalorder %s26, 7
      %p91 = por %p89, %p90
      %p93 = scmp.ne.s32.totalorder %s78, %s92
      %p94 = scmp.eq.s32.totalorder %s26, 0
      %p95 = por %p93, %p94
      %s97 = sadd.s32 %s96, 1
      %p100 = scmp.eq.s32.totalorder %s20, 7
      %p101 = scmp.ne.s32.totalorder %s96, %s98
      %p102 = scmp.eq.s32.totalorder %s20, 0
      %p103 = por %p101, %p102
      %p104 = scmp.ne.s32.totalorder %s96, %s98
      %p105 = scmp.eq.s32.totalorder %s25, 7
      %p106 = por %p104, %p105
      %p107 = scmp.ne.s32.totalorder %s98, %s99
      %p108 = scmp.eq.s32.totalorder %s25, 0
      %p109 = por %p107, %p108
      %p110 = scmp.ne.s32.totalorder %s98, %s99
      %p111 = scmp.eq.s32.totalorder %s26, 7
      %p112 = por %p110, %p111
      %p114 = scmp.ne.s32.totalorder %s99, %s113
      %p115 = scmp.eq.s32.totalorder %s26, 0
      %p116 = por %p114, %p115
      %s118 = sadd.s32 %s117, 1
      %p121 = scmp.eq.s32.totalorder %s20, 7
      %p122 = scmp.ne.s32.totalorder %s117, %s119
      %p123 = scmp.eq.s32.totalorder %s20, 0
      %p124 = por %p122, %p123
      %p125 = scmp.ne.s32.totalorder %s117, %s119
      %p126 = scmp.eq.s32.totalorder %s25, 7
      %p127 = por %p125, %p126
      %p128 = scmp.ne.s32.totalorder %s119, %s120
      %p129 = scmp.eq.s32.totalorder %s25, 0
      %p130 = por %p128, %p129
      %p131 = scmp.ne.s32.totalorder %s119, %s120
      %p132 = scmp.eq.s32.totalorder %s26, 7
      %p133 = por %p131, %p132
      %p135 = scmp.ne.s32.totalorder %s120, %s134
      %p136 = scmp.eq.s32.totalorder %s26, 0
      %p137 = por %p135, %p136
      %s139 = sadd.s32 %s138, 1
      %p142 = scmp.eq.s32.totalorder %s20, 7
      %p143 = scmp.ne.s32.totalorder %s138, %s140
      %p144 = scmp.eq.s32.totalorder %s20, 0
      %p145 = por %p143, %p144
      %p146 = scmp.ne.s32.totalorder %s138, %s140
      %p147 = scmp.eq.s32.totalorder %s25, 7
      %p148 = por %p146, %p147
      %p149 = scmp.ne.s32.totalorder %s140, %s141
      %p150 = scmp.eq.s32.totalorder %s25, 0
      %p151 = por %p149, %p150
      %p152 = scmp.ne.s32.totalorder %s140, %s141
      %p153 = scmp.eq.s32.totalorder %s26, 7
      %p154 = por %p152, %p153
      %p156 = scmp.ne.s32.totalorder %s141, %s155
      %p157 = scmp.eq.s32.totalorder %s26, 0
      %p158 = por %p156, %p157
      %s160 = sadd.s32 %s159, 1
      %p163 = scmp.eq.s32.totalorder %s20, 7
      %p164 = scmp.ne.s32.totalorder %s159, %s161
      %p165 = scmp.eq.s32.totalorder %s20, 0
      %p166 = por %p164, %p165
      %p167 = scmp.ne.s32.totalorder %s159, %s161
      %p168 = scmp.eq.s32.totalorder %s25, 7
      %p169 = por %p167, %p168
      %p170 = scmp.ne.s32.totalorder %s161, %s162
      %p171 = scmp.eq.s32.totalorder %s25, 0
      %p172 = por %p170, %p171
      %p173 = scmp.ne.s32.totalorder %s161, %s162
      %p174 = scmp.eq.s32.totalorder %s26, 7
      %p175 = por %p173, %p174
      %p177 = scmp.ne.s32.totalorder %s162, %s176
      %p178 = scmp.eq.s32.totalorder %s26, 0
      %p179 = por %p177, %p178
      %s180 = ssub.s32 %s20, %s27
      %p181 = scmp.eq.s32.totalorder %s180, 0
      %s183 = sadd.s32 %s182, 1
      %s184 = scalar_select %p181, %s182, %s183
      %p187 = pneg %p181
      %p188 = scmp.eq.s32.totalorder %s20, 7
      %p189 = por %p187, %p188
      %p190 = scmp.ne.s32.totalorder %s182, %s185
      %p191 = scmp.eq.s32.totalorder %s20, 0
      %p192 = por %p190, %p191
      %p193 = scmp.ne.s32.totalorder %s182, %s185
      %p194 = scmp.eq.s32.totalorder %s25, 7
      %p195 = por %p193, %p194
      %p196 = scmp.ne.s32.totalorder %s185, %s186
      %p197 = scmp.eq.s32.totalorder %s25, 0
      %p198 = por %p196, %p197
      %p199 = scmp.ne.s32.totalorder %s185, %s186
      %p200 = scmp.eq.s32.totalorder %s26, 7
      %p201 = por %p199, %p200
      %p203 = scmp.ne.s32.totalorder %s186, %s202
      %p204 = scmp.eq.s32.totalorder %s26, 0
      %p205 = por %p203, %p204
      %p206 = scmp.le.s32.totalorder 1, %s20
      %p207 = scmp.lt.s32.totalorder %s20, 9
      %p208 = pnand %p206, %p207
      %p209 = pneg %p208
      // Predicated region
      $region9: #{tpu_custom_call.1} parent=5 // pred_check
        _
      $region10: #{tpu_custom_call.1} parent=5 // pred_check_branch
        %211 = sbr.rel (%p208) target = $region12
      $region11: #{tpu_custom_call.1} parent=5 // pred_region
        %s212 = ssub.s32 %s20, 1
        // Predicated region
        $region13: #{tpu_custom_call.1} parent=11 // pred_check
          %p213 = pneg %p67
        $region14: #{tpu_custom_call.1} parent=11 // pred_check_branch
          %215 = sbr.rel (%p213) target = $region16
        $region15: #{tpu_custom_call.1} parent=11 // pred_region
          _
        $region16: #{tpu_custom_call.1} parent=11 // pred_fallthru
          _
        // Predicated region
        $region17: #{tpu_custom_call.1} parent=11 // pred_check
          %p216 = pneg %p88
        $region18: #{tpu_custom_call.1} parent=11 // pred_check_branch
          %218 = sbr.rel (%p216) target = $region20
        $region19: #{tpu_custom_call.1} parent=11 // pred_region
          %s220 = ssub.s32 2048, 2048
          %221 = vsyncadd [#allocation6], %s220
          %s222 = sshll.u32 [#allocation5], 4
          %s223 = int_to_ptr.vmem [resolvable:$true] %s222
          %228 = dma.hbm_to_vmem [thread:$0]  %s2, 2048, %s223, [#allocation6], 128, 128, 8
        $region20: #{tpu_custom_call.1} parent=11 // pred_fallthru
          _
        // Predicated region
        $region21: #{tpu_custom_call.1} parent=11 // pred_check
          %p229 = pneg %p109
        $region22: #{tpu_custom_call.1} parent=11 // pred_check_branch
          %231 = sbr.rel (%p229) target = $region24
        $region23: #{tpu_custom_call.1} parent=11 // pred_region
          _
        $region24: #{tpu_custom_call.1} parent=11 // pred_fallthru
          _
        // Predicated region
        $region25: #{tpu_custom_call.1} parent=11 // pred_check
          %p232 = pneg %p130
        $region26: #{tpu_custom_call.1} parent=11 // pred_check_branch
          %234 = sbr.rel (%p232) target = $region28
        $region27: #{tpu_custom_call.1} parent=11 // pred_region
          _
        $region28: #{tpu_custom_call.1} parent=11 // pred_fallthru
          _
        // Predicated region
        $region29: #{tpu_custom_call.1} parent=11 // pred_check
          %p235 = pneg %p151
        $region30: #{tpu_custom_call.1} parent=11 // pred_check_branch
          %237 = sbr.rel (%p235) target = $region32
        $region31: #{tpu_custom_call.1} parent=11 // pred_region
          _
        $region32: #{tpu_custom_call.1} parent=11 // pred_fallthru
          _
        // Predicated region
        $region33: #{tpu_custom_call.1} parent=11 // pred_check
          %p238 = pneg %p172
        $region34: #{tpu_custom_call.1} parent=11 // pred_check_branch
          %240 = sbr.rel (%p238) target = $region36
        $region35: #{tpu_custom_call.1} parent=11 // pred_region
          _
        $region36: #{tpu_custom_call.1} parent=11 // pred_fallthru
          _
      $region12: #{tpu_custom_call.1} parent=5 // pred_fallthru
        _
      %p241 = scmp.lt.s32.totalorder %s20, 8
      // Predicated region
      $region37: #{tpu_custom_call.1} parent=5 // pred_check
        %p242 = pneg %p241
      $region38: #{tpu_custom_call.1} parent=5 // pred_check_branch
        %244 = sbr.rel (%p242) target = $region40
      $region39: #{tpu_custom_call.1} parent=5 // pred_region
        // Predicated region
        $region41: #{tpu_custom_call.1} parent=39 // pred_check
          %p245 = pneg %p40
        $region42: #{tpu_custom_call.1} parent=39 // pred_check_branch
          %247 = sbr.rel (%p245) target = $region44
        $region43: #{tpu_custom_call.1} parent=39 // pred_region
          %s248 = sand.u32 %s30, 1
          %s249 = scalar_lea.sflag [#allocation3], %s248
          %s250 = sand.u32 %s30, 1
          %s251 = smul.addr %s250, 4
          %s252 = scalar_lea.vmem [#allocation2], %s251
          %s253 = smul.u32 2, %s20
          %s255 = ssub.s32 64, 64
          %256 = vsyncadd %s249, %s255
          %s257 = smul.addr %s253, 32
          %s258 = scalar_lea.hbm %s0, %s257
          %s259 = sshll.u32 %s252, 4
          %s260 = int_to_ptr.vmem [resolvable:$true] %s259
          %265 = dma.hbm_to_vmem [thread:$0]  %s258, 64, %s260, %s249, 32, 32, 2
        $region44: #{tpu_custom_call.1} parent=39 // pred_fallthru
          _
      $region40: #{tpu_custom_call.1} parent=5 // pred_fallthru
        _
      %p266 = scmp.le.s32.totalorder 1, %s20
      %p267 = scmp.lt.s32.totalorder %s20, 9
      %p268 = pnand %p266, %p267
      %p269 = pneg %p268
      // Predicated region
      $region45: #{tpu_custom_call.1} parent=5 // pred_check
        _
      $region46: #{tpu_custom_call.1} parent=5 // pred_check_branch
        %271 = sbr.rel (%p268) target = $region48
      $region47: #{tpu_custom_call.1} parent=5 // pred_region
        %s272 = ssub.s32 %s20, 1
        %s273 = sand.u32 %s33, 1
        %s274 = scalar_lea.sflag [#allocation3], %s273
        %s275 = sand.u32 %s33, 1
        %s276 = smul.addr %s275, 4
        %s277 = scalar_lea.vmem [#allocation2], %s276
        // Predicated region
        $region49: #{tpu_custom_call.1} parent=47 // pred_check
          %p278 = pneg %p46
        $region50: #{tpu_custom_call.1} parent=47 // pred_check_branch
          %280 = sbr.rel (%p278) target = $region52
        $region51: #{tpu_custom_call.1} parent=47 // pred_region
          %281 = dma.done %s274, 64
        $region52: #{tpu_custom_call.1} parent=47 // pred_fallthru
          _
        // Predicated region
        $region53: #{tpu_custom_call.1} parent=47 // pred_check
          %p282 = pneg %p88
        $region54: #{tpu_custom_call.1} parent=47 // pred_check_branch
          %284 = sbr.rel (%p282) target = $region56
        $region55: #{tpu_custom_call.1} parent=47 // pred_region
          %285 = dma.done [#allocation6], 2048
        $region56: #{tpu_custom_call.1} parent=47 // pred_fallthru
          _
        %s286 = sand.u32 %s33, 1
        %s287 = scalar_lea.sflag [#allocation3], %s286
        %s288 = sand.u32 %s33, 1
        %s289 = smul.addr %s288, 4
        %s290 = scalar_lea.vmem [#allocation2], %s289
        %p291 = pneg %p46
        %p292 = pneg %p43
        %p293 = pneg %p67
        %p294 = pneg %p64
        %p295 = pneg %p88
        %p296 = pneg %p85
        %p297 = pneg %p109
        %p298 = pneg %p106
        %p299 = pneg %p130
        %p300 = pneg %p127
        %p301 = pneg %p151
        %p302 = pneg %p148
        %p303 = pneg %p172
        %p304 = pneg %p169
        %p305 = pneg %p198
        %p306 = pneg %p195
        %s307 = sand.u32 %s185, 1
        %s308 = scalar_lea.sflag [#allocation4], %s307
        %s309 = sand.u32 %s185, 1
        %s310 = smul.addr %s309, 8
        %s311 = scalar_lea.vmem [#allocation7], %s310
        %s312 = smul.u32 2, %s25
        %s313 = smul.u32 2, %s25
        %v314 = vld [vmem:[%s1] sm:$0xff]
        %v315 = vld [vmem:[%s1 + $0x8] sm:$0xff]
        %v316 = vld [vmem:[%s1 + $0x10] sm:$0xff]
        %v317 = vld [vmem:[%s1 + $0x18] sm:$0xff]
        %v318 = vld [vmem:[%s1 + $0x20] sm:$0xff]
        %v319 = vld [vmem:[%s1 + $0x28] sm:$0xff]
        %v320 = vld [vmem:[%s1 + $0x30] sm:$0xff]
        %v321 = vld [vmem:[%s1 + $0x38] sm:$0xff]
        %v322 = vld [vmem:[%s1 + $0x40] sm:$0xff]
        %v323 = vld [vmem:[%s1 + $0x48] sm:$0xff]
        %v324 = vld [vmem:[%s1 + $0x50] sm:$0xff]
        %v325 = vld [vmem:[%s1 + $0x58] sm:$0xff]
        %v326 = vld [vmem:[%s1 + $0x60] sm:$0xff]
        %v327 = vld [vmem:[%s1 + $0x68] sm:$0xff]
        %v328 = vld [vmem:[%s1 + $0x70] sm:$0xff]
        %v329 = vld [vmem:[%s1 + $0x78] sm:$0xff]
        %v330 = vld [vmem:[#allocation5] sm:$0xff]
        %v331 = vld [vmem:[#allocation5 + $0x8] sm:$0xff]
        %v332 = vld [vmem:[#allocation5 + $0x10] sm:$0xff]
        %v333 = vld [vmem:[#allocation5 + $0x18] sm:$0xff]
        %v334 = vld [vmem:[#allocation5 + $0x20] sm:$0xff]
        %v335 = vld [vmem:[#allocation5 + $0x28] sm:$0xff]
        %v336 = vld [vmem:[#allocation5 + $0x30] sm:$0xff]
        %v337 = vld [vmem:[#allocation5 + $0x38] sm:$0xff]
        %v338 = vld [vmem:[#allocation5 + $0x40] sm:$0xff]
        %v339 = vld [vmem:[#allocation5 + $0x48] sm:$0xff]
        %v340 = vld [vmem:[#allocation5 + $0x50] sm:$0xff]
        %v341 = vld [vmem:[#allocation5 + $0x58] sm:$0xff]
        %v342 = vld [vmem:[#allocation5 + $0x60] sm:$0xff]
        %v343 = vld [vmem:[#allocation5 + $0x68] sm:$0xff]
        %v344 = vld [vmem:[#allocation5 + $0x70] sm:$0xff]
        %v345 = vld [vmem:[#allocation5 + $0x78] sm:$0xff]
        %v346 = vld [vmem:[%s3] sm:$0xff]
        %v347 = vld [vmem:[%s3 + $0x8] sm:$0xff]
        %v348 = vld [vmem:[%s3 + $0x10] sm:$0xff]
        %v349 = vld [vmem:[%s3 + $0x18] sm:$0xff]
        %v350 = vld [vmem:[%s3 + $0x20] sm:$0xff]
        %v351 = vld [vmem:[%s3 + $0x28] sm:$0xff]
        %v352 = vld [vmem:[%s3 + $0x30] sm:$0xff]
        %v353 = vld [vmem:[%s3 + $0x38] sm:$0xff]
        %v354 = vld [vmem:[%s3 + $0x40] sm:$0xff]
        %v355 = vld [vmem:[%s3 + $0x48] sm:$0xff]
        %v356 = vld [vmem:[%s3 + $0x50] sm:$0xff]
        %v357 = vld [vmem:[%s3 + $0x58] sm:$0xff]
        %v358 = vld [vmem:[%s3 + $0x60] sm:$0xff]
        %v359 = vld [vmem:[%s3 + $0x68] sm:$0xff]
        %v360 = vld [vmem:[%s3 + $0x70] sm:$0xff]
        %v361 = vld [vmem:[%s3 + $0x78] sm:$0xff]
        %v362 = vld [vmem:[%s4] sm:$0xff]
        %v363 = vld [vmem:[%s5] sm:$0xff]
        %v364 = vld [vmem:[%s6] sm:$0x1]
        %v366 = vlaneseq
        %v367 = vshrl.u32 %v366, 7
        %v368 = vsub.s32 0, %v367
        %v369 = vrot.slane %v364, %v368
        %v371 = vld [vmem:[%s277] sm:$0x1]
        %v372 = vld [vmem:[%s277 + $0x2] sm:$0x1]
        %v375 = vrot.slane %v372, 7
        %vm376 = vcmask 1041409
        %v377 = vsel %vm376, %v375, %v371
        %379 = vmatprep.subr.mxu0 0.0
        %380 = vmatpush1.msra.mxu0 %v329
        %381 = vmatprep.subr.mxu0 0.0
        %382 = vmatpush1.msra.mxu0 %v328
        %383 = vmatprep.subr.mxu0 0.0
        %384 = vmatpush1.msra.mxu0 %v327
        %385 = vmatprep.subr.mxu0 0.0
        %386 = vmatpush1.msra.mxu0 %v326
        %387 = vmatprep.subr.mxu0 0.0
        %388 = vmatpush1.msra.mxu0 %v325
        %389 = vmatprep.subr.mxu0 0.0
        %390 = vmatpush1.msra.mxu0 %v324
        %391 = vmatprep.subr.mxu0 0.0
        %392 = vmatpush1.msra.mxu0 %v323
        %393 = vmatprep.subr.mxu0 0.0
        %394 = vmatpush1.msra.mxu0 %v322
        %395 = vmatprep.subr.mxu0 0.0
        %396 = vmatpush1.msra.mxu0 %v321
        %397 = vmatprep.subr.mxu0 0.0
        %398 = vmatpush1.msra.mxu0 %v320
        %399 = vmatprep.subr.mxu0 0.0
        %400 = vmatpush1.msra.mxu0 %v319
        %401 = vmatprep.subr.mxu0 0.0
        %402 = vmatpush1.msra.mxu0 %v318
        %403 = vmatprep.subr.mxu0 0.0
        %404 = vmatpush1.msra.mxu0 %v317
        %405 = vmatprep.subr.mxu0 0.0
        %406 = vmatpush1.msra.mxu0 %v316
        %407 = vmatprep.subr.mxu0 0.0
        %408 = vmatpush1.msra.mxu0 %v315
        %409 = vmatprep.subr.mxu0 0.0
        %410 = vmatpush1.msra.mxu0 %v314
        %411 = vmatprep.subr.mxu0 0.0
        %412 = vmatpush2.msra.mxu0 0.0
        %413 = vmatprep.subr.mxu0 0.0
        %414 = vmatpush2.msra.mxu0 0.0
        %415 = vmatprep.subr.mxu0 0.0
        %416 = vmatpush2.msra.mxu0 0.0
        %417 = vmatprep.subr.mxu0 0.0
        %418 = vmatpush2.msra.mxu0 0.0
        %419 = vmatprep.subr.mxu0 0.0
        %420 = vmatpush2.msra.mxu0 0.0
        %421 = vmatprep.subr.mxu0 0.0
        %422 = vmatpush2.msra.mxu0 0.0
        %423 = vmatprep.subr.mxu0 0.0
        %424 = vmatpush2.msra.mxu0 0.0
        %425 = vmatprep.subr.mxu0 0.0
        %426 = vmatpush2.msra.mxu0 0.0
        %427 = vmatprep.subr.mxu0 0.0
        %428 = vmatpush2.msra.mxu0 0.0
        %429 = vmatprep.subr.mxu0 0.0
        %430 = vmatpush2.msra.mxu0 0.0
        %431 = vmatprep.subr.mxu0 0.0
        %432 = vmatpush2.msra.mxu0 0.0
        %433 = vmatprep.subr.mxu0 0.0
        %434 = vmatpush2.msra.mxu0 0.0
        %435 = vmatprep.subr.mxu0 0.0
        %436 = vmatpush2.msra.mxu0 0.0
        %437 = vmatprep.subr.mxu0 0.0
        %438 = vmatpush2.msra.mxu0 0.0
        %439 = vmatprep.subr.mxu0 0.0
        %440 = vmatpush2.msra.mxu0 0.0
        %441 = vmatprep.subr.mxu0 0.0
        %442 = vmatpush2.msra.mxu0 0.0
        %443 = vmatprep.mubr.f32.mxu0 0.0
        %444 = vmatmul.mubr.f32.gmra.mxu0 %v377
        %v445 = vpop.f32.mrf.mxu0
        %v446 = vadd.f32 0.0, %v445
        %v447 = vpop.f32.mrf.mxu0
        %448 = vdwg.mxu0
        %449 = vmatprep.subr.mxu0 0.0
        %v450 = vand.u32 %v361, 4294901760
        %451 = vmatpush1.msra.mxu0 %v450
        %452 = vmatprep.subr.mxu0 0.0
        %v453 = vand.u32 %v360, 4294901760
        %454 = vmatpush1.msra.mxu0 %v453
        %455 = vmatprep.subr.mxu0 0.0
        %v456 = vand.u32 %v359, 4294901760
        %457 = vmatpush1.msra.mxu0 %v456
        %458 = vmatprep.subr.mxu0 0.0
        %v459 = vand.u32 %v358, 4294901760
        %460 = vmatpush1.msra.mxu0 %v459
        %461 = vmatprep.subr.mxu0 0.0
        %v462 = vand.u32 %v357, 4294901760
        %463 = vmatpush1.msra.mxu0 %v462
        %464 = vmatprep.subr.mxu0 0.0
        %v465 = vand.u32 %v356, 4294901760
        %466 = vmatpush1.msra.mxu0 %v465
        %467 = vmatprep.subr.mxu0 0.0
        %v468 = vand.u32 %v355, 4294901760
        %469 = vmatpush1.msra.mxu0 %v468
        %470 = vmatprep.subr.mxu0 0.0
        %v471 = vand.u32 %v354, 4294901760
        %472 = vmatpush1.msra.mxu0 %v471
        %473 = vmatprep.subr.mxu0 0.0
        %v474 = vand.u32 %v353, 4294901760
        %475 = vmatpush1.msra.mxu0 %v474
        %476 = vmatprep.subr.mxu0 0.0
        %v477 = vand.u32 %v352, 4294901760
        %478 = vmatpush1.msra.mxu0 %v477
        %479 = vmatprep.subr.mxu0 0.0
        %v480 = vand.u32 %v351, 4294901760
        %481 = vmatpush1.msra.mxu0 %v480
        %482 = vmatprep.subr.mxu0 0.0
        %v483 = vand.u32 %v350, 4294901760
        %484 = vmatpush1.msra.mxu0 %v483
        %485 = vmatprep.subr.mxu0 0.0
        %v486 = vand.u32 %v349, 4294901760
        %487 = vmatpush1.msra.mxu0 %v486
        %488 = vmatprep.subr.mxu0 0.0
        %v489 = vand.u32 %v348, 4294901760
        %490 = vmatpush1.msra.mxu0 %v489
        %491 = vmatprep.subr.mxu0 0.0
        %v492 = vand.u32 %v347, 4294901760
        %493 = vmatpush1.msra.mxu0 %v492
        %494 = vmatprep.subr.mxu0 0.0
        %v495 = vand.u32 %v346, 4294901760
        %496 = vmatpush1.msra.mxu0 %v495
        %497 = vmatprep.subr.mxu0 0.0
        %498 = vmatpush2.msra.mxu0 0.0
        %499 = vmatprep.subr.mxu0 0.0
        %500 = vmatpush2.msra.mxu0 0.0
        %501 = vmatprep.subr.mxu0 0.0
        %502 = vmatpush2.msra.mxu0 0.0
        %503 = vmatprep.subr.mxu0 0.0
        %504 = vmatpush2.msra.mxu0 0.0
        %505 = vmatprep.subr.mxu0 0.0
        %506 = vmatpush2.msra.mxu0 0.0
        %507 = vmatprep.subr.mxu0 0.0
        %508 = vmatpush2.msra.mxu0 0.0
        %509 = vmatprep.subr.mxu0 0.0
        %510 = vmatpush2.msra.mxu0 0.0
        %511 = vmatprep.subr.mxu0 0.0
        %512 = vmatpush2.msra.mxu0 0.0
        %513 = vmatprep.subr.mxu0 0.0
        %514 = vmatpush2.msra.mxu0 0.0
        %515 = vmatprep.subr.mxu0 0.0
        %516 = vmatpush2.msra.mxu0 0.0
        %517 = vmatprep.subr.mxu0 0.0
        %518 = vmatpush2.msra.mxu0 0.0
        %519 = vmatprep.subr.mxu0 0.0
        %520 = vmatpush2.msra.mxu0 0.0
        %521 = vmatprep.subr.mxu0 0.0
        %522 = vmatpush2.msra.mxu0 0.0
        %523 = vmatprep.subr.mxu0 0.0
        %524 = vmatpush2.msra.mxu0 0.0
        %525 = vmatprep.subr.mxu0 0.0
        %526 = vmatpush2.msra.mxu0 0.0
        %527 = vmatprep.subr.mxu0 0.0
        %528 = vmatpush2.msra.mxu0 0.0
        %529 = vmatprep.mubr.f32.mxu0 0.0
        %v530 = vand.u32 %v446, 4294901760
        %v531 = vsub.f32 %v446, %v530
        %v532 = vand.u32 %v531, 4294901760
        %v533 = vsub.f32 %v531, %v532
        %v534 = vand.u32 %v533, 4294901760
        %535 = vmatmul.mubr.f32.gmra.mxu0 %v534
        %v536 = vpop.f32.mrf.mxu0
        %v537 = vadd.f32 0.0, %v536
        %v538 = vpop.f32.mrf.mxu0
        %539 = vdwg.mxu0
        %540 = vmatprep.subr.mxu0 0.0
        %v541 = vand.u32 %v361, 4294901760
        %v542 = vsub.f32 %v361, %v541
        %v543 = vand.u32 %v542, 4294901760
        %v544 = vsub.f32 %v542, %v543
        %v545 = vand.u32 %v544, 4294901760
        %546 = vmatpush1.msra.mxu0 %v545
        %547 = vmatprep.subr.mxu0 0.0
        %v548 = vand.u32 %v360, 4294901760
        %v549 = vsub.f32 %v360, %v548
        %v550 = vand.u32 %v549, 4294901760
        %v551 = vsub.f32 %v549, %v550
        %v552 = vand.u32 %v551, 4294901760
        %553 = vmatpush1.msra.mxu0 %v552
        %554 = vmatprep.subr.mxu0 0.0
        %v555 = vand.u32 %v359, 4294901760
        %v556 = vsub.f32 %v359, %v555
        %v557 = vand.u32 %v556, 4294901760
        %v558 = vsub.f32 %v556, %v557
        %v559 = vand.u32 %v558, 4294901760
        %560 = vmatpush1.msra.mxu0 %v559
        %561 = vmatprep.subr.mxu0 0.0
        %v562 = vand.u32 %v358, 4294901760
        %v563 = vsub.f32 %v358, %v562
        %v564 = vand.u32 %v563, 4294901760
        %v565 = vsub.f32 %v563, %v564
        %v566 = vand.u32 %v565, 4294901760
        %567 = vmatpush1.msra.mxu0 %v566
        %568 = vmatprep.subr.mxu0 0.0
        %v569 = vand.u32 %v357, 4294901760
        %v570 = vsub.f32 %v357, %v569
        %v571 = vand.u32 %v570, 4294901760
        %v572 = vsub.f32 %v570, %v571
        %v573 = vand.u32 %v572, 4294901760
        %574 = vmatpush1.msra.mxu0 %v573
        %575 = vmatprep.subr.mxu0 0.0
        %v576 = vand.u32 %v356, 4294901760
        %v577 = vsub.f32 %v356, %v576
        %v578 = vand.u32 %v577, 4294901760
        %v579 = vsub.f32 %v577, %v578
        %v580 = vand.u32 %v579, 4294901760
        %581 = vmatpush1.msra.mxu0 %v580
        %582 = vmatprep.subr.mxu0 0.0
        %v583 = vand.u32 %v355, 4294901760
        %v584 = vsub.f32 %v355, %v583
        %v585 = vand.u32 %v584, 4294901760
        %v586 = vsub.f32 %v584, %v585
        %v587 = vand.u32 %v586, 4294901760
        %588 = vmatpush1.msra.mxu0 %v587
        %589 = vmatprep.subr.mxu0 0.0
        %v590 = vand.u32 %v354, 4294901760
        %v591 = vsub.f32 %v354, %v590
        %v592 = vand.u32 %v591, 4294901760
        %v593 = vsub.f32 %v591, %v592
        %v594 = vand.u32 %v593, 4294901760
        %595 = vmatpush1.msra.mxu0 %v594
        %596 = vmatprep.subr.mxu0 0.0
        %v597 = vand.u32 %v353, 4294901760
        %v598 = vsub.f32 %v353, %v597
        %v599 = vand.u32 %v598, 4294901760
        %v600 = vsub.f32 %v598, %v599
        %v601 = vand.u32 %v600, 4294901760
        %602 = vmatpush1.msra.mxu0 %v601
        %603 = vmatprep.subr.mxu0 0.0
        %v604 = vand.u32 %v352, 4294901760
        %v605 = vsub.f32 %v352, %v604
        %v606 = vand.u32 %v605, 4294901760
        %v607 = vsub.f32 %v605, %v606
        %v608 = vand.u32 %v607, 4294901760
        %609 = vmatpush1.msra.mxu0 %v608
        %610 = vmatprep.subr.mxu0 0.0
        %v611 = vand.u32 %v351, 4294901760
        %v612 = vsub.f32 %v351, %v611
        %v613 = vand.u32 %v612, 4294901760
        %v614 = vsub.f32 %v612, %v613
        %v615 = vand.u32 %v614, 4294901760
        %616 = vmatpush1.msra.mxu0 %v615
        %617 = vmatprep.subr.mxu0 0.0
        %v618 = vand.u32 %v350, 4294901760
        %v619 = vsub.f32 %v350, %v618
        %v620 = vand.u32 %v619, 4294901760
        %v621 = vsub.f32 %v619, %v620
        %v622 = vand.u32 %v621, 4294901760
        %623 = vmatpush1.msra.mxu0 %v622
        %624 = vmatprep.subr.mxu0 0.0
        %v625 = vand.u32 %v349, 4294901760
        %v626 = vsub.f32 %v349, %v625
        %v627 = vand.u32 %v626, 4294901760
        %v628 = vsub.f32 %v626, %v627
        %v629 = vand.u32 %v628, 4294901760
        %630 = vmatpush1.msra.mxu0 %v629
        %631 = vmatprep.subr.mxu0 0.0
        %v632 = vand.u32 %v348, 4294901760
        %v633 = vsub.f32 %v348, %v632
        %v634 = vand.u32 %v633, 4294901760
        %v635 = vsub.f32 %v633, %v634
        %v636 = vand.u32 %v635, 4294901760
        %637 = vmatpush1.msra.mxu0 %v636
        %638 = vmatprep.subr.mxu0 0.0
        %v639 = vand.u32 %v347, 4294901760
        %v640 = vsub.f32 %v347, %v639
        %v641 = vand.u32 %v640, 4294901760
        %v642 = vsub.f32 %v640, %v641
        %v643 = vand.u32 %v642, 4294901760
        %644 = vmatpush1.msra.mxu0 %v643
        %645 = vmatprep.subr.mxu0 0.0
        %v646 = vand.u32 %v346, 4294901760
        %v647 = vsub.f32 %v346, %v646
        %v648 = vand.u32 %v647, 4294901760
        %v649 = vsub.f32 %v647, %v648
        %v650 = vand.u32 %v649, 4294901760
        %651 = vmatpush1.msra.mxu0 %v650
        %652 = vmatprep.subr.mxu0 0.0
        %653 = vmatpush2.msra.mxu0 0.0
        %654 = vmatprep.subr.mxu0 0.0
        %655 = vmatpush2.msra.mxu0 0.0
        %656 = vmatprep.subr.mxu0 0.0
        %657 = vmatpush2.msra.mxu0 0.0
        %658 = vmatprep.subr.mxu0 0.0
        %659 = vmatpush2.msra.mxu0 0.0
        %660 = vmatprep.subr.mxu0 0.0
        %661 = vmatpush2.msra.mxu0 0.0
        %662 = vmatprep.subr.mxu0 0.0
        %663 = vmatpush2.msra.mxu0 0.0
        %664 = vmatprep.subr.mxu0 0.0
        %665 = vmatpush2.msra.mxu0 0.0
        %666 = vmatprep.subr.mxu0 0.0
        %667 = vmatpush2.msra.mxu0 0.0
        %668 = vmatprep.subr.mxu0 0.0
        %669 = vmatpush2.msra.mxu0 0.0
        %670 = vmatprep.subr.mxu0 0.0
        %671 = vmatpush2.msra.mxu0 0.0
        %672 = vmatprep.subr.mxu0 0.0
        %673 = vmatpush2.msra.mxu0 0.0
        %674 = vmatprep.subr.mxu0 0.0
        %675 = vmatpush2.msra.mxu0 0.0
        %676 = vmatprep.subr.mxu0 0.0
        %677 = vmatpush2.msra.mxu0 0.0
        %678 = vmatprep.subr.mxu0 0.0
        %679 = vmatpush2.msra.mxu0 0.0
        %680 = vmatprep.subr.mxu0 0.0
        %681 = vmatpush2.msra.mxu0 0.0
        %682 = vmatprep.subr.mxu0 0.0
        %683 = vmatpush2.msra.mxu0 0.0
        %684 = vmatprep.mubr.f32.mxu0 0.0
        %v685 = vand.u32 %v446, 4294901760
        %686 = vmatmul.mubr.f32.gmra.mxu0 %v685
        %v687 = vpop.f32.mrf.mxu0
        %v688 = vadd.f32 %v537, %v687
        %v689 = vpop.f32.mrf.mxu0
        %690 = vdwg.mxu0
        %691 = vmatprep.subr.mxu0 0.0
        %v692 = vand.u32 %v361, 4294901760
        %v693 = vsub.f32 %v361, %v692
        %694 = vmatpush1.msra.mxu0 %v693
        %695 = vmatprep.subr.mxu0 0.0
        %v696 = vand.u32 %v360, 4294901760
        %v697 = vsub.f32 %v360, %v696
        %698 = vmatpush1.msra.mxu0 %v697
        %699 = vmatprep.subr.mxu0 0.0
        %v700 = vand.u32 %v359, 4294901760
        %v701 = vsub.f32 %v359, %v700
        %702 = vmatpush1.msra.mxu0 %v701
        %703 = vmatprep.subr.mxu0 0.0
        %v704 = vand.u32 %v358, 4294901760
        %v705 = vsub.f32 %v358, %v704
        %706 = vmatpush1.msra.mxu0 %v705
        %707 = vmatprep.subr.mxu0 0.0
        %v708 = vand.u32 %v357, 4294901760
        %v709 = vsub.f32 %v357, %v708
        %710 = vmatpush1.msra.mxu0 %v709
        %711 = vmatprep.subr.mxu0 0.0
        %v712 = vand.u32 %v356, 4294901760
        %v713 = vsub.f32 %v356, %v712
        %714 = vmatpush1.msra.mxu0 %v713
        %715 = vmatprep.subr.mxu0 0.0
        %v716 = vand.u32 %v355, 4294901760
        %v717 = vsub.f32 %v355, %v716
        %718 = vmatpush1.msra.mxu0 %v717
        %719 = vmatprep.subr.mxu0 0.0
        %v720 = vand.u32 %v354, 4294901760
        %v721 = vsub.f32 %v354, %v720
        %722 = vmatpush1.msra.mxu0 %v721
        %723 = vmatprep.subr.mxu0 0.0
        %v724 = vand.u32 %v353, 4294901760
        %v725 = vsub.f32 %v353, %v724
        %726 = vmatpush1.msra.mxu0 %v725
        %727 = vmatprep.subr.mxu0 0.0
        %v728 = vand.u32 %v352, 4294901760
        %v729 = vsub.f32 %v352, %v728
        %730 = vmatpush1.msra.mxu0 %v729
        %731 = vmatprep.subr.mxu0 0.0
        %v732 = vand.u32 %v351, 4294901760
        %v733 = vsub.f32 %v351, %v732
        %734 = vmatpush1.msra.mxu0 %v733
        %735 = vmatprep.subr.mxu0 0.0
        %v736 = vand.u32 %v350, 4294901760
        %v737 = vsub.f32 %v350, %v736
        %738 = vmatpush1.msra.mxu0 %v737
        %739 = vmatprep.subr.mxu0 0.0
        %v740 = vand.u32 %v349, 4294901760
        %v741 = vsub.f32 %v349, %v740
        %742 = vmatpush1.msra.mxu0 %v741
        %743 = vmatprep.subr.mxu0 0.0
        %v744 = vand.u32 %v348, 4294901760
        %v745 = vsub.f32 %v348, %v744
        %746 = vmatpush1.msra.mxu0 %v745
        %747 = vmatprep.subr.mxu0 0.0
        %v748 = vand.u32 %v347, 4294901760
        %v749 = vsub.f32 %v347, %v748
        %750 = vmatpush1.msra.mxu0 %v749
        %751 = vmatprep.subr.mxu0 0.0
        %v752 = vand.u32 %v346, 4294901760
        %v753 = vsub.f32 %v346, %v752
        %754 = vmatpush1.msra.mxu0 %v753
        %755 = vmatprep.subr.mxu0 0.0
        %756 = vmatpush2.msra.mxu0 0.0
        %757 = vmatprep.subr.mxu0 0.0
        %758 = vmatpush2.msra.mxu0 0.0
        %759 = vmatprep.subr.mxu0 0.0
        %760 = vmatpush2.msra.mxu0 0.0
        %761 = vmatprep.subr.mxu0 0.0
        %762 = vmatpush2.msra.mxu0 0.0
        %763 = vmatprep.subr.mxu0 0.0
        %764 = vmatpush2.msra.mxu0 0.0
        %765 = vmatprep.subr.mxu0 0.0
        %766 = vmatpush2.msra.mxu0 0.0
        %767 = vmatprep.subr.mxu0 0.0
        %768 = vmatpush2.msra.mxu0 0.0
        %769 = vmatprep.subr.mxu0 0.0
        %770 = vmatpush2.msra.mxu0 0.0
        %771 = vmatprep.subr.mxu0 0.0
        %772 = vmatpush2.msra.mxu0 0.0
        %773 = vmatprep.subr.mxu0 0.0
        %774 = vmatpush2.msra.mxu0 0.0
        %775 = vmatprep.subr.mxu0 0.0
        %776 = vmatpush2.msra.mxu0 0.0
        %777 = vmatprep.subr.mxu0 0.0
        %778 = vmatpush2.msra.mxu0 0.0
        %779 = vmatprep.subr.mxu0 0.0
        %780 = vmatpush2.msra.mxu0 0.0
        %781 = vmatprep.subr.mxu0 0.0
        %782 = vmatpush2.msra.mxu0 0.0
        %783 = vmatprep.subr.mxu0 0.0
        %784 = vmatpush2.msra.mxu0 0.0
        %785 = vmatprep.subr.mxu0 0.0
        %786 = vmatpush2.msra.mxu0 0.0
        %787 = vmatprep.mubr.f32.mxu0 0.0
        %v788 = vand.u32 %v446, 4294901760
        %v789 = vsub.f32 %v446, %v788
        %790 = vmatmul.mubr.f32.gmra.mxu0 %v789
        %v791 = vpop.f32.mrf.mxu0
        %v792 = vadd.f32 %v688, %v791
        %v793 = vpop.f32.mrf.mxu0
        %794 = vdwg.mxu0
        %795 = vmatprep.subr.mxu0 0.0
        %v796 = vand.u32 %v361, 4294901760
        %797 = vmatpush1.msra.mxu0 %v796
        %798 = vmatprep.subr.mxu0 0.0
        %v799 = vand.u32 %v360, 4294901760
        %800 = vmatpush1.msra.mxu0 %v799
        %801 = vmatprep.subr.mxu0 0.0
        %v802 = vand.u32 %v359, 4294901760
        %803 = vmatpush1.msra.mxu0 %v802
        %804 = vmatprep.subr.mxu0 0.0
        %v805 = vand.u32 %v358, 4294901760
        %806 = vmatpush1.msra.mxu0 %v805
        %807 = vmatprep.subr.mxu0 0.0
        %v808 = vand.u32 %v357, 4294901760
        %809 = vmatpush1.msra.mxu0 %v808
        %810 = vmatprep.subr.mxu0 0.0
        %v811 = vand.u32 %v356, 4294901760
        %812 = vmatpush1.msra.mxu0 %v811
        %813 = vmatprep.subr.mxu0 0.0
        %v814 = vand.u32 %v355, 4294901760
        %815 = vmatpush1.msra.mxu0 %v814
        %816 = vmatprep.subr.mxu0 0.0
        %v817 = vand.u32 %v354, 4294901760
        %818 = vmatpush1.msra.mxu0 %v817
        %819 = vmatprep.subr.mxu0 0.0
        %v820 = vand.u32 %v353, 4294901760
        %821 = vmatpush1.msra.mxu0 %v820
        %822 = vmatprep.subr.mxu0 0.0
        %v823 = vand.u32 %v352, 4294901760
        %824 = vmatpush1.msra.mxu0 %v823
        %825 = vmatprep.subr.mxu0 0.0
        %v826 = vand.u32 %v351, 4294901760
        %827 = vmatpush1.msra.mxu0 %v826
        %828 = vmatprep.subr.mxu0 0.0
        %v829 = vand.u32 %v350, 4294901760
        %830 = vmatpush1.msra.mxu0 %v829
        %831 = vmatprep.subr.mxu0 0.0
        %v832 = vand.u32 %v349, 4294901760
        %833 = vmatpush1.msra.mxu0 %v832
        %834 = vmatprep.subr.mxu0 0.0
        %v835 = vand.u32 %v348, 4294901760
        %836 = vmatpush1.msra.mxu0 %v835
        %837 = vmatprep.subr.mxu0 0.0
        %v838 = vand.u32 %v347, 4294901760
        %839 = vmatpush1.msra.mxu0 %v838
        %840 = vmatprep.subr.mxu0 0.0
        %v841 = vand.u32 %v346, 4294901760
        %842 = vmatpush1.msra.mxu0 %v841
        %843 = vmatprep.subr.mxu0 0.0
        %844 = vmatpush2.msra.mxu0 0.0
        %845 = vmatprep.subr.mxu0 0.0
        %846 = vmatpush2.msra.mxu0 0.0
        %847 = vmatprep.subr.mxu0 0.0
        %848 = vmatpush2.msra.mxu0 0.0
        %849 = vmatprep.subr.mxu0 0.0
        %850 = vmatpush2.msra.mxu0 0.0
        %851 = vmatprep.subr.mxu0 0.0
        %852 = vmatpush2.msra.mxu0 0.0
        %853 = vmatprep.subr.mxu0 0.0
        %854 = vmatpush2.msra.mxu0 0.0
        %855 = vmatprep.subr.mxu0 0.0
        %856 = vmatpush2.msra.mxu0 0.0
        %857 = vmatprep.subr.mxu0 0.0
        %858 = vmatpush2.msra.mxu0 0.0
        %859 = vmatprep.subr.mxu0 0.0
        %860 = vmatpush2.msra.mxu0 0.0
        %861 = vmatprep.subr.mxu0 0.0
        %862 = vmatpush2.msra.mxu0 0.0
        %863 = vmatprep.subr.mxu0 0.0
        %864 = vmatpush2.msra.mxu0 0.0
        %865 = vmatprep.subr.mxu0 0.0
        %866 = vmatpush2.msra.mxu0 0.0
        %867 = vmatprep.subr.mxu0 0.0
        %868 = vmatpush2.msra.mxu0 0.0
        %869 = vmatprep.subr.mxu0 0.0
        %870 = vmatpush2.msra.mxu0 0.0
        %871 = vmatprep.subr.mxu0 0.0
        %872 = vmatpush2.msra.mxu0 0.0
        %873 = vmatprep.subr.mxu0 0.0
        %874 = vmatpush2.msra.mxu0 0.0
        %875 = vmatprep.mubr.f32.mxu0 0.0
        %v876 = vand.u32 %v446, 4294901760
        %v877 = vsub.f32 %v446, %v876
        %v878 = vand.u32 %v877, 4294901760
        %879 = vmatmul.mubr.f32.gmra.mxu0 %v878
        %v880 = vpop.f32.mrf.mxu0
        %v881 = vadd.f32 %v792, %v880
        %v882 = vpop.f32.mrf.mxu0
        %883 = vdwg.mxu0
        %884 = vmatprep.subr.mxu0 0.0
        %v885 = vand.u32 %v361, 4294901760
        %v886 = vsub.f32 %v361, %v885
        %v887 = vand.u32 %v886, 4294901760
        %888 = vmatpush1.msra.mxu0 %v887
        %889 = vmatprep.subr.mxu0 0.0
        %v890 = vand.u32 %v360, 4294901760
        %v891 = vsub.f32 %v360, %v890
        %v892 = vand.u32 %v891, 4294901760
        %893 = vmatpush1.msra.mxu0 %v892
        %894 = vmatprep.subr.mxu0 0.0
        %v895 = vand.u32 %v359, 4294901760
        %v896 = vsub.f32 %v359, %v895
        %v897 = vand.u32 %v896, 4294901760
        %898 = vmatpush1.msra.mxu0 %v897
        %899 = vmatprep.subr.mxu0 0.0
        %v900 = vand.u32 %v358, 4294901760
        %v901 = vsub.f32 %v358, %v900
        %v902 = vand.u32 %v901, 4294901760
        %903 = vmatpush1.msra.mxu0 %v902
        %904 = vmatprep.subr.mxu0 0.0
        %v905 = vand.u32 %v357, 4294901760
        %v906 = vsub.f32 %v357, %v905
        %v907 = vand.u32 %v906, 4294901760
        %908 = vmatpush1.msra.mxu0 %v907
        %909 = vmatprep.subr.mxu0 0.0
        %v910 = vand.u32 %v356, 4294901760
        %v911 = vsub.f32 %v356, %v910
        %v912 = vand.u32 %v911, 4294901760
        %913 = vmatpush1.msra.mxu0 %v912
        %914 = vmatprep.subr.mxu0 0.0
        %v915 = vand.u32 %v355, 4294901760
        %v916 = vsub.f32 %v355, %v915
        %v917 = vand.u32 %v916, 4294901760
        %918 = vmatpush1.msra.mxu0 %v917
        %919 = vmatprep.subr.mxu0 0.0
        %v920 = vand.u32 %v354, 4294901760
        %v921 = vsub.f32 %v354, %v920
        %v922 = vand.u32 %v921, 4294901760
        %923 = vmatpush1.msra.mxu0 %v922
        %924 = vmatprep.subr.mxu0 0.0
        %v925 = vand.u32 %v353, 4294901760
        %v926 = vsub.f32 %v353, %v925
        %v927 = vand.u32 %v926, 4294901760
        %928 = vmatpush1.msra.mxu0 %v927
        %929 = vmatprep.subr.mxu0 0.0
        %v930 = vand.u32 %v352, 4294901760
        %v931 = vsub.f32 %v352, %v930
        %v932 = vand.u32 %v931, 4294901760
        %933 = vmatpush1.msra.mxu0 %v932
        %934 = vmatprep.subr.mxu0 0.0
        %v935 = vand.u32 %v351, 4294901760
        %v936 = vsub.f32 %v351, %v935
        %v937 = vand.u32 %v936, 4294901760
        %938 = vmatpush1.msra.mxu0 %v937
        %939 = vmatprep.subr.mxu0 0.0
        %v940 = vand.u32 %v350, 4294901760
        %v941 = vsub.f32 %v350, %v940
        %v942 = vand.u32 %v941, 4294901760
        %943 = vmatpush1.msra.mxu0 %v942
        %944 = vmatprep.subr.mxu0 0.0
        %v945 = vand.u32 %v349, 4294901760
        %v946 = vsub.f32 %v349, %v945
        %v947 = vand.u32 %v946, 4294901760
        %948 = vmatpush1.msra.mxu0 %v947
        %949 = vmatprep.subr.mxu0 0.0
        %v950 = vand.u32 %v348, 4294901760
        %v951 = vsub.f32 %v348, %v950
        %v952 = vand.u32 %v951, 4294901760
        %953 = vmatpush1.msra.mxu0 %v952
        %954 = vmatprep.subr.mxu0 0.0
        %v955 = vand.u32 %v347, 4294901760
        %v956 = vsub.f32 %v347, %v955
        %v957 = vand.u32 %v956, 4294901760
        %958 = vmatpush1.msra.mxu0 %v957
        %959 = vmatprep.subr.mxu0 0.0
        %v960 = vand.u32 %v346, 4294901760
        %v961 = vsub.f32 %v346, %v960
        %v962 = vand.u32 %v961, 4294901760
        %963 = vmatpush1.msra.mxu0 %v962
        %964 = vmatprep.subr.mxu0 0.0
        %965 = vmatpush2.msra.mxu0 0.0
        %966 = vmatprep.subr.mxu0 0.0
        %967 = vmatpush2.msra.mxu0 0.0
        %968 = vmatprep.subr.mxu0 0.0
        %969 = vmatpush2.msra.mxu0 0.0
        %970 = vmatprep.subr.mxu0 0.0
        %971 = vmatpush2.msra.mxu0 0.0
        %972 = vmatprep.subr.mxu0 0.0
        %973 = vmatpush2.msra.mxu0 0.0
        %974 = vmatprep.subr.mxu0 0.0
        %975 = vmatpush2.msra.mxu0 0.0
        %976 = vmatprep.subr.mxu0 0.0
        %977 = vmatpush2.msra.mxu0 0.0
        %978 = vmatprep.subr.mxu0 0.0
        %979 = vmatpush2.msra.mxu0 0.0
        %980 = vmatprep.subr.mxu0 0.0
        %981 = vmatpush2.msra.mxu0 0.0
        %982 = vmatprep.subr.mxu0 0.0
        %983 = vmatpush2.msra.mxu0 0.0
        %984 = vmatprep.subr.mxu0 0.0
        %985 = vmatpush2.msra.mxu0 0.0
        %986 = vmatprep.subr.mxu0 0.0
        %987 = vmatpush2.msra.mxu0 0.0
        %988 = vmatprep.subr.mxu0 0.0
        %989 = vmatpush2.msra.mxu0 0.0
        %990 = vmatprep.subr.mxu0 0.0
        %991 = vmatpush2.msra.mxu0 0.0
        %992 = vmatprep.subr.mxu0 0.0
        %993 = vmatpush2.msra.mxu0 0.0
        %994 = vmatprep.subr.mxu0 0.0
        %995 = vmatpush2.msra.mxu0 0.0
        %996 = vmatprep.mubr.f32.mxu0 0.0
        %v997 = vand.u32 %v446, 4294901760
        %998 = vmatmul.mubr.f32.gmra.mxu0 %v997
        %v999 = vpop.f32.mrf.mxu0
        %v1000 = vadd.f32 %v881, %v999
        %v1001 = vpop.f32.mrf.mxu0
        %1002 = vdwg.mxu0
        %1003 = vmatprep.subr.mxu0 0.0
        %v1004 = vand.u32 %v361, 4294901760
        %1005 = vmatpush1.msra.mxu0 %v1004
        %1006 = vmatprep.subr.mxu0 0.0
        %v1007 = vand.u32 %v360, 4294901760
        %1008 = vmatpush1.msra.mxu0 %v1007
        %1009 = vmatprep.subr.mxu0 0.0
        %v1010 = vand.u32 %v359, 4294901760
        %1011 = vmatpush1.msra.mxu0 %v1010
        %1012 = vmatprep.subr.mxu0 0.0
        %v1013 = vand.u32 %v358, 4294901760
        %1014 = vmatpush1.msra.mxu0 %v1013
        %1015 = vmatprep.subr.mxu0 0.0
        %v1016 = vand.u32 %v357, 4294901760
        %1017 = vmatpush1.msra.mxu0 %v1016
        %1018 = vmatprep.subr.mxu0 0.0
        %v1019 = vand.u32 %v356, 4294901760
        %1020 = vmatpush1.msra.mxu0 %v1019
        %1021 = vmatprep.subr.mxu0 0.0
        %v1022 = vand.u32 %v355, 4294901760
        %1023 = vmatpush1.msra.mxu0 %v1022
        %1024 = vmatprep.subr.mxu0 0.0
        %v1025 = vand.u32 %v354, 4294901760
        %1026 = vmatpush1.msra.mxu0 %v1025
        %1027 = vmatprep.subr.mxu0 0.0
        %v1028 = vand.u32 %v353, 4294901760
        %1029 = vmatpush1.msra.mxu0 %v1028
        %1030 = vmatprep.subr.mxu0 0.0
        %v1031 = vand.u32 %v352, 4294901760
        %1032 = vmatpush1.msra.mxu0 %v1031
        %1033 = vmatprep.subr.mxu0 0.0
        %v1034 = vand.u32 %v351, 4294901760
        %1035 = vmatpush1.msra.mxu0 %v1034
        %1036 = vmatprep.subr.mxu0 0.0
        %v1037 = vand.u32 %v350, 4294901760
        %1038 = vmatpush1.msra.mxu0 %v1037
        %1039 = vmatprep.subr.mxu0 0.0
        %v1040 = vand.u32 %v349, 4294901760
        %1041 = vmatpush1.msra.mxu0 %v1040
        %1042 = vmatprep.subr.mxu0 0.0
        %v1043 = vand.u32 %v348, 4294901760
        %1044 = vmatpush1.msra.mxu0 %v1043
        %1045 = vmatprep.subr.mxu0 0.0
        %v1046 = vand.u32 %v347, 4294901760
        %1047 = vmatpush1.msra.mxu0 %v1046
        %1048 = vmatprep.subr.mxu0 0.0
        %v1049 = vand.u32 %v346, 4294901760
        %1050 = vmatpush1.msra.mxu0 %v1049
        %1051 = vmatprep.subr.mxu0 0.0
        %1052 = vmatpush2.msra.mxu0 0.0
        %1053 = vmatprep.subr.mxu0 0.0
        %1054 = vmatpush2.msra.mxu0 0.0
        %1055 = vmatprep.subr.mxu0 0.0
        %1056 = vmatpush2.msra.mxu0 0.0
        %1057 = vmatprep.subr.mxu0 0.0
        %1058 = vmatpush2.msra.mxu0 0.0
        %1059 = vmatprep.subr.mxu0 0.0
        %1060 = vmatpush2.msra.mxu0 0.0
        %1061 = vmatprep.subr.mxu0 0.0
        %1062 = vmatpush2.msra.mxu0 0.0
        %1063 = vmatprep.subr.mxu0 0.0
        %1064 = vmatpush2.msra.mxu0 0.0
        %1065 = vmatprep.subr.mxu0 0.0
        %1066 = vmatpush2.msra.mxu0 0.0
        %1067 = vmatprep.subr.mxu0 0.0
        %1068 = vmatpush2.msra.mxu0 0.0
        %1069 = vmatprep.subr.mxu0 0.0
        %1070 = vmatpush2.msra.mxu0 0.0
        %1071 = vmatprep.subr.mxu0 0.0
        %1072 = vmatpush2.msra.mxu0 0.0
        %1073 = vmatprep.subr.mxu0 0.0
        %1074 = vmatpush2.msra.mxu0 0.0
        %1075 = vmatprep.subr.mxu0 0.0
        %1076 = vmatpush2.msra.mxu0 0.0
        %1077 = vmatprep.subr.mxu0 0.0
        %1078 = vmatpush2.msra.mxu0 0.0
        %1079 = vmatprep.subr.mxu0 0.0
        %1080 = vmatpush2.msra.mxu0 0.0
        %1081 = vmatprep.subr.mxu0 0.0
        %1082 = vmatpush2.msra.mxu0 0.0
        %1083 = vmatprep.mubr.f32.mxu0 0.0
        %v1084 = vand.u32 %v446, 4294901760
        %1085 = vmatmul.mubr.f32.gmra.mxu0 %v1084
        %v1086 = vpop.f32.mrf.mxu0
        %v1087 = vadd.f32 %v1000, %v1086
        %v1088 = vpop.f32.mrf.mxu0
        %1089 = vdwg.mxu0
        %vm1090 = vcmask 64512
        %v1092 = vsel %vm1090, %v1087, 0
        %1094 = vmatprep.subr.mxu0 0.0
        %1095 = vmatpush1.msra.mxu0 0.0
        %1096 = vmatprep.subr.mxu0 0.0
        %1097 = vmatpush1.msra.mxu0 0.0
        %1098 = vmatprep.subr.mxu0 0.0
        %1099 = vmatpush1.msra.mxu0 0.0
        %1100 = vmatprep.subr.mxu0 0.0
        %1101 = vmatpush1.msra.mxu0 0.0
        %1102 = vmatprep.subr.mxu0 0.0
        %1103 = vmatpush1.msra.mxu0 0.0
        %1104 = vmatprep.subr.mxu0 0.0
        %1105 = vmatpush1.msra.mxu0 0.0
        %1106 = vmatprep.subr.mxu0 0.0
        %1107 = vmatpush1.msra.mxu0 0.0
        %1108 = vmatprep.subr.mxu0 0.0
        %1109 = vmatpush1.msra.mxu0 0.0
        %1110 = vmatprep.subr.mxu0 0.0
        %1111 = vmatpush1.msra.mxu0 0.0
        %1112 = vmatprep.subr.mxu0 0.0
        %1113 = vmatpush1.msra.mxu0 0.0
        %1114 = vmatprep.subr.mxu0 0.0
        %1115 = vmatpush1.msra.mxu0 0.0
        %1116 = vmatprep.subr.mxu0 0.0
        %1117 = vmatpush1.msra.mxu0 0.0
        %1118 = vmatprep.subr.mxu0 0.0
        %1119 = vmatpush1.msra.mxu0 0.0
        %1120 = vmatprep.subr.mxu0 0.0
        %1121 = vmatpush1.msra.mxu0 0.0
        %1122 = vmatprep.subr.mxu0 0.0
        %1123 = vmatpush1.msra.mxu0 0.0
        %1124 = vmatprep.subr.mxu0 0.0
        %v1125 = vand.u32 %v362, 4294901760
        %1126 = vmatpush1.msra.mxu0 %v1125
        %1127 = vmatprep.subr.mxu0 0.0
        %1128 = vmatpush2.msra.mxu0 0.0
        %1129 = vmatprep.subr.mxu0 0.0
        %1130 = vmatpush2.msra.mxu0 0.0
        %1131 = vmatprep.subr.mxu0 0.0
        %1132 = vmatpush2.msra.mxu0 0.0
        %1133 = vmatprep.subr.mxu0 0.0
        %1134 = vmatpush2.msra.mxu0 0.0
        %1135 = vmatprep.subr.mxu0 0.0
        %1136 = vmatpush2.msra.mxu0 0.0
        %1137 = vmatprep.subr.mxu0 0.0
        %1138 = vmatpush2.msra.mxu0 0.0
        %1139 = vmatprep.subr.mxu0 0.0
        %1140 = vmatpush2.msra.mxu0 0.0
        %1141 = vmatprep.subr.mxu0 0.0
        %1142 = vmatpush2.msra.mxu0 0.0
        %1143 = vmatprep.subr.mxu0 0.0
        %1144 = vmatpush2.msra.mxu0 0.0
        %1145 = vmatprep.subr.mxu0 0.0
        %1146 = vmatpush2.msra.mxu0 0.0
        %1147 = vmatprep.subr.mxu0 0.0
        %1148 = vmatpush2.msra.mxu0 0.0
        %1149 = vmatprep.subr.mxu0 0.0
        %1150 = vmatpush2.msra.mxu0 0.0
        %1151 = vmatprep.subr.mxu0 0.0
        %1152 = vmatpush2.msra.mxu0 0.0
        %1153 = vmatprep.subr.mxu0 0.0
        %1154 = vmatpush2.msra.mxu0 0.0
        %1155 = vmatprep.subr.mxu0 0.0
        %1156 = vmatpush2.msra.mxu0 0.0
        %1157 = vmatprep.subr.mxu0 0.0
        %1158 = vmatpush2.msra.mxu0 0.0
        %1159 = vmatprep.mubr.f32.mxu0 0.0
        %v1160 = vand.u32 %v1092, 4294901760
        %v1161 = vsub.f32 %v1092, %v1160
        %v1162 = vand.u32 %v1161, 4294901760
        %v1163 = vsub.f32 %v1161, %v1162
        %v1164 = vand.u32 %v1163, 4294901760
        %1165 = vmatmul.mubr.f32.gmra.mxu0 %v1164
        %v1166 = vpop.f32.mrf.mxu0
        %v1167 = vadd.f32 0.0, %v1166
        %v1168 = vpop.f32.mrf.mxu0
        %1169 = vdwg.mxu0
        %1170 = vmatprep.subr.mxu0 0.0
        %1171 = vmatpush1.msra.mxu0 0.0
        %1172 = vmatprep.subr.mxu0 0.0
        %1173 = vmatpush1.msra.mxu0 0.0
        %1174 = vmatprep.subr.mxu0 0.0
        %1175 = vmatpush1.msra.mxu0 0.0
        %1176 = vmatprep.subr.mxu0 0.0
        %1177 = vmatpush1.msra.mxu0 0.0
        %1178 = vmatprep.subr.mxu0 0.0
        %1179 = vmatpush1.msra.mxu0 0.0
        %1180 = vmatprep.subr.mxu0 0.0
        %1181 = vmatpush1.msra.mxu0 0.0
        %1182 = vmatprep.subr.mxu0 0.0
        %1183 = vmatpush1.msra.mxu0 0.0
        %1184 = vmatprep.subr.mxu0 0.0
        %1185 = vmatpush1.msra.mxu0 0.0
        %1186 = vmatprep.subr.mxu0 0.0
        %1187 = vmatpush1.msra.mxu0 0.0
        %1188 = vmatprep.subr.mxu0 0.0
        %1189 = vmatpush1.msra.mxu0 0.0
        %1190 = vmatprep.subr.mxu0 0.0
        %1191 = vmatpush1.msra.mxu0 0.0
        %1192 = vmatprep.subr.mxu0 0.0
        %1193 = vmatpush1.msra.mxu0 0.0
        %1194 = vmatprep.subr.mxu0 0.0
        %1195 = vmatpush1.msra.mxu0 0.0
        %1196 = vmatprep.subr.mxu0 0.0
        %1197 = vmatpush1.msra.mxu0 0.0
        %1198 = vmatprep.subr.mxu0 0.0
        %1199 = vmatpush1.msra.mxu0 0.0
        %1200 = vmatprep.subr.mxu0 0.0
        %v1201 = vand.u32 %v362, 4294901760
        %v1202 = vsub.f32 %v362, %v1201
        %v1203 = vand.u32 %v1202, 4294901760
        %v1204 = vsub.f32 %v1202, %v1203
        %v1205 = vand.u32 %v1204, 4294901760
        %1206 = vmatpush1.msra.mxu0 %v1205
        %1207 = vmatprep.subr.mxu0 0.0
        %1208 = vmatpush2.msra.mxu0 0.0
        %1209 = vmatprep.subr.mxu0 0.0
        %1210 = vmatpush2.msra.mxu0 0.0
        %1211 = vmatprep.subr.mxu0 0.0
        %1212 = vmatpush2.msra.mxu0 0.0
        %1213 = vmatprep.subr.mxu0 0.0
        %1214 = vmatpush2.msra.mxu0 0.0
        %1215 = vmatprep.subr.mxu0 0.0
        %1216 = vmatpush2.msra.mxu0 0.0
        %1217 = vmatprep.subr.mxu0 0.0
        %1218 = vmatpush2.msra.mxu0 0.0
        %1219 = vmatprep.subr.mxu0 0.0
        %1220 = vmatpush2.msra.mxu0 0.0
        %1221 = vmatprep.subr.mxu0 0.0
        %1222 = vmatpush2.msra.mxu0 0.0
        %1223 = vmatprep.subr.mxu0 0.0
        %1224 = vmatpush2.msra.mxu0 0.0
        %1225 = vmatprep.subr.mxu0 0.0
        %1226 = vmatpush2.msra.mxu0 0.0
        %1227 = vmatprep.subr.mxu0 0.0
        %1228 = vmatpush2.msra.mxu0 0.0
        %1229 = vmatprep.subr.mxu0 0.0
        %1230 = vmatpush2.msra.mxu0 0.0
        %1231 = vmatprep.subr.mxu0 0.0
        %1232 = vmatpush2.msra.mxu0 0.0
        %1233 = vmatprep.subr.mxu0 0.0
        %1234 = vmatpush2.msra.mxu0 0.0
        %1235 = vmatprep.subr.mxu0 0.0
        %1236 = vmatpush2.msra.mxu0 0.0
        %1237 = vmatprep.subr.mxu0 0.0
        %1238 = vmatpush2.msra.mxu0 0.0
        %1239 = vmatprep.mubr.f32.mxu0 0.0
        %v1240 = vand.u32 %v1092, 4294901760
        %1241 = vmatmul.mubr.f32.gmra.mxu0 %v1240
        %v1242 = vpop.f32.mrf.mxu0
        %v1243 = vadd.f32 %v1167, %v1242
        %v1244 = vpop.f32.mrf.mxu0
        %1245 = vdwg.mxu0
        %1246 = vmatprep.subr.mxu0 0.0
        %1247 = vmatpush1.msra.mxu0 0.0
        %1248 = vmatprep.subr.mxu0 0.0
        %1249 = vmatpush1.msra.mxu0 0.0
        %1250 = vmatprep.subr.mxu0 0.0
        %1251 = vmatpush1.msra.mxu0 0.0
        %1252 = vmatprep.subr.mxu0 0.0
        %1253 = vmatpush1.msra.mxu0 0.0
        %1254 = vmatprep.subr.mxu0 0.0
        %1255 = vmatpush1.msra.mxu0 0.0
        %1256 = vmatprep.subr.mxu0 0.0
        %1257 = vmatpush1.msra.mxu0 0.0
        %1258 = vmatprep.subr.mxu0 0.0
        %1259 = vmatpush1.msra.mxu0 0.0
        %1260 = vmatprep.subr.mxu0 0.0
        %1261 = vmatpush1.msra.mxu0 0.0
        %1262 = vmatprep.subr.mxu0 0.0
        %1263 = vmatpush1.msra.mxu0 0.0
        %1264 = vmatprep.subr.mxu0 0.0
        %1265 = vmatpush1.msra.mxu0 0.0
        %1266 = vmatprep.subr.mxu0 0.0
        %1267 = vmatpush1.msra.mxu0 0.0
        %1268 = vmatprep.subr.mxu0 0.0
        %1269 = vmatpush1.msra.mxu0 0.0
        %1270 = vmatprep.subr.mxu0 0.0
        %1271 = vmatpush1.msra.mxu0 0.0
        %1272 = vmatprep.subr.mxu0 0.0
        %1273 = vmatpush1.msra.mxu0 0.0
        %1274 = vmatprep.subr.mxu0 0.0
        %1275 = vmatpush1.msra.mxu0 0.0
        %1276 = vmatprep.subr.mxu0 0.0
        %v1277 = vand.u32 %v362, 4294901760
        %v1278 = vsub.f32 %v362, %v1277
        %1279 = vmatpush1.msra.mxu0 %v1278
        %1280 = vmatprep.subr.mxu0 0.0
        %1281 = vmatpush2.msra.mxu0 0.0
        %1282 = vmatprep.subr.mxu0 0.0
        %1283 = vmatpush2.msra.mxu0 0.0
        %1284 = vmatprep.subr.mxu0 0.0
        %1285 = vmatpush2.msra.mxu0 0.0
        %1286 = vmatprep.subr.mxu0 0.0
        %1287 = vmatpush2.msra.mxu0 0.0
        %1288 = vmatprep.subr.mxu0 0.0
        %1289 = vmatpush2.msra.mxu0 0.0
        %1290 = vmatprep.subr.mxu0 0.0
        %1291 = vmatpush2.msra.mxu0 0.0
        %1292 = vmatprep.subr.mxu0 0.0
        %1293 = vmatpush2.msra.mxu0 0.0
        %1294 = vmatprep.subr.mxu0 0.0
        %1295 = vmatpush2.msra.mxu0 0.0
        %1296 = vmatprep.subr.mxu0 0.0
        %1297 = vmatpush2.msra.mxu0 0.0
        %1298 = vmatprep.subr.mxu0 0.0
        %1299 = vmatpush2.msra.mxu0 0.0
        %1300 = vmatprep.subr.mxu0 0.0
        %1301 = vmatpush2.msra.mxu0 0.0
        %1302 = vmatprep.subr.mxu0 0.0
        %1303 = vmatpush2.msra.mxu0 0.0
        %1304 = vmatprep.subr.mxu0 0.0
        %1305 = vmatpush2.msra.mxu0 0.0
        %1306 = vmatprep.subr.mxu0 0.0
        %1307 = vmatpush2.msra.mxu0 0.0
        %1308 = vmatprep.subr.mxu0 0.0
        %1309 = vmatpush2.msra.mxu0 0.0
        %1310 = vmatprep.subr.mxu0 0.0
        %1311 = vmatpush2.msra.mxu0 0.0
        %1312 = vmatprep.mubr.f32.mxu0 0.0
        %v1313 = vand.u32 %v1092, 4294901760
        %v1314 = vsub.f32 %v1092, %v1313
        %1315 = vmatmul.mubr.f32.gmra.mxu0 %v1314
        %v1316 = vpop.f32.mrf.mxu0
        %v1317 = vadd.f32 %v1243, %v1316
        %v1318 = vpop.f32.mrf.mxu0
        %1319 = vdwg.mxu0
        %1320 = vmatprep.subr.mxu0 0.0
        %1321 = vmatpush1.msra.mxu0 0.0
        %1322 = vmatprep.subr.mxu0 0.0
        %1323 = vmatpush1.msra.mxu0 0.0
        %1324 = vmatprep.subr.mxu0 0.0
        %1325 = vmatpush1.msra.mxu0 0.0
        %1326 = vmatprep.subr.mxu0 0.0
        %1327 = vmatpush1.msra.mxu0 0.0
        %1328 = vmatprep.subr.mxu0 0.0
        %1329 = vmatpush1.msra.mxu0 0.0
        %1330 = vmatprep.subr.mxu0 0.0
        %1331 = vmatpush1.msra.mxu0 0.0
        %1332 = vmatprep.subr.mxu0 0.0
        %1333 = vmatpush1.msra.mxu0 0.0
        %1334 = vmatprep.subr.mxu0 0.0
        %1335 = vmatpush1.msra.mxu0 0.0
        %1336 = vmatprep.subr.mxu0 0.0
        %1337 = vmatpush1.msra.mxu0 0.0
        %1338 = vmatprep.subr.mxu0 0.0
        %1339 = vmatpush1.msra.mxu0 0.0
        %1340 = vmatprep.subr.mxu0 0.0
        %1341 = vmatpush1.msra.mxu0 0.0
        %1342 = vmatprep.subr.mxu0 0.0
        %1343 = vmatpush1.msra.mxu0 0.0
        %1344 = vmatprep.subr.mxu0 0.0
        %1345 = vmatpush1.msra.mxu0 0.0
        %1346 = vmatprep.subr.mxu0 0.0
        %1347 = vmatpush1.msra.mxu0 0.0
        %1348 = vmatprep.subr.mxu0 0.0
        %1349 = vmatpush1.msra.mxu0 0.0
        %1350 = vmatprep.subr.mxu0 0.0
        %v1351 = vand.u32 %v362, 4294901760
        %1352 = vmatpush1.msra.mxu0 %v1351
        %1353 = vmatprep.subr.mxu0 0.0
        %1354 = vmatpush2.msra.mxu0 0.0
        %1355 = vmatprep.subr.mxu0 0.0
        %1356 = vmatpush2.msra.mxu0 0.0
        %1357 = vmatprep.subr.mxu0 0.0
        %1358 = vmatpush2.msra.mxu0 0.0
        %1359 = vmatprep.subr.mxu0 0.0
        %1360 = vmatpush2.msra.mxu0 0.0
        %1361 = vmatprep.subr.mxu0 0.0
        %1362 = vmatpush2.msra.mxu0 0.0
        %1363 = vmatprep.subr.mxu0 0.0
        %1364 = vmatpush2.msra.mxu0 0.0
        %1365 = vmatprep.subr.mxu0 0.0
        %1366 = vmatpush2.msra.mxu0 0.0
        %1367 = vmatprep.subr.mxu0 0.0
        %1368 = vmatpush2.msra.mxu0 0.0
        %1369 = vmatprep.subr.mxu0 0.0
        %1370 = vmatpush2.msra.mxu0 0.0
        %1371 = vmatprep.subr.mxu0 0.0
        %1372 = vmatpush2.msra.mxu0 0.0
        %1373 = vmatprep.subr.mxu0 0.0
        %1374 = vmatpush2.msra.mxu0 0.0
        %1375 = vmatprep.subr.mxu0 0.0
        %1376 = vmatpush2.msra.mxu0 0.0
        %1377 = vmatprep.subr.mxu0 0.0
        %1378 = vmatpush2.msra.mxu0 0.0
        %1379 = vmatprep.subr.mxu0 0.0
        %1380 = vmatpush2.msra.mxu0 0.0
        %1381 = vmatprep.subr.mxu0 0.0
        %1382 = vmatpush2.msra.mxu0 0.0
        %1383 = vmatprep.subr.mxu0 0.0
        %1384 = vmatpush2.msra.mxu0 0.0
        %1385 = vmatprep.mubr.f32.mxu0 0.0
        %v1386 = vand.u32 %v1092, 4294901760
        %v1387 = vsub.f32 %v1092, %v1386
        %v1388 = vand.u32 %v1387, 4294901760
        %1389 = vmatmul.mubr.f32.gmra.mxu0 %v1388
        %v1390 = vpop.f32.mrf.mxu0
        %v1391 = vadd.f32 %v1317, %v1390
        %v1392 = vpop.f32.mrf.mxu0
        %1393 = vdwg.mxu0
        %1394 = vmatprep.subr.mxu0 0.0
        %1395 = vmatpush1.msra.mxu0 0.0
        %1396 = vmatprep.subr.mxu0 0.0
        %1397 = vmatpush1.msra.mxu0 0.0
        %1398 = vmatprep.subr.mxu0 0.0
        %1399 = vmatpush1.msra.mxu0 0.0
        %1400 = vmatprep.subr.mxu0 0.0
        %1401 = vmatpush1.msra.mxu0 0.0
        %1402 = vmatprep.subr.mxu0 0.0
        %1403 = vmatpush1.msra.mxu0 0.0
        %1404 = vmatprep.subr.mxu0 0.0
        %1405 = vmatpush1.msra.mxu0 0.0
        %1406 = vmatprep.subr.mxu0 0.0
        %1407 = vmatpush1.msra.mxu0 0.0
        %1408 = vmatprep.subr.mxu0 0.0
        %1409 = vmatpush1.msra.mxu0 0.0
        %1410 = vmatprep.subr.mxu0 0.0
        %1411 = vmatpush1.msra.mxu0 0.0
        %1412 = vmatprep.subr.mxu0 0.0
        %1413 = vmatpush1.msra.mxu0 0.0
        %1414 = vmatprep.subr.mxu0 0.0
        %1415 = vmatpush1.msra.mxu0 0.0
        %1416 = vmatprep.subr.mxu0 0.0
        %1417 = vmatpush1.msra.mxu0 0.0
        %1418 = vmatprep.subr.mxu0 0.0
        %1419 = vmatpush1.msra.mxu0 0.0
        %1420 = vmatprep.subr.mxu0 0.0
        %1421 = vmatpush1.msra.mxu0 0.0
        %1422 = vmatprep.subr.mxu0 0.0
        %1423 = vmatpush1.msra.mxu0 0.0
        %1424 = vmatprep.subr.mxu0 0.0
        %v1425 = vand.u32 %v362, 4294901760
        %v1426 = vsub.f32 %v362, %v1425
        %v1427 = vand.u32 %v1426, 4294901760
        %1428 = vmatpush1.msra.mxu0 %v1427
        %1429 = vmatprep.subr.mxu0 0.0
        %1430 = vmatpush2.msra.mxu0 0.0
        %1431 = vmatprep.subr.mxu0 0.0
        %1432 = vmatpush2.msra.mxu0 0.0
        %1433 = vmatprep.subr.mxu0 0.0
        %1434 = vmatpush2.msra.mxu0 0.0
        %1435 = vmatprep.subr.mxu0 0.0
        %1436 = vmatpush2.msra.mxu0 0.0
        %1437 = vmatprep.subr.mxu0 0.0
        %1438 = vmatpush2.msra.mxu0 0.0
        %1439 = vmatprep.subr.mxu0 0.0
        %1440 = vmatpush2.msra.mxu0 0.0
        %1441 = vmatprep.subr.mxu0 0.0
        %1442 = vmatpush2.msra.mxu0 0.0
        %1443 = vmatprep.subr.mxu0 0.0
        %1444 = vmatpush2.msra.mxu0 0.0
        %1445 = vmatprep.subr.mxu0 0.0
        %1446 = vmatpush2.msra.mxu0 0.0
        %1447 = vmatprep.subr.mxu0 0.0
        %1448 = vmatpush2.msra.mxu0 0.0
        %1449 = vmatprep.subr.mxu0 0.0
        %1450 = vmatpush2.msra.mxu0 0.0
        %1451 = vmatprep.subr.mxu0 0.0
        %1452 = vmatpush2.msra.mxu0 0.0
        %1453 = vmatprep.subr.mxu0 0.0
        %1454 = vmatpush2.msra.mxu0 0.0
        %1455 = vmatprep.subr.mxu0 0.0
        %1456 = vmatpush2.msra.mxu0 0.0
        %1457 = vmatprep.subr.mxu0 0.0
        %1458 = vmatpush2.msra.mxu0 0.0
        %1459 = vmatprep.subr.mxu0 0.0
        %1460 = vmatpush2.msra.mxu0 0.0
        %1461 = vmatprep.mubr.f32.mxu0 0.0
        %v1462 = vand.u32 %v1092, 4294901760
        %1463 = vmatmul.mubr.f32.gmra.mxu0 %v1462
        %v1464 = vpop.f32.mrf.mxu0
        %v1465 = vadd.f32 %v1391, %v1464
        %v1466 = vpop.f32.mrf.mxu0
        %1467 = vdwg.mxu0
        %1468 = vmatprep.subr.mxu0 0.0
        %1469 = vmatpush1.msra.mxu0 0.0
        %1470 = vmatprep.subr.mxu0 0.0
        %1471 = vmatpush1.msra.mxu0 0.0
        %1472 = vmatprep.subr.mxu0 0.0
        %1473 = vmatpush1.msra.mxu0 0.0
        %1474 = vmatprep.subr.mxu0 0.0
        %1475 = vmatpush1.msra.mxu0 0.0
        %1476 = vmatprep.subr.mxu0 0.0
        %1477 = vmatpush1.msra.mxu0 0.0
        %1478 = vmatprep.subr.mxu0 0.0
        %1479 = vmatpush1.msra.mxu0 0.0
        %1480 = vmatprep.subr.mxu0 0.0
        %1481 = vmatpush1.msra.mxu0 0.0
        %1482 = vmatprep.subr.mxu0 0.0
        %1483 = vmatpush1.msra.mxu0 0.0
        %1484 = vmatprep.subr.mxu0 0.0
        %1485 = vmatpush1.msra.mxu0 0.0
        %1486 = vmatprep.subr.mxu0 0.0
        %1487 = vmatpush1.msra.mxu0 0.0
        %1488 = vmatprep.subr.mxu0 0.0
        %1489 = vmatpush1.msra.mxu0 0.0
        %1490 = vmatprep.subr.mxu0 0.0
        %1491 = vmatpush1.msra.mxu0 0.0
        %1492 = vmatprep.subr.mxu0 0.0
        %1493 = vmatpush1.msra.mxu0 0.0
        %1494 = vmatprep.subr.mxu0 0.0
        %1495 = vmatpush1.msra.mxu0 0.0
        %1496 = vmatprep.subr.mxu0 0.0
        %1497 = vmatpush1.msra.mxu0 0.0
        %1498 = vmatprep.subr.mxu0 0.0
        %v1499 = vand.u32 %v362, 4294901760
        %1500 = vmatpush1.msra.mxu0 %v1499
        %1501 = vmatprep.subr.mxu0 0.0
        %1502 = vmatpush2.msra.mxu0 0.0
        %1503 = vmatprep.subr.mxu0 0.0
        %1504 = vmatpush2.msra.mxu0 0.0
        %1505 = vmatprep.subr.mxu0 0.0
        %1506 = vmatpush2.msra.mxu0 0.0
        %1507 = vmatprep.subr.mxu0 0.0
        %1508 = vmatpush2.msra.mxu0 0.0
        %1509 = vmatprep.subr.mxu0 0.0
        %1510 = vmatpush2.msra.mxu0 0.0
        %1511 = vmatprep.subr.mxu0 0.0
        %1512 = vmatpush2.msra.mxu0 0.0
        %1513 = vmatprep.subr.mxu0 0.0
        %1514 = vmatpush2.msra.mxu0 0.0
        %1515 = vmatprep.subr.mxu0 0.0
        %1516 = vmatpush2.msra.mxu0 0.0
        %1517 = vmatprep.subr.mxu0 0.0
        %1518 = vmatpush2.msra.mxu0 0.0
        %1519 = vmatprep.subr.mxu0 0.0
        %1520 = vmatpush2.msra.mxu0 0.0
        %1521 = vmatprep.subr.mxu0 0.0
        %1522 = vmatpush2.msra.mxu0 0.0
        %1523 = vmatprep.subr.mxu0 0.0
        %1524 = vmatpush2.msra.mxu0 0.0
        %1525 = vmatprep.subr.mxu0 0.0
        %1526 = vmatpush2.msra.mxu0 0.0
        %1527 = vmatprep.subr.mxu0 0.0
        %1528 = vmatpush2.msra.mxu0 0.0
        %1529 = vmatprep.subr.mxu0 0.0
        %1530 = vmatpush2.msra.mxu0 0.0
        %1531 = vmatprep.subr.mxu0 0.0
        %1532 = vmatpush2.msra.mxu0 0.0
        %1533 = vmatprep.mubr.f32.mxu0 0.0
        %v1534 = vand.u32 %v1092, 4294901760
        %1535 = vmatmul.mubr.f32.gmra.mxu0 %v1534
        %v1536 = vpop.f32.mrf.mxu0
        %v1537 = vadd.f32 %v1465, %v1536
        %v1538 = vpop.f32.mrf.mxu0
        %1539 = vdwg.mxu0
        %v1540 = vsub.f32 %v446, %v1537
        %v1541 = vmul.f32 %v1540, %v1540
        %1542 = vmatprep.subr.mxu0 0.0
        %v1543 = vand.u32 %v361, 4294901760
        %1544 = vmatpush1.msra.mxu0 %v1543
        %1545 = vmatprep.subr.mxu0 0.0
        %v1546 = vand.u32 %v360, 4294901760
        %1547 = vmatpush1.msra.mxu0 %v1546
        %1548 = vmatprep.subr.mxu0 0.0
        %v1549 = vand.u32 %v359, 4294901760
        %1550 = vmatpush1.msra.mxu0 %v1549
        %1551 = vmatprep.subr.mxu0 0.0
        %v1552 = vand.u32 %v358, 4294901760
        %1553 = vmatpush1.msra.mxu0 %v1552
        %1554 = vmatprep.subr.mxu0 0.0
        %v1555 = vand.u32 %v357, 4294901760
        %1556 = vmatpush1.msra.mxu0 %v1555
        %1557 = vmatprep.subr.mxu0 0.0
        %v1558 = vand.u32 %v356, 4294901760
        %1559 = vmatpush1.msra.mxu0 %v1558
        %1560 = vmatprep.subr.mxu0 0.0
        %v1561 = vand.u32 %v355, 4294901760
        %1562 = vmatpush1.msra.mxu0 %v1561
        %1563 = vmatprep.subr.mxu0 0.0
        %v1564 = vand.u32 %v354, 4294901760
        %1565 = vmatpush1.msra.mxu0 %v1564
        %1566 = vmatprep.subr.mxu0 0.0
        %v1567 = vand.u32 %v353, 4294901760
        %1568 = vmatpush1.msra.mxu0 %v1567
        %1569 = vmatprep.subr.mxu0 0.0
        %v1570 = vand.u32 %v352, 4294901760
        %1571 = vmatpush1.msra.mxu0 %v1570
        %1572 = vmatprep.subr.mxu0 0.0
        %v1573 = vand.u32 %v351, 4294901760
        %1574 = vmatpush1.msra.mxu0 %v1573
        %1575 = vmatprep.subr.mxu0 0.0
        %v1576 = vand.u32 %v350, 4294901760
        %1577 = vmatpush1.msra.mxu0 %v1576
        %1578 = vmatprep.subr.mxu0 0.0
        %v1579 = vand.u32 %v349, 4294901760
        %1580 = vmatpush1.msra.mxu0 %v1579
        %1581 = vmatprep.subr.mxu0 0.0
        %v1582 = vand.u32 %v348, 4294901760
        %1583 = vmatpush1.msra.mxu0 %v1582
        %1584 = vmatprep.subr.mxu0 0.0
        %v1585 = vand.u32 %v347, 4294901760
        %1586 = vmatpush1.msra.mxu0 %v1585
        %1587 = vmatprep.subr.mxu0 0.0
        %v1588 = vand.u32 %v346, 4294901760
        %1589 = vmatpush1.msra.mxu0 %v1588
        %1590 = vmatprep.subr.mxu0 0.0
        %1591 = vmatpush2.msra.mxu0 0.0
        %1592 = vmatprep.subr.mxu0 0.0
        %1593 = vmatpush2.msra.mxu0 0.0
        %1594 = vmatprep.subr.mxu0 0.0
        %1595 = vmatpush2.msra.mxu0 0.0
        %1596 = vmatprep.subr.mxu0 0.0
        %1597 = vmatpush2.msra.mxu0 0.0
        %1598 = vmatprep.subr.mxu0 0.0
        %1599 = vmatpush2.msra.mxu0 0.0
        %1600 = vmatprep.subr.mxu0 0.0
        %1601 = vmatpush2.msra.mxu0 0.0
        %1602 = vmatprep.subr.mxu0 0.0
        %1603 = vmatpush2.msra.mxu0 0.0
        %1604 = vmatprep.subr.mxu0 0.0
        %1605 = vmatpush2.msra.mxu0 0.0
        %1606 = vmatprep.subr.mxu0 0.0
        %1607 = vmatpush2.msra.mxu0 0.0
        %1608 = vmatprep.subr.mxu0 0.0
        %1609 = vmatpush2.msra.mxu0 0.0
        %1610 = vmatprep.subr.mxu0 0.0
        %1611 = vmatpush2.msra.mxu0 0.0
        %1612 = vmatprep.subr.mxu0 0.0
        %1613 = vmatpush2.msra.mxu0 0.0
        %1614 = vmatprep.subr.mxu0 0.0
        %1615 = vmatpush2.msra.mxu0 0.0
        %1616 = vmatprep.subr.mxu0 0.0
        %1617 = vmatpush2.msra.mxu0 0.0
        %1618 = vmatprep.subr.mxu0 0.0
        %1619 = vmatpush2.msra.mxu0 0.0
        %1620 = vmatprep.subr.mxu0 0.0
        %1621 = vmatpush2.msra.mxu0 0.0
        %1622 = vmatprep.mubr.f32.mxu0 0.0
        %v1623 = vand.u32 %v1541, 4294901760
        %v1624 = vsub.f32 %v1541, %v1623
        %v1625 = vand.u32 %v1624, 4294901760
        %v1626 = vsub.f32 %v1624, %v1625
        %v1627 = vand.u32 %v1626, 4294901760
        %1628 = vmatmul.mubr.f32.gmra.mxu0 %v1627
        %v1629 = vpop.f32.mrf.mxu0
        %v1630 = vadd.f32 1e-05, %v1629
        %v1631 = vpop.f32.mrf.mxu0
        %1632 = vdwg.mxu0
        %1633 = vmatprep.subr.mxu0 0.0
        %v1634 = vand.u32 %v361, 4294901760
        %v1635 = vsub.f32 %v361, %v1634
        %v1636 = vand.u32 %v1635, 4294901760
        %v1637 = vsub.f32 %v1635, %v1636
        %v1638 = vand.u32 %v1637, 4294901760
        %1639 = vmatpush1.msra.mxu0 %v1638
        %1640 = vmatprep.subr.mxu0 0.0
        %v1641 = vand.u32 %v360, 4294901760
        %v1642 = vsub.f32 %v360, %v1641
        %v1643 = vand.u32 %v1642, 4294901760
        %v1644 = vsub.f32 %v1642, %v1643
        %v1645 = vand.u32 %v1644, 4294901760
        %1646 = vmatpush1.msra.mxu0 %v1645
        %1647 = vmatprep.subr.mxu0 0.0
        %v1648 = vand.u32 %v359, 4294901760
        %v1649 = vsub.f32 %v359, %v1648
        %v1650 = vand.u32 %v1649, 4294901760
        %v1651 = vsub.f32 %v1649, %v1650
        %v1652 = vand.u32 %v1651, 4294901760
        %1653 = vmatpush1.msra.mxu0 %v1652
        %1654 = vmatprep.subr.mxu0 0.0
        %v1655 = vand.u32 %v358, 4294901760
        %v1656 = vsub.f32 %v358, %v1655
        %v1657 = vand.u32 %v1656, 4294901760
        %v1658 = vsub.f32 %v1656, %v1657
        %v1659 = vand.u32 %v1658, 4294901760
        %1660 = vmatpush1.msra.mxu0 %v1659
        %1661 = vmatprep.subr.mxu0 0.0
        %v1662 = vand.u32 %v357, 4294901760
        %v1663 = vsub.f32 %v357, %v1662
        %v1664 = vand.u32 %v1663, 4294901760
        %v1665 = vsub.f32 %v1663, %v1664
        %v1666 = vand.u32 %v1665, 4294901760
        %1667 = vmatpush1.msra.mxu0 %v1666
        %1668 = vmatprep.subr.mxu0 0.0
        %v1669 = vand.u32 %v356, 4294901760
        %v1670 = vsub.f32 %v356, %v1669
        %v1671 = vand.u32 %v1670, 4294901760
        %v1672 = vsub.f32 %v1670, %v1671
        %v1673 = vand.u32 %v1672, 4294901760
        %1674 = vmatpush1.msra.mxu0 %v1673
        %1675 = vmatprep.subr.mxu0 0.0
        %v1676 = vand.u32 %v355, 4294901760
        %v1677 = vsub.f32 %v355, %v1676
        %v1678 = vand.u32 %v1677, 4294901760
        %v1679 = vsub.f32 %v1677, %v1678
        %v1680 = vand.u32 %v1679, 4294901760
        %1681 = vmatpush1.msra.mxu0 %v1680
        %1682 = vmatprep.subr.mxu0 0.0
        %v1683 = vand.u32 %v354, 4294901760
        %v1684 = vsub.f32 %v354, %v1683
        %v1685 = vand.u32 %v1684, 4294901760
        %v1686 = vsub.f32 %v1684, %v1685
        %v1687 = vand.u32 %v1686, 4294901760
        %1688 = vmatpush1.msra.mxu0 %v1687
        %1689 = vmatprep.subr.mxu0 0.0
        %v1690 = vand.u32 %v353, 4294901760
        %v1691 = vsub.f32 %v353, %v1690
        %v1692 = vand.u32 %v1691, 4294901760
        %v1693 = vsub.f32 %v1691, %v1692
        %v1694 = vand.u32 %v1693, 4294901760
        %1695 = vmatpush1.msra.mxu0 %v1694
        %1696 = vmatprep.subr.mxu0 0.0
        %v1697 = vand.u32 %v352, 4294901760
        %v1698 = vsub.f32 %v352, %v1697
        %v1699 = vand.u32 %v1698, 4294901760
        %v1700 = vsub.f32 %v1698, %v1699
        %v1701 = vand.u32 %v1700, 4294901760
        %1702 = vmatpush1.msra.mxu0 %v1701
        %1703 = vmatprep.subr.mxu0 0.0
        %v1704 = vand.u32 %v351, 4294901760
        %v1705 = vsub.f32 %v351, %v1704
        %v1706 = vand.u32 %v1705, 4294901760
        %v1707 = vsub.f32 %v1705, %v1706
        %v1708 = vand.u32 %v1707, 4294901760
        %1709 = vmatpush1.msra.mxu0 %v1708
        %1710 = vmatprep.subr.mxu0 0.0
        %v1711 = vand.u32 %v350, 4294901760
        %v1712 = vsub.f32 %v350, %v1711
        %v1713 = vand.u32 %v1712, 4294901760
        %v1714 = vsub.f32 %v1712, %v1713
        %v1715 = vand.u32 %v1714, 4294901760
        %1716 = vmatpush1.msra.mxu0 %v1715
        %1717 = vmatprep.subr.mxu0 0.0
        %v1718 = vand.u32 %v349, 4294901760
        %v1719 = vsub.f32 %v349, %v1718
        %v1720 = vand.u32 %v1719, 4294901760
        %v1721 = vsub.f32 %v1719, %v1720
        %v1722 = vand.u32 %v1721, 4294901760
        %1723 = vmatpush1.msra.mxu0 %v1722
        %1724 = vmatprep.subr.mxu0 0.0
        %v1725 = vand.u32 %v348, 4294901760
        %v1726 = vsub.f32 %v348, %v1725
        %v1727 = vand.u32 %v1726, 4294901760
        %v1728 = vsub.f32 %v1726, %v1727
        %v1729 = vand.u32 %v1728, 4294901760
        %1730 = vmatpush1.msra.mxu0 %v1729
        %1731 = vmatprep.subr.mxu0 0.0
        %v1732 = vand.u32 %v347, 4294901760
        %v1733 = vsub.f32 %v347, %v1732
        %v1734 = vand.u32 %v1733, 4294901760
        %v1735 = vsub.f32 %v1733, %v1734
        %v1736 = vand.u32 %v1735, 4294901760
        %1737 = vmatpush1.msra.mxu0 %v1736
        %1738 = vmatprep.subr.mxu0 0.0
        %v1739 = vand.u32 %v346, 4294901760
        %v1740 = vsub.f32 %v346, %v1739
        %v1741 = vand.u32 %v1740, 4294901760
        %v1742 = vsub.f32 %v1740, %v1741
        %v1743 = vand.u32 %v1742, 4294901760
        %1744 = vmatpush1.msra.mxu0 %v1743
        %1745 = vmatprep.subr.mxu0 0.0
        %1746 = vmatpush2.msra.mxu0 0.0
        %1747 = vmatprep.subr.mxu0 0.0
        %1748 = vmatpush2.msra.mxu0 0.0
        %1749 = vmatprep.subr.mxu0 0.0
        %1750 = vmatpush2.msra.mxu0 0.0
        %1751 = vmatprep.subr.mxu0 0.0
        %1752 = vmatpush2.msra.mxu0 0.0
        %1753 = vmatprep.subr.mxu0 0.0
        %1754 = vmatpush2.msra.mxu0 0.0
        %1755 = vmatprep.subr.mxu0 0.0
        %1756 = vmatpush2.msra.mxu0 0.0
        %1757 = vmatprep.subr.mxu0 0.0
        %1758 = vmatpush2.msra.mxu0 0.0
        %1759 = vmatprep.subr.mxu0 0.0
        %1760 = vmatpush2.msra.mxu0 0.0
        %1761 = vmatprep.subr.mxu0 0.0
        %1762 = vmatpush2.msra.mxu0 0.0
        %1763 = vmatprep.subr.mxu0 0.0
        %1764 = vmatpush2.msra.mxu0 0.0
        %1765 = vmatprep.subr.mxu0 0.0
        %1766 = vmatpush2.msra.mxu0 0.0
        %1767 = vmatprep.subr.mxu0 0.0
        %1768 = vmatpush2.msra.mxu0 0.0
        %1769 = vmatprep.subr.mxu0 0.0
        %1770 = vmatpush2.msra.mxu0 0.0
        %1771 = vmatprep.subr.mxu0 0.0
        %1772 = vmatpush2.msra.mxu0 0.0
        %1773 = vmatprep.subr.mxu0 0.0
        %1774 = vmatpush2.msra.mxu0 0.0
        %1775 = vmatprep.subr.mxu0 0.0
        %1776 = vmatpush2.msra.mxu0 0.0
        %1777 = vmatprep.mubr.f32.mxu0 0.0
        %v1778 = vand.u32 %v1541, 4294901760
        %1779 = vmatmul.mubr.f32.gmra.mxu0 %v1778
        %v1780 = vpop.f32.mrf.mxu0
        %v1781 = vadd.f32 %v1630, %v1780
        %v1782 = vpop.f32.mrf.mxu0
        %1783 = vdwg.mxu0
        %1784 = vmatprep.subr.mxu0 0.0
        %v1785 = vand.u32 %v361, 4294901760
        %v1786 = vsub.f32 %v361, %v1785
        %1787 = vmatpush1.msra.mxu0 %v1786
        %1788 = vmatprep.subr.mxu0 0.0
        %v1789 = vand.u32 %v360, 4294901760
        %v1790 = vsub.f32 %v360, %v1789
        %1791 = vmatpush1.msra.mxu0 %v1790
        %1792 = vmatprep.subr.mxu0 0.0
        %v1793 = vand.u32 %v359, 4294901760
        %v1794 = vsub.f32 %v359, %v1793
        %1795 = vmatpush1.msra.mxu0 %v1794
        %1796 = vmatprep.subr.mxu0 0.0
        %v1797 = vand.u32 %v358, 4294901760
        %v1798 = vsub.f32 %v358, %v1797
        %1799 = vmatpush1.msra.mxu0 %v1798
        %1800 = vmatprep.subr.mxu0 0.0
        %v1801 = vand.u32 %v357, 4294901760
        %v1802 = vsub.f32 %v357, %v1801
        %1803 = vmatpush1.msra.mxu0 %v1802
        %1804 = vmatprep.subr.mxu0 0.0
        %v1805 = vand.u32 %v356, 4294901760
        %v1806 = vsub.f32 %v356, %v1805
        %1807 = vmatpush1.msra.mxu0 %v1806
        %1808 = vmatprep.subr.mxu0 0.0
        %v1809 = vand.u32 %v355, 4294901760
        %v1810 = vsub.f32 %v355, %v1809
        %1811 = vmatpush1.msra.mxu0 %v1810
        %1812 = vmatprep.subr.mxu0 0.0
        %v1813 = vand.u32 %v354, 4294901760
        %v1814 = vsub.f32 %v354, %v1813
        %1815 = vmatpush1.msra.mxu0 %v1814
        %1816 = vmatprep.subr.mxu0 0.0
        %v1817 = vand.u32 %v353, 4294901760
        %v1818 = vsub.f32 %v353, %v1817
        %1819 = vmatpush1.msra.mxu0 %v1818
        %1820 = vmatprep.subr.mxu0 0.0
        %v1821 = vand.u32 %v352, 4294901760
        %v1822 = vsub.f32 %v352, %v1821
        %1823 = vmatpush1.msra.mxu0 %v1822
        %1824 = vmatprep.subr.mxu0 0.0
        %v1825 = vand.u32 %v351, 4294901760
        %v1826 = vsub.f32 %v351, %v1825
        %1827 = vmatpush1.msra.mxu0 %v1826
        %1828 = vmatprep.subr.mxu0 0.0
        %v1829 = vand.u32 %v350, 4294901760
        %v1830 = vsub.f32 %v350, %v1829
        %1831 = vmatpush1.msra.mxu0 %v1830
        %1832 = vmatprep.subr.mxu0 0.0
        %v1833 = vand.u32 %v349, 4294901760
        %v1834 = vsub.f32 %v349, %v1833
        %1835 = vmatpush1.msra.mxu0 %v1834
        %1836 = vmatprep.subr.mxu0 0.0
        %v1837 = vand.u32 %v348, 4294901760
        %v1838 = vsub.f32 %v348, %v1837
        %1839 = vmatpush1.msra.mxu0 %v1838
        %1840 = vmatprep.subr.mxu0 0.0
        %v1841 = vand.u32 %v347, 4294901760
        %v1842 = vsub.f32 %v347, %v1841
        %1843 = vmatpush1.msra.mxu0 %v1842
        %1844 = vmatprep.subr.mxu0 0.0
        %v1845 = vand.u32 %v346, 4294901760
        %v1846 = vsub.f32 %v346, %v1845
        %1847 = vmatpush1.msra.mxu0 %v1846
        %1848 = vmatprep.subr.mxu0 0.0
        %1849 = vmatpush2.msra.mxu0 0.0
        %1850 = vmatprep.subr.mxu0 0.0
        %1851 = vmatpush2.msra.mxu0 0.0
        %1852 = vmatprep.subr.mxu0 0.0
        %1853 = vmatpush2.msra.mxu0 0.0
        %1854 = vmatprep.subr.mxu0 0.0
        %1855 = vmatpush2.msra.mxu0 0.0
        %1856 = vmatprep.subr.mxu0 0.0
        %1857 = vmatpush2.msra.mxu0 0.0
        %1858 = vmatprep.subr.mxu0 0.0
        %1859 = vmatpush2.msra.mxu0 0.0
        %1860 = vmatprep.subr.mxu0 0.0
        %1861 = vmatpush2.msra.mxu0 0.0
        %1862 = vmatprep.subr.mxu0 0.0
        %1863 = vmatpush2.msra.mxu0 0.0
        %1864 = vmatprep.subr.mxu0 0.0
        %1865 = vmatpush2.msra.mxu0 0.0
        %1866 = vmatprep.subr.mxu0 0.0
        %1867 = vmatpush2.msra.mxu0 0.0
        %1868 = vmatprep.subr.mxu0 0.0
        %1869 = vmatpush2.msra.mxu0 0.0
        %1870 = vmatprep.subr.mxu0 0.0
        %1871 = vmatpush2.msra.mxu0 0.0
        %1872 = vmatprep.subr.mxu0 0.0
        %1873 = vmatpush2.msra.mxu0 0.0
        %1874 = vmatprep.subr.mxu0 0.0
        %1875 = vmatpush2.msra.mxu0 0.0
        %1876 = vmatprep.subr.mxu0 0.0
        %1877 = vmatpush2.msra.mxu0 0.0
        %1878 = vmatprep.subr.mxu0 0.0
        %1879 = vmatpush2.msra.mxu0 0.0
        %1880 = vmatprep.mubr.f32.mxu0 0.0
        %v1881 = vand.u32 %v1541, 4294901760
        %v1882 = vsub.f32 %v1541, %v1881
        %1883 = vmatmul.mubr.f32.gmra.mxu0 %v1882
        %v1884 = vpop.f32.mrf.mxu0
        %v1885 = vadd.f32 %v1781, %v1884
        %v1886 = vpop.f32.mrf.mxu0
        %1887 = vdwg.mxu0
        %1888 = vmatprep.subr.mxu0 0.0
        %v1889 = vand.u32 %v361, 4294901760
        %1890 = vmatpush1.msra.mxu0 %v1889
        %1891 = vmatprep.subr.mxu0 0.0
        %v1892 = vand.u32 %v360, 4294901760
        %1893 = vmatpush1.msra.mxu0 %v1892
        %1894 = vmatprep.subr.mxu0 0.0
        %v1895 = vand.u32 %v359, 4294901760
        %1896 = vmatpush1.msra.mxu0 %v1895
        %1897 = vmatprep.subr.mxu0 0.0
        %v1898 = vand.u32 %v358, 4294901760
        %1899 = vmatpush1.msra.mxu0 %v1898
        %1900 = vmatprep.subr.mxu0 0.0
        %v1901 = vand.u32 %v357, 4294901760
        %1902 = vmatpush1.msra.mxu0 %v1901
        %1903 = vmatprep.subr.mxu0 0.0
        %v1904 = vand.u32 %v356, 4294901760
        %1905 = vmatpush1.msra.mxu0 %v1904
        %1906 = vmatprep.subr.mxu0 0.0
        %v1907 = vand.u32 %v355, 4294901760
        %1908 = vmatpush1.msra.mxu0 %v1907
        %1909 = vmatprep.subr.mxu0 0.0
        %v1910 = vand.u32 %v354, 4294901760
        %1911 = vmatpush1.msra.mxu0 %v1910
        %1912 = vmatprep.subr.mxu0 0.0
        %v1913 = vand.u32 %v353, 4294901760
        %1914 = vmatpush1.msra.mxu0 %v1913
        %1915 = vmatprep.subr.mxu0 0.0
        %v1916 = vand.u32 %v352, 4294901760
        %1917 = vmatpush1.msra.mxu0 %v1916
        %1918 = vmatprep.subr.mxu0 0.0
        %v1919 = vand.u32 %v351, 4294901760
        %1920 = vmatpush1.msra.mxu0 %v1919
        %1921 = vmatprep.subr.mxu0 0.0
        %v1922 = vand.u32 %v350, 4294901760
        %1923 = vmatpush1.msra.mxu0 %v1922
        %1924 = vmatprep.subr.mxu0 0.0
        %v1925 = vand.u32 %v349, 4294901760
        %1926 = vmatpush1.msra.mxu0 %v1925
        %1927 = vmatprep.subr.mxu0 0.0
        %v1928 = vand.u32 %v348, 4294901760
        %1929 = vmatpush1.msra.mxu0 %v1928
        %1930 = vmatprep.subr.mxu0 0.0
        %v1931 = vand.u32 %v347, 4294901760
        %1932 = vmatpush1.msra.mxu0 %v1931
        %1933 = vmatprep.subr.mxu0 0.0
        %v1934 = vand.u32 %v346, 4294901760
        %1935 = vmatpush1.msra.mxu0 %v1934
        %1936 = vmatprep.subr.mxu0 0.0
        %1937 = vmatpush2.msra.mxu0 0.0
        %1938 = vmatprep.subr.mxu0 0.0
        %1939 = vmatpush2.msra.mxu0 0.0
        %1940 = vmatprep.subr.mxu0 0.0
        %1941 = vmatpush2.msra.mxu0 0.0
        %1942 = vmatprep.subr.mxu0 0.0
        %1943 = vmatpush2.msra.mxu0 0.0
        %1944 = vmatprep.subr.mxu0 0.0
        %1945 = vmatpush2.msra.mxu0 0.0
        %1946 = vmatprep.subr.mxu0 0.0
        %1947 = vmatpush2.msra.mxu0 0.0
        %1948 = vmatprep.subr.mxu0 0.0
        %1949 = vmatpush2.msra.mxu0 0.0
        %1950 = vmatprep.subr.mxu0 0.0
        %1951 = vmatpush2.msra.mxu0 0.0
        %1952 = vmatprep.subr.mxu0 0.0
        %1953 = vmatpush2.msra.mxu0 0.0
        %1954 = vmatprep.subr.mxu0 0.0
        %1955 = vmatpush2.msra.mxu0 0.0
        %1956 = vmatprep.subr.mxu0 0.0
        %1957 = vmatpush2.msra.mxu0 0.0
        %1958 = vmatprep.subr.mxu0 0.0
        %1959 = vmatpush2.msra.mxu0 0.0
        %1960 = vmatprep.subr.mxu0 0.0
        %1961 = vmatpush2.msra.mxu0 0.0
        %1962 = vmatprep.subr.mxu0 0.0
        %1963 = vmatpush2.msra.mxu0 0.0
        %1964 = vmatprep.subr.mxu0 0.0
        %1965 = vmatpush2.msra.mxu0 0.0
        %1966 = vmatprep.subr.mxu0 0.0
        %1967 = vmatpush2.msra.mxu0 0.0
        %1968 = vmatprep.mubr.f32.mxu0 0.0
        %v1969 = vand.u32 %v1541, 4294901760
        %v1970 = vsub.f32 %v1541, %v1969
        %v1971 = vand.u32 %v1970, 4294901760
        %1972 = vmatmul.mubr.f32.gmra.mxu0 %v1971
        %v1973 = vpop.f32.mrf.mxu0
        %v1974 = vadd.f32 %v1885, %v1973
        %v1975 = vpop.f32.mrf.mxu0
        %1976 = vdwg.mxu0
        %1977 = vmatprep.subr.mxu0 0.0
        %v1978 = vand.u32 %v361, 4294901760
        %v1979 = vsub.f32 %v361, %v1978
        %v1980 = vand.u32 %v1979, 4294901760
        %1981 = vmatpush1.msra.mxu0 %v1980
        %1982 = vmatprep.subr.mxu0 0.0
        %v1983 = vand.u32 %v360, 4294901760
        %v1984 = vsub.f32 %v360, %v1983
        %v1985 = vand.u32 %v1984, 4294901760
        %1986 = vmatpush1.msra.mxu0 %v1985
        %1987 = vmatprep.subr.mxu0 0.0
        %v1988 = vand.u32 %v359, 4294901760
        %v1989 = vsub.f32 %v359, %v1988
        %v1990 = vand.u32 %v1989, 4294901760
        %1991 = vmatpush1.msra.mxu0 %v1990
        %1992 = vmatprep.subr.mxu0 0.0
        %v1993 = vand.u32 %v358, 4294901760
        %v1994 = vsub.f32 %v358, %v1993
        %v1995 = vand.u32 %v1994, 4294901760
        %1996 = vmatpush1.msra.mxu0 %v1995
        %1997 = vmatprep.subr.mxu0 0.0
        %v1998 = vand.u32 %v357, 4294901760
        %v1999 = vsub.f32 %v357, %v1998
        %v2000 = vand.u32 %v1999, 4294901760
        %2001 = vmatpush1.msra.mxu0 %v2000
        %2002 = vmatprep.subr.mxu0 0.0
        %v2003 = vand.u32 %v356, 4294901760
        %v2004 = vsub.f32 %v356, %v2003
        %v2005 = vand.u32 %v2004, 4294901760
        %2006 = vmatpush1.msra.mxu0 %v2005
        %2007 = vmatprep.subr.mxu0 0.0
        %v2008 = vand.u32 %v355, 4294901760
        %v2009 = vsub.f32 %v355, %v2008
        %v2010 = vand.u32 %v2009, 4294901760
        %2011 = vmatpush1.msra.mxu0 %v2010
        %2012 = vmatprep.subr.mxu0 0.0
        %v2013 = vand.u32 %v354, 4294901760
        %v2014 = vsub.f32 %v354, %v2013
        %v2015 = vand.u32 %v2014, 4294901760
        %2016 = vmatpush1.msra.mxu0 %v2015
        %2017 = vmatprep.subr.mxu0 0.0
        %v2018 = vand.u32 %v353, 4294901760
        %v2019 = vsub.f32 %v353, %v2018
        %v2020 = vand.u32 %v2019, 4294901760
        %2021 = vmatpush1.msra.mxu0 %v2020
        %2022 = vmatprep.subr.mxu0 0.0
        %v2023 = vand.u32 %v352, 4294901760
        %v2024 = vsub.f32 %v352, %v2023
        %v2025 = vand.u32 %v2024, 4294901760
        %2026 = vmatpush1.msra.mxu0 %v2025
        %2027 = vmatprep.subr.mxu0 0.0
        %v2028 = vand.u32 %v351, 4294901760
        %v2029 = vsub.f32 %v351, %v2028
        %v2030 = vand.u32 %v2029, 4294901760
        %2031 = vmatpush1.msra.mxu0 %v2030
        %2032 = vmatprep.subr.mxu0 0.0
        %v2033 = vand.u32 %v350, 4294901760
        %v2034 = vsub.f32 %v350, %v2033
        %v2035 = vand.u32 %v2034, 4294901760
        %2036 = vmatpush1.msra.mxu0 %v2035
        %2037 = vmatprep.subr.mxu0 0.0
        %v2038 = vand.u32 %v349, 4294901760
        %v2039 = vsub.f32 %v349, %v2038
        %v2040 = vand.u32 %v2039, 4294901760
        %2041 = vmatpush1.msra.mxu0 %v2040
        %2042 = vmatprep.subr.mxu0 0.0
        %v2043 = vand.u32 %v348, 4294901760
        %v2044 = vsub.f32 %v348, %v2043
        %v2045 = vand.u32 %v2044, 4294901760
        %2046 = vmatpush1.msra.mxu0 %v2045
        %2047 = vmatprep.subr.mxu0 0.0
        %v2048 = vand.u32 %v347, 4294901760
        %v2049 = vsub.f32 %v347, %v2048
        %v2050 = vand.u32 %v2049, 4294901760
        %2051 = vmatpush1.msra.mxu0 %v2050
        %2052 = vmatprep.subr.mxu0 0.0
        %v2053 = vand.u32 %v346, 4294901760
        %v2054 = vsub.f32 %v346, %v2053
        %v2055 = vand.u32 %v2054, 4294901760
        %2056 = vmatpush1.msra.mxu0 %v2055
        %2057 = vmatprep.subr.mxu0 0.0
        %2058 = vmatpush2.msra.mxu0 0.0
        %2059 = vmatprep.subr.mxu0 0.0
        %2060 = vmatpush2.msra.mxu0 0.0
        %2061 = vmatprep.subr.mxu0 0.0
        %2062 = vmatpush2.msra.mxu0 0.0
        %2063 = vmatprep.subr.mxu0 0.0
        %2064 = vmatpush2.msra.mxu0 0.0
        %2065 = vmatprep.subr.mxu0 0.0
        %2066 = vmatpush2.msra.mxu0 0.0
        %2067 = vmatprep.subr.mxu0 0.0
        %2068 = vmatpush2.msra.mxu0 0.0
        %2069 = vmatprep.subr.mxu0 0.0
        %2070 = vmatpush2.msra.mxu0 0.0
        %2071 = vmatprep.subr.mxu0 0.0
        %2072 = vmatpush2.msra.mxu0 0.0
        %2073 = vmatprep.subr.mxu0 0.0
        %2074 = vmatpush2.msra.mxu0 0.0
        %2075 = vmatprep.subr.mxu0 0.0
        %2076 = vmatpush2.msra.mxu0 0.0
        %2077 = vmatprep.subr.mxu0 0.0
        %2078 = vmatpush2.msra.mxu0 0.0
        %2079 = vmatprep.subr.mxu0 0.0
        %2080 = vmatpush2.msra.mxu0 0.0
        %2081 = vmatprep.subr.mxu0 0.0
        %2082 = vmatpush2.msra.mxu0 0.0
        %2083 = vmatprep.subr.mxu0 0.0
        %2084 = vmatpush2.msra.mxu0 0.0
        %2085 = vmatprep.subr.mxu0 0.0
        %2086 = vmatpush2.msra.mxu0 0.0
        %2087 = vmatprep.subr.mxu0 0.0
        %2088 = vmatpush2.msra.mxu0 0.0
        %2089 = vmatprep.mubr.f32.mxu0 0.0
        %v2090 = vand.u32 %v1541, 4294901760
        %2091 = vmatmul.mubr.f32.gmra.mxu0 %v2090
        %v2092 = vpop.f32.mrf.mxu0
        %v2093 = vadd.f32 %v1974, %v2092
        %v2094 = vpop.f32.mrf.mxu0
        %2095 = vdwg.mxu0
        %2096 = vmatprep.subr.mxu0 0.0
        %v2097 = vand.u32 %v361, 4294901760
        %2098 = vmatpush1.msra.mxu0 %v2097
        %2099 = vmatprep.subr.mxu0 0.0
        %v2100 = vand.u32 %v360, 4294901760
        %2101 = vmatpush1.msra.mxu0 %v2100
        %2102 = vmatprep.subr.mxu0 0.0
        %v2103 = vand.u32 %v359, 4294901760
        %2104 = vmatpush1.msra.mxu0 %v2103
        %2105 = vmatprep.subr.mxu0 0.0
        %v2106 = vand.u32 %v358, 4294901760
        %2107 = vmatpush1.msra.mxu0 %v2106
        %2108 = vmatprep.subr.mxu0 0.0
        %v2109 = vand.u32 %v357, 4294901760
        %2110 = vmatpush1.msra.mxu0 %v2109
        %2111 = vmatprep.subr.mxu0 0.0
        %v2112 = vand.u32 %v356, 4294901760
        %2113 = vmatpush1.msra.mxu0 %v2112
        %2114 = vmatprep.subr.mxu0 0.0
        %v2115 = vand.u32 %v355, 4294901760
        %2116 = vmatpush1.msra.mxu0 %v2115
        %2117 = vmatprep.subr.mxu0 0.0
        %v2118 = vand.u32 %v354, 4294901760
        %2119 = vmatpush1.msra.mxu0 %v2118
        %2120 = vmatprep.subr.mxu0 0.0
        %v2121 = vand.u32 %v353, 4294901760
        %2122 = vmatpush1.msra.mxu0 %v2121
        %2123 = vmatprep.subr.mxu0 0.0
        %v2124 = vand.u32 %v352, 4294901760
        %2125 = vmatpush1.msra.mxu0 %v2124
        %2126 = vmatprep.subr.mxu0 0.0
        %v2127 = vand.u32 %v351, 4294901760
        %2128 = vmatpush1.msra.mxu0 %v2127
        %2129 = vmatprep.subr.mxu0 0.0
        %v2130 = vand.u32 %v350, 4294901760
        %2131 = vmatpush1.msra.mxu0 %v2130
        %2132 = vmatprep.subr.mxu0 0.0
        %v2133 = vand.u32 %v349, 4294901760
        %2134 = vmatpush1.msra.mxu0 %v2133
        %2135 = vmatprep.subr.mxu0 0.0
        %v2136 = vand.u32 %v348, 4294901760
        %2137 = vmatpush1.msra.mxu0 %v2136
        %2138 = vmatprep.subr.mxu0 0.0
        %v2139 = vand.u32 %v347, 4294901760
        %2140 = vmatpush1.msra.mxu0 %v2139
        %2141 = vmatprep.subr.mxu0 0.0
        %v2142 = vand.u32 %v346, 4294901760
        %2143 = vmatpush1.msra.mxu0 %v2142
        %2144 = vmatprep.subr.mxu0 0.0
        %2145 = vmatpush2.msra.mxu0 0.0
        %2146 = vmatprep.subr.mxu0 0.0
        %2147 = vmatpush2.msra.mxu0 0.0
        %2148 = vmatprep.subr.mxu0 0.0
        %2149 = vmatpush2.msra.mxu0 0.0
        %2150 = vmatprep.subr.mxu0 0.0
        %2151 = vmatpush2.msra.mxu0 0.0
        %2152 = vmatprep.subr.mxu0 0.0
        %2153 = vmatpush2.msra.mxu0 0.0
        %2154 = vmatprep.subr.mxu0 0.0
        %2155 = vmatpush2.msra.mxu0 0.0
        %2156 = vmatprep.subr.mxu0 0.0
        %2157 = vmatpush2.msra.mxu0 0.0
        %2158 = vmatprep.subr.mxu0 0.0
        %2159 = vmatpush2.msra.mxu0 0.0
        %2160 = vmatprep.subr.mxu0 0.0
        %2161 = vmatpush2.msra.mxu0 0.0
        %2162 = vmatprep.subr.mxu0 0.0
        %2163 = vmatpush2.msra.mxu0 0.0
        %2164 = vmatprep.subr.mxu0 0.0
        %2165 = vmatpush2.msra.mxu0 0.0
        %2166 = vmatprep.subr.mxu0 0.0
        %2167 = vmatpush2.msra.mxu0 0.0
        %2168 = vmatprep.subr.mxu0 0.0
        %2169 = vmatpush2.msra.mxu0 0.0
        %2170 = vmatprep.subr.mxu0 0.0
        %2171 = vmatpush2.msra.mxu0 0.0
        %2172 = vmatprep.subr.mxu0 0.0
        %2173 = vmatpush2.msra.mxu0 0.0
        %2174 = vmatprep.subr.mxu0 0.0
        %2175 = vmatpush2.msra.mxu0 0.0
        %2176 = vmatprep.mubr.f32.mxu0 0.0
        %v2177 = vand.u32 %v1541, 4294901760
        %2178 = vmatmul.mubr.f32.gmra.mxu0 %v2177
        %v2179 = vpop.f32.mrf.mxu0
        %v2180 = vadd.f32 %v2093, %v2179
        %v2181 = vpop.f32.mrf.mxu0
        %2182 = vdwg.mxu0
        %v2183 = vrsqrt.pop %v2180
        %v2185 = vsel %vm1090, %v2183, 0
        %2187 = vmatprep.subr.mxu0 0.0
        %2188 = vmatpush1.msra.mxu0 0.0
        %2189 = vmatprep.subr.mxu0 0.0
        %2190 = vmatpush1.msra.mxu0 0.0
        %2191 = vmatprep.subr.mxu0 0.0
        %2192 = vmatpush1.msra.mxu0 0.0
        %2193 = vmatprep.subr.mxu0 0.0
        %2194 = vmatpush1.msra.mxu0 0.0
        %2195 = vmatprep.subr.mxu0 0.0
        %2196 = vmatpush1.msra.mxu0 0.0
        %2197 = vmatprep.subr.mxu0 0.0
        %2198 = vmatpush1.msra.mxu0 0.0
        %2199 = vmatprep.subr.mxu0 0.0
        %2200 = vmatpush1.msra.mxu0 0.0
        %2201 = vmatprep.subr.mxu0 0.0
        %2202 = vmatpush1.msra.mxu0 0.0
        %2203 = vmatprep.subr.mxu0 0.0
        %2204 = vmatpush1.msra.mxu0 0.0
        %2205 = vmatprep.subr.mxu0 0.0
        %2206 = vmatpush1.msra.mxu0 0.0
        %2207 = vmatprep.subr.mxu0 0.0
        %2208 = vmatpush1.msra.mxu0 0.0
        %2209 = vmatprep.subr.mxu0 0.0
        %2210 = vmatpush1.msra.mxu0 0.0
        %2211 = vmatprep.subr.mxu0 0.0
        %2212 = vmatpush1.msra.mxu0 0.0
        %2213 = vmatprep.subr.mxu0 0.0
        %2214 = vmatpush1.msra.mxu0 0.0
        %2215 = vmatprep.subr.mxu0 0.0
        %2216 = vmatpush1.msra.mxu0 0.0
        %2217 = vmatprep.subr.mxu0 0.0
        %v2218 = vand.u32 %v363, 4294901760
        %2219 = vmatpush1.msra.mxu0 %v2218
        %2220 = vmatprep.subr.mxu0 0.0
        %2221 = vmatpush2.msra.mxu0 0.0
        %2222 = vmatprep.subr.mxu0 0.0
        %2223 = vmatpush2.msra.mxu0 0.0
        %2224 = vmatprep.subr.mxu0 0.0
        %2225 = vmatpush2.msra.mxu0 0.0
        %2226 = vmatprep.subr.mxu0 0.0
        %2227 = vmatpush2.msra.mxu0 0.0
        %2228 = vmatprep.subr.mxu0 0.0
        %2229 = vmatpush2.msra.mxu0 0.0
        %2230 = vmatprep.subr.mxu0 0.0
        %2231 = vmatpush2.msra.mxu0 0.0
        %2232 = vmatprep.subr.mxu0 0.0
        %2233 = vmatpush2.msra.mxu0 0.0
        %2234 = vmatprep.subr.mxu0 0.0
        %2235 = vmatpush2.msra.mxu0 0.0
        %2236 = vmatprep.subr.mxu0 0.0
        %2237 = vmatpush2.msra.mxu0 0.0
        %2238 = vmatprep.subr.mxu0 0.0
        %2239 = vmatpush2.msra.mxu0 0.0
        %2240 = vmatprep.subr.mxu0 0.0
        %2241 = vmatpush2.msra.mxu0 0.0
        %2242 = vmatprep.subr.mxu0 0.0
        %2243 = vmatpush2.msra.mxu0 0.0
        %2244 = vmatprep.subr.mxu0 0.0
        %2245 = vmatpush2.msra.mxu0 0.0
        %2246 = vmatprep.subr.mxu0 0.0
        %2247 = vmatpush2.msra.mxu0 0.0
        %2248 = vmatprep.subr.mxu0 0.0
        %2249 = vmatpush2.msra.mxu0 0.0
        %2250 = vmatprep.subr.mxu0 0.0
        %2251 = vmatpush2.msra.mxu0 0.0
        %2252 = vmatprep.mubr.f32.mxu0 0.0
        %v2253 = vand.u32 %v2185, 4294901760
        %v2254 = vsub.f32 %v2185, %v2253
        %v2255 = vand.u32 %v2254, 4294901760
        %v2256 = vsub.f32 %v2254, %v2255
        %v2257 = vand.u32 %v2256, 4294901760
        %2258 = vmatmul.mubr.f32.gmra.mxu0 %v2257
        %v2259 = vpop.f32.mrf.mxu0
        %v2260 = vadd.f32 0.0, %v2259
        %v2261 = vpop.f32.mrf.mxu0
        %2262 = vdwg.mxu0
        %2263 = vmatprep.subr.mxu0 0.0
        %2264 = vmatpush1.msra.mxu0 0.0
        %2265 = vmatprep.subr.mxu0 0.0
        %2266 = vmatpush1.msra.mxu0 0.0
        %2267 = vmatprep.subr.mxu0 0.0
        %2268 = vmatpush1.msra.mxu0 0.0
        %2269 = vmatprep.subr.mxu0 0.0
        %2270 = vmatpush1.msra.mxu0 0.0
        %2271 = vmatprep.subr.mxu0 0.0
        %2272 = vmatpush1.msra.mxu0 0.0
        %2273 = vmatprep.subr.mxu0 0.0
        %2274 = vmatpush1.msra.mxu0 0.0
        %2275 = vmatprep.subr.mxu0 0.0
        %2276 = vmatpush1.msra.mxu0 0.0
        %2277 = vmatprep.subr.mxu0 0.0
        %2278 = vmatpush1.msra.mxu0 0.0
        %2279 = vmatprep.subr.mxu0 0.0
        %2280 = vmatpush1.msra.mxu0 0.0
        %2281 = vmatprep.subr.mxu0 0.0
        %2282 = vmatpush1.msra.mxu0 0.0
        %2283 = vmatprep.subr.mxu0 0.0
        %2284 = vmatpush1.msra.mxu0 0.0
        %2285 = vmatprep.subr.mxu0 0.0
        %2286 = vmatpush1.msra.mxu0 0.0
        %2287 = vmatprep.subr.mxu0 0.0
        %2288 = vmatpush1.msra.mxu0 0.0
        %2289 = vmatprep.subr.mxu0 0.0
        %2290 = vmatpush1.msra.mxu0 0.0
        %2291 = vmatprep.subr.mxu0 0.0
        %2292 = vmatpush1.msra.mxu0 0.0
        %2293 = vmatprep.subr.mxu0 0.0
        %v2294 = vand.u32 %v363, 4294901760
        %v2295 = vsub.f32 %v363, %v2294
        %v2296 = vand.u32 %v2295, 4294901760
        %v2297 = vsub.f32 %v2295, %v2296
        %v2298 = vand.u32 %v2297, 4294901760
        %2299 = vmatpush1.msra.mxu0 %v2298
        %2300 = vmatprep.subr.mxu0 0.0
        %2301 = vmatpush2.msra.mxu0 0.0
        %2302 = vmatprep.subr.mxu0 0.0
        %2303 = vmatpush2.msra.mxu0 0.0
        %2304 = vmatprep.subr.mxu0 0.0
        %2305 = vmatpush2.msra.mxu0 0.0
        %2306 = vmatprep.subr.mxu0 0.0
        %2307 = vmatpush2.msra.mxu0 0.0
        %2308 = vmatprep.subr.mxu0 0.0
        %2309 = vmatpush2.msra.mxu0 0.0
        %2310 = vmatprep.subr.mxu0 0.0
        %2311 = vmatpush2.msra.mxu0 0.0
        %2312 = vmatprep.subr.mxu0 0.0
        %2313 = vmatpush2.msra.mxu0 0.0
        %2314 = vmatprep.subr.mxu0 0.0
        %2315 = vmatpush2.msra.mxu0 0.0
        %2316 = vmatprep.subr.mxu0 0.0
        %2317 = vmatpush2.msra.mxu0 0.0
        %2318 = vmatprep.subr.mxu0 0.0
        %2319 = vmatpush2.msra.mxu0 0.0
        %2320 = vmatprep.subr.mxu0 0.0
        %2321 = vmatpush2.msra.mxu0 0.0
        %2322 = vmatprep.subr.mxu0 0.0
        %2323 = vmatpush2.msra.mxu0 0.0
        %2324 = vmatprep.subr.mxu0 0.0
        %2325 = vmatpush2.msra.mxu0 0.0
        %2326 = vmatprep.subr.mxu0 0.0
        %2327 = vmatpush2.msra.mxu0 0.0
        %2328 = vmatprep.subr.mxu0 0.0
        %2329 = vmatpush2.msra.mxu0 0.0
        %2330 = vmatprep.subr.mxu0 0.0
        %2331 = vmatpush2.msra.mxu0 0.0
        %2332 = vmatprep.mubr.f32.mxu0 0.0
        %v2333 = vand.u32 %v2185, 4294901760
        %2334 = vmatmul.mubr.f32.gmra.mxu0 %v2333
        %v2335 = vpop.f32.mrf.mxu0
        %v2336 = vadd.f32 %v2260, %v2335
        %v2337 = vpop.f32.mrf.mxu0
        %2338 = vdwg.mxu0
        %2339 = vmatprep.subr.mxu0 0.0
        %2340 = vmatpush1.msra.mxu0 0.0
        %2341 = vmatprep.subr.mxu0 0.0
        %2342 = vmatpush1.msra.mxu0 0.0
        %2343 = vmatprep.subr.mxu0 0.0
        %2344 = vmatpush1.msra.mxu0 0.0
        %2345 = vmatprep.subr.mxu0 0.0
        %2346 = vmatpush1.msra.mxu0 0.0
        %2347 = vmatprep.subr.mxu0 0.0
        %2348 = vmatpush1.msra.mxu0 0.0
        %2349 = vmatprep.subr.mxu0 0.0
        %2350 = vmatpush1.msra.mxu0 0.0
        %2351 = vmatprep.subr.mxu0 0.0
        %2352 = vmatpush1.msra.mxu0 0.0
        %2353 = vmatprep.subr.mxu0 0.0
        %2354 = vmatpush1.msra.mxu0 0.0
        %2355 = vmatprep.subr.mxu0 0.0
        %2356 = vmatpush1.msra.mxu0 0.0
        %2357 = vmatprep.subr.mxu0 0.0
        %2358 = vmatpush1.msra.mxu0 0.0
        %2359 = vmatprep.subr.mxu0 0.0
        %2360 = vmatpush1.msra.mxu0 0.0
        %2361 = vmatprep.subr.mxu0 0.0
        %2362 = vmatpush1.msra.mxu0 0.0
        %2363 = vmatprep.subr.mxu0 0.0
        %2364 = vmatpush1.msra.mxu0 0.0
        %2365 = vmatprep.subr.mxu0 0.0
        %2366 = vmatpush1.msra.mxu0 0.0
        %2367 = vmatprep.subr.mxu0 0.0
        %2368 = vmatpush1.msra.mxu0 0.0
        %2369 = vmatprep.subr.mxu0 0.0
        %v2370 = vand.u32 %v363, 4294901760
        %v2371 = vsub.f32 %v363, %v2370
        %2372 = vmatpush1.msra.mxu0 %v2371
        %2373 = vmatprep.subr.mxu0 0.0
        %2374 = vmatpush2.msra.mxu0 0.0
        %2375 = vmatprep.subr.mxu0 0.0
        %2376 = vmatpush2.msra.mxu0 0.0
        %2377 = vmatprep.subr.mxu0 0.0
        %2378 = vmatpush2.msra.mxu0 0.0
        %2379 = vmatprep.subr.mxu0 0.0
        %2380 = vmatpush2.msra.mxu0 0.0
        %2381 = vmatprep.subr.mxu0 0.0
        %2382 = vmatpush2.msra.mxu0 0.0
        %2383 = vmatprep.subr.mxu0 0.0
        %2384 = vmatpush2.msra.mxu0 0.0
        %2385 = vmatprep.subr.mxu0 0.0
        %2386 = vmatpush2.msra.mxu0 0.0
        %2387 = vmatprep.subr.mxu0 0.0
        %2388 = vmatpush2.msra.mxu0 0.0
        %2389 = vmatprep.subr.mxu0 0.0
        %2390 = vmatpush2.msra.mxu0 0.0
        %2391 = vmatprep.subr.mxu0 0.0
        %2392 = vmatpush2.msra.mxu0 0.0
        %2393 = vmatprep.subr.mxu0 0.0
        %2394 = vmatpush2.msra.mxu0 0.0
        %2395 = vmatprep.subr.mxu0 0.0
        %2396 = vmatpush2.msra.mxu0 0.0
        %2397 = vmatprep.subr.mxu0 0.0
        %2398 = vmatpush2.msra.mxu0 0.0
        %2399 = vmatprep.subr.mxu0 0.0
        %2400 = vmatpush2.msra.mxu0 0.0
        %2401 = vmatprep.subr.mxu0 0.0
        %2402 = vmatpush2.msra.mxu0 0.0
        %2403 = vmatprep.subr.mxu0 0.0
        %2404 = vmatpush2.msra.mxu0 0.0
        %2405 = vmatprep.mubr.f32.mxu0 0.0
        %v2406 = vand.u32 %v2185, 4294901760
        %v2407 = vsub.f32 %v2185, %v2406
        %2408 = vmatmul.mubr.f32.gmra.mxu0 %v2407
        %v2409 = vpop.f32.mrf.mxu0
        %v2410 = vadd.f32 %v2336, %v2409
        %v2411 = vpop.f32.mrf.mxu0
        %2412 = vdwg.mxu0
        %2413 = vmatprep.subr.mxu0 0.0
        %2414 = vmatpush1.msra.mxu0 0.0
        %2415 = vmatprep.subr.mxu0 0.0
        %2416 = vmatpush1.msra.mxu0 0.0
        %2417 = vmatprep.subr.mxu0 0.0
        %2418 = vmatpush1.msra.mxu0 0.0
        %2419 = vmatprep.subr.mxu0 0.0
        %2420 = vmatpush1.msra.mxu0 0.0
        %2421 = vmatprep.subr.mxu0 0.0
        %2422 = vmatpush1.msra.mxu0 0.0
        %2423 = vmatprep.subr.mxu0 0.0
        %2424 = vmatpush1.msra.mxu0 0.0
        %2425 = vmatprep.subr.mxu0 0.0
        %2426 = vmatpush1.msra.mxu0 0.0
        %2427 = vmatprep.subr.mxu0 0.0
        %2428 = vmatpush1.msra.mxu0 0.0
        %2429 = vmatprep.subr.mxu0 0.0
        %2430 = vmatpush1.msra.mxu0 0.0
        %2431 = vmatprep.subr.mxu0 0.0
        %2432 = vmatpush1.msra.mxu0 0.0
        %2433 = vmatprep.subr.mxu0 0.0
        %2434 = vmatpush1.msra.mxu0 0.0
        %2435 = vmatprep.subr.mxu0 0.0
        %2436 = vmatpush1.msra.mxu0 0.0
        %2437 = vmatprep.subr.mxu0 0.0
        %2438 = vmatpush1.msra.mxu0 0.0
        %2439 = vmatprep.subr.mxu0 0.0
        %2440 = vmatpush1.msra.mxu0 0.0
        %2441 = vmatprep.subr.mxu0 0.0
        %2442 = vmatpush1.msra.mxu0 0.0
        %2443 = vmatprep.subr.mxu0 0.0
        %v2444 = vand.u32 %v363, 4294901760
        %2445 = vmatpush1.msra.mxu0 %v2444
        %2446 = vmatprep.subr.mxu0 0.0
        %2447 = vmatpush2.msra.mxu0 0.0
        %2448 = vmatprep.subr.mxu0 0.0
        %2449 = vmatpush2.msra.mxu0 0.0
        %2450 = vmatprep.subr.mxu0 0.0
        %2451 = vmatpush2.msra.mxu0 0.0
        %2452 = vmatprep.subr.mxu0 0.0
        %2453 = vmatpush2.msra.mxu0 0.0
        %2454 = vmatprep.subr.mxu0 0.0
        %2455 = vmatpush2.msra.mxu0 0.0
        %2456 = vmatprep.subr.mxu0 0.0
        %2457 = vmatpush2.msra.mxu0 0.0
        %2458 = vmatprep.subr.mxu0 0.0
        %2459 = vmatpush2.msra.mxu0 0.0
        %2460 = vmatprep.subr.mxu0 0.0
        %2461 = vmatpush2.msra.mxu0 0.0
        %2462 = vmatprep.subr.mxu0 0.0
        %2463 = vmatpush2.msra.mxu0 0.0
        %2464 = vmatprep.subr.mxu0 0.0
        %2465 = vmatpush2.msra.mxu0 0.0
        %2466 = vmatprep.subr.mxu0 0.0
        %2467 = vmatpush2.msra.mxu0 0.0
        %2468 = vmatprep.subr.mxu0 0.0
        %2469 = vmatpush2.msra.mxu0 0.0
        %2470 = vmatprep.subr.mxu0 0.0
        %2471 = vmatpush2.msra.mxu0 0.0
        %2472 = vmatprep.subr.mxu0 0.0
        %2473 = vmatpush2.msra.mxu0 0.0
        %2474 = vmatprep.subr.mxu0 0.0
        %2475 = vmatpush2.msra.mxu0 0.0
        %2476 = vmatprep.subr.mxu0 0.0
        %2477 = vmatpush2.msra.mxu0 0.0
        %2478 = vmatprep.mubr.f32.mxu0 0.0
        %v2479 = vand.u32 %v2185, 4294901760
        %v2480 = vsub.f32 %v2185, %v2479
        %v2481 = vand.u32 %v2480, 4294901760
        %2482 = vmatmul.mubr.f32.gmra.mxu0 %v2481
        %v2483 = vpop.f32.mrf.mxu0
        %v2484 = vadd.f32 %v2410, %v2483
        %v2485 = vpop.f32.mrf.mxu0
        %2486 = vdwg.mxu0
        %2487 = vmatprep.subr.mxu0 0.0
        %2488 = vmatpush1.msra.mxu0 0.0
        %2489 = vmatprep.subr.mxu0 0.0
        %2490 = vmatpush1.msra.mxu0 0.0
        %2491 = vmatprep.subr.mxu0 0.0
        %2492 = vmatpush1.msra.mxu0 0.0
        %2493 = vmatprep.subr.mxu0 0.0
        %2494 = vmatpush1.msra.mxu0 0.0
        %2495 = vmatprep.subr.mxu0 0.0
        %2496 = vmatpush1.msra.mxu0 0.0
        %2497 = vmatprep.subr.mxu0 0.0
        %2498 = vmatpush1.msra.mxu0 0.0
        %2499 = vmatprep.subr.mxu0 0.0
        %2500 = vmatpush1.msra.mxu0 0.0
        %2501 = vmatprep.subr.mxu0 0.0
        %2502 = vmatpush1.msra.mxu0 0.0
        %2503 = vmatprep.subr.mxu0 0.0
        %2504 = vmatpush1.msra.mxu0 0.0
        %2505 = vmatprep.subr.mxu0 0.0
        %2506 = vmatpush1.msra.mxu0 0.0
        %2507 = vmatprep.subr.mxu0 0.0
        %2508 = vmatpush1.msra.mxu0 0.0
        %2509 = vmatprep.subr.mxu0 0.0
        %2510 = vmatpush1.msra.mxu0 0.0
        %2511 = vmatprep.subr.mxu0 0.0
        %2512 = vmatpush1.msra.mxu0 0.0
        %2513 = vmatprep.subr.mxu0 0.0
        %2514 = vmatpush1.msra.mxu0 0.0
        %2515 = vmatprep.subr.mxu0 0.0
        %2516 = vmatpush1.msra.mxu0 0.0
        %2517 = vmatprep.subr.mxu0 0.0
        %v2518 = vand.u32 %v363, 4294901760
        %v2519 = vsub.f32 %v363, %v2518
        %v2520 = vand.u32 %v2519, 4294901760
        %2521 = vmatpush1.msra.mxu0 %v2520
        %2522 = vmatprep.subr.mxu0 0.0
        %2523 = vmatpush2.msra.mxu0 0.0
        %2524 = vmatprep.subr.mxu0 0.0
        %2525 = vmatpush2.msra.mxu0 0.0
        %2526 = vmatprep.subr.mxu0 0.0
        %2527 = vmatpush2.msra.mxu0 0.0
        %2528 = vmatprep.subr.mxu0 0.0
        %2529 = vmatpush2.msra.mxu0 0.0
        %2530 = vmatprep.subr.mxu0 0.0
        %2531 = vmatpush2.msra.mxu0 0.0
        %2532 = vmatprep.subr.mxu0 0.0
        %2533 = vmatpush2.msra.mxu0 0.0
        %2534 = vmatprep.subr.mxu0 0.0
        %2535 = vmatpush2.msra.mxu0 0.0
        %2536 = vmatprep.subr.mxu0 0.0
        %2537 = vmatpush2.msra.mxu0 0.0
        %2538 = vmatprep.subr.mxu0 0.0
        %2539 = vmatpush2.msra.mxu0 0.0
        %2540 = vmatprep.subr.mxu0 0.0
        %2541 = vmatpush2.msra.mxu0 0.0
        %2542 = vmatprep.subr.mxu0 0.0
        %2543 = vmatpush2.msra.mxu0 0.0
        %2544 = vmatprep.subr.mxu0 0.0
        %2545 = vmatpush2.msra.mxu0 0.0
        %2546 = vmatprep.subr.mxu0 0.0
        %2547 = vmatpush2.msra.mxu0 0.0
        %2548 = vmatprep.subr.mxu0 0.0
        %2549 = vmatpush2.msra.mxu0 0.0
        %2550 = vmatprep.subr.mxu0 0.0
        %2551 = vmatpush2.msra.mxu0 0.0
        %2552 = vmatprep.subr.mxu0 0.0
        %2553 = vmatpush2.msra.mxu0 0.0
        %2554 = vmatprep.mubr.f32.mxu0 0.0
        %v2555 = vand.u32 %v2185, 4294901760
        %2556 = vmatmul.mubr.f32.gmra.mxu0 %v2555
        %v2557 = vpop.f32.mrf.mxu0
        %v2558 = vadd.f32 %v2484, %v2557
        %v2559 = vpop.f32.mrf.mxu0
        %2560 = vdwg.mxu0
        %2561 = vmatprep.subr.mxu0 0.0
        %2562 = vmatpush1.msra.mxu0 0.0
        %2563 = vmatprep.subr.mxu0 0.0
        %2564 = vmatpush1.msra.mxu0 0.0
        %2565 = vmatprep.subr.mxu0 0.0
        %2566 = vmatpush1.msra.mxu0 0.0
        %2567 = vmatprep.subr.mxu0 0.0
        %2568 = vmatpush1.msra.mxu0 0.0
        %2569 = vmatprep.subr.mxu0 0.0
        %2570 = vmatpush1.msra.mxu0 0.0
        %2571 = vmatprep.subr.mxu0 0.0
        %2572 = vmatpush1.msra.mxu0 0.0
        %2573 = vmatprep.subr.mxu0 0.0
        %2574 = vmatpush1.msra.mxu0 0.0
        %2575 = vmatprep.subr.mxu0 0.0
        %2576 = vmatpush1.msra.mxu0 0.0
        %2577 = vmatprep.subr.mxu0 0.0
        %2578 = vmatpush1.msra.mxu0 0.0
        %2579 = vmatprep.subr.mxu0 0.0
        %2580 = vmatpush1.msra.mxu0 0.0
        %2581 = vmatprep.subr.mxu0 0.0
        %2582 = vmatpush1.msra.mxu0 0.0
        %2583 = vmatprep.subr.mxu0 0.0
        %2584 = vmatpush1.msra.mxu0 0.0
        %2585 = vmatprep.subr.mxu0 0.0
        %2586 = vmatpush1.msra.mxu0 0.0
        %2587 = vmatprep.subr.mxu0 0.0
        %2588 = vmatpush1.msra.mxu0 0.0
        %2589 = vmatprep.subr.mxu0 0.0
        %2590 = vmatpush1.msra.mxu0 0.0
        %2591 = vmatprep.subr.mxu0 0.0
        %v2592 = vand.u32 %v363, 4294901760
        %2593 = vmatpush1.msra.mxu0 %v2592
        %2594 = vmatprep.subr.mxu0 0.0
        %2595 = vmatpush2.msra.mxu0 0.0
        %2596 = vmatprep.subr.mxu0 0.0
        %2597 = vmatpush2.msra.mxu0 0.0
        %2598 = vmatprep.subr.mxu0 0.0
        %2599 = vmatpush2.msra.mxu0 0.0
        %2600 = vmatprep.subr.mxu0 0.0
        %2601 = vmatpush2.msra.mxu0 0.0
        %2602 = vmatprep.subr.mxu0 0.0
        %2603 = vmatpush2.msra.mxu0 0.0
        %2604 = vmatprep.subr.mxu0 0.0
        %2605 = vmatpush2.msra.mxu0 0.0
        %2606 = vmatprep.subr.mxu0 0.0
        %2607 = vmatpush2.msra.mxu0 0.0
        %2608 = vmatprep.subr.mxu0 0.0
        %2609 = vmatpush2.msra.mxu0 0.0
        %2610 = vmatprep.subr.mxu0 0.0
        %2611 = vmatpush2.msra.mxu0 0.0
        %2612 = vmatprep.subr.mxu0 0.0
        %2613 = vmatpush2.msra.mxu0 0.0
        %2614 = vmatprep.subr.mxu0 0.0
        %2615 = vmatpush2.msra.mxu0 0.0
        %2616 = vmatprep.subr.mxu0 0.0
        %2617 = vmatpush2.msra.mxu0 0.0
        %2618 = vmatprep.subr.mxu0 0.0
        %2619 = vmatpush2.msra.mxu0 0.0
        %2620 = vmatprep.subr.mxu0 0.0
        %2621 = vmatpush2.msra.mxu0 0.0
        %2622 = vmatprep.subr.mxu0 0.0
        %2623 = vmatpush2.msra.mxu0 0.0
        %2624 = vmatprep.subr.mxu0 0.0
        %2625 = vmatpush2.msra.mxu0 0.0
        %2626 = vmatprep.mubr.f32.mxu0 0.0
        %v2627 = vand.u32 %v2185, 4294901760
        %2628 = vmatmul.mubr.f32.gmra.mxu0 %v2627
        %v2629 = vpop.f32.mrf.mxu0
        %v2630 = vadd.f32 %v2558, %v2629
        %v2631 = vpop.f32.mrf.mxu0
        %2632 = vdwg.mxu0
        %v2633 = vmul.f32 %v1540, %v2630
        %v2634 = vadd.f32 %v2633, %v369
        %v2637 = vunpack.c.l.s4 1966171168
        %v2638 = vunpack.c.0.s8 %v2637
        %v2639 = vlaneseq
        %v2640 = vshrl.u32 %v2639, 7
        %v2641 = vsub.s32 %v2638, %v2640
        %v2642 = vrot.slane %v2634, %v2641
        %v2643 = vcombine.high %v2642, %v2642
        %v2645 = vunpack.c.l.s4 1966171168
        %v2646 = vunpack.c.0.s8 %v2645
        %v2647 = vlaneseq
        %v2648 = vshrl.u32 %v2647, 7
        %v2649 = vsub.s32 %v2646, %v2648
        %v2650 = vrot.slane %v2642, %v2649
        %v2652 = vunpack.c.l.s4 1966171168
        %v2653 = vunpack.c.0.s8 %v2652
        %v2654 = vlaneseq
        %v2655 = vshrl.u32 %v2654, 7
        %v2656 = vsub.s32 %v2653, %v2655
        %v2657 = vrot.slane %v2643, %v2656
        %2660 = vst [vmem:[%s311] sm:$0x1] %v2650
        %2661 = vst [vmem:[%s311 + $0x4] sm:$0x1] %v2657
        %v2662 = vld [vmem:[%s277] sm:$0x1]
        %v2663 = vld [vmem:[%s277 + $0x2] sm:$0x1]
        %v2666 = vrot.slane %v2663, 7
        %v2667 = vsel %vm376, %v2666, %v2662
        %2669 = vmatprep.subr.mxu0 0.0
        %2670 = vmatpush1.msra.mxu0 %v345
        %2671 = vmatprep.subr.mxu0 0.0
        %2672 = vmatpush1.msra.mxu0 %v344
        %2673 = vmatprep.subr.mxu0 0.0
        %2674 = vmatpush1.msra.mxu0 %v343
        %2675 = vmatprep.subr.mxu0 0.0
        %2676 = vmatpush1.msra.mxu0 %v342
        %2677 = vmatprep.subr.mxu0 0.0
        %2678 = vmatpush1.msra.mxu0 %v341
        %2679 = vmatprep.subr.mxu0 0.0
        %2680 = vmatpush1.msra.mxu0 %v340
        %2681 = vmatprep.subr.mxu0 0.0
        %2682 = vmatpush1.msra.mxu0 %v339
        %2683 = vmatprep.subr.mxu0 0.0
        %2684 = vmatpush1.msra.mxu0 %v338
        %2685 = vmatprep.subr.mxu0 0.0
        %2686 = vmatpush1.msra.mxu0 %v337
        %2687 = vmatprep.subr.mxu0 0.0
        %2688 = vmatpush1.msra.mxu0 %v336
        %2689 = vmatprep.subr.mxu0 0.0
        %2690 = vmatpush1.msra.mxu0 %v335
        %2691 = vmatprep.subr.mxu0 0.0
        %2692 = vmatpush1.msra.mxu0 %v334
        %2693 = vmatprep.subr.mxu0 0.0
        %2694 = vmatpush1.msra.mxu0 %v333
        %2695 = vmatprep.subr.mxu0 0.0
        %2696 = vmatpush1.msra.mxu0 %v332
        %2697 = vmatprep.subr.mxu0 0.0
        %2698 = vmatpush1.msra.mxu0 %v331
        %2699 = vmatprep.subr.mxu0 0.0
        %2700 = vmatpush1.msra.mxu0 %v330
        %2701 = vmatprep.subr.mxu0 0.0
        %2702 = vmatpush2.msra.mxu0 0.0
        %2703 = vmatprep.subr.mxu0 0.0
        %2704 = vmatpush2.msra.mxu0 0.0
        %2705 = vmatprep.subr.mxu0 0.0
        %2706 = vmatpush2.msra.mxu0 0.0
        %2707 = vmatprep.subr.mxu0 0.0
        %2708 = vmatpush2.msra.mxu0 0.0
        %2709 = vmatprep.subr.mxu0 0.0
        %2710 = vmatpush2.msra.mxu0 0.0
        %2711 = vmatprep.subr.mxu0 0.0
        %2712 = vmatpush2.msra.mxu0 0.0
        %2713 = vmatprep.subr.mxu0 0.0
        %2714 = vmatpush2.msra.mxu0 0.0
        %2715 = vmatprep.subr.mxu0 0.0
        %2716 = vmatpush2.msra.mxu0 0.0
        %2717 = vmatprep.subr.mxu0 0.0
        %2718 = vmatpush2.msra.mxu0 0.0
        %2719 = vmatprep.subr.mxu0 0.0
        %2720 = vmatpush2.msra.mxu0 0.0
        %2721 = vmatprep.subr.mxu0 0.0
        %2722 = vmatpush2.msra.mxu0 0.0
        %2723 = vmatprep.subr.mxu0 0.0
        %2724 = vmatpush2.msra.mxu0 0.0
        %2725 = vmatprep.subr.mxu0 0.0
        %2726 = vmatpush2.msra.mxu0 0.0
        %2727 = vmatprep.subr.mxu0 0.0
        %2728 = vmatpush2.msra.mxu0 0.0
        %2729 = vmatprep.subr.mxu0 0.0
        %2730 = vmatpush2.msra.mxu0 0.0
        %2731 = vmatprep.subr.mxu0 0.0
        %2732 = vmatpush2.msra.mxu0 0.0
        %2733 = vmatprep.mubr.f32.mxu0 0.0
        %2734 = vmatmul.mubr.f32.gmra.mxu0 %v2667
        %v2735 = vpop.f32.mrf.mxu0
        %v2736 = vadd.f32 0.0, %v2735
        %v2737 = vpop.f32.mrf.mxu0
        %2738 = vdwg.mxu0
        %2739 = vmatprep.subr.mxu0 0.0
        %v2740 = vand.u32 %v361, 4294901760
        %2741 = vmatpush1.msra.mxu0 %v2740
        %2742 = vmatprep.subr.mxu0 0.0
        %v2743 = vand.u32 %v360, 4294901760
        %2744 = vmatpush1.msra.mxu0 %v2743
        %2745 = vmatprep.subr.mxu0 0.0
        %v2746 = vand.u32 %v359, 4294901760
        %2747 = vmatpush1.msra.mxu0 %v2746
        %2748 = vmatprep.subr.mxu0 0.0
        %v2749 = vand.u32 %v358, 4294901760
        %2750 = vmatpush1.msra.mxu0 %v2749
        %2751 = vmatprep.subr.mxu0 0.0
        %v2752 = vand.u32 %v357, 4294901760
        %2753 = vmatpush1.msra.mxu0 %v2752
        %2754 = vmatprep.subr.mxu0 0.0
        %v2755 = vand.u32 %v356, 4294901760
        %2756 = vmatpush1.msra.mxu0 %v2755
        %2757 = vmatprep.subr.mxu0 0.0
        %v2758 = vand.u32 %v355, 4294901760
        %2759 = vmatpush1.msra.mxu0 %v2758
        %2760 = vmatprep.subr.mxu0 0.0
        %v2761 = vand.u32 %v354, 4294901760
        %2762 = vmatpush1.msra.mxu0 %v2761
        %2763 = vmatprep.subr.mxu0 0.0
        %v2764 = vand.u32 %v353, 4294901760
        %2765 = vmatpush1.msra.mxu0 %v2764
        %2766 = vmatprep.subr.mxu0 0.0
        %v2767 = vand.u32 %v352, 4294901760
        %2768 = vmatpush1.msra.mxu0 %v2767
        %2769 = vmatprep.subr.mxu0 0.0
        %v2770 = vand.u32 %v351, 4294901760
        %2771 = vmatpush1.msra.mxu0 %v2770
        %2772 = vmatprep.subr.mxu0 0.0
        %v2773 = vand.u32 %v350, 4294901760
        %2774 = vmatpush1.msra.mxu0 %v2773
        %2775 = vmatprep.subr.mxu0 0.0
        %v2776 = vand.u32 %v349, 4294901760
        %2777 = vmatpush1.msra.mxu0 %v2776
        %2778 = vmatprep.subr.mxu0 0.0
        %v2779 = vand.u32 %v348, 4294901760
        %2780 = vmatpush1.msra.mxu0 %v2779
        %2781 = vmatprep.subr.mxu0 0.0
        %v2782 = vand.u32 %v347, 4294901760
        %2783 = vmatpush1.msra.mxu0 %v2782
        %2784 = vmatprep.subr.mxu0 0.0
        %v2785 = vand.u32 %v346, 4294901760
        %2786 = vmatpush1.msra.mxu0 %v2785
        %2787 = vmatprep.subr.mxu0 0.0
        %2788 = vmatpush2.msra.mxu0 0.0
        %2789 = vmatprep.subr.mxu0 0.0
        %2790 = vmatpush2.msra.mxu0 0.0
        %2791 = vmatprep.subr.mxu0 0.0
        %2792 = vmatpush2.msra.mxu0 0.0
        %2793 = vmatprep.subr.mxu0 0.0
        %2794 = vmatpush2.msra.mxu0 0.0
        %2795 = vmatprep.subr.mxu0 0.0
        %2796 = vmatpush2.msra.mxu0 0.0
        %2797 = vmatprep.subr.mxu0 0.0
        %2798 = vmatpush2.msra.mxu0 0.0
        %2799 = vmatprep.subr.mxu0 0.0
        %2800 = vmatpush2.msra.mxu0 0.0
        %2801 = vmatprep.subr.mxu0 0.0
        %2802 = vmatpush2.msra.mxu0 0.0
        %2803 = vmatprep.subr.mxu0 0.0
        %2804 = vmatpush2.msra.mxu0 0.0
        %2805 = vmatprep.subr.mxu0 0.0
        %2806 = vmatpush2.msra.mxu0 0.0
        %2807 = vmatprep.subr.mxu0 0.0
        %2808 = vmatpush2.msra.mxu0 0.0
        %2809 = vmatprep.subr.mxu0 0.0
        %2810 = vmatpush2.msra.mxu0 0.0
        %2811 = vmatprep.subr.mxu0 0.0
        %2812 = vmatpush2.msra.mxu0 0.0
        %2813 = vmatprep.subr.mxu0 0.0
        %2814 = vmatpush2.msra.mxu0 0.0
        %2815 = vmatprep.subr.mxu0 0.0
        %2816 = vmatpush2.msra.mxu0 0.0
        %2817 = vmatprep.subr.mxu0 0.0
        %2818 = vmatpush2.msra.mxu0 0.0
        %2819 = vmatprep.mubr.f32.mxu0 0.0
        %v2820 = vand.u32 %v2736, 4294901760
        %v2821 = vsub.f32 %v2736, %v2820
        %v2822 = vand.u32 %v2821, 4294901760
        %v2823 = vsub.f32 %v2821, %v2822
        %v2824 = vand.u32 %v2823, 4294901760
        %2825 = vmatmul.mubr.f32.gmra.mxu0 %v2824
        %v2826 = vpop.f32.mrf.mxu0
        %v2827 = vadd.f32 0.0, %v2826
        %v2828 = vpop.f32.mrf.mxu0
        %2829 = vdwg.mxu0
        %2830 = vmatprep.subr.mxu0 0.0
        %v2831 = vand.u32 %v361, 4294901760
        %v2832 = vsub.f32 %v361, %v2831
        %v2833 = vand.u32 %v2832, 4294901760
        %v2834 = vsub.f32 %v2832, %v2833
        %v2835 = vand.u32 %v2834, 4294901760
        %2836 = vmatpush1.msra.mxu0 %v2835
        %2837 = vmatprep.subr.mxu0 0.0
        %v2838 = vand.u32 %v360, 4294901760
        %v2839 = vsub.f32 %v360, %v2838
        %v2840 = vand.u32 %v2839, 4294901760
        %v2841 = vsub.f32 %v2839, %v2840
        %v2842 = vand.u32 %v2841, 4294901760
        %2843 = vmatpush1.msra.mxu0 %v2842
        %2844 = vmatprep.subr.mxu0 0.0
        %v2845 = vand.u32 %v359, 4294901760
        %v2846 = vsub.f32 %v359, %v2845
        %v2847 = vand.u32 %v2846, 4294901760
        %v2848 = vsub.f32 %v2846, %v2847
        %v2849 = vand.u32 %v2848, 4294901760
        %2850 = vmatpush1.msra.mxu0 %v2849
        %2851 = vmatprep.subr.mxu0 0.0
        %v2852 = vand.u32 %v358, 4294901760
        %v2853 = vsub.f32 %v358, %v2852
        %v2854 = vand.u32 %v2853, 4294901760
        %v2855 = vsub.f32 %v2853, %v2854
        %v2856 = vand.u32 %v2855, 4294901760
        %2857 = vmatpush1.msra.mxu0 %v2856
        %2858 = vmatprep.subr.mxu0 0.0
        %v2859 = vand.u32 %v357, 4294901760
        %v2860 = vsub.f32 %v357, %v2859
        %v2861 = vand.u32 %v2860, 4294901760
        %v2862 = vsub.f32 %v2860, %v2861
        %v2863 = vand.u32 %v2862, 4294901760
        %2864 = vmatpush1.msra.mxu0 %v2863
        %2865 = vmatprep.subr.mxu0 0.0
        %v2866 = vand.u32 %v356, 4294901760
        %v2867 = vsub.f32 %v356, %v2866
        %v2868 = vand.u32 %v2867, 4294901760
        %v2869 = vsub.f32 %v2867, %v2868
        %v2870 = vand.u32 %v2869, 4294901760
        %2871 = vmatpush1.msra.mxu0 %v2870
        %2872 = vmatprep.subr.mxu0 0.0
        %v2873 = vand.u32 %v355, 4294901760
        %v2874 = vsub.f32 %v355, %v2873
        %v2875 = vand.u32 %v2874, 4294901760
        %v2876 = vsub.f32 %v2874, %v2875
        %v2877 = vand.u32 %v2876, 4294901760
        %2878 = vmatpush1.msra.mxu0 %v2877
        %2879 = vmatprep.subr.mxu0 0.0
        %v2880 = vand.u32 %v354, 4294901760
        %v2881 = vsub.f32 %v354, %v2880
        %v2882 = vand.u32 %v2881, 4294901760
        %v2883 = vsub.f32 %v2881, %v2882
        %v2884 = vand.u32 %v2883, 4294901760
        %2885 = vmatpush1.msra.mxu0 %v2884
        %2886 = vmatprep.subr.mxu0 0.0
        %v2887 = vand.u32 %v353, 4294901760
        %v2888 = vsub.f32 %v353, %v2887
        %v2889 = vand.u32 %v2888, 4294901760
        %v2890 = vsub.f32 %v2888, %v2889
        %v2891 = vand.u32 %v2890, 4294901760
        %2892 = vmatpush1.msra.mxu0 %v2891
        %2893 = vmatprep.subr.mxu0 0.0
        %v2894 = vand.u32 %v352, 4294901760
        %v2895 = vsub.f32 %v352, %v2894
        %v2896 = vand.u32 %v2895, 4294901760
        %v2897 = vsub.f32 %v2895, %v2896
        %v2898 = vand.u32 %v2897, 4294901760
        %2899 = vmatpush1.msra.mxu0 %v2898
        %2900 = vmatprep.subr.mxu0 0.0
        %v2901 = vand.u32 %v351, 4294901760
        %v2902 = vsub.f32 %v351, %v2901
        %v2903 = vand.u32 %v2902, 4294901760
        %v2904 = vsub.f32 %v2902, %v2903
        %v2905 = vand.u32 %v2904, 4294901760
        %2906 = vmatpush1.msra.mxu0 %v2905
        %2907 = vmatprep.subr.mxu0 0.0
        %v2908 = vand.u32 %v350, 4294901760
        %v2909 = vsub.f32 %v350, %v2908
        %v2910 = vand.u32 %v2909, 4294901760
        %v2911 = vsub.f32 %v2909, %v2910
        %v2912 = vand.u32 %v2911, 4294901760
        %2913 = vmatpush1.msra.mxu0 %v2912
        %2914 = vmatprep.subr.mxu0 0.0
        %v2915 = vand.u32 %v349, 4294901760
        %v2916 = vsub.f32 %v349, %v2915
        %v2917 = vand.u32 %v2916, 4294901760
        %v2918 = vsub.f32 %v2916, %v2917
        %v2919 = vand.u32 %v2918, 4294901760
        %2920 = vmatpush1.msra.mxu0 %v2919
        %2921 = vmatprep.subr.mxu0 0.0
        %v2922 = vand.u32 %v348, 4294901760
        %v2923 = vsub.f32 %v348, %v2922
        %v2924 = vand.u32 %v2923, 4294901760
        %v2925 = vsub.f32 %v2923, %v2924
        %v2926 = vand.u32 %v2925, 4294901760
        %2927 = vmatpush1.msra.mxu0 %v2926
        %2928 = vmatprep.subr.mxu0 0.0
        %v2929 = vand.u32 %v347, 4294901760
        %v2930 = vsub.f32 %v347, %v2929
        %v2931 = vand.u32 %v2930, 4294901760
        %v2932 = vsub.f32 %v2930, %v2931
        %v2933 = vand.u32 %v2932, 4294901760
        %2934 = vmatpush1.msra.mxu0 %v2933
        %2935 = vmatprep.subr.mxu0 0.0
        %v2936 = vand.u32 %v346, 4294901760
        %v2937 = vsub.f32 %v346, %v2936
        %v2938 = vand.u32 %v2937, 4294901760
        %v2939 = vsub.f32 %v2937, %v2938
        %v2940 = vand.u32 %v2939, 4294901760
        %2941 = vmatpush1.msra.mxu0 %v2940
        %2942 = vmatprep.subr.mxu0 0.0
        %2943 = vmatpush2.msra.mxu0 0.0
        %2944 = vmatprep.subr.mxu0 0.0
        %2945 = vmatpush2.msra.mxu0 0.0
        %2946 = vmatprep.subr.mxu0 0.0
        %2947 = vmatpush2.msra.mxu0 0.0
        %2948 = vmatprep.subr.mxu0 0.0
        %2949 = vmatpush2.msra.mxu0 0.0
        %2950 = vmatprep.subr.mxu0 0.0
        %2951 = vmatpush2.msra.mxu0 0.0
        %2952 = vmatprep.subr.mxu0 0.0
        %2953 = vmatpush2.msra.mxu0 0.0
        %2954 = vmatprep.subr.mxu0 0.0
        %2955 = vmatpush2.msra.mxu0 0.0
        %2956 = vmatprep.subr.mxu0 0.0
        %2957 = vmatpush2.msra.mxu0 0.0
        %2958 = vmatprep.subr.mxu0 0.0
        %2959 = vmatpush2.msra.mxu0 0.0
        %2960 = vmatprep.subr.mxu0 0.0
        %2961 = vmatpush2.msra.mxu0 0.0
        %2962 = vmatprep.subr.mxu0 0.0
        %2963 = vmatpush2.msra.mxu0 0.0
        %2964 = vmatprep.subr.mxu0 0.0
        %2965 = vmatpush2.msra.mxu0 0.0
        %2966 = vmatprep.subr.mxu0 0.0
        %2967 = vmatpush2.msra.mxu0 0.0
        %2968 = vmatprep.subr.mxu0 0.0
        %2969 = vmatpush2.msra.mxu0 0.0
        %2970 = vmatprep.subr.mxu0 0.0
        %2971 = vmatpush2.msra.mxu0 0.0
        %2972 = vmatprep.subr.mxu0 0.0
        %2973 = vmatpush2.msra.mxu0 0.0
        %2974 = vmatprep.mubr.f32.mxu0 0.0
        %v2975 = vand.u32 %v2736, 4294901760
        %2976 = vmatmul.mubr.f32.gmra.mxu0 %v2975
        %v2977 = vpop.f32.mrf.mxu0
        %v2978 = vadd.f32 %v2827, %v2977
        %v2979 = vpop.f32.mrf.mxu0
        %2980 = vdwg.mxu0
        %2981 = vmatprep.subr.mxu0 0.0
        %v2982 = vand.u32 %v361, 4294901760
        %v2983 = vsub.f32 %v361, %v2982
        %2984 = vmatpush1.msra.mxu0 %v2983
        %2985 = vmatprep.subr.mxu0 0.0
        %v2986 = vand.u32 %v360, 4294901760
        %v2987 = vsub.f32 %v360, %v2986
        %2988 = vmatpush1.msra.mxu0 %v2987
        %2989 = vmatprep.subr.mxu0 0.0
        %v2990 = vand.u32 %v359, 4294901760
        %v2991 = vsub.f32 %v359, %v2990
        %2992 = vmatpush1.msra.mxu0 %v2991
        %2993 = vmatprep.subr.mxu0 0.0
        %v2994 = vand.u32 %v358, 4294901760
        %v2995 = vsub.f32 %v358, %v2994
        %2996 = vmatpush1.msra.mxu0 %v2995
        %2997 = vmatprep.subr.mxu0 0.0
        %v2998 = vand.u32 %v357, 4294901760
        %v2999 = vsub.f32 %v357, %v2998
        %3000 = vmatpush1.msra.mxu0 %v2999
        %3001 = vmatprep.subr.mxu0 0.0
        %v3002 = vand.u32 %v356, 4294901760
        %v3003 = vsub.f32 %v356, %v3002
        %3004 = vmatpush1.msra.mxu0 %v3003
        %3005 = vmatprep.subr.mxu0 0.0
        %v3006 = vand.u32 %v355, 4294901760
        %v3007 = vsub.f32 %v355, %v3006
        %3008 = vmatpush1.msra.mxu0 %v3007
        %3009 = vmatprep.subr.mxu0 0.0
        %v3010 = vand.u32 %v354, 4294901760
        %v3011 = vsub.f32 %v354, %v3010
        %3012 = vmatpush1.msra.mxu0 %v3011
        %3013 = vmatprep.subr.mxu0 0.0
        %v3014 = vand.u32 %v353, 4294901760
        %v3015 = vsub.f32 %v353, %v3014
        %3016 = vmatpush1.msra.mxu0 %v3015
        %3017 = vmatprep.subr.mxu0 0.0
        %v3018 = vand.u32 %v352, 4294901760
        %v3019 = vsub.f32 %v352, %v3018
        %3020 = vmatpush1.msra.mxu0 %v3019
        %3021 = vmatprep.subr.mxu0 0.0
        %v3022 = vand.u32 %v351, 4294901760
        %v3023 = vsub.f32 %v351, %v3022
        %3024 = vmatpush1.msra.mxu0 %v3023
        %3025 = vmatprep.subr.mxu0 0.0
        %v3026 = vand.u32 %v350, 4294901760
        %v3027 = vsub.f32 %v350, %v3026
        %3028 = vmatpush1.msra.mxu0 %v3027
        %3029 = vmatprep.subr.mxu0 0.0
        %v3030 = vand.u32 %v349, 4294901760
        %v3031 = vsub.f32 %v349, %v3030
        %3032 = vmatpush1.msra.mxu0 %v3031
        %3033 = vmatprep.subr.mxu0 0.0
        %v3034 = vand.u32 %v348, 4294901760
        %v3035 = vsub.f32 %v348, %v3034
        %3036 = vmatpush1.msra.mxu0 %v3035
        %3037 = vmatprep.subr.mxu0 0.0
        %v3038 = vand.u32 %v347, 4294901760
        %v3039 = vsub.f32 %v347, %v3038
        %3040 = vmatpush1.msra.mxu0 %v3039
        %3041 = vmatprep.subr.mxu0 0.0
        %v3042 = vand.u32 %v346, 4294901760
        %v3043 = vsub.f32 %v346, %v3042
        %3044 = vmatpush1.msra.mxu0 %v3043
        %3045 = vmatprep.subr.mxu0 0.0
        %3046 = vmatpush2.msra.mxu0 0.0
        %3047 = vmatprep.subr.mxu0 0.0
        %3048 = vmatpush2.msra.mxu0 0.0
        %3049 = vmatprep.subr.mxu0 0.0
        %3050 = vmatpush2.msra.mxu0 0.0
        %3051 = vmatprep.subr.mxu0 0.0
        %3052 = vmatpush2.msra.mxu0 0.0
        %3053 = vmatprep.subr.mxu0 0.0
        %3054 = vmatpush2.msra.mxu0 0.0
        %3055 = vmatprep.subr.mxu0 0.0
        %3056 = vmatpush2.msra.mxu0 0.0
        %3057 = vmatprep.subr.mxu0 0.0
        %3058 = vmatpush2.msra.mxu0 0.0
        %3059 = vmatprep.subr.mxu0 0.0
        %3060 = vmatpush2.msra.mxu0 0.0
        %3061 = vmatprep.subr.mxu0 0.0
        %3062 = vmatpush2.msra.mxu0 0.0
        %3063 = vmatprep.subr.mxu0 0.0
        %3064 = vmatpush2.msra.mxu0 0.0
        %3065 = vmatprep.subr.mxu0 0.0
        %3066 = vmatpush2.msra.mxu0 0.0
        %3067 = vmatprep.subr.mxu0 0.0
        %3068 = vmatpush2.msra.mxu0 0.0
        %3069 = vmatprep.subr.mxu0 0.0
        %3070 = vmatpush2.msra.mxu0 0.0
        %3071 = vmatprep.subr.mxu0 0.0
        %3072 = vmatpush2.msra.mxu0 0.0
        %3073 = vmatprep.subr.mxu0 0.0
        %3074 = vmatpush2.msra.mxu0 0.0
        %3075 = vmatprep.subr.mxu0 0.0
        %3076 = vmatpush2.msra.mxu0 0.0
        %3077 = vmatprep.mubr.f32.mxu0 0.0
        %v3078 = vand.u32 %v2736, 4294901760
        %v3079 = vsub.f32 %v2736, %v3078
        %3080 = vmatmul.mubr.f32.gmra.mxu0 %v3079
        %v3081 = vpop.f32.mrf.mxu0
        %v3082 = vadd.f32 %v2978, %v3081
        %v3083 = vpop.f32.mrf.mxu0
        %3084 = vdwg.mxu0
        %3085 = vmatprep.subr.mxu0 0.0
        %v3086 = vand.u32 %v361, 4294901760
        %3087 = vmatpush1.msra.mxu0 %v3086
        %3088 = vmatprep.subr.mxu0 0.0
        %v3089 = vand.u32 %v360, 4294901760
        %3090 = vmatpush1.msra.mxu0 %v3089
        %3091 = vmatprep.subr.mxu0 0.0
        %v3092 = vand.u32 %v359, 4294901760
        %3093 = vmatpush1.msra.mxu0 %v3092
        %3094 = vmatprep.subr.mxu0 0.0
        %v3095 = vand.u32 %v358, 4294901760
        %3096 = vmatpush1.msra.mxu0 %v3095
        %3097 = vmatprep.subr.mxu0 0.0
        %v3098 = vand.u32 %v357, 4294901760
        %3099 = vmatpush1.msra.mxu0 %v3098
        %3100 = vmatprep.subr.mxu0 0.0
        %v3101 = vand.u32 %v356, 4294901760
        %3102 = vmatpush1.msra.mxu0 %v3101
        %3103 = vmatprep.subr.mxu0 0.0
        %v3104 = vand.u32 %v355, 4294901760
        %3105 = vmatpush1.msra.mxu0 %v3104
        %3106 = vmatprep.subr.mxu0 0.0
        %v3107 = vand.u32 %v354, 4294901760
        %3108 = vmatpush1.msra.mxu0 %v3107
        %3109 = vmatprep.subr.mxu0 0.0
        %v3110 = vand.u32 %v353, 4294901760
        %3111 = vmatpush1.msra.mxu0 %v3110
        %3112 = vmatprep.subr.mxu0 0.0
        %v3113 = vand.u32 %v352, 4294901760
        %3114 = vmatpush1.msra.mxu0 %v3113
        %3115 = vmatprep.subr.mxu0 0.0
        %v3116 = vand.u32 %v351, 4294901760
        %3117 = vmatpush1.msra.mxu0 %v3116
        %3118 = vmatprep.subr.mxu0 0.0
        %v3119 = vand.u32 %v350, 4294901760
        %3120 = vmatpush1.msra.mxu0 %v3119
        %3121 = vmatprep.subr.mxu0 0.0
        %v3122 = vand.u32 %v349, 4294901760
        %3123 = vmatpush1.msra.mxu0 %v3122
        %3124 = vmatprep.subr.mxu0 0.0
        %v3125 = vand.u32 %v348, 4294901760
        %3126 = vmatpush1.msra.mxu0 %v3125
        %3127 = vmatprep.subr.mxu0 0.0
        %v3128 = vand.u32 %v347, 4294901760
        %3129 = vmatpush1.msra.mxu0 %v3128
        %3130 = vmatprep.subr.mxu0 0.0
        %v3131 = vand.u32 %v346, 4294901760
        %3132 = vmatpush1.msra.mxu0 %v3131
        %3133 = vmatprep.subr.mxu0 0.0
        %3134 = vmatpush2.msra.mxu0 0.0
        %3135 = vmatprep.subr.mxu0 0.0
        %3136 = vmatpush2.msra.mxu0 0.0
        %3137 = vmatprep.subr.mxu0 0.0
        %3138 = vmatpush2.msra.mxu0 0.0
        %3139 = vmatprep.subr.mxu0 0.0
        %3140 = vmatpush2.msra.mxu0 0.0
        %3141 = vmatprep.subr.mxu0 0.0
        %3142 = vmatpush2.msra.mxu0 0.0
        %3143 = vmatprep.subr.mxu0 0.0
        %3144 = vmatpush2.msra.mxu0 0.0
        %3145 = vmatprep.subr.mxu0 0.0
        %3146 = vmatpush2.msra.mxu0 0.0
        %3147 = vmatprep.subr.mxu0 0.0
        %3148 = vmatpush2.msra.mxu0 0.0
        %3149 = vmatprep.subr.mxu0 0.0
        %3150 = vmatpush2.msra.mxu0 0.0
        %3151 = vmatprep.subr.mxu0 0.0
        %3152 = vmatpush2.msra.mxu0 0.0
        %3153 = vmatprep.subr.mxu0 0.0
        %3154 = vmatpush2.msra.mxu0 0.0
        %3155 = vmatprep.subr.mxu0 0.0
        %3156 = vmatpush2.msra.mxu0 0.0
        %3157 = vmatprep.subr.mxu0 0.0
        %3158 = vmatpush2.msra.mxu0 0.0
        %3159 = vmatprep.subr.mxu0 0.0
        %3160 = vmatpush2.msra.mxu0 0.0
        %3161 = vmatprep.subr.mxu0 0.0
        %3162 = vmatpush2.msra.mxu0 0.0
        %3163 = vmatprep.subr.mxu0 0.0
        %3164 = vmatpush2.msra.mxu0 0.0
        %3165 = vmatprep.mubr.f32.mxu0 0.0
        %v3166 = vand.u32 %v2736, 4294901760
        %v3167 = vsub.f32 %v2736, %v3166
        %v3168 = vand.u32 %v3167, 4294901760
        %3169 = vmatmul.mubr.f32.gmra.mxu0 %v3168
        %v3170 = vpop.f32.mrf.mxu0
        %v3171 = vadd.f32 %v3082, %v3170
        %v3172 = vpop.f32.mrf.mxu0
        %3173 = vdwg.mxu0
        %3174 = vmatprep.subr.mxu0 0.0
        %v3175 = vand.u32 %v361, 4294901760
        %v3176 = vsub.f32 %v361, %v3175
        %v3177 = vand.u32 %v3176, 4294901760
        %3178 = vmatpush1.msra.mxu0 %v3177
        %3179 = vmatprep.subr.mxu0 0.0
        %v3180 = vand.u32 %v360, 4294901760
        %v3181 = vsub.f32 %v360, %v3180
        %v3182 = vand.u32 %v3181, 4294901760
        %3183 = vmatpush1.msra.mxu0 %v3182
        %3184 = vmatprep.subr.mxu0 0.0
        %v3185 = vand.u32 %v359, 4294901760
        %v3186 = vsub.f32 %v359, %v3185
        %v3187 = vand.u32 %v3186, 4294901760
        %3188 = vmatpush1.msra.mxu0 %v3187
        %3189 = vmatprep.subr.mxu0 0.0
        %v3190 = vand.u32 %v358, 4294901760
        %v3191 = vsub.f32 %v358, %v3190
        %v3192 = vand.u32 %v3191, 4294901760
        %3193 = vmatpush1.msra.mxu0 %v3192
        %3194 = vmatprep.subr.mxu0 0.0
        %v3195 = vand.u32 %v357, 4294901760
        %v3196 = vsub.f32 %v357, %v3195
        %v3197 = vand.u32 %v3196, 4294901760
        %3198 = vmatpush1.msra.mxu0 %v3197
        %3199 = vmatprep.subr.mxu0 0.0
        %v3200 = vand.u32 %v356, 4294901760
        %v3201 = vsub.f32 %v356, %v3200
        %v3202 = vand.u32 %v3201, 4294901760
        %3203 = vmatpush1.msra.mxu0 %v3202
        %3204 = vmatprep.subr.mxu0 0.0
        %v3205 = vand.u32 %v355, 4294901760
        %v3206 = vsub.f32 %v355, %v3205
        %v3207 = vand.u32 %v3206, 4294901760
        %3208 = vmatpush1.msra.mxu0 %v3207
        %3209 = vmatprep.subr.mxu0 0.0
        %v3210 = vand.u32 %v354, 4294901760
        %v3211 = vsub.f32 %v354, %v3210
        %v3212 = vand.u32 %v3211, 4294901760
        %3213 = vmatpush1.msra.mxu0 %v3212
        %3214 = vmatprep.subr.mxu0 0.0
        %v3215 = vand.u32 %v353, 4294901760
        %v3216 = vsub.f32 %v353, %v3215
        %v3217 = vand.u32 %v3216, 4294901760
        %3218 = vmatpush1.msra.mxu0 %v3217
        %3219 = vmatprep.subr.mxu0 0.0
        %v3220 = vand.u32 %v352, 4294901760
        %v3221 = vsub.f32 %v352, %v3220
        %v3222 = vand.u32 %v3221, 4294901760
        %3223 = vmatpush1.msra.mxu0 %v3222
        %3224 = vmatprep.subr.mxu0 0.0
        %v3225 = vand.u32 %v351, 4294901760
        %v3226 = vsub.f32 %v351, %v3225
        %v3227 = vand.u32 %v3226, 4294901760
        %3228 = vmatpush1.msra.mxu0 %v3227
        %3229 = vmatprep.subr.mxu0 0.0
        %v3230 = vand.u32 %v350, 4294901760
        %v3231 = vsub.f32 %v350, %v3230
        %v3232 = vand.u32 %v3231, 4294901760
        %3233 = vmatpush1.msra.mxu0 %v3232
        %3234 = vmatprep.subr.mxu0 0.0
        %v3235 = vand.u32 %v349, 4294901760
        %v3236 = vsub.f32 %v349, %v3235
        %v3237 = vand.u32 %v3236, 4294901760
        %3238 = vmatpush1.msra.mxu0 %v3237
        %3239 = vmatprep.subr.mxu0 0.0
        %v3240 = vand.u32 %v348, 4294901760
        %v3241 = vsub.f32 %v348, %v3240
        %v3242 = vand.u32 %v3241, 4294901760
        %3243 = vmatpush1.msra.mxu0 %v3242
        %3244 = vmatprep.subr.mxu0 0.0
        %v3245 = vand.u32 %v347, 4294901760
        %v3246 = vsub.f32 %v347, %v3245
        %v3247 = vand.u32 %v3246, 4294901760
        %3248 = vmatpush1.msra.mxu0 %v3247
        %3249 = vmatprep.subr.mxu0 0.0
        %v3250 = vand.u32 %v346, 4294901760
        %v3251 = vsub.f32 %v346, %v3250
        %v3252 = vand.u32 %v3251, 4294901760
        %3253 = vmatpush1.msra.mxu0 %v3252
        %3254 = vmatprep.subr.mxu0 0.0
        %3255 = vmatpush2.msra.mxu0 0.0
        %3256 = vmatprep.subr.mxu0 0.0
        %3257 = vmatpush2.msra.mxu0 0.0
        %3258 = vmatprep.subr.mxu0 0.0
        %3259 = vmatpush2.msra.mxu0 0.0
        %3260 = vmatprep.subr.mxu0 0.0
        %3261 = vmatpush2.msra.mxu0 0.0
        %3262 = vmatprep.subr.mxu0 0.0
        %3263 = vmatpush2.msra.mxu0 0.0
        %3264 = vmatprep.subr.mxu0 0.0
        %3265 = vmatpush2.msra.mxu0 0.0
        %3266 = vmatprep.subr.mxu0 0.0
        %3267 = vmatpush2.msra.mxu0 0.0
        %3268 = vmatprep.subr.mxu0 0.0
        %3269 = vmatpush2.msra.mxu0 0.0
        %3270 = vmatprep.subr.mxu0 0.0
        %3271 = vmatpush2.msra.mxu0 0.0
        %3272 = vmatprep.subr.mxu0 0.0
        %3273 = vmatpush2.msra.mxu0 0.0
        %3274 = vmatprep.subr.mxu0 0.0
        %3275 = vmatpush2.msra.mxu0 0.0
        %3276 = vmatprep.subr.mxu0 0.0
        %3277 = vmatpush2.msra.mxu0 0.0
        %3278 = vmatprep.subr.mxu0 0.0
        %3279 = vmatpush2.msra.mxu0 0.0
        %3280 = vmatprep.subr.mxu0 0.0
        %3281 = vmatpush2.msra.mxu0 0.0
        %3282 = vmatprep.subr.mxu0 0.0
        %3283 = vmatpush2.msra.mxu0 0.0
        %3284 = vmatprep.subr.mxu0 0.0
        %3285 = vmatpush2.msra.mxu0 0.0
        %3286 = vmatprep.mubr.f32.mxu0 0.0
        %v3287 = vand.u32 %v2736, 4294901760
        %3288 = vmatmul.mubr.f32.gmra.mxu0 %v3287
        %v3289 = vpop.f32.mrf.mxu0
        %v3290 = vadd.f32 %v3171, %v3289
        %v3291 = vpop.f32.mrf.mxu0
        %3292 = vdwg.mxu0
        %3293 = vmatprep.subr.mxu0 0.0
        %v3294 = vand.u32 %v361, 4294901760
        %3295 = vmatpush1.msra.mxu0 %v3294
        %3296 = vmatprep.subr.mxu0 0.0
        %v3297 = vand.u32 %v360, 4294901760
        %3298 = vmatpush1.msra.mxu0 %v3297
        %3299 = vmatprep.subr.mxu0 0.0
        %v3300 = vand.u32 %v359, 4294901760
        %3301 = vmatpush1.msra.mxu0 %v3300
        %3302 = vmatprep.subr.mxu0 0.0
        %v3303 = vand.u32 %v358, 4294901760
        %3304 = vmatpush1.msra.mxu0 %v3303
        %3305 = vmatprep.subr.mxu0 0.0
        %v3306 = vand.u32 %v357, 4294901760
        %3307 = vmatpush1.msra.mxu0 %v3306
        %3308 = vmatprep.subr.mxu0 0.0
        %v3309 = vand.u32 %v356, 4294901760
        %3310 = vmatpush1.msra.mxu0 %v3309
        %3311 = vmatprep.subr.mxu0 0.0
        %v3312 = vand.u32 %v355, 4294901760
        %3313 = vmatpush1.msra.mxu0 %v3312
        %3314 = vmatprep.subr.mxu0 0.0
        %v3315 = vand.u32 %v354, 4294901760
        %3316 = vmatpush1.msra.mxu0 %v3315
        %3317 = vmatprep.subr.mxu0 0.0
        %v3318 = vand.u32 %v353, 4294901760
        %3319 = vmatpush1.msra.mxu0 %v3318
        %3320 = vmatprep.subr.mxu0 0.0
        %v3321 = vand.u32 %v352, 4294901760
        %3322 = vmatpush1.msra.mxu0 %v3321
        %3323 = vmatprep.subr.mxu0 0.0
        %v3324 = vand.u32 %v351, 4294901760
        %3325 = vmatpush1.msra.mxu0 %v3324
        %3326 = vmatprep.subr.mxu0 0.0
        %v3327 = vand.u32 %v350, 4294901760
        %3328 = vmatpush1.msra.mxu0 %v3327
        %3329 = vmatprep.subr.mxu0 0.0
        %v3330 = vand.u32 %v349, 4294901760
        %3331 = vmatpush1.msra.mxu0 %v3330
        %3332 = vmatprep.subr.mxu0 0.0
        %v3333 = vand.u32 %v348, 4294901760
        %3334 = vmatpush1.msra.mxu0 %v3333
        %3335 = vmatprep.subr.mxu0 0.0
        %v3336 = vand.u32 %v347, 4294901760
        %3337 = vmatpush1.msra.mxu0 %v3336
        %3338 = vmatprep.subr.mxu0 0.0
        %v3339 = vand.u32 %v346, 4294901760
        %3340 = vmatpush1.msra.mxu0 %v3339
        %3341 = vmatprep.subr.mxu0 0.0
        %3342 = vmatpush2.msra.mxu0 0.0
        %3343 = vmatprep.subr.mxu0 0.0
        %3344 = vmatpush2.msra.mxu0 0.0
        %3345 = vmatprep.subr.mxu0 0.0
        %3346 = vmatpush2.msra.mxu0 0.0
        %3347 = vmatprep.subr.mxu0 0.0
        %3348 = vmatpush2.msra.mxu0 0.0
        %3349 = vmatprep.subr.mxu0 0.0
        %3350 = vmatpush2.msra.mxu0 0.0
        %3351 = vmatprep.subr.mxu0 0.0
        %3352 = vmatpush2.msra.mxu0 0.0
        %3353 = vmatprep.subr.mxu0 0.0
        %3354 = vmatpush2.msra.mxu0 0.0
        %3355 = vmatprep.subr.mxu0 0.0
        %3356 = vmatpush2.msra.mxu0 0.0
        %3357 = vmatprep.subr.mxu0 0.0
        %3358 = vmatpush2.msra.mxu0 0.0
        %3359 = vmatprep.subr.mxu0 0.0
        %3360 = vmatpush2.msra.mxu0 0.0
        %3361 = vmatprep.subr.mxu0 0.0
        %3362 = vmatpush2.msra.mxu0 0.0
        %3363 = vmatprep.subr.mxu0 0.0
        %3364 = vmatpush2.msra.mxu0 0.0
        %3365 = vmatprep.subr.mxu0 0.0
        %3366 = vmatpush2.msra.mxu0 0.0
        %3367 = vmatprep.subr.mxu0 0.0
        %3368 = vmatpush2.msra.mxu0 0.0
        %3369 = vmatprep.subr.mxu0 0.0
        %3370 = vmatpush2.msra.mxu0 0.0
        %3371 = vmatprep.subr.mxu0 0.0
        %3372 = vmatpush2.msra.mxu0 0.0
        %3373 = vmatprep.mubr.f32.mxu0 0.0
        %v3374 = vand.u32 %v2736, 4294901760
        %3375 = vmatmul.mubr.f32.gmra.mxu0 %v3374
        %v3376 = vpop.f32.mrf.mxu0
        %v3377 = vadd.f32 %v3290, %v3376
        %v3378 = vpop.f32.mrf.mxu0
        %3379 = vdwg.mxu0
        %v3381 = vsel %vm1090, %v3377, 0
        %3383 = vmatprep.subr.mxu0 0.0
        %3384 = vmatpush1.msra.mxu0 0.0
        %3385 = vmatprep.subr.mxu0 0.0
        %3386 = vmatpush1.msra.mxu0 0.0
        %3387 = vmatprep.subr.mxu0 0.0
        %3388 = vmatpush1.msra.mxu0 0.0
        %3389 = vmatprep.subr.mxu0 0.0
        %3390 = vmatpush1.msra.mxu0 0.0
        %3391 = vmatprep.subr.mxu0 0.0
        %3392 = vmatpush1.msra.mxu0 0.0
        %3393 = vmatprep.subr.mxu0 0.0
        %3394 = vmatpush1.msra.mxu0 0.0
        %3395 = vmatprep.subr.mxu0 0.0
        %3396 = vmatpush1.msra.mxu0 0.0
        %3397 = vmatprep.subr.mxu0 0.0
        %3398 = vmatpush1.msra.mxu0 0.0
        %3399 = vmatprep.subr.mxu0 0.0
        %3400 = vmatpush1.msra.mxu0 0.0
        %3401 = vmatprep.subr.mxu0 0.0
        %3402 = vmatpush1.msra.mxu0 0.0
        %3403 = vmatprep.subr.mxu0 0.0
        %3404 = vmatpush1.msra.mxu0 0.0
        %3405 = vmatprep.subr.mxu0 0.0
        %3406 = vmatpush1.msra.mxu0 0.0
        %3407 = vmatprep.subr.mxu0 0.0
        %3408 = vmatpush1.msra.mxu0 0.0
        %3409 = vmatprep.subr.mxu0 0.0
        %3410 = vmatpush1.msra.mxu0 0.0
        %3411 = vmatprep.subr.mxu0 0.0
        %3412 = vmatpush1.msra.mxu0 0.0
        %3413 = vmatprep.subr.mxu0 0.0
        %v3414 = vand.u32 %v362, 4294901760
        %3415 = vmatpush1.msra.mxu0 %v3414
        %3416 = vmatprep.subr.mxu0 0.0
        %3417 = vmatpush2.msra.mxu0 0.0
        %3418 = vmatprep.subr.mxu0 0.0
        %3419 = vmatpush2.msra.mxu0 0.0
        %3420 = vmatprep.subr.mxu0 0.0
        %3421 = vmatpush2.msra.mxu0 0.0
        %3422 = vmatprep.subr.mxu0 0.0
        %3423 = vmatpush2.msra.mxu0 0.0
        %3424 = vmatprep.subr.mxu0 0.0
        %3425 = vmatpush2.msra.mxu0 0.0
        %3426 = vmatprep.subr.mxu0 0.0
        %3427 = vmatpush2.msra.mxu0 0.0
        %3428 = vmatprep.subr.mxu0 0.0
        %3429 = vmatpush2.msra.mxu0 0.0
        %3430 = vmatprep.subr.mxu0 0.0
        %3431 = vmatpush2.msra.mxu0 0.0
        %3432 = vmatprep.subr.mxu0 0.0
        %3433 = vmatpush2.msra.mxu0 0.0
        %3434 = vmatprep.subr.mxu0 0.0
        %3435 = vmatpush2.msra.mxu0 0.0
        %3436 = vmatprep.subr.mxu0 0.0
        %3437 = vmatpush2.msra.mxu0 0.0
        %3438 = vmatprep.subr.mxu0 0.0
        %3439 = vmatpush2.msra.mxu0 0.0
        %3440 = vmatprep.subr.mxu0 0.0
        %3441 = vmatpush2.msra.mxu0 0.0
        %3442 = vmatprep.subr.mxu0 0.0
        %3443 = vmatpush2.msra.mxu0 0.0
        %3444 = vmatprep.subr.mxu0 0.0
        %3445 = vmatpush2.msra.mxu0 0.0
        %3446 = vmatprep.subr.mxu0 0.0
        %3447 = vmatpush2.msra.mxu0 0.0
        %3448 = vmatprep.mubr.f32.mxu0 0.0
        %v3449 = vand.u32 %v3381, 4294901760
        %v3450 = vsub.f32 %v3381, %v3449
        %v3451 = vand.u32 %v3450, 4294901760
        %v3452 = vsub.f32 %v3450, %v3451
        %v3453 = vand.u32 %v3452, 4294901760
        %3454 = vmatmul.mubr.f32.gmra.mxu0 %v3453
        %v3455 = vpop.f32.mrf.mxu0
        %v3456 = vadd.f32 0.0, %v3455
        %v3457 = vpop.f32.mrf.mxu0
        %3458 = vdwg.mxu0
        %3459 = vmatprep.subr.mxu0 0.0
        %3460 = vmatpush1.msra.mxu0 0.0
        %3461 = vmatprep.subr.mxu0 0.0
        %3462 = vmatpush1.msra.mxu0 0.0
        %3463 = vmatprep.subr.mxu0 0.0
        %3464 = vmatpush1.msra.mxu0 0.0
        %3465 = vmatprep.subr.mxu0 0.0
        %3466 = vmatpush1.msra.mxu0 0.0
        %3467 = vmatprep.subr.mxu0 0.0
        %3468 = vmatpush1.msra.mxu0 0.0
        %3469 = vmatprep.subr.mxu0 0.0
        %3470 = vmatpush1.msra.mxu0 0.0
        %3471 = vmatprep.subr.mxu0 0.0
        %3472 = vmatpush1.msra.mxu0 0.0
        %3473 = vmatprep.subr.mxu0 0.0
        %3474 = vmatpush1.msra.mxu0 0.0
        %3475 = vmatprep.subr.mxu0 0.0
        %3476 = vmatpush1.msra.mxu0 0.0
        %3477 = vmatprep.subr.mxu0 0.0
        %3478 = vmatpush1.msra.mxu0 0.0
        %3479 = vmatprep.subr.mxu0 0.0
        %3480 = vmatpush1.msra.mxu0 0.0
        %3481 = vmatprep.subr.mxu0 0.0
        %3482 = vmatpush1.msra.mxu0 0.0
        %3483 = vmatprep.subr.mxu0 0.0
        %3484 = vmatpush1.msra.mxu0 0.0
        %3485 = vmatprep.subr.mxu0 0.0
        %3486 = vmatpush1.msra.mxu0 0.0
        %3487 = vmatprep.subr.mxu0 0.0
        %3488 = vmatpush1.msra.mxu0 0.0
        %3489 = vmatprep.subr.mxu0 0.0
        %v3490 = vand.u32 %v362, 4294901760
        %v3491 = vsub.f32 %v362, %v3490
        %v3492 = vand.u32 %v3491, 4294901760
        %v3493 = vsub.f32 %v3491, %v3492
        %v3494 = vand.u32 %v3493, 4294901760
        %3495 = vmatpush1.msra.mxu0 %v3494
        %3496 = vmatprep.subr.mxu0 0.0
        %3497 = vmatpush2.msra.mxu0 0.0
        %3498 = vmatprep.subr.mxu0 0.0
        %3499 = vmatpush2.msra.mxu0 0.0
        %3500 = vmatprep.subr.mxu0 0.0
        %3501 = vmatpush2.msra.mxu0 0.0
        %3502 = vmatprep.subr.mxu0 0.0
        %3503 = vmatpush2.msra.mxu0 0.0
        %3504 = vmatprep.subr.mxu0 0.0
        %3505 = vmatpush2.msra.mxu0 0.0
        %3506 = vmatprep.subr.mxu0 0.0
        %3507 = vmatpush2.msra.mxu0 0.0
        %3508 = vmatprep.subr.mxu0 0.0
        %3509 = vmatpush2.msra.mxu0 0.0
        %3510 = vmatprep.subr.mxu0 0.0
        %3511 = vmatpush2.msra.mxu0 0.0
        %3512 = vmatprep.subr.mxu0 0.0
        %3513 = vmatpush2.msra.mxu0 0.0
        %3514 = vmatprep.subr.mxu0 0.0
        %3515 = vmatpush2.msra.mxu0 0.0
        %3516 = vmatprep.subr.mxu0 0.0
        %3517 = vmatpush2.msra.mxu0 0.0
        %3518 = vmatprep.subr.mxu0 0.0
        %3519 = vmatpush2.msra.mxu0 0.0
        %3520 = vmatprep.subr.mxu0 0.0
        %3521 = vmatpush2.msra.mxu0 0.0
        %3522 = vmatprep.subr.mxu0 0.0
        %3523 = vmatpush2.msra.mxu0 0.0
        %3524 = vmatprep.subr.mxu0 0.0
        %3525 = vmatpush2.msra.mxu0 0.0
        %3526 = vmatprep.subr.mxu0 0.0
        %3527 = vmatpush2.msra.mxu0 0.0
        %3528 = vmatprep.mubr.f32.mxu0 0.0
        %v3529 = vand.u32 %v3381, 4294901760
        %3530 = vmatmul.mubr.f32.gmra.mxu0 %v3529
        %v3531 = vpop.f32.mrf.mxu0
        %v3532 = vadd.f32 %v3456, %v3531
        %v3533 = vpop.f32.mrf.mxu0
        %3534 = vdwg.mxu0
        %3535 = vmatprep.subr.mxu0 0.0
        %3536 = vmatpush1.msra.mxu0 0.0
        %3537 = vmatprep.subr.mxu0 0.0
        %3538 = vmatpush1.msra.mxu0 0.0
        %3539 = vmatprep.subr.mxu0 0.0
        %3540 = vmatpush1.msra.mxu0 0.0
        %3541 = vmatprep.subr.mxu0 0.0
        %3542 = vmatpush1.msra.mxu0 0.0
        %3543 = vmatprep.subr.mxu0 0.0
        %3544 = vmatpush1.msra.mxu0 0.0
        %3545 = vmatprep.subr.mxu0 0.0
        %3546 = vmatpush1.msra.mxu0 0.0
        %3547 = vmatprep.subr.mxu0 0.0
        %3548 = vmatpush1.msra.mxu0 0.0
        %3549 = vmatprep.subr.mxu0 0.0
        %3550 = vmatpush1.msra.mxu0 0.0
        %3551 = vmatprep.subr.mxu0 0.0
        %3552 = vmatpush1.msra.mxu0 0.0
        %3553 = vmatprep.subr.mxu0 0.0
        %3554 = vmatpush1.msra.mxu0 0.0
        %3555 = vmatprep.subr.mxu0 0.0
        %3556 = vmatpush1.msra.mxu0 0.0
        %3557 = vmatprep.subr.mxu0 0.0
        %3558 = vmatpush1.msra.mxu0 0.0
        %3559 = vmatprep.subr.mxu0 0.0
        %3560 = vmatpush1.msra.mxu0 0.0
        %3561 = vmatprep.subr.mxu0 0.0
        %3562 = vmatpush1.msra.mxu0 0.0
        %3563 = vmatprep.subr.mxu0 0.0
        %3564 = vmatpush1.msra.mxu0 0.0
        %3565 = vmatprep.subr.mxu0 0.0
        %v3566 = vand.u32 %v362, 4294901760
        %v3567 = vsub.f32 %v362, %v3566
        %3568 = vmatpush1.msra.mxu0 %v3567
        %3569 = vmatprep.subr.mxu0 0.0
        %3570 = vmatpush2.msra.mxu0 0.0
        %3571 = vmatprep.subr.mxu0 0.0
        %3572 = vmatpush2.msra.mxu0 0.0
        %3573 = vmatprep.subr.mxu0 0.0
        %3574 = vmatpush2.msra.mxu0 0.0
        %3575 = vmatprep.subr.mxu0 0.0
        %3576 = vmatpush2.msra.mxu0 0.0
        %3577 = vmatprep.subr.mxu0 0.0
        %3578 = vmatpush2.msra.mxu0 0.0
        %3579 = vmatprep.subr.mxu0 0.0
        %3580 = vmatpush2.msra.mxu0 0.0
        %3581 = vmatprep.subr.mxu0 0.0
        %3582 = vmatpush2.msra.mxu0 0.0
        %3583 = vmatprep.subr.mxu0 0.0
        %3584 = vmatpush2.msra.mxu0 0.0
        %3585 = vmatprep.subr.mxu0 0.0
        %3586 = vmatpush2.msra.mxu0 0.0
        %3587 = vmatprep.subr.mxu0 0.0
        %3588 = vmatpush2.msra.mxu0 0.0
        %3589 = vmatprep.subr.mxu0 0.0
        %3590 = vmatpush2.msra.mxu0 0.0
        %3591 = vmatprep.subr.mxu0 0.0
        %3592 = vmatpush2.msra.mxu0 0.0
        %3593 = vmatprep.subr.mxu0 0.0
        %3594 = vmatpush2.msra.mxu0 0.0
        %3595 = vmatprep.subr.mxu0 0.0
        %3596 = vmatpush2.msra.mxu0 0.0
        %3597 = vmatprep.subr.mxu0 0.0
        %3598 = vmatpush2.msra.mxu0 0.0
        %3599 = vmatprep.subr.mxu0 0.0
        %3600 = vmatpush2.msra.mxu0 0.0
        %3601 = vmatprep.mubr.f32.mxu0 0.0
        %v3602 = vand.u32 %v3381, 4294901760
        %v3603 = vsub.f32 %v3381, %v3602
        %3604 = vmatmul.mubr.f32.gmra.mxu0 %v3603
        %v3605 = vpop.f32.mrf.mxu0
        %v3606 = vadd.f32 %v3532, %v3605
        %v3607 = vpop.f32.mrf.mxu0
        %3608 = vdwg.mxu0
        %3609 = vmatprep.subr.mxu0 0.0
        %3610 = vmatpush1.msra.mxu0 0.0
        %3611 = vmatprep.subr.mxu0 0.0
        %3612 = vmatpush1.msra.mxu0 0.0
        %3613 = vmatprep.subr.mxu0 0.0
        %3614 = vmatpush1.msra.mxu0 0.0
        %3615 = vmatprep.subr.mxu0 0.0
        %3616 = vmatpush1.msra.mxu0 0.0
        %3617 = vmatprep.subr.mxu0 0.0
        %3618 = vmatpush1.msra.mxu0 0.0
        %3619 = vmatprep.subr.mxu0 0.0
        %3620 = vmatpush1.msra.mxu0 0.0
        %3621 = vmatprep.subr.mxu0 0.0
        %3622 = vmatpush1.msra.mxu0 0.0
        %3623 = vmatprep.subr.mxu0 0.0
        %3624 = vmatpush1.msra.mxu0 0.0
        %3625 = vmatprep.subr.mxu0 0.0
        %3626 = vmatpush1.msra.mxu0 0.0
        %3627 = vmatprep.subr.mxu0 0.0
        %3628 = vmatpush1.msra.mxu0 0.0
        %3629 = vmatprep.subr.mxu0 0.0
        %3630 = vmatpush1.msra.mxu0 0.0
        %3631 = vmatprep.subr.mxu0 0.0
        %3632 = vmatpush1.msra.mxu0 0.0
        %3633 = vmatprep.subr.mxu0 0.0
        %3634 = vmatpush1.msra.mxu0 0.0
        %3635 = vmatprep.subr.mxu0 0.0
        %3636 = vmatpush1.msra.mxu0 0.0
        %3637 = vmatprep.subr.mxu0 0.0
        %3638 = vmatpush1.msra.mxu0 0.0
        %3639 = vmatprep.subr.mxu0 0.0
        %v3640 = vand.u32 %v362, 4294901760
        %3641 = vmatpush1.msra.mxu0 %v3640
        %3642 = vmatprep.subr.mxu0 0.0
        %3643 = vmatpush2.msra.mxu0 0.0
        %3644 = vmatprep.subr.mxu0 0.0
        %3645 = vmatpush2.msra.mxu0 0.0
        %3646 = vmatprep.subr.mxu0 0.0
        %3647 = vmatpush2.msra.mxu0 0.0
        %3648 = vmatprep.subr.mxu0 0.0
        %3649 = vmatpush2.msra.mxu0 0.0
        %3650 = vmatprep.subr.mxu0 0.0
        %3651 = vmatpush2.msra.mxu0 0.0
        %3652 = vmatprep.subr.mxu0 0.0
        %3653 = vmatpush2.msra.mxu0 0.0
        %3654 = vmatprep.subr.mxu0 0.0
        %3655 = vmatpush2.msra.mxu0 0.0
        %3656 = vmatprep.subr.mxu0 0.0
        %3657 = vmatpush2.msra.mxu0 0.0
        %3658 = vmatprep.subr.mxu0 0.0
        %3659 = vmatpush2.msra.mxu0 0.0
        %3660 = vmatprep.subr.mxu0 0.0
        %3661 = vmatpush2.msra.mxu0 0.0
        %3662 = vmatprep.subr.mxu0 0.0
        %3663 = vmatpush2.msra.mxu0 0.0
        %3664 = vmatprep.subr.mxu0 0.0
        %3665 = vmatpush2.msra.mxu0 0.0
        %3666 = vmatprep.subr.mxu0 0.0
        %3667 = vmatpush2.msra.mxu0 0.0
        %3668 = vmatprep.subr.mxu0 0.0
        %3669 = vmatpush2.msra.mxu0 0.0
        %3670 = vmatprep.subr.mxu0 0.0
        %3671 = vmatpush2.msra.mxu0 0.0
        %3672 = vmatprep.subr.mxu0 0.0
        %3673 = vmatpush2.msra.mxu0 0.0
        %3674 = vmatprep.mubr.f32.mxu0 0.0
        %v3675 = vand.u32 %v3381, 4294901760
        %v3676 = vsub.f32 %v3381, %v3675
        %v3677 = vand.u32 %v3676, 4294901760
        %3678 = vmatmul.mubr.f32.gmra.mxu0 %v3677
        %v3679 = vpop.f32.mrf.mxu0
        %v3680 = vadd.f32 %v3606, %v3679
        %v3681 = vpop.f32.mrf.mxu0
        %3682 = vdwg.mxu0
        %3683 = vmatprep.subr.mxu0 0.0
        %3684 = vmatpush1.msra.mxu0 0.0
        %3685 = vmatprep.subr.mxu0 0.0
        %3686 = vmatpush1.msra.mxu0 0.0
        %3687 = vmatprep.subr.mxu0 0.0
        %3688 = vmatpush1.msra.mxu0 0.0
        %3689 = vmatprep.subr.mxu0 0.0
        %3690 = vmatpush1.msra.mxu0 0.0
        %3691 = vmatprep.subr.mxu0 0.0
        %3692 = vmatpush1.msra.mxu0 0.0
        %3693 = vmatprep.subr.mxu0 0.0
        %3694 = vmatpush1.msra.mxu0 0.0
        %3695 = vmatprep.subr.mxu0 0.0
        %3696 = vmatpush1.msra.mxu0 0.0
        %3697 = vmatprep.subr.mxu0 0.0
        %3698 = vmatpush1.msra.mxu0 0.0
        %3699 = vmatprep.subr.mxu0 0.0
        %3700 = vmatpush1.msra.mxu0 0.0
        %3701 = vmatprep.subr.mxu0 0.0
        %3702 = vmatpush1.msra.mxu0 0.0
        %3703 = vmatprep.subr.mxu0 0.0
        %3704 = vmatpush1.msra.mxu0 0.0
        %3705 = vmatprep.subr.mxu0 0.0
        %3706 = vmatpush1.msra.mxu0 0.0
        %3707 = vmatprep.subr.mxu0 0.0
        %3708 = vmatpush1.msra.mxu0 0.0
        %3709 = vmatprep.subr.mxu0 0.0
        %3710 = vmatpush1.msra.mxu0 0.0
        %3711 = vmatprep.subr.mxu0 0.0
        %3712 = vmatpush1.msra.mxu0 0.0
        %3713 = vmatprep.subr.mxu0 0.0
        %v3714 = vand.u32 %v362, 4294901760
        %v3715 = vsub.f32 %v362, %v3714
        %v3716 = vand.u32 %v3715, 4294901760
        %3717 = vmatpush1.msra.mxu0 %v3716
        %3718 = vmatprep.subr.mxu0 0.0
        %3719 = vmatpush2.msra.mxu0 0.0
        %3720 = vmatprep.subr.mxu0 0.0
        %3721 = vmatpush2.msra.mxu0 0.0
        %3722 = vmatprep.subr.mxu0 0.0
        %3723 = vmatpush2.msra.mxu0 0.0
        %3724 = vmatprep.subr.mxu0 0.0
        %3725 = vmatpush2.msra.mxu0 0.0
        %3726 = vmatprep.subr.mxu0 0.0
        %3727 = vmatpush2.msra.mxu0 0.0
        %3728 = vmatprep.subr.mxu0 0.0
        %3729 = vmatpush2.msra.mxu0 0.0
        %3730 = vmatprep.subr.mxu0 0.0
        %3731 = vmatpush2.msra.mxu0 0.0
        %3732 = vmatprep.subr.mxu0 0.0
        %3733 = vmatpush2.msra.mxu0 0.0
        %3734 = vmatprep.subr.mxu0 0.0
        %3735 = vmatpush2.msra.mxu0 0.0
        %3736 = vmatprep.subr.mxu0 0.0
        %3737 = vmatpush2.msra.mxu0 0.0
        %3738 = vmatprep.subr.mxu0 0.0
        %3739 = vmatpush2.msra.mxu0 0.0
        %3740 = vmatprep.subr.mxu0 0.0
        %3741 = vmatpush2.msra.mxu0 0.0
        %3742 = vmatprep.subr.mxu0 0.0
        %3743 = vmatpush2.msra.mxu0 0.0
        %3744 = vmatprep.subr.mxu0 0.0
        %3745 = vmatpush2.msra.mxu0 0.0
        %3746 = vmatprep.subr.mxu0 0.0
        %3747 = vmatpush2.msra.mxu0 0.0
        %3748 = vmatprep.subr.mxu0 0.0
        %3749 = vmatpush2.msra.mxu0 0.0
        %3750 = vmatprep.mubr.f32.mxu0 0.0
        %v3751 = vand.u32 %v3381, 4294901760
        %3752 = vmatmul.mubr.f32.gmra.mxu0 %v3751
        %v3753 = vpop.f32.mrf.mxu0
        %v3754 = vadd.f32 %v3680, %v3753
        %v3755 = vpop.f32.mrf.mxu0
        %3756 = vdwg.mxu0
        %3757 = vmatprep.subr.mxu0 0.0
        %3758 = vmatpush1.msra.mxu0 0.0
        %3759 = vmatprep.subr.mxu0 0.0
        %3760 = vmatpush1.msra.mxu0 0.0
        %3761 = vmatprep.subr.mxu0 0.0
        %3762 = vmatpush1.msra.mxu0 0.0
        %3763 = vmatprep.subr.mxu0 0.0
        %3764 = vmatpush1.msra.mxu0 0.0
        %3765 = vmatprep.subr.mxu0 0.0
        %3766 = vmatpush1.msra.mxu0 0.0
        %3767 = vmatprep.subr.mxu0 0.0
        %3768 = vmatpush1.msra.mxu0 0.0
        %3769 = vmatprep.subr.mxu0 0.0
        %3770 = vmatpush1.msra.mxu0 0.0
        %3771 = vmatprep.subr.mxu0 0.0
        %3772 = vmatpush1.msra.mxu0 0.0
        %3773 = vmatprep.subr.mxu0 0.0
        %3774 = vmatpush1.msra.mxu0 0.0
        %3775 = vmatprep.subr.mxu0 0.0
        %3776 = vmatpush1.msra.mxu0 0.0
        %3777 = vmatprep.subr.mxu0 0.0
        %3778 = vmatpush1.msra.mxu0 0.0
        %3779 = vmatprep.subr.mxu0 0.0
        %3780 = vmatpush1.msra.mxu0 0.0
        %3781 = vmatprep.subr.mxu0 0.0
        %3782 = vmatpush1.msra.mxu0 0.0
        %3783 = vmatprep.subr.mxu0 0.0
        %3784 = vmatpush1.msra.mxu0 0.0
        %3785 = vmatprep.subr.mxu0 0.0
        %3786 = vmatpush1.msra.mxu0 0.0
        %3787 = vmatprep.subr.mxu0 0.0
        %v3788 = vand.u32 %v362, 4294901760
        %3789 = vmatpush1.msra.mxu0 %v3788
        %3790 = vmatprep.subr.mxu0 0.0
        %3791 = vmatpush2.msra.mxu0 0.0
        %3792 = vmatprep.subr.mxu0 0.0
        %3793 = vmatpush2.msra.mxu0 0.0
        %3794 = vmatprep.subr.mxu0 0.0
        %3795 = vmatpush2.msra.mxu0 0.0
        %3796 = vmatprep.subr.mxu0 0.0
        %3797 = vmatpush2.msra.mxu0 0.0
        %3798 = vmatprep.subr.mxu0 0.0
        %3799 = vmatpush2.msra.mxu0 0.0
        %3800 = vmatprep.subr.mxu0 0.0
        %3801 = vmatpush2.msra.mxu0 0.0
        %3802 = vmatprep.subr.mxu0 0.0
        %3803 = vmatpush2.msra.mxu0 0.0
        %3804 = vmatprep.subr.mxu0 0.0
        %3805 = vmatpush2.msra.mxu0 0.0
        %3806 = vmatprep.subr.mxu0 0.0
        %3807 = vmatpush2.msra.mxu0 0.0
        %3808 = vmatprep.subr.mxu0 0.0
        %3809 = vmatpush2.msra.mxu0 0.0
        %3810 = vmatprep.subr.mxu0 0.0
        %3811 = vmatpush2.msra.mxu0 0.0
        %3812 = vmatprep.subr.mxu0 0.0
        %3813 = vmatpush2.msra.mxu0 0.0
        %3814 = vmatprep.subr.mxu0 0.0
        %3815 = vmatpush2.msra.mxu0 0.0
        %3816 = vmatprep.subr.mxu0 0.0
        %3817 = vmatpush2.msra.mxu0 0.0
        %3818 = vmatprep.subr.mxu0 0.0
        %3819 = vmatpush2.msra.mxu0 0.0
        %3820 = vmatprep.subr.mxu0 0.0
        %3821 = vmatpush2.msra.mxu0 0.0
        %3822 = vmatprep.mubr.f32.mxu0 0.0
        %v3823 = vand.u32 %v3381, 4294901760
        %3824 = vmatmul.mubr.f32.gmra.mxu0 %v3823
        %v3825 = vpop.f32.mrf.mxu0
        %v3826 = vadd.f32 %v3754, %v3825
        %v3827 = vpop.f32.mrf.mxu0
        %3828 = vdwg.mxu0
        %v3829 = vsub.f32 %v2736, %v3826
        %v3830 = vmul.f32 %v3829, %v3829
        %3831 = vmatprep.subr.mxu0 0.0
        %v3832 = vand.u32 %v361, 4294901760
        %3833 = vmatpush1.msra.mxu0 %v3832
        %3834 = vmatprep.subr.mxu0 0.0
        %v3835 = vand.u32 %v360, 4294901760
        %3836 = vmatpush1.msra.mxu0 %v3835
        %3837 = vmatprep.subr.mxu0 0.0
        %v3838 = vand.u32 %v359, 4294901760
        %3839 = vmatpush1.msra.mxu0 %v3838
        %3840 = vmatprep.subr.mxu0 0.0
        %v3841 = vand.u32 %v358, 4294901760
        %3842 = vmatpush1.msra.mxu0 %v3841
        %3843 = vmatprep.subr.mxu0 0.0
        %v3844 = vand.u32 %v357, 4294901760
        %3845 = vmatpush1.msra.mxu0 %v3844
        %3846 = vmatprep.subr.mxu0 0.0
        %v3847 = vand.u32 %v356, 4294901760
        %3848 = vmatpush1.msra.mxu0 %v3847
        %3849 = vmatprep.subr.mxu0 0.0
        %v3850 = vand.u32 %v355, 4294901760
        %3851 = vmatpush1.msra.mxu0 %v3850
        %3852 = vmatprep.subr.mxu0 0.0
        %v3853 = vand.u32 %v354, 4294901760
        %3854 = vmatpush1.msra.mxu0 %v3853
        %3855 = vmatprep.subr.mxu0 0.0
        %v3856 = vand.u32 %v353, 4294901760
        %3857 = vmatpush1.msra.mxu0 %v3856
        %3858 = vmatprep.subr.mxu0 0.0
        %v3859 = vand.u32 %v352, 4294901760
        %3860 = vmatpush1.msra.mxu0 %v3859
        %3861 = vmatprep.subr.mxu0 0.0
        %v3862 = vand.u32 %v351, 4294901760
        %3863 = vmatpush1.msra.mxu0 %v3862
        %3864 = vmatprep.subr.mxu0 0.0
        %v3865 = vand.u32 %v350, 4294901760
        %3866 = vmatpush1.msra.mxu0 %v3865
        %3867 = vmatprep.subr.mxu0 0.0
        %v3868 = vand.u32 %v349, 4294901760
        %3869 = vmatpush1.msra.mxu0 %v3868
        %3870 = vmatprep.subr.mxu0 0.0
        %v3871 = vand.u32 %v348, 4294901760
        %3872 = vmatpush1.msra.mxu0 %v3871
        %3873 = vmatprep.subr.mxu0 0.0
        %v3874 = vand.u32 %v347, 4294901760
        %3875 = vmatpush1.msra.mxu0 %v3874
        %3876 = vmatprep.subr.mxu0 0.0
        %v3877 = vand.u32 %v346, 4294901760
        %3878 = vmatpush1.msra.mxu0 %v3877
        %3879 = vmatprep.subr.mxu0 0.0
        %3880 = vmatpush2.msra.mxu0 0.0
        %3881 = vmatprep.subr.mxu0 0.0
        %3882 = vmatpush2.msra.mxu0 0.0
        %3883 = vmatprep.subr.mxu0 0.0
        %3884 = vmatpush2.msra.mxu0 0.0
        %3885 = vmatprep.subr.mxu0 0.0
        %3886 = vmatpush2.msra.mxu0 0.0
        %3887 = vmatprep.subr.mxu0 0.0
        %3888 = vmatpush2.msra.mxu0 0.0
        %3889 = vmatprep.subr.mxu0 0.0
        %3890 = vmatpush2.msra.mxu0 0.0
        %3891 = vmatprep.subr.mxu0 0.0
        %3892 = vmatpush2.msra.mxu0 0.0
        %3893 = vmatprep.subr.mxu0 0.0
        %3894 = vmatpush2.msra.mxu0 0.0
        %3895 = vmatprep.subr.mxu0 0.0
        %3896 = vmatpush2.msra.mxu0 0.0
        %3897 = vmatprep.subr.mxu0 0.0
        %3898 = vmatpush2.msra.mxu0 0.0
        %3899 = vmatprep.subr.mxu0 0.0
        %3900 = vmatpush2.msra.mxu0 0.0
        %3901 = vmatprep.subr.mxu0 0.0
        %3902 = vmatpush2.msra.mxu0 0.0
        %3903 = vmatprep.subr.mxu0 0.0
        %3904 = vmatpush2.msra.mxu0 0.0
        %3905 = vmatprep.subr.mxu0 0.0
        %3906 = vmatpush2.msra.mxu0 0.0
        %3907 = vmatprep.subr.mxu0 0.0
        %3908 = vmatpush2.msra.mxu0 0.0
        %3909 = vmatprep.subr.mxu0 0.0
        %3910 = vmatpush2.msra.mxu0 0.0
        %3911 = vmatprep.mubr.f32.mxu0 0.0
        %v3912 = vand.u32 %v3830, 4294901760
        %v3913 = vsub.f32 %v3830, %v3912
        %v3914 = vand.u32 %v3913, 4294901760
        %v3915 = vsub.f32 %v3913, %v3914
        %v3916 = vand.u32 %v3915, 4294901760
        %3917 = vmatmul.mubr.f32.gmra.mxu0 %v3916
        %v3918 = vpop.f32.mrf.mxu0
        %v3919 = vadd.f32 1e-05, %v3918
        %v3920 = vpop.f32.mrf.mxu0
        %3921 = vdwg.mxu0
        %3922 = vmatprep.subr.mxu0 0.0
        %v3923 = vand.u32 %v361, 4294901760
        %v3924 = vsub.f32 %v361, %v3923
        %v3925 = vand.u32 %v3924, 4294901760
        %v3926 = vsub.f32 %v3924, %v3925
        %v3927 = vand.u32 %v3926, 4294901760
        %3928 = vmatpush1.msra.mxu0 %v3927
        %3929 = vmatprep.subr.mxu0 0.0
        %v3930 = vand.u32 %v360, 4294901760
        %v3931 = vsub.f32 %v360, %v3930
        %v3932 = vand.u32 %v3931, 4294901760
        %v3933 = vsub.f32 %v3931, %v3932
        %v3934 = vand.u32 %v3933, 4294901760
        %3935 = vmatpush1.msra.mxu0 %v3934
        %3936 = vmatprep.subr.mxu0 0.0
        %v3937 = vand.u32 %v359, 4294901760
        %v3938 = vsub.f32 %v359, %v3937
        %v3939 = vand.u32 %v3938, 4294901760
        %v3940 = vsub.f32 %v3938, %v3939
        %v3941 = vand.u32 %v3940, 4294901760
        %3942 = vmatpush1.msra.mxu0 %v3941
        %3943 = vmatprep.subr.mxu0 0.0
        %v3944 = vand.u32 %v358, 4294901760
        %v3945 = vsub.f32 %v358, %v3944
        %v3946 = vand.u32 %v3945, 4294901760
        %v3947 = vsub.f32 %v3945, %v3946
        %v3948 = vand.u32 %v3947, 4294901760
        %3949 = vmatpush1.msra.mxu0 %v3948
        %3950 = vmatprep.subr.mxu0 0.0
        %v3951 = vand.u32 %v357, 4294901760
        %v3952 = vsub.f32 %v357, %v3951
        %v3953 = vand.u32 %v3952, 4294901760
        %v3954 = vsub.f32 %v3952, %v3953
        %v3955 = vand.u32 %v3954, 4294901760
        %3956 = vmatpush1.msra.mxu0 %v3955
        %3957 = vmatprep.subr.mxu0 0.0
        %v3958 = vand.u32 %v356, 4294901760
        %v3959 = vsub.f32 %v356, %v3958
        %v3960 = vand.u32 %v3959, 4294901760
        %v3961 = vsub.f32 %v3959, %v3960
        %v3962 = vand.u32 %v3961, 4294901760
        %3963 = vmatpush1.msra.mxu0 %v3962
        %3964 = vmatprep.subr.mxu0 0.0
        %v3965 = vand.u32 %v355, 4294901760
        %v3966 = vsub.f32 %v355, %v3965
        %v3967 = vand.u32 %v3966, 4294901760
        %v3968 = vsub.f32 %v3966, %v3967
        %v3969 = vand.u32 %v3968, 4294901760
        %3970 = vmatpush1.msra.mxu0 %v3969
        %3971 = vmatprep.subr.mxu0 0.0
        %v3972 = vand.u32 %v354, 4294901760
        %v3973 = vsub.f32 %v354, %v3972
        %v3974 = vand.u32 %v3973, 4294901760
        %v3975 = vsub.f32 %v3973, %v3974
        %v3976 = vand.u32 %v3975, 4294901760
        %3977 = vmatpush1.msra.mxu0 %v3976
        %3978 = vmatprep.subr.mxu0 0.0
        %v3979 = vand.u32 %v353, 4294901760
        %v3980 = vsub.f32 %v353, %v3979
        %v3981 = vand.u32 %v3980, 4294901760
        %v3982 = vsub.f32 %v3980, %v3981
        %v3983 = vand.u32 %v3982, 4294901760
        %3984 = vmatpush1.msra.mxu0 %v3983
        %3985 = vmatprep.subr.mxu0 0.0
        %v3986 = vand.u32 %v352, 4294901760
        %v3987 = vsub.f32 %v352, %v3986
        %v3988 = vand.u32 %v3987, 4294901760
        %v3989 = vsub.f32 %v3987, %v3988
        %v3990 = vand.u32 %v3989, 4294901760
        %3991 = vmatpush1.msra.mxu0 %v3990
        %3992 = vmatprep.subr.mxu0 0.0
        %v3993 = vand.u32 %v351, 4294901760
        %v3994 = vsub.f32 %v351, %v3993
        %v3995 = vand.u32 %v3994, 4294901760
        %v3996 = vsub.f32 %v3994, %v3995
        %v3997 = vand.u32 %v3996, 4294901760
        %3998 = vmatpush1.msra.mxu0 %v3997
        %3999 = vmatprep.subr.mxu0 0.0
        %v4000 = vand.u32 %v350, 4294901760
        %v4001 = vsub.f32 %v350, %v4000
        %v4002 = vand.u32 %v4001, 4294901760
        %v4003 = vsub.f32 %v4001, %v4002
        %v4004 = vand.u32 %v4003, 4294901760
        %4005 = vmatpush1.msra.mxu0 %v4004
        %4006 = vmatprep.subr.mxu0 0.0
        %v4007 = vand.u32 %v349, 4294901760
        %v4008 = vsub.f32 %v349, %v4007
        %v4009 = vand.u32 %v4008, 4294901760
        %v4010 = vsub.f32 %v4008, %v4009
        %v4011 = vand.u32 %v4010, 4294901760
        %4012 = vmatpush1.msra.mxu0 %v4011
        %4013 = vmatprep.subr.mxu0 0.0
        %v4014 = vand.u32 %v348, 4294901760
        %v4015 = vsub.f32 %v348, %v4014
        %v4016 = vand.u32 %v4015, 4294901760
        %v4017 = vsub.f32 %v4015, %v4016
        %v4018 = vand.u32 %v4017, 4294901760
        %4019 = vmatpush1.msra.mxu0 %v4018
        %4020 = vmatprep.subr.mxu0 0.0
        %v4021 = vand.u32 %v347, 4294901760
        %v4022 = vsub.f32 %v347, %v4021
        %v4023 = vand.u32 %v4022, 4294901760
        %v4024 = vsub.f32 %v4022, %v4023
        %v4025 = vand.u32 %v4024, 4294901760
        %4026 = vmatpush1.msra.mxu0 %v4025
        %4027 = vmatprep.subr.mxu0 0.0
        %v4028 = vand.u32 %v346, 4294901760
        %v4029 = vsub.f32 %v346, %v4028
        %v4030 = vand.u32 %v4029, 4294901760
        %v4031 = vsub.f32 %v4029, %v4030
        %v4032 = vand.u32 %v4031, 4294901760
        %4033 = vmatpush1.msra.mxu0 %v4032
        %4034 = vmatprep.subr.mxu0 0.0
        %4035 = vmatpush2.msra.mxu0 0.0
        %4036 = vmatprep.subr.mxu0 0.0
        %4037 = vmatpush2.msra.mxu0 0.0
        %4038 = vmatprep.subr.mxu0 0.0
        %4039 = vmatpush2.msra.mxu0 0.0
        %4040 = vmatprep.subr.mxu0 0.0
        %4041 = vmatpush2.msra.mxu0 0.0
        %4042 = vmatprep.subr.mxu0 0.0
        %4043 = vmatpush2.msra.mxu0 0.0
        %4044 = vmatprep.subr.mxu0 0.0
        %4045 = vmatpush2.msra.mxu0 0.0
        %4046 = vmatprep.subr.mxu0 0.0
        %4047 = vmatpush2.msra.mxu0 0.0
        %4048 = vmatprep.subr.mxu0 0.0
        %4049 = vmatpush2.msra.mxu0 0.0
        %4050 = vmatprep.subr.mxu0 0.0
        %4051 = vmatpush2.msra.mxu0 0.0
        %4052 = vmatprep.subr.mxu0 0.0
        %4053 = vmatpush2.msra.mxu0 0.0
        %4054 = vmatprep.subr.mxu0 0.0
        %4055 = vmatpush2.msra.mxu0 0.0
        %4056 = vmatprep.subr.mxu0 0.0
        %4057 = vmatpush2.msra.mxu0 0.0
        %4058 = vmatprep.subr.mxu0 0.0
        %4059 = vmatpush2.msra.mxu0 0.0
        %4060 = vmatprep.subr.mxu0 0.0
        %4061 = vmatpush2.msra.mxu0 0.0
        %4062 = vmatprep.subr.mxu0 0.0
        %4063 = vmatpush2.msra.mxu0 0.0
        %4064 = vmatprep.subr.mxu0 0.0
        %4065 = vmatpush2.msra.mxu0 0.0
        %4066 = vmatprep.mubr.f32.mxu0 0.0
        %v4067 = vand.u32 %v3830, 4294901760
        %4068 = vmatmul.mubr.f32.gmra.mxu0 %v4067
        %v4069 = vpop.f32.mrf.mxu0
        %v4070 = vadd.f32 %v3919, %v4069
        %v4071 = vpop.f32.mrf.mxu0
        %4072 = vdwg.mxu0
        %4073 = vmatprep.subr.mxu0 0.0
        %v4074 = vand.u32 %v361, 4294901760
        %v4075 = vsub.f32 %v361, %v4074
        %4076 = vmatpush1.msra.mxu0 %v4075
        %4077 = vmatprep.subr.mxu0 0.0
        %v4078 = vand.u32 %v360, 4294901760
        %v4079 = vsub.f32 %v360, %v4078
        %4080 = vmatpush1.msra.mxu0 %v4079
        %4081 = vmatprep.subr.mxu0 0.0
        %v4082 = vand.u32 %v359, 4294901760
        %v4083 = vsub.f32 %v359, %v4082
        %4084 = vmatpush1.msra.mxu0 %v4083
        %4085 = vmatprep.subr.mxu0 0.0
        %v4086 = vand.u32 %v358, 4294901760
        %v4087 = vsub.f32 %v358, %v4086
        %4088 = vmatpush1.msra.mxu0 %v4087
        %4089 = vmatprep.subr.mxu0 0.0
        %v4090 = vand.u32 %v357, 4294901760
        %v4091 = vsub.f32 %v357, %v4090
        %4092 = vmatpush1.msra.mxu0 %v4091
        %4093 = vmatprep.subr.mxu0 0.0
        %v4094 = vand.u32 %v356, 4294901760
        %v4095 = vsub.f32 %v356, %v4094
        %4096 = vmatpush1.msra.mxu0 %v4095
        %4097 = vmatprep.subr.mxu0 0.0
        %v4098 = vand.u32 %v355, 4294901760
        %v4099 = vsub.f32 %v355, %v4098
        %4100 = vmatpush1.msra.mxu0 %v4099
        %4101 = vmatprep.subr.mxu0 0.0
        %v4102 = vand.u32 %v354, 4294901760
        %v4103 = vsub.f32 %v354, %v4102
        %4104 = vmatpush1.msra.mxu0 %v4103
        %4105 = vmatprep.subr.mxu0 0.0
        %v4106 = vand.u32 %v353, 4294901760
        %v4107 = vsub.f32 %v353, %v4106
        %4108 = vmatpush1.msra.mxu0 %v4107
        %4109 = vmatprep.subr.mxu0 0.0
        %v4110 = vand.u32 %v352, 4294901760
        %v4111 = vsub.f32 %v352, %v4110
        %4112 = vmatpush1.msra.mxu0 %v4111
        %4113 = vmatprep.subr.mxu0 0.0
        %v4114 = vand.u32 %v351, 4294901760
        %v4115 = vsub.f32 %v351, %v4114
        %4116 = vmatpush1.msra.mxu0 %v4115
        %4117 = vmatprep.subr.mxu0 0.0
        %v4118 = vand.u32 %v350, 4294901760
        %v4119 = vsub.f32 %v350, %v4118
        %4120 = vmatpush1.msra.mxu0 %v4119
        %4121 = vmatprep.subr.mxu0 0.0
        %v4122 = vand.u32 %v349, 4294901760
        %v4123 = vsub.f32 %v349, %v4122
        %4124 = vmatpush1.msra.mxu0 %v4123
        %4125 = vmatprep.subr.mxu0 0.0
        %v4126 = vand.u32 %v348, 4294901760
        %v4127 = vsub.f32 %v348, %v4126
        %4128 = vmatpush1.msra.mxu0 %v4127
        %4129 = vmatprep.subr.mxu0 0.0
        %v4130 = vand.u32 %v347, 4294901760
        %v4131 = vsub.f32 %v347, %v4130
        %4132 = vmatpush1.msra.mxu0 %v4131
        %4133 = vmatprep.subr.mxu0 0.0
        %v4134 = vand.u32 %v346, 4294901760
        %v4135 = vsub.f32 %v346, %v4134
        %4136 = vmatpush1.msra.mxu0 %v4135
        %4137 = vmatprep.subr.mxu0 0.0
        %4138 = vmatpush2.msra.mxu0 0.0
        %4139 = vmatprep.subr.mxu0 0.0
        %4140 = vmatpush2.msra.mxu0 0.0
        %4141 = vmatprep.subr.mxu0 0.0
        %4142 = vmatpush2.msra.mxu0 0.0
        %4143 = vmatprep.subr.mxu0 0.0
        %4144 = vmatpush2.msra.mxu0 0.0
        %4145 = vmatprep.subr.mxu0 0.0
        %4146 = vmatpush2.msra.mxu0 0.0
        %4147 = vmatprep.subr.mxu0 0.0
        %4148 = vmatpush2.msra.mxu0 0.0
        %4149 = vmatprep.subr.mxu0 0.0
        %4150 = vmatpush2.msra.mxu0 0.0
        %4151 = vmatprep.subr.mxu0 0.0
        %4152 = vmatpush2.msra.mxu0 0.0
        %4153 = vmatprep.subr.mxu0 0.0
        %4154 = vmatpush2.msra.mxu0 0.0
        %4155 = vmatprep.subr.mxu0 0.0
        %4156 = vmatpush2.msra.mxu0 0.0
        %4157 = vmatprep.subr.mxu0 0.0
        %4158 = vmatpush2.msra.mxu0 0.0
        %4159 = vmatprep.subr.mxu0 0.0
        %4160 = vmatpush2.msra.mxu0 0.0
        %4161 = vmatprep.subr.mxu0 0.0
        %4162 = vmatpush2.msra.mxu0 0.0
        %4163 = vmatprep.subr.mxu0 0.0
        %4164 = vmatpush2.msra.mxu0 0.0
        %4165 = vmatprep.subr.mxu0 0.0
        %4166 = vmatpush2.msra.mxu0 0.0
        %4167 = vmatprep.subr.mxu0 0.0
        %4168 = vmatpush2.msra.mxu0 0.0
        %4169 = vmatprep.mubr.f32.mxu0 0.0
        %v4170 = vand.u32 %v3830, 4294901760
        %v4171 = vsub.f32 %v3830, %v4170
        %4172 = vmatmul.mubr.f32.gmra.mxu0 %v4171
        %v4173 = vpop.f32.mrf.mxu0
        %v4174 = vadd.f32 %v4070, %v4173
        %v4175 = vpop.f32.mrf.mxu0
        %4176 = vdwg.mxu0
        %4177 = vmatprep.subr.mxu0 0.0
        %v4178 = vand.u32 %v361, 4294901760
        %4179 = vmatpush1.msra.mxu0 %v4178
        %4180 = vmatprep.subr.mxu0 0.0
        %v4181 = vand.u32 %v360, 4294901760
        %4182 = vmatpush1.msra.mxu0 %v4181
        %4183 = vmatprep.subr.mxu0 0.0
        %v4184 = vand.u32 %v359, 4294901760
        %4185 = vmatpush1.msra.mxu0 %v4184
        %4186 = vmatprep.subr.mxu0 0.0
        %v4187 = vand.u32 %v358, 4294901760
        %4188 = vmatpush1.msra.mxu0 %v4187
        %4189 = vmatprep.subr.mxu0 0.0
        %v4190 = vand.u32 %v357, 4294901760
        %4191 = vmatpush1.msra.mxu0 %v4190
        %4192 = vmatprep.subr.mxu0 0.0
        %v4193 = vand.u32 %v356, 4294901760
        %4194 = vmatpush1.msra.mxu0 %v4193
        %4195 = vmatprep.subr.mxu0 0.0
        %v4196 = vand.u32 %v355, 4294901760
        %4197 = vmatpush1.msra.mxu0 %v4196
        %4198 = vmatprep.subr.mxu0 0.0
        %v4199 = vand.u32 %v354, 4294901760
        %4200 = vmatpush1.msra.mxu0 %v4199
        %4201 = vmatprep.subr.mxu0 0.0
        %v4202 = vand.u32 %v353, 4294901760
        %4203 = vmatpush1.msra.mxu0 %v4202
        %4204 = vmatprep.subr.mxu0 0.0
        %v4205 = vand.u32 %v352, 4294901760
        %4206 = vmatpush1.msra.mxu0 %v4205
        %4207 = vmatprep.subr.mxu0 0.0
        %v4208 = vand.u32 %v351, 4294901760
        %4209 = vmatpush1.msra.mxu0 %v4208
        %4210 = vmatprep.subr.mxu0 0.0
        %v4211 = vand.u32 %v350, 4294901760
        %4212 = vmatpush1.msra.mxu0 %v4211
        %4213 = vmatprep.subr.mxu0 0.0
        %v4214 = vand.u32 %v349, 4294901760
        %4215 = vmatpush1.msra.mxu0 %v4214
        %4216 = vmatprep.subr.mxu0 0.0
        %v4217 = vand.u32 %v348, 4294901760
        %4218 = vmatpush1.msra.mxu0 %v4217
        %4219 = vmatprep.subr.mxu0 0.0
        %v4220 = vand.u32 %v347, 4294901760
        %4221 = vmatpush1.msra.mxu0 %v4220
        %4222 = vmatprep.subr.mxu0 0.0
        %v4223 = vand.u32 %v346, 4294901760
        %4224 = vmatpush1.msra.mxu0 %v4223
        %4225 = vmatprep.subr.mxu0 0.0
        %4226 = vmatpush2.msra.mxu0 0.0
        %4227 = vmatprep.subr.mxu0 0.0
        %4228 = vmatpush2.msra.mxu0 0.0
        %4229 = vmatprep.subr.mxu0 0.0
        %4230 = vmatpush2.msra.mxu0 0.0
        %4231 = vmatprep.subr.mxu0 0.0
        %4232 = vmatpush2.msra.mxu0 0.0
        %4233 = vmatprep.subr.mxu0 0.0
        %4234 = vmatpush2.msra.mxu0 0.0
        %4235 = vmatprep.subr.mxu0 0.0
        %4236 = vmatpush2.msra.mxu0 0.0
        %4237 = vmatprep.subr.mxu0 0.0
        %4238 = vmatpush2.msra.mxu0 0.0
        %4239 = vmatprep.subr.mxu0 0.0
        %4240 = vmatpush2.msra.mxu0 0.0
        %4241 = vmatprep.subr.mxu0 0.0
        %4242 = vmatpush2.msra.mxu0 0.0
        %4243 = vmatprep.subr.mxu0 0.0
        %4244 = vmatpush2.msra.mxu0 0.0
        %4245 = vmatprep.subr.mxu0 0.0
        %4246 = vmatpush2.msra.mxu0 0.0
        %4247 = vmatprep.subr.mxu0 0.0
        %4248 = vmatpush2.msra.mxu0 0.0
        %4249 = vmatprep.subr.mxu0 0.0
        %4250 = vmatpush2.msra.mxu0 0.0
        %4251 = vmatprep.subr.mxu0 0.0
        %4252 = vmatpush2.msra.mxu0 0.0
        %4253 = vmatprep.subr.mxu0 0.0
        %4254 = vmatpush2.msra.mxu0 0.0
        %4255 = vmatprep.subr.mxu0 0.0
        %4256 = vmatpush2.msra.mxu0 0.0
        %4257 = vmatprep.mubr.f32.mxu0 0.0
        %v4258 = vand.u32 %v3830, 4294901760
        %v4259 = vsub.f32 %v3830, %v4258
        %v4260 = vand.u32 %v4259, 4294901760
        %4261 = vmatmul.mubr.f32.gmra.mxu0 %v4260
        %v4262 = vpop.f32.mrf.mxu0
        %v4263 = vadd.f32 %v4174, %v4262
        %v4264 = vpop.f32.mrf.mxu0
        %4265 = vdwg.mxu0
        %4266 = vmatprep.subr.mxu0 0.0
        %v4267 = vand.u32 %v361, 4294901760
        %v4268 = vsub.f32 %v361, %v4267
        %v4269 = vand.u32 %v4268, 4294901760
        %4270 = vmatpush1.msra.mxu0 %v4269
        %4271 = vmatprep.subr.mxu0 0.0
        %v4272 = vand.u32 %v360, 4294901760
        %v4273 = vsub.f32 %v360, %v4272
        %v4274 = vand.u32 %v4273, 4294901760
        %4275 = vmatpush1.msra.mxu0 %v4274
        %4276 = vmatprep.subr.mxu0 0.0
        %v4277 = vand.u32 %v359, 4294901760
        %v4278 = vsub.f32 %v359, %v4277
        %v4279 = vand.u32 %v4278, 4294901760
        %4280 = vmatpush1.msra.mxu0 %v4279
        %4281 = vmatprep.subr.mxu0 0.0
        %v4282 = vand.u32 %v358, 4294901760
        %v4283 = vsub.f32 %v358, %v4282
        %v4284 = vand.u32 %v4283, 4294901760
        %4285 = vmatpush1.msra.mxu0 %v4284
        %4286 = vmatprep.subr.mxu0 0.0
        %v4287 = vand.u32 %v357, 4294901760
        %v4288 = vsub.f32 %v357, %v4287
        %v4289 = vand.u32 %v4288, 4294901760
        %4290 = vmatpush1.msra.mxu0 %v4289
        %4291 = vmatprep.subr.mxu0 0.0
        %v4292 = vand.u32 %v356, 4294901760
        %v4293 = vsub.f32 %v356, %v4292
        %v4294 = vand.u32 %v4293, 4294901760
        %4295 = vmatpush1.msra.mxu0 %v4294
        %4296 = vmatprep.subr.mxu0 0.0
        %v4297 = vand.u32 %v355, 4294901760
        %v4298 = vsub.f32 %v355, %v4297
        %v4299 = vand.u32 %v4298, 4294901760
        %4300 = vmatpush1.msra.mxu0 %v4299
        %4301 = vmatprep.subr.mxu0 0.0
        %v4302 = vand.u32 %v354, 4294901760
        %v4303 = vsub.f32 %v354, %v4302
        %v4304 = vand.u32 %v4303, 4294901760
        %4305 = vmatpush1.msra.mxu0 %v4304
        %4306 = vmatprep.subr.mxu0 0.0
        %v4307 = vand.u32 %v353, 4294901760
        %v4308 = vsub.f32 %v353, %v4307
        %v4309 = vand.u32 %v4308, 4294901760
        %4310 = vmatpush1.msra.mxu0 %v4309
        %4311 = vmatprep.subr.mxu0 0.0
        %v4312 = vand.u32 %v352, 4294901760
        %v4313 = vsub.f32 %v352, %v4312
        %v4314 = vand.u32 %v4313, 4294901760
        %4315 = vmatpush1.msra.mxu0 %v4314
        %4316 = vmatprep.subr.mxu0 0.0
        %v4317 = vand.u32 %v351, 4294901760
        %v4318 = vsub.f32 %v351, %v4317
        %v4319 = vand.u32 %v4318, 4294901760
        %4320 = vmatpush1.msra.mxu0 %v4319
        %4321 = vmatprep.subr.mxu0 0.0
        %v4322 = vand.u32 %v350, 4294901760
        %v4323 = vsub.f32 %v350, %v4322
        %v4324 = vand.u32 %v4323, 4294901760
        %4325 = vmatpush1.msra.mxu0 %v4324
        %4326 = vmatprep.subr.mxu0 0.0
        %v4327 = vand.u32 %v349, 4294901760
        %v4328 = vsub.f32 %v349, %v4327
        %v4329 = vand.u32 %v4328, 4294901760
        %4330 = vmatpush1.msra.mxu0 %v4329
        %4331 = vmatprep.subr.mxu0 0.0
        %v4332 = vand.u32 %v348, 4294901760
        %v4333 = vsub.f32 %v348, %v4332
        %v4334 = vand.u32 %v4333, 4294901760
        %4335 = vmatpush1.msra.mxu0 %v4334
        %4336 = vmatprep.subr.mxu0 0.0
        %v4337 = vand.u32 %v347, 4294901760
        %v4338 = vsub.f32 %v347, %v4337
        %v4339 = vand.u32 %v4338, 4294901760
        %4340 = vmatpush1.msra.mxu0 %v4339
        %4341 = vmatprep.subr.mxu0 0.0
        %v4342 = vand.u32 %v346, 4294901760
        %v4343 = vsub.f32 %v346, %v4342
        %v4344 = vand.u32 %v4343, 4294901760
        %4345 = vmatpush1.msra.mxu0 %v4344
        %4346 = vmatprep.subr.mxu0 0.0
        %4347 = vmatpush2.msra.mxu0 0.0
        %4348 = vmatprep.subr.mxu0 0.0
        %4349 = vmatpush2.msra.mxu0 0.0
        %4350 = vmatprep.subr.mxu0 0.0
        %4351 = vmatpush2.msra.mxu0 0.0
        %4352 = vmatprep.subr.mxu0 0.0
        %4353 = vmatpush2.msra.mxu0 0.0
        %4354 = vmatprep.subr.mxu0 0.0
        %4355 = vmatpush2.msra.mxu0 0.0
        %4356 = vmatprep.subr.mxu0 0.0
        %4357 = vmatpush2.msra.mxu0 0.0
        %4358 = vmatprep.subr.mxu0 0.0
        %4359 = vmatpush2.msra.mxu0 0.0
        %4360 = vmatprep.subr.mxu0 0.0
        %4361 = vmatpush2.msra.mxu0 0.0
        %4362 = vmatprep.subr.mxu0 0.0
        %4363 = vmatpush2.msra.mxu0 0.0
        %4364 = vmatprep.subr.mxu0 0.0
        %4365 = vmatpush2.msra.mxu0 0.0
        %4366 = vmatprep.subr.mxu0 0.0
        %4367 = vmatpush2.msra.mxu0 0.0
        %4368 = vmatprep.subr.mxu0 0.0
        %4369 = vmatpush2.msra.mxu0 0.0
        %4370 = vmatprep.subr.mxu0 0.0
        %4371 = vmatpush2.msra.mxu0 0.0
        %4372 = vmatprep.subr.mxu0 0.0
        %4373 = vmatpush2.msra.mxu0 0.0
        %4374 = vmatprep.subr.mxu0 0.0
        %4375 = vmatpush2.msra.mxu0 0.0
        %4376 = vmatprep.subr.mxu0 0.0
        %4377 = vmatpush2.msra.mxu0 0.0
        %4378 = vmatprep.mubr.f32.mxu0 0.0
        %v4379 = vand.u32 %v3830, 4294901760
        %4380 = vmatmul.mubr.f32.gmra.mxu0 %v4379
        %v4381 = vpop.f32.mrf.mxu0
        %v4382 = vadd.f32 %v4263, %v4381
        %v4383 = vpop.f32.mrf.mxu0
        %4384 = vdwg.mxu0
        %4385 = vmatprep.subr.mxu0 0.0
        %v4386 = vand.u32 %v361, 4294901760
        %4387 = vmatpush1.msra.mxu0 %v4386
        %4388 = vmatprep.subr.mxu0 0.0
        %v4389 = vand.u32 %v360, 4294901760
        %4390 = vmatpush1.msra.mxu0 %v4389
        %4391 = vmatprep.subr.mxu0 0.0
        %v4392 = vand.u32 %v359, 4294901760
        %4393 = vmatpush1.msra.mxu0 %v4392
        %4394 = vmatprep.subr.mxu0 0.0
        %v4395 = vand.u32 %v358, 4294901760
        %4396 = vmatpush1.msra.mxu0 %v4395
        %4397 = vmatprep.subr.mxu0 0.0
        %v4398 = vand.u32 %v357, 4294901760
        %4399 = vmatpush1.msra.mxu0 %v4398
        %4400 = vmatprep.subr.mxu0 0.0
        %v4401 = vand.u32 %v356, 4294901760
        %4402 = vmatpush1.msra.mxu0 %v4401
        %4403 = vmatprep.subr.mxu0 0.0
        %v4404 = vand.u32 %v355, 4294901760
        %4405 = vmatpush1.msra.mxu0 %v4404
        %4406 = vmatprep.subr.mxu0 0.0
        %v4407 = vand.u32 %v354, 4294901760
        %4408 = vmatpush1.msra.mxu0 %v4407
        %4409 = vmatprep.subr.mxu0 0.0
        %v4410 = vand.u32 %v353, 4294901760
        %4411 = vmatpush1.msra.mxu0 %v4410
        %4412 = vmatprep.subr.mxu0 0.0
        %v4413 = vand.u32 %v352, 4294901760
        %4414 = vmatpush1.msra.mxu0 %v4413
        %4415 = vmatprep.subr.mxu0 0.0
        %v4416 = vand.u32 %v351, 4294901760
        %4417 = vmatpush1.msra.mxu0 %v4416
        %4418 = vmatprep.subr.mxu0 0.0
        %v4419 = vand.u32 %v350, 4294901760
        %4420 = vmatpush1.msra.mxu0 %v4419
        %4421 = vmatprep.subr.mxu0 0.0
        %v4422 = vand.u32 %v349, 4294901760
        %4423 = vmatpush1.msra.mxu0 %v4422
        %4424 = vmatprep.subr.mxu0 0.0
        %v4425 = vand.u32 %v348, 4294901760
        %4426 = vmatpush1.msra.mxu0 %v4425
        %4427 = vmatprep.subr.mxu0 0.0
        %v4428 = vand.u32 %v347, 4294901760
        %4429 = vmatpush1.msra.mxu0 %v4428
        %4430 = vmatprep.subr.mxu0 0.0
        %v4431 = vand.u32 %v346, 4294901760
        %4432 = vmatpush1.msra.mxu0 %v4431
        %4433 = vmatprep.subr.mxu0 0.0
        %4434 = vmatpush2.msra.mxu0 0.0
        %4435 = vmatprep.subr.mxu0 0.0
        %4436 = vmatpush2.msra.mxu0 0.0
        %4437 = vmatprep.subr.mxu0 0.0
        %4438 = vmatpush2.msra.mxu0 0.0
        %4439 = vmatprep.subr.mxu0 0.0
        %4440 = vmatpush2.msra.mxu0 0.0
        %4441 = vmatprep.subr.mxu0 0.0
        %4442 = vmatpush2.msra.mxu0 0.0
        %4443 = vmatprep.subr.mxu0 0.0
        %4444 = vmatpush2.msra.mxu0 0.0
        %4445 = vmatprep.subr.mxu0 0.0
        %4446 = vmatpush2.msra.mxu0 0.0
        %4447 = vmatprep.subr.mxu0 0.0
        %4448 = vmatpush2.msra.mxu0 0.0
        %4449 = vmatprep.subr.mxu0 0.0
        %4450 = vmatpush2.msra.mxu0 0.0
        %4451 = vmatprep.subr.mxu0 0.0
        %4452 = vmatpush2.msra.mxu0 0.0
        %4453 = vmatprep.subr.mxu0 0.0
        %4454 = vmatpush2.msra.mxu0 0.0
        %4455 = vmatprep.subr.mxu0 0.0
        %4456 = vmatpush2.msra.mxu0 0.0
        %4457 = vmatprep.subr.mxu0 0.0
        %4458 = vmatpush2.msra.mxu0 0.0
        %4459 = vmatprep.subr.mxu0 0.0
        %4460 = vmatpush2.msra.mxu0 0.0
        %4461 = vmatprep.subr.mxu0 0.0
        %4462 = vmatpush2.msra.mxu0 0.0
        %4463 = vmatprep.subr.mxu0 0.0
        %4464 = vmatpush2.msra.mxu0 0.0
        %4465 = vmatprep.mubr.f32.mxu0 0.0
        %v4466 = vand.u32 %v3830, 4294901760
        %4467 = vmatmul.mubr.f32.gmra.mxu0 %v4466
        %v4468 = vpop.f32.mrf.mxu0
        %v4469 = vadd.f32 %v4382, %v4468
        %v4470 = vpop.f32.mrf.mxu0
        %4471 = vdwg.mxu0
        %v4472 = vrsqrt.pop %v4469
        %v4474 = vsel %vm1090, %v4472, 0
        %4476 = vmatprep.subr.mxu0 0.0
        %4477 = vmatpush1.msra.mxu0 0.0
        %4478 = vmatprep.subr.mxu0 0.0
        %4479 = vmatpush1.msra.mxu0 0.0
        %4480 = vmatprep.subr.mxu0 0.0
        %4481 = vmatpush1.msra.mxu0 0.0
        %4482 = vmatprep.subr.mxu0 0.0
        %4483 = vmatpush1.msra.mxu0 0.0
        %4484 = vmatprep.subr.mxu0 0.0
        %4485 = vmatpush1.msra.mxu0 0.0
        %4486 = vmatprep.subr.mxu0 0.0
        %4487 = vmatpush1.msra.mxu0 0.0
        %4488 = vmatprep.subr.mxu0 0.0
        %4489 = vmatpush1.msra.mxu0 0.0
        %4490 = vmatprep.subr.mxu0 0.0
        %4491 = vmatpush1.msra.mxu0 0.0
        %4492 = vmatprep.subr.mxu0 0.0
        %4493 = vmatpush1.msra.mxu0 0.0
        %4494 = vmatprep.subr.mxu0 0.0
        %4495 = vmatpush1.msra.mxu0 0.0
        %4496 = vmatprep.subr.mxu0 0.0
        %4497 = vmatpush1.msra.mxu0 0.0
        %4498 = vmatprep.subr.mxu0 0.0
        %4499 = vmatpush1.msra.mxu0 0.0
        %4500 = vmatprep.subr.mxu0 0.0
        %4501 = vmatpush1.msra.mxu0 0.0
        %4502 = vmatprep.subr.mxu0 0.0
        %4503 = vmatpush1.msra.mxu0 0.0
        %4504 = vmatprep.subr.mxu0 0.0
        %4505 = vmatpush1.msra.mxu0 0.0
        %4506 = vmatprep.subr.mxu0 0.0
        %v4507 = vand.u32 %v363, 4294901760
        %4508 = vmatpush1.msra.mxu0 %v4507
        %4509 = vmatprep.subr.mxu0 0.0
        %4510 = vmatpush2.msra.mxu0 0.0
        %4511 = vmatprep.subr.mxu0 0.0
        %4512 = vmatpush2.msra.mxu0 0.0
        %4513 = vmatprep.subr.mxu0 0.0
        %4514 = vmatpush2.msra.mxu0 0.0
        %4515 = vmatprep.subr.mxu0 0.0
        %4516 = vmatpush2.msra.mxu0 0.0
        %4517 = vmatprep.subr.mxu0 0.0
        %4518 = vmatpush2.msra.mxu0 0.0
        %4519 = vmatprep.subr.mxu0 0.0
        %4520 = vmatpush2.msra.mxu0 0.0
        %4521 = vmatprep.subr.mxu0 0.0
        %4522 = vmatpush2.msra.mxu0 0.0
        %4523 = vmatprep.subr.mxu0 0.0
        %4524 = vmatpush2.msra.mxu0 0.0
        %4525 = vmatprep.subr.mxu0 0.0
        %4526 = vmatpush2.msra.mxu0 0.0
        %4527 = vmatprep.subr.mxu0 0.0
        %4528 = vmatpush2.msra.mxu0 0.0
        %4529 = vmatprep.subr.mxu0 0.0
        %4530 = vmatpush2.msra.mxu0 0.0
        %4531 = vmatprep.subr.mxu0 0.0
        %4532 = vmatpush2.msra.mxu0 0.0
        %4533 = vmatprep.subr.mxu0 0.0
        %4534 = vmatpush2.msra.mxu0 0.0
        %4535 = vmatprep.subr.mxu0 0.0
        %4536 = vmatpush2.msra.mxu0 0.0
        %4537 = vmatprep.subr.mxu0 0.0
        %4538 = vmatpush2.msra.mxu0 0.0
        %4539 = vmatprep.subr.mxu0 0.0
        %4540 = vmatpush2.msra.mxu0 0.0
        %4541 = vmatprep.mubr.f32.mxu0 0.0
        %v4542 = vand.u32 %v4474, 4294901760
        %v4543 = vsub.f32 %v4474, %v4542
        %v4544 = vand.u32 %v4543, 4294901760
        %v4545 = vsub.f32 %v4543, %v4544
        %v4546 = vand.u32 %v4545, 4294901760
        %4547 = vmatmul.mubr.f32.gmra.mxu0 %v4546
        %v4548 = vpop.f32.mrf.mxu0
        %v4549 = vadd.f32 0.0, %v4548
        %v4550 = vpop.f32.mrf.mxu0
        %4551 = vdwg.mxu0
        %4552 = vmatprep.subr.mxu0 0.0
        %4553 = vmatpush1.msra.mxu0 0.0
        %4554 = vmatprep.subr.mxu0 0.0
        %4555 = vmatpush1.msra.mxu0 0.0
        %4556 = vmatprep.subr.mxu0 0.0
        %4557 = vmatpush1.msra.mxu0 0.0
        %4558 = vmatprep.subr.mxu0 0.0
        %4559 = vmatpush1.msra.mxu0 0.0
        %4560 = vmatprep.subr.mxu0 0.0
        %4561 = vmatpush1.msra.mxu0 0.0
        %4562 = vmatprep.subr.mxu0 0.0
        %4563 = vmatpush1.msra.mxu0 0.0
        %4564 = vmatprep.subr.mxu0 0.0
        %4565 = vmatpush1.msra.mxu0 0.0
        %4566 = vmatprep.subr.mxu0 0.0
        %4567 = vmatpush1.msra.mxu0 0.0
        %4568 = vmatprep.subr.mxu0 0.0
        %4569 = vmatpush1.msra.mxu0 0.0
        %4570 = vmatprep.subr.mxu0 0.0
        %4571 = vmatpush1.msra.mxu0 0.0
        %4572 = vmatprep.subr.mxu0 0.0
        %4573 = vmatpush1.msra.mxu0 0.0
        %4574 = vmatprep.subr.mxu0 0.0
        %4575 = vmatpush1.msra.mxu0 0.0
        %4576 = vmatprep.subr.mxu0 0.0
        %4577 = vmatpush1.msra.mxu0 0.0
        %4578 = vmatprep.subr.mxu0 0.0
        %4579 = vmatpush1.msra.mxu0 0.0
        %4580 = vmatprep.subr.mxu0 0.0
        %4581 = vmatpush1.msra.mxu0 0.0
        %4582 = vmatprep.subr.mxu0 0.0
        %v4583 = vand.u32 %v363, 4294901760
        %v4584 = vsub.f32 %v363, %v4583
        %v4585 = vand.u32 %v4584, 4294901760
        %v4586 = vsub.f32 %v4584, %v4585
        %v4587 = vand.u32 %v4586, 4294901760
        %4588 = vmatpush1.msra.mxu0 %v4587
        %4589 = vmatprep.subr.mxu0 0.0
        %4590 = vmatpush2.msra.mxu0 0.0
        %4591 = vmatprep.subr.mxu0 0.0
        %4592 = vmatpush2.msra.mxu0 0.0
        %4593 = vmatprep.subr.mxu0 0.0
        %4594 = vmatpush2.msra.mxu0 0.0
        %4595 = vmatprep.subr.mxu0 0.0
        %4596 = vmatpush2.msra.mxu0 0.0
        %4597 = vmatprep.subr.mxu0 0.0
        %4598 = vmatpush2.msra.mxu0 0.0
        %4599 = vmatprep.subr.mxu0 0.0
        %4600 = vmatpush2.msra.mxu0 0.0
        %4601 = vmatprep.subr.mxu0 0.0
        %4602 = vmatpush2.msra.mxu0 0.0
        %4603 = vmatprep.subr.mxu0 0.0
        %4604 = vmatpush2.msra.mxu0 0.0
        %4605 = vmatprep.subr.mxu0 0.0
        %4606 = vmatpush2.msra.mxu0 0.0
        %4607 = vmatprep.subr.mxu0 0.0
        %4608 = vmatpush2.msra.mxu0 0.0
        %4609 = vmatprep.subr.mxu0 0.0
        %4610 = vmatpush2.msra.mxu0 0.0
        %4611 = vmatprep.subr.mxu0 0.0
        %4612 = vmatpush2.msra.mxu0 0.0
        %4613 = vmatprep.subr.mxu0 0.0
        %4614 = vmatpush2.msra.mxu0 0.0
        %4615 = vmatprep.subr.mxu0 0.0
        %4616 = vmatpush2.msra.mxu0 0.0
        %4617 = vmatprep.subr.mxu0 0.0
        %4618 = vmatpush2.msra.mxu0 0.0
        %4619 = vmatprep.subr.mxu0 0.0
        %4620 = vmatpush2.msra.mxu0 0.0
        %4621 = vmatprep.mubr.f32.mxu0 0.0
        %v4622 = vand.u32 %v4474, 4294901760
        %4623 = vmatmul.mubr.f32.gmra.mxu0 %v4622
        %v4624 = vpop.f32.mrf.mxu0
        %v4625 = vadd.f32 %v4549, %v4624
        %v4626 = vpop.f32.mrf.mxu0
        %4627 = vdwg.mxu0
        %4628 = vmatprep.subr.mxu0 0.0
        %4629 = vmatpush1.msra.mxu0 0.0
        %4630 = vmatprep.subr.mxu0 0.0
        %4631 = vmatpush1.msra.mxu0 0.0
        %4632 = vmatprep.subr.mxu0 0.0
        %4633 = vmatpush1.msra.mxu0 0.0
        %4634 = vmatprep.subr.mxu0 0.0
        %4635 = vmatpush1.msra.mxu0 0.0
        %4636 = vmatprep.subr.mxu0 0.0
        %4637 = vmatpush1.msra.mxu0 0.0
        %4638 = vmatprep.subr.mxu0 0.0
        %4639 = vmatpush1.msra.mxu0 0.0
        %4640 = vmatprep.subr.mxu0 0.0
        %4641 = vmatpush1.msra.mxu0 0.0
        %4642 = vmatprep.subr.mxu0 0.0
        %4643 = vmatpush1.msra.mxu0 0.0
        %4644 = vmatprep.subr.mxu0 0.0
        %4645 = vmatpush1.msra.mxu0 0.0
        %4646 = vmatprep.subr.mxu0 0.0
        %4647 = vmatpush1.msra.mxu0 0.0
        %4648 = vmatprep.subr.mxu0 0.0
        %4649 = vmatpush1.msra.mxu0 0.0
        %4650 = vmatprep.subr.mxu0 0.0
        %4651 = vmatpush1.msra.mxu0 0.0
        %4652 = vmatprep.subr.mxu0 0.0
        %4653 = vmatpush1.msra.mxu0 0.0
        %4654 = vmatprep.subr.mxu0 0.0
        %4655 = vmatpush1.msra.mxu0 0.0
        %4656 = vmatprep.subr.mxu0 0.0
        %4657 = vmatpush1.msra.mxu0 0.0
        %4658 = vmatprep.subr.mxu0 0.0
        %v4659 = vand.u32 %v363, 4294901760
        %v4660 = vsub.f32 %v363, %v4659
        %4661 = vmatpush1.msra.mxu0 %v4660
        %4662 = vmatprep.subr.mxu0 0.0
        %4663 = vmatpush2.msra.mxu0 0.0
        %4664 = vmatprep.subr.mxu0 0.0
        %4665 = vmatpush2.msra.mxu0 0.0
        %4666 = vmatprep.subr.mxu0 0.0
        %4667 = vmatpush2.msra.mxu0 0.0
        %4668 = vmatprep.subr.mxu0 0.0
        %4669 = vmatpush2.msra.mxu0 0.0
        %4670 = vmatprep.subr.mxu0 0.0
        %4671 = vmatpush2.msra.mxu0 0.0
        %4672 = vmatprep.subr.mxu0 0.0
        %4673 = vmatpush2.msra.mxu0 0.0
        %4674 = vmatprep.subr.mxu0 0.0
        %4675 = vmatpush2.msra.mxu0 0.0
        %4676 = vmatprep.subr.mxu0 0.0
        %4677 = vmatpush2.msra.mxu0 0.0
        %4678 = vmatprep.subr.mxu0 0.0
        %4679 = vmatpush2.msra.mxu0 0.0
        %4680 = vmatprep.subr.mxu0 0.0
        %4681 = vmatpush2.msra.mxu0 0.0
        %4682 = vmatprep.subr.mxu0 0.0
        %4683 = vmatpush2.msra.mxu0 0.0
        %4684 = vmatprep.subr.mxu0 0.0
        %4685 = vmatpush2.msra.mxu0 0.0
        %4686 = vmatprep.subr.mxu0 0.0
        %4687 = vmatpush2.msra.mxu0 0.0
        %4688 = vmatprep.subr.mxu0 0.0
        %4689 = vmatpush2.msra.mxu0 0.0
        %4690 = vmatprep.subr.mxu0 0.0
        %4691 = vmatpush2.msra.mxu0 0.0
        %4692 = vmatprep.subr.mxu0 0.0
        %4693 = vmatpush2.msra.mxu0 0.0
        %4694 = vmatprep.mubr.f32.mxu0 0.0
        %v4695 = vand.u32 %v4474, 4294901760
        %v4696 = vsub.f32 %v4474, %v4695
        %4697 = vmatmul.mubr.f32.gmra.mxu0 %v4696
        %v4698 = vpop.f32.mrf.mxu0
        %v4699 = vadd.f32 %v4625, %v4698
        %v4700 = vpop.f32.mrf.mxu0
        %4701 = vdwg.mxu0
        %4702 = vmatprep.subr.mxu0 0.0
        %4703 = vmatpush1.msra.mxu0 0.0
        %4704 = vmatprep.subr.mxu0 0.0
        %4705 = vmatpush1.msra.mxu0 0.0
        %4706 = vmatprep.subr.mxu0 0.0
        %4707 = vmatpush1.msra.mxu0 0.0
        %4708 = vmatprep.subr.mxu0 0.0
        %4709 = vmatpush1.msra.mxu0 0.0
        %4710 = vmatprep.subr.mxu0 0.0
        %4711 = vmatpush1.msra.mxu0 0.0
        %4712 = vmatprep.subr.mxu0 0.0
        %4713 = vmatpush1.msra.mxu0 0.0
        %4714 = vmatprep.subr.mxu0 0.0
        %4715 = vmatpush1.msra.mxu0 0.0
        %4716 = vmatprep.subr.mxu0 0.0
        %4717 = vmatpush1.msra.mxu0 0.0
        %4718 = vmatprep.subr.mxu0 0.0
        %4719 = vmatpush1.msra.mxu0 0.0
        %4720 = vmatprep.subr.mxu0 0.0
        %4721 = vmatpush1.msra.mxu0 0.0
        %4722 = vmatprep.subr.mxu0 0.0
        %4723 = vmatpush1.msra.mxu0 0.0
        %4724 = vmatprep.subr.mxu0 0.0
        %4725 = vmatpush1.msra.mxu0 0.0
        %4726 = vmatprep.subr.mxu0 0.0
        %4727 = vmatpush1.msra.mxu0 0.0
        %4728 = vmatprep.subr.mxu0 0.0
        %4729 = vmatpush1.msra.mxu0 0.0
        %4730 = vmatprep.subr.mxu0 0.0
        %4731 = vmatpush1.msra.mxu0 0.0
        %4732 = vmatprep.subr.mxu0 0.0
        %v4733 = vand.u32 %v363, 4294901760
        %4734 = vmatpush1.msra.mxu0 %v4733
        %4735 = vmatprep.subr.mxu0 0.0
        %4736 = vmatpush2.msra.mxu0 0.0
        %4737 = vmatprep.subr.mxu0 0.0
        %4738 = vmatpush2.msra.mxu0 0.0
        %4739 = vmatprep.subr.mxu0 0.0
        %4740 = vmatpush2.msra.mxu0 0.0
        %4741 = vmatprep.subr.mxu0 0.0
        %4742 = vmatpush2.msra.mxu0 0.0
        %4743 = vmatprep.subr.mxu0 0.0
        %4744 = vmatpush2.msra.mxu0 0.0
        %4745 = vmatprep.subr.mxu0 0.0
        %4746 = vmatpush2.msra.mxu0 0.0
        %4747 = vmatprep.subr.mxu0 0.0
        %4748 = vmatpush2.msra.mxu0 0.0
        %4749 = vmatprep.subr.mxu0 0.0
        %4750 = vmatpush2.msra.mxu0 0.0
        %4751 = vmatprep.subr.mxu0 0.0
        %4752 = vmatpush2.msra.mxu0 0.0
        %4753 = vmatprep.subr.mxu0 0.0
        %4754 = vmatpush2.msra.mxu0 0.0
        %4755 = vmatprep.subr.mxu0 0.0
        %4756 = vmatpush2.msra.mxu0 0.0
        %4757 = vmatprep.subr.mxu0 0.0
        %4758 = vmatpush2.msra.mxu0 0.0
        %4759 = vmatprep.subr.mxu0 0.0
        %4760 = vmatpush2.msra.mxu0 0.0
        %4761 = vmatprep.subr.mxu0 0.0
        %4762 = vmatpush2.msra.mxu0 0.0
        %4763 = vmatprep.subr.mxu0 0.0
        %4764 = vmatpush2.msra.mxu0 0.0
        %4765 = vmatprep.subr.mxu0 0.0
        %4766 = vmatpush2.msra.mxu0 0.0
        %4767 = vmatprep.mubr.f32.mxu0 0.0
        %v4768 = vand.u32 %v4474, 4294901760
        %v4769 = vsub.f32 %v4474, %v4768
        %v4770 = vand.u32 %v4769, 4294901760
        %4771 = vmatmul.mubr.f32.gmra.mxu0 %v4770
        %v4772 = vpop.f32.mrf.mxu0
        %v4773 = vadd.f32 %v4699, %v4772
        %v4774 = vpop.f32.mrf.mxu0
        %4775 = vdwg.mxu0
        %4776 = vmatprep.subr.mxu0 0.0
        %4777 = vmatpush1.msra.mxu0 0.0
        %4778 = vmatprep.subr.mxu0 0.0
        %4779 = vmatpush1.msra.mxu0 0.0
        %4780 = vmatprep.subr.mxu0 0.0
        %4781 = vmatpush1.msra.mxu0 0.0
        %4782 = vmatprep.subr.mxu0 0.0
        %4783 = vmatpush1.msra.mxu0 0.0
        %4784 = vmatprep.subr.mxu0 0.0
        %4785 = vmatpush1.msra.mxu0 0.0
        %4786 = vmatprep.subr.mxu0 0.0
        %4787 = vmatpush1.msra.mxu0 0.0
        %4788 = vmatprep.subr.mxu0 0.0
        %4789 = vmatpush1.msra.mxu0 0.0
        %4790 = vmatprep.subr.mxu0 0.0
        %4791 = vmatpush1.msra.mxu0 0.0
        %4792 = vmatprep.subr.mxu0 0.0
        %4793 = vmatpush1.msra.mxu0 0.0
        %4794 = vmatprep.subr.mxu0 0.0
        %4795 = vmatpush1.msra.mxu0 0.0
        %4796 = vmatprep.subr.mxu0 0.0
        %4797 = vmatpush1.msra.mxu0 0.0
        %4798 = vmatprep.subr.mxu0 0.0
        %4799 = vmatpush1.msra.mxu0 0.0
        %4800 = vmatprep.subr.mxu0 0.0
        %4801 = vmatpush1.msra.mxu0 0.0
        %4802 = vmatprep.subr.mxu0 0.0
        %4803 = vmatpush1.msra.mxu0 0.0
        %4804 = vmatprep.subr.mxu0 0.0
        %4805 = vmatpush1.msra.mxu0 0.0
        %4806 = vmatprep.subr.mxu0 0.0
        %v4807 = vand.u32 %v363, 4294901760
        %v4808 = vsub.f32 %v363, %v4807
        %v4809 = vand.u32 %v4808, 4294901760
        %4810 = vmatpush1.msra.mxu0 %v4809
        %4811 = vmatprep.subr.mxu0 0.0
        %4812 = vmatpush2.msra.mxu0 0.0
        %4813 = vmatprep.subr.mxu0 0.0
        %4814 = vmatpush2.msra.mxu0 0.0
        %4815 = vmatprep.subr.mxu0 0.0
        %4816 = vmatpush2.msra.mxu0 0.0
        %4817 = vmatprep.subr.mxu0 0.0
        %4818 = vmatpush2.msra.mxu0 0.0
        %4819 = vmatprep.subr.mxu0 0.0
        %4820 = vmatpush2.msra.mxu0 0.0
        %4821 = vmatprep.subr.mxu0 0.0
        %4822 = vmatpush2.msra.mxu0 0.0
        %4823 = vmatprep.subr.mxu0 0.0
        %4824 = vmatpush2.msra.mxu0 0.0
        %4825 = vmatprep.subr.mxu0 0.0
        %4826 = vmatpush2.msra.mxu0 0.0
        %4827 = vmatprep.subr.mxu0 0.0
        %4828 = vmatpush2.msra.mxu0 0.0
        %4829 = vmatprep.subr.mxu0 0.0
        %4830 = vmatpush2.msra.mxu0 0.0
        %4831 = vmatprep.subr.mxu0 0.0
        %4832 = vmatpush2.msra.mxu0 0.0
        %4833 = vmatprep.subr.mxu0 0.0
        %4834 = vmatpush2.msra.mxu0 0.0
        %4835 = vmatprep.subr.mxu0 0.0
        %4836 = vmatpush2.msra.mxu0 0.0
        %4837 = vmatprep.subr.mxu0 0.0
        %4838 = vmatpush2.msra.mxu0 0.0
        %4839 = vmatprep.subr.mxu0 0.0
        %4840 = vmatpush2.msra.mxu0 0.0
        %4841 = vmatprep.subr.mxu0 0.0
        %4842 = vmatpush2.msra.mxu0 0.0
        %4843 = vmatprep.mubr.f32.mxu0 0.0
        %v4844 = vand.u32 %v4474, 4294901760
        %4845 = vmatmul.mubr.f32.gmra.mxu0 %v4844
        %v4846 = vpop.f32.mrf.mxu0
        %v4847 = vadd.f32 %v4773, %v4846
        %v4848 = vpop.f32.mrf.mxu0
        %4849 = vdwg.mxu0
        %4850 = vmatprep.subr.mxu0 0.0
        %4851 = vmatpush1.msra.mxu0 0.0
        %4852 = vmatprep.subr.mxu0 0.0
        %4853 = vmatpush1.msra.mxu0 0.0
        %4854 = vmatprep.subr.mxu0 0.0
        %4855 = vmatpush1.msra.mxu0 0.0
        %4856 = vmatprep.subr.mxu0 0.0
        %4857 = vmatpush1.msra.mxu0 0.0
        %4858 = vmatprep.subr.mxu0 0.0
        %4859 = vmatpush1.msra.mxu0 0.0
        %4860 = vmatprep.subr.mxu0 0.0
        %4861 = vmatpush1.msra.mxu0 0.0
        %4862 = vmatprep.subr.mxu0 0.0
        %4863 = vmatpush1.msra.mxu0 0.0
        %4864 = vmatprep.subr.mxu0 0.0
        %4865 = vmatpush1.msra.mxu0 0.0
        %4866 = vmatprep.subr.mxu0 0.0
        %4867 = vmatpush1.msra.mxu0 0.0
        %4868 = vmatprep.subr.mxu0 0.0
        %4869 = vmatpush1.msra.mxu0 0.0
        %4870 = vmatprep.subr.mxu0 0.0
        %4871 = vmatpush1.msra.mxu0 0.0
        %4872 = vmatprep.subr.mxu0 0.0
        %4873 = vmatpush1.msra.mxu0 0.0
        %4874 = vmatprep.subr.mxu0 0.0
        %4875 = vmatpush1.msra.mxu0 0.0
        %4876 = vmatprep.subr.mxu0 0.0
        %4877 = vmatpush1.msra.mxu0 0.0
        %4878 = vmatprep.subr.mxu0 0.0
        %4879 = vmatpush1.msra.mxu0 0.0
        %4880 = vmatprep.subr.mxu0 0.0
        %v4881 = vand.u32 %v363, 4294901760
        %4882 = vmatpush1.msra.mxu0 %v4881
        %4883 = vmatprep.subr.mxu0 0.0
        %4884 = vmatpush2.msra.mxu0 0.0
        %4885 = vmatprep.subr.mxu0 0.0
        %4886 = vmatpush2.msra.mxu0 0.0
        %4887 = vmatprep.subr.mxu0 0.0
        %4888 = vmatpush2.msra.mxu0 0.0
        %4889 = vmatprep.subr.mxu0 0.0
        %4890 = vmatpush2.msra.mxu0 0.0
        %4891 = vmatprep.subr.mxu0 0.0
        %4892 = vmatpush2.msra.mxu0 0.0
        %4893 = vmatprep.subr.mxu0 0.0
        %4894 = vmatpush2.msra.mxu0 0.0
        %4895 = vmatprep.subr.mxu0 0.0
        %4896 = vmatpush2.msra.mxu0 0.0
        %4897 = vmatprep.subr.mxu0 0.0
        %4898 = vmatpush2.msra.mxu0 0.0
        %4899 = vmatprep.subr.mxu0 0.0
        %4900 = vmatpush2.msra.mxu0 0.0
        %4901 = vmatprep.subr.mxu0 0.0
        %4902 = vmatpush2.msra.mxu0 0.0
        %4903 = vmatprep.subr.mxu0 0.0
        %4904 = vmatpush2.msra.mxu0 0.0
        %4905 = vmatprep.subr.mxu0 0.0
        %4906 = vmatpush2.msra.mxu0 0.0
        %4907 = vmatprep.subr.mxu0 0.0
        %4908 = vmatpush2.msra.mxu0 0.0
        %4909 = vmatprep.subr.mxu0 0.0
        %4910 = vmatpush2.msra.mxu0 0.0
        %4911 = vmatprep.subr.mxu0 0.0
        %4912 = vmatpush2.msra.mxu0 0.0
        %4913 = vmatprep.subr.mxu0 0.0
        %4914 = vmatpush2.msra.mxu0 0.0
        %4915 = vmatprep.mubr.f32.mxu0 0.0
        %v4916 = vand.u32 %v4474, 4294901760
        %4917 = vmatmul.mubr.f32.gmra.mxu0 %v4916
        %v4918 = vpop.f32.mrf.mxu0
        %v4919 = vadd.f32 %v4847, %v4918
        %v4920 = vpop.f32.mrf.mxu0
        %4921 = vdwg.mxu0
        %v4922 = vmul.f32 %v3829, %v4919
        %v4923 = vadd.f32 %v4922, %v369
        %v4926 = vunpack.c.l.s4 1966171168
        %v4927 = vunpack.c.0.s8 %v4926
        %v4928 = vlaneseq
        %v4929 = vshrl.u32 %v4928, 7
        %v4930 = vsub.s32 %v4927, %v4929
        %v4931 = vrot.slane %v4923, %v4930
        %v4932 = vcombine.high %v4931, %v4931
        %v4934 = vunpack.c.l.s4 1966171168
        %v4935 = vunpack.c.0.s8 %v4934
        %v4936 = vlaneseq
        %v4937 = vshrl.u32 %v4936, 7
        %v4938 = vsub.s32 %v4935, %v4937
        %v4939 = vrot.slane %v4931, %v4938
        %v4941 = vunpack.c.l.s4 1966171168
        %v4942 = vunpack.c.0.s8 %v4941
        %v4943 = vlaneseq
        %v4944 = vshrl.u32 %v4943, 7
        %v4945 = vsub.s32 %v4942, %v4944
        %v4946 = vrot.slane %v4932, %v4945
        %s4949 = scalar_lea.vmem %s311, 2 [#allocation7]
        %4950 = vst [vmem:[%s4949] sm:$0x1] %v4939
        %4951 = vst [vmem:[%s4949 + $0x4] sm:$0x1] %v4946
        %v4952 = vld [vmem:[%s277 + $0x1] sm:$0x1]
        %v4953 = vld [vmem:[%s277 + $0x3] sm:$0x1]
        %v4956 = vrot.slane %v4953, 7
        %v4957 = vsel %vm376, %v4956, %v4952
        %4959 = vmatprep.subr.mxu0 0.0
        %4960 = vmatpush1.msra.mxu0 %v329
        %4961 = vmatprep.subr.mxu0 0.0
        %4962 = vmatpush1.msra.mxu0 %v328
        %4963 = vmatprep.subr.mxu0 0.0
        %4964 = vmatpush1.msra.mxu0 %v327
        %4965 = vmatprep.subr.mxu0 0.0
        %4966 = vmatpush1.msra.mxu0 %v326
        %4967 = vmatprep.subr.mxu0 0.0
        %4968 = vmatpush1.msra.mxu0 %v325
        %4969 = vmatprep.subr.mxu0 0.0
        %4970 = vmatpush1.msra.mxu0 %v324
        %4971 = vmatprep.subr.mxu0 0.0
        %4972 = vmatpush1.msra.mxu0 %v323
        %4973 = vmatprep.subr.mxu0 0.0
        %4974 = vmatpush1.msra.mxu0 %v322
        %4975 = vmatprep.subr.mxu0 0.0
        %4976 = vmatpush1.msra.mxu0 %v321
        %4977 = vmatprep.subr.mxu0 0.0
        %4978 = vmatpush1.msra.mxu0 %v320
        %4979 = vmatprep.subr.mxu0 0.0
        %4980 = vmatpush1.msra.mxu0 %v319
        %4981 = vmatprep.subr.mxu0 0.0
        %4982 = vmatpush1.msra.mxu0 %v318
        %4983 = vmatprep.subr.mxu0 0.0
        %4984 = vmatpush1.msra.mxu0 %v317
        %4985 = vmatprep.subr.mxu0 0.0
        %4986 = vmatpush1.msra.mxu0 %v316
        %4987 = vmatprep.subr.mxu0 0.0
        %4988 = vmatpush1.msra.mxu0 %v315
        %4989 = vmatprep.subr.mxu0 0.0
        %4990 = vmatpush1.msra.mxu0 %v314
        %4991 = vmatprep.subr.mxu0 0.0
        %4992 = vmatpush2.msra.mxu0 0.0
        %4993 = vmatprep.subr.mxu0 0.0
        %4994 = vmatpush2.msra.mxu0 0.0
        %4995 = vmatprep.subr.mxu0 0.0
        %4996 = vmatpush2.msra.mxu0 0.0
        %4997 = vmatprep.subr.mxu0 0.0
        %4998 = vmatpush2.msra.mxu0 0.0
        %4999 = vmatprep.subr.mxu0 0.0
        %5000 = vmatpush2.msra.mxu0 0.0
        %5001 = vmatprep.subr.mxu0 0.0
        %5002 = vmatpush2.msra.mxu0 0.0
        %5003 = vmatprep.subr.mxu0 0.0
        %5004 = vmatpush2.msra.mxu0 0.0
        %5005 = vmatprep.subr.mxu0 0.0
        %5006 = vmatpush2.msra.mxu0 0.0
        %5007 = vmatprep.subr.mxu0 0.0
        %5008 = vmatpush2.msra.mxu0 0.0
        %5009 = vmatprep.subr.mxu0 0.0
        %5010 = vmatpush2.msra.mxu0 0.0
        %5011 = vmatprep.subr.mxu0 0.0
        %5012 = vmatpush2.msra.mxu0 0.0
        %5013 = vmatprep.subr.mxu0 0.0
        %5014 = vmatpush2.msra.mxu0 0.0
        %5015 = vmatprep.subr.mxu0 0.0
        %5016 = vmatpush2.msra.mxu0 0.0
        %5017 = vmatprep.subr.mxu0 0.0
        %5018 = vmatpush2.msra.mxu0 0.0
        %5019 = vmatprep.subr.mxu0 0.0
        %5020 = vmatpush2.msra.mxu0 0.0
        %5021 = vmatprep.subr.mxu0 0.0
        %5022 = vmatpush2.msra.mxu0 0.0
        %5023 = vmatprep.mubr.f32.mxu0 0.0
        %5024 = vmatmul.mubr.f32.gmra.mxu0 %v4957
        %v5025 = vpop.f32.mrf.mxu0
        %v5026 = vadd.f32 0.0, %v5025
        %v5027 = vpop.f32.mrf.mxu0
        %5028 = vdwg.mxu0
        %5029 = vmatprep.subr.mxu0 0.0
        %v5030 = vand.u32 %v361, 4294901760
        %5031 = vmatpush1.msra.mxu0 %v5030
        %5032 = vmatprep.subr.mxu0 0.0
        %v5033 = vand.u32 %v360, 4294901760
        %5034 = vmatpush1.msra.mxu0 %v5033
        %5035 = vmatprep.subr.mxu0 0.0
        %v5036 = vand.u32 %v359, 4294901760
        %5037 = vmatpush1.msra.mxu0 %v5036
        %5038 = vmatprep.subr.mxu0 0.0
        %v5039 = vand.u32 %v358, 4294901760
        %5040 = vmatpush1.msra.mxu0 %v5039
        %5041 = vmatprep.subr.mxu0 0.0
        %v5042 = vand.u32 %v357, 4294901760
        %5043 = vmatpush1.msra.mxu0 %v5042
        %5044 = vmatprep.subr.mxu0 0.0
        %v5045 = vand.u32 %v356, 4294901760
        %5046 = vmatpush1.msra.mxu0 %v5045
        %5047 = vmatprep.subr.mxu0 0.0
        %v5048 = vand.u32 %v355, 4294901760
        %5049 = vmatpush1.msra.mxu0 %v5048
        %5050 = vmatprep.subr.mxu0 0.0
        %v5051 = vand.u32 %v354, 4294901760
        %5052 = vmatpush1.msra.mxu0 %v5051
        %5053 = vmatprep.subr.mxu0 0.0
        %v5054 = vand.u32 %v353, 4294901760
        %5055 = vmatpush1.msra.mxu0 %v5054
        %5056 = vmatprep.subr.mxu0 0.0
        %v5057 = vand.u32 %v352, 4294901760
        %5058 = vmatpush1.msra.mxu0 %v5057
        %5059 = vmatprep.subr.mxu0 0.0
        %v5060 = vand.u32 %v351, 4294901760
        %5061 = vmatpush1.msra.mxu0 %v5060
        %5062 = vmatprep.subr.mxu0 0.0
        %v5063 = vand.u32 %v350, 4294901760
        %5064 = vmatpush1.msra.mxu0 %v5063
        %5065 = vmatprep.subr.mxu0 0.0
        %v5066 = vand.u32 %v349, 4294901760
        %5067 = vmatpush1.msra.mxu0 %v5066
        %5068 = vmatprep.subr.mxu0 0.0
        %v5069 = vand.u32 %v348, 4294901760
        %5070 = vmatpush1.msra.mxu0 %v5069
        %5071 = vmatprep.subr.mxu0 0.0
        %v5072 = vand.u32 %v347, 4294901760
        %5073 = vmatpush1.msra.mxu0 %v5072
        %5074 = vmatprep.subr.mxu0 0.0
        %v5075 = vand.u32 %v346, 4294901760
        %5076 = vmatpush1.msra.mxu0 %v5075
        %5077 = vmatprep.subr.mxu0 0.0
        %5078 = vmatpush2.msra.mxu0 0.0
        %5079 = vmatprep.subr.mxu0 0.0
        %5080 = vmatpush2.msra.mxu0 0.0
        %5081 = vmatprep.subr.mxu0 0.0
        %5082 = vmatpush2.msra.mxu0 0.0
        %5083 = vmatprep.subr.mxu0 0.0
        %5084 = vmatpush2.msra.mxu0 0.0
        %5085 = vmatprep.subr.mxu0 0.0
        %5086 = vmatpush2.msra.mxu0 0.0
        %5087 = vmatprep.subr.mxu0 0.0
        %5088 = vmatpush2.msra.mxu0 0.0
        %5089 = vmatprep.subr.mxu0 0.0
        %5090 = vmatpush2.msra.mxu0 0.0
        %5091 = vmatprep.subr.mxu0 0.0
        %5092 = vmatpush2.msra.mxu0 0.0
        %5093 = vmatprep.subr.mxu0 0.0
        %5094 = vmatpush2.msra.mxu0 0.0
        %5095 = vmatprep.subr.mxu0 0.0
        %5096 = vmatpush2.msra.mxu0 0.0
        %5097 = vmatprep.subr.mxu0 0.0
        %5098 = vmatpush2.msra.mxu0 0.0
        %5099 = vmatprep.subr.mxu0 0.0
        %5100 = vmatpush2.msra.mxu0 0.0
        %5101 = vmatprep.subr.mxu0 0.0
        %5102 = vmatpush2.msra.mxu0 0.0
        %5103 = vmatprep.subr.mxu0 0.0
        %5104 = vmatpush2.msra.mxu0 0.0
        %5105 = vmatprep.subr.mxu0 0.0
        %5106 = vmatpush2.msra.mxu0 0.0
        %5107 = vmatprep.subr.mxu0 0.0
        %5108 = vmatpush2.msra.mxu0 0.0
        %5109 = vmatprep.mubr.f32.mxu0 0.0
        %v5110 = vand.u32 %v5026, 4294901760
        %v5111 = vsub.f32 %v5026, %v5110
        %v5112 = vand.u32 %v5111, 4294901760
        %v5113 = vsub.f32 %v5111, %v5112
        %v5114 = vand.u32 %v5113, 4294901760
        %5115 = vmatmul.mubr.f32.gmra.mxu0 %v5114
        %v5116 = vpop.f32.mrf.mxu0
        %v5117 = vadd.f32 0.0, %v5116
        %v5118 = vpop.f32.mrf.mxu0
        %5119 = vdwg.mxu0
        %5120 = vmatprep.subr.mxu0 0.0
        %v5121 = vand.u32 %v361, 4294901760
        %v5122 = vsub.f32 %v361, %v5121
        %v5123 = vand.u32 %v5122, 4294901760
        %v5124 = vsub.f32 %v5122, %v5123
        %v5125 = vand.u32 %v5124, 4294901760
        %5126 = vmatpush1.msra.mxu0 %v5125
        %5127 = vmatprep.subr.mxu0 0.0
        %v5128 = vand.u32 %v360, 4294901760
        %v5129 = vsub.f32 %v360, %v5128
        %v5130 = vand.u32 %v5129, 4294901760
        %v5131 = vsub.f32 %v5129, %v5130
        %v5132 = vand.u32 %v5131, 4294901760
        %5133 = vmatpush1.msra.mxu0 %v5132
        %5134 = vmatprep.subr.mxu0 0.0
        %v5135 = vand.u32 %v359, 4294901760
        %v5136 = vsub.f32 %v359, %v5135
        %v5137 = vand.u32 %v5136, 4294901760
        %v5138 = vsub.f32 %v5136, %v5137
        %v5139 = vand.u32 %v5138, 4294901760
        %5140 = vmatpush1.msra.mxu0 %v5139
        %5141 = vmatprep.subr.mxu0 0.0
        %v5142 = vand.u32 %v358, 4294901760
        %v5143 = vsub.f32 %v358, %v5142
        %v5144 = vand.u32 %v5143, 4294901760
        %v5145 = vsub.f32 %v5143, %v5144
        %v5146 = vand.u32 %v5145, 4294901760
        %5147 = vmatpush1.msra.mxu0 %v5146
        %5148 = vmatprep.subr.mxu0 0.0
        %v5149 = vand.u32 %v357, 4294901760
        %v5150 = vsub.f32 %v357, %v5149
        %v5151 = vand.u32 %v5150, 4294901760
        %v5152 = vsub.f32 %v5150, %v5151
        %v5153 = vand.u32 %v5152, 4294901760
        %5154 = vmatpush1.msra.mxu0 %v5153
        %5155 = vmatprep.subr.mxu0 0.0
        %v5156 = vand.u32 %v356, 4294901760
        %v5157 = vsub.f32 %v356, %v5156
        %v5158 = vand.u32 %v5157, 4294901760
        %v5159 = vsub.f32 %v5157, %v5158
        %v5160 = vand.u32 %v5159, 4294901760
        %5161 = vmatpush1.msra.mxu0 %v5160
        %5162 = vmatprep.subr.mxu0 0.0
        %v5163 = vand.u32 %v355, 4294901760
        %v5164 = vsub.f32 %v355, %v5163
        %v5165 = vand.u32 %v5164, 4294901760
        %v5166 = vsub.f32 %v5164, %v5165
        %v5167 = vand.u32 %v5166, 4294901760
        %5168 = vmatpush1.msra.mxu0 %v5167
        %5169 = vmatprep.subr.mxu0 0.0
        %v5170 = vand.u32 %v354, 4294901760
        %v5171 = vsub.f32 %v354, %v5170
        %v5172 = vand.u32 %v5171, 4294901760
        %v5173 = vsub.f32 %v5171, %v5172
        %v5174 = vand.u32 %v5173, 4294901760
        %5175 = vmatpush1.msra.mxu0 %v5174
        %5176 = vmatprep.subr.mxu0 0.0
        %v5177 = vand.u32 %v353, 4294901760
        %v5178 = vsub.f32 %v353, %v5177
        %v5179 = vand.u32 %v5178, 4294901760
        %v5180 = vsub.f32 %v5178, %v5179
        %v5181 = vand.u32 %v5180, 4294901760
        %5182 = vmatpush1.msra.mxu0 %v5181
        %5183 = vmatprep.subr.mxu0 0.0
        %v5184 = vand.u32 %v352, 4294901760
        %v5185 = vsub.f32 %v352, %v5184
        %v5186 = vand.u32 %v5185, 4294901760
        %v5187 = vsub.f32 %v5185, %v5186
        %v5188 = vand.u32 %v5187, 4294901760
        %5189 = vmatpush1.msra.mxu0 %v5188
        %5190 = vmatprep.subr.mxu0 0.0
        %v5191 = vand.u32 %v351, 4294901760
        %v5192 = vsub.f32 %v351, %v5191
        %v5193 = vand.u32 %v5192, 4294901760
        %v5194 = vsub.f32 %v5192, %v5193
        %v5195 = vand.u32 %v5194, 4294901760
        %5196 = vmatpush1.msra.mxu0 %v5195
        %5197 = vmatprep.subr.mxu0 0.0
        %v5198 = vand.u32 %v350, 4294901760
        %v5199 = vsub.f32 %v350, %v5198
        %v5200 = vand.u32 %v5199, 4294901760
        %v5201 = vsub.f32 %v5199, %v5200
        %v5202 = vand.u32 %v5201, 4294901760
        %5203 = vmatpush1.msra.mxu0 %v5202
        %5204 = vmatprep.subr.mxu0 0.0
        %v5205 = vand.u32 %v349, 4294901760
        %v5206 = vsub.f32 %v349, %v5205
        %v5207 = vand.u32 %v5206, 4294901760
        %v5208 = vsub.f32 %v5206, %v5207
        %v5209 = vand.u32 %v5208, 4294901760
        %5210 = vmatpush1.msra.mxu0 %v5209
        %5211 = vmatprep.subr.mxu0 0.0
        %v5212 = vand.u32 %v348, 4294901760
        %v5213 = vsub.f32 %v348, %v5212
        %v5214 = vand.u32 %v5213, 4294901760
        %v5215 = vsub.f32 %v5213, %v5214
        %v5216 = vand.u32 %v5215, 4294901760
        %5217 = vmatpush1.msra.mxu0 %v5216
        %5218 = vmatprep.subr.mxu0 0.0
        %v5219 = vand.u32 %v347, 4294901760
        %v5220 = vsub.f32 %v347, %v5219
        %v5221 = vand.u32 %v5220, 4294901760
        %v5222 = vsub.f32 %v5220, %v5221
        %v5223 = vand.u32 %v5222, 4294901760
        %5224 = vmatpush1.msra.mxu0 %v5223
        %5225 = vmatprep.subr.mxu0 0.0
        %v5226 = vand.u32 %v346, 4294901760
        %v5227 = vsub.f32 %v346, %v5226
        %v5228 = vand.u32 %v5227, 4294901760
        %v5229 = vsub.f32 %v5227, %v5228
        %v5230 = vand.u32 %v5229, 4294901760
        %5231 = vmatpush1.msra.mxu0 %v5230
        %5232 = vmatprep.subr.mxu0 0.0
        %5233 = vmatpush2.msra.mxu0 0.0
        %5234 = vmatprep.subr.mxu0 0.0
        %5235 = vmatpush2.msra.mxu0 0.0
        %5236 = vmatprep.subr.mxu0 0.0
        %5237 = vmatpush2.msra.mxu0 0.0
        %5238 = vmatprep.subr.mxu0 0.0
        %5239 = vmatpush2.msra.mxu0 0.0
        %5240 = vmatprep.subr.mxu0 0.0
        %5241 = vmatpush2.msra.mxu0 0.0
        %5242 = vmatprep.subr.mxu0 0.0
        %5243 = vmatpush2.msra.mxu0 0.0
        %5244 = vmatprep.subr.mxu0 0.0
        %5245 = vmatpush2.msra.mxu0 0.0
        %5246 = vmatprep.subr.mxu0 0.0
        %5247 = vmatpush2.msra.mxu0 0.0
        %5248 = vmatprep.subr.mxu0 0.0
        %5249 = vmatpush2.msra.mxu0 0.0
        %5250 = vmatprep.subr.mxu0 0.0
        %5251 = vmatpush2.msra.mxu0 0.0
        %5252 = vmatprep.subr.mxu0 0.0
        %5253 = vmatpush2.msra.mxu0 0.0
        %5254 = vmatprep.subr.mxu0 0.0
        %5255 = vmatpush2.msra.mxu0 0.0
        %5256 = vmatprep.subr.mxu0 0.0
        %5257 = vmatpush2.msra.mxu0 0.0
        %5258 = vmatprep.subr.mxu0 0.0
        %5259 = vmatpush2.msra.mxu0 0.0
        %5260 = vmatprep.subr.mxu0 0.0
        %5261 = vmatpush2.msra.mxu0 0.0
        %5262 = vmatprep.subr.mxu0 0.0
        %5263 = vmatpush2.msra.mxu0 0.0
        %5264 = vmatprep.mubr.f32.mxu0 0.0
        %v5265 = vand.u32 %v5026, 4294901760
        %5266 = vmatmul.mubr.f32.gmra.mxu0 %v5265
        %v5267 = vpop.f32.mrf.mxu0
        %v5268 = vadd.f32 %v5117, %v5267
        %v5269 = vpop.f32.mrf.mxu0
        %5270 = vdwg.mxu0
        %5271 = vmatprep.subr.mxu0 0.0
        %v5272 = vand.u32 %v361, 4294901760
        %v5273 = vsub.f32 %v361, %v5272
        %5274 = vmatpush1.msra.mxu0 %v5273
        %5275 = vmatprep.subr.mxu0 0.0
        %v5276 = vand.u32 %v360, 4294901760
        %v5277 = vsub.f32 %v360, %v5276
        %5278 = vmatpush1.msra.mxu0 %v5277
        %5279 = vmatprep.subr.mxu0 0.0
        %v5280 = vand.u32 %v359, 4294901760
        %v5281 = vsub.f32 %v359, %v5280
        %5282 = vmatpush1.msra.mxu0 %v5281
        %5283 = vmatprep.subr.mxu0 0.0
        %v5284 = vand.u32 %v358, 4294901760
        %v5285 = vsub.f32 %v358, %v5284
        %5286 = vmatpush1.msra.mxu0 %v5285
        %5287 = vmatprep.subr.mxu0 0.0
        %v5288 = vand.u32 %v357, 4294901760
        %v5289 = vsub.f32 %v357, %v5288
        %5290 = vmatpush1.msra.mxu0 %v5289
        %5291 = vmatprep.subr.mxu0 0.0
        %v5292 = vand.u32 %v356, 4294901760
        %v5293 = vsub.f32 %v356, %v5292
        %5294 = vmatpush1.msra.mxu0 %v5293
        %5295 = vmatprep.subr.mxu0 0.0
        %v5296 = vand.u32 %v355, 4294901760
        %v5297 = vsub.f32 %v355, %v5296
        %5298 = vmatpush1.msra.mxu0 %v5297
        %5299 = vmatprep.subr.mxu0 0.0
        %v5300 = vand.u32 %v354, 4294901760
        %v5301 = vsub.f32 %v354, %v5300
        %5302 = vmatpush1.msra.mxu0 %v5301
        %5303 = vmatprep.subr.mxu0 0.0
        %v5304 = vand.u32 %v353, 4294901760
        %v5305 = vsub.f32 %v353, %v5304
        %5306 = vmatpush1.msra.mxu0 %v5305
        %5307 = vmatprep.subr.mxu0 0.0
        %v5308 = vand.u32 %v352, 4294901760
        %v5309 = vsub.f32 %v352, %v5308
        %5310 = vmatpush1.msra.mxu0 %v5309
        %5311 = vmatprep.subr.mxu0 0.0
        %v5312 = vand.u32 %v351, 4294901760
        %v5313 = vsub.f32 %v351, %v5312
        %5314 = vmatpush1.msra.mxu0 %v5313
        %5315 = vmatprep.subr.mxu0 0.0
        %v5316 = vand.u32 %v350, 4294901760
        %v5317 = vsub.f32 %v350, %v5316
        %5318 = vmatpush1.msra.mxu0 %v5317
        %5319 = vmatprep.subr.mxu0 0.0
        %v5320 = vand.u32 %v349, 4294901760
        %v5321 = vsub.f32 %v349, %v5320
        %5322 = vmatpush1.msra.mxu0 %v5321
        %5323 = vmatprep.subr.mxu0 0.0
        %v5324 = vand.u32 %v348, 4294901760
        %v5325 = vsub.f32 %v348, %v5324
        %5326 = vmatpush1.msra.mxu0 %v5325
        %5327 = vmatprep.subr.mxu0 0.0
        %v5328 = vand.u32 %v347, 4294901760
        %v5329 = vsub.f32 %v347, %v5328
        %5330 = vmatpush1.msra.mxu0 %v5329
        %5331 = vmatprep.subr.mxu0 0.0
        %v5332 = vand.u32 %v346, 4294901760
        %v5333 = vsub.f32 %v346, %v5332
        %5334 = vmatpush1.msra.mxu0 %v5333
        %5335 = vmatprep.subr.mxu0 0.0
        %5336 = vmatpush2.msra.mxu0 0.0
        %5337 = vmatprep.subr.mxu0 0.0
        %5338 = vmatpush2.msra.mxu0 0.0
        %5339 = vmatprep.subr.mxu0 0.0
        %5340 = vmatpush2.msra.mxu0 0.0
        %5341 = vmatprep.subr.mxu0 0.0
        %5342 = vmatpush2.msra.mxu0 0.0
        %5343 = vmatprep.subr.mxu0 0.0
        %5344 = vmatpush2.msra.mxu0 0.0
        %5345 = vmatprep.subr.mxu0 0.0
        %5346 = vmatpush2.msra.mxu0 0.0
        %5347 = vmatprep.subr.mxu0 0.0
        %5348 = vmatpush2.msra.mxu0 0.0
        %5349 = vmatprep.subr.mxu0 0.0
        %5350 = vmatpush2.msra.mxu0 0.0
        %5351 = vmatprep.subr.mxu0 0.0
        %5352 = vmatpush2.msra.mxu0 0.0
        %5353 = vmatprep.subr.mxu0 0.0
        %5354 = vmatpush2.msra.mxu0 0.0
        %5355 = vmatprep.subr.mxu0 0.0
        %5356 = vmatpush2.msra.mxu0 0.0
        %5357 = vmatprep.subr.mxu0 0.0
        %5358 = vmatpush2.msra.mxu0 0.0
        %5359 = vmatprep.subr.mxu0 0.0
        %5360 = vmatpush2.msra.mxu0 0.0
        %5361 = vmatprep.subr.mxu0 0.0
        %5362 = vmatpush2.msra.mxu0 0.0
        %5363 = vmatprep.subr.mxu0 0.0
        %5364 = vmatpush2.msra.mxu0 0.0
        %5365 = vmatprep.subr.mxu0 0.0
        %5366 = vmatpush2.msra.mxu0 0.0
        %5367 = vmatprep.mubr.f32.mxu0 0.0
        %v5368 = vand.u32 %v5026, 4294901760
        %v5369 = vsub.f32 %v5026, %v5368
        %5370 = vmatmul.mubr.f32.gmra.mxu0 %v5369
        %v5371 = vpop.f32.mrf.mxu0
        %v5372 = vadd.f32 %v5268, %v5371
        %v5373 = vpop.f32.mrf.mxu0
        %5374 = vdwg.mxu0
        %5375 = vmatprep.subr.mxu0 0.0
        %v5376 = vand.u32 %v361, 4294901760
        %5377 = vmatpush1.msra.mxu0 %v5376
        %5378 = vmatprep.subr.mxu0 0.0
        %v5379 = vand.u32 %v360, 4294901760
        %5380 = vmatpush1.msra.mxu0 %v5379
        %5381 = vmatprep.subr.mxu0 0.0
        %v5382 = vand.u32 %v359, 4294901760
        %5383 = vmatpush1.msra.mxu0 %v5382
        %5384 = vmatprep.subr.mxu0 0.0
        %v5385 = vand.u32 %v358, 4294901760
        %5386 = vmatpush1.msra.mxu0 %v5385
        %5387 = vmatprep.subr.mxu0 0.0
        %v5388 = vand.u32 %v357, 4294901760
        %5389 = vmatpush1.msra.mxu0 %v5388
        %5390 = vmatprep.subr.mxu0 0.0
        %v5391 = vand.u32 %v356, 4294901760
        %5392 = vmatpush1.msra.mxu0 %v5391
        %5393 = vmatprep.subr.mxu0 0.0
        %v5394 = vand.u32 %v355, 4294901760
        %5395 = vmatpush1.msra.mxu0 %v5394
        %5396 = vmatprep.subr.mxu0 0.0
        %v5397 = vand.u32 %v354, 4294901760
        %5398 = vmatpush1.msra.mxu0 %v5397
        %5399 = vmatprep.subr.mxu0 0.0
        %v5400 = vand.u32 %v353, 4294901760
        %5401 = vmatpush1.msra.mxu0 %v5400
        %5402 = vmatprep.subr.mxu0 0.0
        %v5403 = vand.u32 %v352, 4294901760
        %5404 = vmatpush1.msra.mxu0 %v5403
        %5405 = vmatprep.subr.mxu0 0.0
        %v5406 = vand.u32 %v351, 4294901760
        %5407 = vmatpush1.msra.mxu0 %v5406
        %5408 = vmatprep.subr.mxu0 0.0
        %v5409 = vand.u32 %v350, 4294901760
        %5410 = vmatpush1.msra.mxu0 %v5409
        %5411 = vmatprep.subr.mxu0 0.0
        %v5412 = vand.u32 %v349, 4294901760
        %5413 = vmatpush1.msra.mxu0 %v5412
        %5414 = vmatprep.subr.mxu0 0.0
        %v5415 = vand.u32 %v348, 4294901760
        %5416 = vmatpush1.msra.mxu0 %v5415
        %5417 = vmatprep.subr.mxu0 0.0
        %v5418 = vand.u32 %v347, 4294901760
        %5419 = vmatpush1.msra.mxu0 %v5418
        %5420 = vmatprep.subr.mxu0 0.0
        %v5421 = vand.u32 %v346, 4294901760
        %5422 = vmatpush1.msra.mxu0 %v5421
        %5423 = vmatprep.subr.mxu0 0.0
        %5424 = vmatpush2.msra.mxu0 0.0
        %5425 = vmatprep.subr.mxu0 0.0
        %5426 = vmatpush2.msra.mxu0 0.0
        %5427 = vmatprep.subr.mxu0 0.0
        %5428 = vmatpush2.msra.mxu0 0.0
        %5429 = vmatprep.subr.mxu0 0.0
        %5430 = vmatpush2.msra.mxu0 0.0
        %5431 = vmatprep.subr.mxu0 0.0
        %5432 = vmatpush2.msra.mxu0 0.0
        %5433 = vmatprep.subr.mxu0 0.0
        %5434 = vmatpush2.msra.mxu0 0.0
        %5435 = vmatprep.subr.mxu0 0.0
        %5436 = vmatpush2.msra.mxu0 0.0
        %5437 = vmatprep.subr.mxu0 0.0
        %5438 = vmatpush2.msra.mxu0 0.0
        %5439 = vmatprep.subr.mxu0 0.0
        %5440 = vmatpush2.msra.mxu0 0.0
        %5441 = vmatprep.subr.mxu0 0.0
        %5442 = vmatpush2.msra.mxu0 0.0
        %5443 = vmatprep.subr.mxu0 0.0
        %5444 = vmatpush2.msra.mxu0 0.0
        %5445 = vmatprep.subr.mxu0 0.0
        %5446 = vmatpush2.msra.mxu0 0.0
        %5447 = vmatprep.subr.mxu0 0.0
        %5448 = vmatpush2.msra.mxu0 0.0
        %5449 = vmatprep.subr.mxu0 0.0
        %5450 = vmatpush2.msra.mxu0 0.0
        %5451 = vmatprep.subr.mxu0 0.0
        %5452 = vmatpush2.msra.mxu0 0.0
        %5453 = vmatprep.subr.mxu0 0.0
        %5454 = vmatpush2.msra.mxu0 0.0
        %5455 = vmatprep.mubr.f32.mxu0 0.0
        %v5456 = vand.u32 %v5026, 4294901760
        %v5457 = vsub.f32 %v5026, %v5456
        %v5458 = vand.u32 %v5457, 4294901760
        %5459 = vmatmul.mubr.f32.gmra.mxu0 %v5458
        %v5460 = vpop.f32.mrf.mxu0
        %v5461 = vadd.f32 %v5372, %v5460
        %v5462 = vpop.f32.mrf.mxu0
        %5463 = vdwg.mxu0
        %5464 = vmatprep.subr.mxu0 0.0
        %v5465 = vand.u32 %v361, 4294901760
        %v5466 = vsub.f32 %v361, %v5465
        %v5467 = vand.u32 %v5466, 4294901760
        %5468 = vmatpush1.msra.mxu0 %v5467
        %5469 = vmatprep.subr.mxu0 0.0
        %v5470 = vand.u32 %v360, 4294901760
        %v5471 = vsub.f32 %v360, %v5470
        %v5472 = vand.u32 %v5471, 4294901760
        %5473 = vmatpush1.msra.mxu0 %v5472
        %5474 = vmatprep.subr.mxu0 0.0
        %v5475 = vand.u32 %v359, 4294901760
        %v5476 = vsub.f32 %v359, %v5475
        %v5477 = vand.u32 %v5476, 4294901760
        %5478 = vmatpush1.msra.mxu0 %v5477
        %5479 = vmatprep.subr.mxu0 0.0
        %v5480 = vand.u32 %v358, 4294901760
        %v5481 = vsub.f32 %v358, %v5480
        %v5482 = vand.u32 %v5481, 4294901760
        %5483 = vmatpush1.msra.mxu0 %v5482
        %5484 = vmatprep.subr.mxu0 0.0
        %v5485 = vand.u32 %v357, 4294901760
        %v5486 = vsub.f32 %v357, %v5485
        %v5487 = vand.u32 %v5486, 4294901760
        %5488 = vmatpush1.msra.mxu0 %v5487
        %5489 = vmatprep.subr.mxu0 0.0
        %v5490 = vand.u32 %v356, 4294901760
        %v5491 = vsub.f32 %v356, %v5490
        %v5492 = vand.u32 %v5491, 4294901760
        %5493 = vmatpush1.msra.mxu0 %v5492
        %5494 = vmatprep.subr.mxu0 0.0
        %v5495 = vand.u32 %v355, 4294901760
        %v5496 = vsub.f32 %v355, %v5495
        %v5497 = vand.u32 %v5496, 4294901760
        %5498 = vmatpush1.msra.mxu0 %v5497
        %5499 = vmatprep.subr.mxu0 0.0
        %v5500 = vand.u32 %v354, 4294901760
        %v5501 = vsub.f32 %v354, %v5500
        %v5502 = vand.u32 %v5501, 4294901760
        %5503 = vmatpush1.msra.mxu0 %v5502
        %5504 = vmatprep.subr.mxu0 0.0
        %v5505 = vand.u32 %v353, 4294901760
        %v5506 = vsub.f32 %v353, %v5505
        %v5507 = vand.u32 %v5506, 4294901760
        %5508 = vmatpush1.msra.mxu0 %v5507
        %5509 = vmatprep.subr.mxu0 0.0
        %v5510 = vand.u32 %v352, 4294901760
        %v5511 = vsub.f32 %v352, %v5510
        %v5512 = vand.u32 %v5511, 4294901760
        %5513 = vmatpush1.msra.mxu0 %v5512
        %5514 = vmatprep.subr.mxu0 0.0
        %v5515 = vand.u32 %v351, 4294901760
        %v5516 = vsub.f32 %v351, %v5515
        %v5517 = vand.u32 %v5516, 4294901760
        %5518 = vmatpush1.msra.mxu0 %v5517
        %5519 = vmatprep.subr.mxu0 0.0
        %v5520 = vand.u32 %v350, 4294901760
        %v5521 = vsub.f32 %v350, %v5520
        %v5522 = vand.u32 %v5521, 4294901760
        %5523 = vmatpush1.msra.mxu0 %v5522
        %5524 = vmatprep.subr.mxu0 0.0
        %v5525 = vand.u32 %v349, 4294901760
        %v5526 = vsub.f32 %v349, %v5525
        %v5527 = vand.u32 %v5526, 4294901760
        %5528 = vmatpush1.msra.mxu0 %v5527
        %5529 = vmatprep.subr.mxu0 0.0
        %v5530 = vand.u32 %v348, 4294901760
        %v5531 = vsub.f32 %v348, %v5530
        %v5532 = vand.u32 %v5531, 4294901760
        %5533 = vmatpush1.msra.mxu0 %v5532
        %5534 = vmatprep.subr.mxu0 0.0
        %v5535 = vand.u32 %v347, 4294901760
        %v5536 = vsub.f32 %v347, %v5535
        %v5537 = vand.u32 %v5536, 4294901760
        %5538 = vmatpush1.msra.mxu0 %v5537
        %5539 = vmatprep.subr.mxu0 0.0
        %v5540 = vand.u32 %v346, 4294901760
        %v5541 = vsub.f32 %v346, %v5540
        %v5542 = vand.u32 %v5541, 4294901760
        %5543 = vmatpush1.msra.mxu0 %v5542
        %5544 = vmatprep.subr.mxu0 0.0
        %5545 = vmatpush2.msra.mxu0 0.0
        %5546 = vmatprep.subr.mxu0 0.0
        %5547 = vmatpush2.msra.mxu0 0.0
        %5548 = vmatprep.subr.mxu0 0.0
        %5549 = vmatpush2.msra.mxu0 0.0
        %5550 = vmatprep.subr.mxu0 0.0
        %5551 = vmatpush2.msra.mxu0 0.0
        %5552 = vmatprep.subr.mxu0 0.0
        %5553 = vmatpush2.msra.mxu0 0.0
        %5554 = vmatprep.subr.mxu0 0.0
        %5555 = vmatpush2.msra.mxu0 0.0
        %5556 = vmatprep.subr.mxu0 0.0
        %5557 = vmatpush2.msra.mxu0 0.0
        %5558 = vmatprep.subr.mxu0 0.0
        %5559 = vmatpush2.msra.mxu0 0.0
        %5560 = vmatprep.subr.mxu0 0.0
        %5561 = vmatpush2.msra.mxu0 0.0
        %5562 = vmatprep.subr.mxu0 0.0
        %5563 = vmatpush2.msra.mxu0 0.0
        %5564 = vmatprep.subr.mxu0 0.0
        %5565 = vmatpush2.msra.mxu0 0.0
        %5566 = vmatprep.subr.mxu0 0.0
        %5567 = vmatpush2.msra.mxu0 0.0
        %5568 = vmatprep.subr.mxu0 0.0
        %5569 = vmatpush2.msra.mxu0 0.0
        %5570 = vmatprep.subr.mxu0 0.0
        %5571 = vmatpush2.msra.mxu0 0.0
        %5572 = vmatprep.subr.mxu0 0.0
        %5573 = vmatpush2.msra.mxu0 0.0
        %5574 = vmatprep.subr.mxu0 0.0
        %5575 = vmatpush2.msra.mxu0 0.0
        %5576 = vmatprep.mubr.f32.mxu0 0.0
        %v5577 = vand.u32 %v5026, 4294901760
        %5578 = vmatmul.mubr.f32.gmra.mxu0 %v5577
        %v5579 = vpop.f32.mrf.mxu0
        %v5580 = vadd.f32 %v5461, %v5579
        %v5581 = vpop.f32.mrf.mxu0
        %5582 = vdwg.mxu0
        %5583 = vmatprep.subr.mxu0 0.0
        %v5584 = vand.u32 %v361, 4294901760
        %5585 = vmatpush1.msra.mxu0 %v5584
        %5586 = vmatprep.subr.mxu0 0.0
        %v5587 = vand.u32 %v360, 4294901760
        %5588 = vmatpush1.msra.mxu0 %v5587
        %5589 = vmatprep.subr.mxu0 0.0
        %v5590 = vand.u32 %v359, 4294901760
        %5591 = vmatpush1.msra.mxu0 %v5590
        %5592 = vmatprep.subr.mxu0 0.0
        %v5593 = vand.u32 %v358, 4294901760
        %5594 = vmatpush1.msra.mxu0 %v5593
        %5595 = vmatprep.subr.mxu0 0.0
        %v5596 = vand.u32 %v357, 4294901760
        %5597 = vmatpush1.msra.mxu0 %v5596
        %5598 = vmatprep.subr.mxu0 0.0
        %v5599 = vand.u32 %v356, 4294901760
        %5600 = vmatpush1.msra.mxu0 %v5599
        %5601 = vmatprep.subr.mxu0 0.0
        %v5602 = vand.u32 %v355, 4294901760
        %5603 = vmatpush1.msra.mxu0 %v5602
        %5604 = vmatprep.subr.mxu0 0.0
        %v5605 = vand.u32 %v354, 4294901760
        %5606 = vmatpush1.msra.mxu0 %v5605
        %5607 = vmatprep.subr.mxu0 0.0
        %v5608 = vand.u32 %v353, 4294901760
        %5609 = vmatpush1.msra.mxu0 %v5608
        %5610 = vmatprep.subr.mxu0 0.0
        %v5611 = vand.u32 %v352, 4294901760
        %5612 = vmatpush1.msra.mxu0 %v5611
        %5613 = vmatprep.subr.mxu0 0.0
        %v5614 = vand.u32 %v351, 4294901760
        %5615 = vmatpush1.msra.mxu0 %v5614
        %5616 = vmatprep.subr.mxu0 0.0
        %v5617 = vand.u32 %v350, 4294901760
        %5618 = vmatpush1.msra.mxu0 %v5617
        %5619 = vmatprep.subr.mxu0 0.0
        %v5620 = vand.u32 %v349, 4294901760
        %5621 = vmatpush1.msra.mxu0 %v5620
        %5622 = vmatprep.subr.mxu0 0.0
        %v5623 = vand.u32 %v348, 4294901760
        %5624 = vmatpush1.msra.mxu0 %v5623
        %5625 = vmatprep.subr.mxu0 0.0
        %v5626 = vand.u32 %v347, 4294901760
        %5627 = vmatpush1.msra.mxu0 %v5626
        %5628 = vmatprep.subr.mxu0 0.0
        %v5629 = vand.u32 %v346, 4294901760
        %5630 = vmatpush1.msra.mxu0 %v5629
        %5631 = vmatprep.subr.mxu0 0.0
        %5632 = vmatpush2.msra.mxu0 0.0
        %5633 = vmatprep.subr.mxu0 0.0
        %5634 = vmatpush2.msra.mxu0 0.0
        %5635 = vmatprep.subr.mxu0 0.0
        %5636 = vmatpush2.msra.mxu0 0.0
        %5637 = vmatprep.subr.mxu0 0.0
        %5638 = vmatpush2.msra.mxu0 0.0
        %5639 = vmatprep.subr.mxu0 0.0
        %5640 = vmatpush2.msra.mxu0 0.0
        %5641 = vmatprep.subr.mxu0 0.0
        %5642 = vmatpush2.msra.mxu0 0.0
        %5643 = vmatprep.subr.mxu0 0.0
        %5644 = vmatpush2.msra.mxu0 0.0
        %5645 = vmatprep.subr.mxu0 0.0
        %5646 = vmatpush2.msra.mxu0 0.0
        %5647 = vmatprep.subr.mxu0 0.0
        %5648 = vmatpush2.msra.mxu0 0.0
        %5649 = vmatprep.subr.mxu0 0.0
        %5650 = vmatpush2.msra.mxu0 0.0
        %5651 = vmatprep.subr.mxu0 0.0
        %5652 = vmatpush2.msra.mxu0 0.0
        %5653 = vmatprep.subr.mxu0 0.0
        %5654 = vmatpush2.msra.mxu0 0.0
        %5655 = vmatprep.subr.mxu0 0.0
        %5656 = vmatpush2.msra.mxu0 0.0
        %5657 = vmatprep.subr.mxu0 0.0
        %5658 = vmatpush2.msra.mxu0 0.0
        %5659 = vmatprep.subr.mxu0 0.0
        %5660 = vmatpush2.msra.mxu0 0.0
        %5661 = vmatprep.subr.mxu0 0.0
        %5662 = vmatpush2.msra.mxu0 0.0
        %5663 = vmatprep.mubr.f32.mxu0 0.0
        %v5664 = vand.u32 %v5026, 4294901760
        %5665 = vmatmul.mubr.f32.gmra.mxu0 %v5664
        %v5666 = vpop.f32.mrf.mxu0
        %v5667 = vadd.f32 %v5580, %v5666
        %v5668 = vpop.f32.mrf.mxu0
        %5669 = vdwg.mxu0
        %v5671 = vsel %vm1090, %v5667, 0
        %5673 = vmatprep.subr.mxu0 0.0
        %5674 = vmatpush1.msra.mxu0 0.0
        %5675 = vmatprep.subr.mxu0 0.0
        %5676 = vmatpush1.msra.mxu0 0.0
        %5677 = vmatprep.subr.mxu0 0.0
        %5678 = vmatpush1.msra.mxu0 0.0
        %5679 = vmatprep.subr.mxu0 0.0
        %5680 = vmatpush1.msra.mxu0 0.0
        %5681 = vmatprep.subr.mxu0 0.0
        %5682 = vmatpush1.msra.mxu0 0.0
        %5683 = vmatprep.subr.mxu0 0.0
        %5684 = vmatpush1.msra.mxu0 0.0
        %5685 = vmatprep.subr.mxu0 0.0
        %5686 = vmatpush1.msra.mxu0 0.0
        %5687 = vmatprep.subr.mxu0 0.0
        %5688 = vmatpush1.msra.mxu0 0.0
        %5689 = vmatprep.subr.mxu0 0.0
        %5690 = vmatpush1.msra.mxu0 0.0
        %5691 = vmatprep.subr.mxu0 0.0
        %5692 = vmatpush1.msra.mxu0 0.0
        %5693 = vmatprep.subr.mxu0 0.0
        %5694 = vmatpush1.msra.mxu0 0.0
        %5695 = vmatprep.subr.mxu0 0.0
        %5696 = vmatpush1.msra.mxu0 0.0
        %5697 = vmatprep.subr.mxu0 0.0
        %5698 = vmatpush1.msra.mxu0 0.0
        %5699 = vmatprep.subr.mxu0 0.0
        %5700 = vmatpush1.msra.mxu0 0.0
        %5701 = vmatprep.subr.mxu0 0.0
        %5702 = vmatpush1.msra.mxu0 0.0
        %5703 = vmatprep.subr.mxu0 0.0
        %v5704 = vand.u32 %v362, 4294901760
        %5705 = vmatpush1.msra.mxu0 %v5704
        %5706 = vmatprep.subr.mxu0 0.0
        %5707 = vmatpush2.msra.mxu0 0.0
        %5708 = vmatprep.subr.mxu0 0.0
        %5709 = vmatpush2.msra.mxu0 0.0
        %5710 = vmatprep.subr.mxu0 0.0
        %5711 = vmatpush2.msra.mxu0 0.0
        %5712 = vmatprep.subr.mxu0 0.0
        %5713 = vmatpush2.msra.mxu0 0.0
        %5714 = vmatprep.subr.mxu0 0.0
        %5715 = vmatpush2.msra.mxu0 0.0
        %5716 = vmatprep.subr.mxu0 0.0
        %5717 = vmatpush2.msra.mxu0 0.0
        %5718 = vmatprep.subr.mxu0 0.0
        %5719 = vmatpush2.msra.mxu0 0.0
        %5720 = vmatprep.subr.mxu0 0.0
        %5721 = vmatpush2.msra.mxu0 0.0
        %5722 = vmatprep.subr.mxu0 0.0
        %5723 = vmatpush2.msra.mxu0 0.0
        %5724 = vmatprep.subr.mxu0 0.0
        %5725 = vmatpush2.msra.mxu0 0.0
        %5726 = vmatprep.subr.mxu0 0.0
        %5727 = vmatpush2.msra.mxu0 0.0
        %5728 = vmatprep.subr.mxu0 0.0
        %5729 = vmatpush2.msra.mxu0 0.0
        %5730 = vmatprep.subr.mxu0 0.0
        %5731 = vmatpush2.msra.mxu0 0.0
        %5732 = vmatprep.subr.mxu0 0.0
        %5733 = vmatpush2.msra.mxu0 0.0
        %5734 = vmatprep.subr.mxu0 0.0
        %5735 = vmatpush2.msra.mxu0 0.0
        %5736 = vmatprep.subr.mxu0 0.0
        %5737 = vmatpush2.msra.mxu0 0.0
        %5738 = vmatprep.mubr.f32.mxu0 0.0
        %v5739 = vand.u32 %v5671, 4294901760
        %v5740 = vsub.f32 %v5671, %v5739
        %v5741 = vand.u32 %v5740, 4294901760
        %v5742 = vsub.f32 %v5740, %v5741
        %v5743 = vand.u32 %v5742, 4294901760
        %5744 = vmatmul.mubr.f32.gmra.mxu0 %v5743
        %v5745 = vpop.f32.mrf.mxu0
        %v5746 = vadd.f32 0.0, %v5745
        %v5747 = vpop.f32.mrf.mxu0
        %5748 = vdwg.mxu0
        %5749 = vmatprep.subr.mxu0 0.0
        %5750 = vmatpush1.msra.mxu0 0.0
        %5751 = vmatprep.subr.mxu0 0.0
        %5752 = vmatpush1.msra.mxu0 0.0
        %5753 = vmatprep.subr.mxu0 0.0
        %5754 = vmatpush1.msra.mxu0 0.0
        %5755 = vmatprep.subr.mxu0 0.0
        %5756 = vmatpush1.msra.mxu0 0.0
        %5757 = vmatprep.subr.mxu0 0.0
        %5758 = vmatpush1.msra.mxu0 0.0
        %5759 = vmatprep.subr.mxu0 0.0
        %5760 = vmatpush1.msra.mxu0 0.0
        %5761 = vmatprep.subr.mxu0 0.0
        %5762 = vmatpush1.msra.mxu0 0.0
        %5763 = vmatprep.subr.mxu0 0.0
        %5764 = vmatpush1.msra.mxu0 0.0
        %5765 = vmatprep.subr.mxu0 0.0
        %5766 = vmatpush1.msra.mxu0 0.0
        %5767 = vmatprep.subr.mxu0 0.0
        %5768 = vmatpush1.msra.mxu0 0.0
        %5769 = vmatprep.subr.mxu0 0.0
        %5770 = vmatpush1.msra.mxu0 0.0
        %5771 = vmatprep.subr.mxu0 0.0
        %5772 = vmatpush1.msra.mxu0 0.0
        %5773 = vmatprep.subr.mxu0 0.0
        %5774 = vmatpush1.msra.mxu0 0.0
        %5775 = vmatprep.subr.mxu0 0.0
        %5776 = vmatpush1.msra.mxu0 0.0
        %5777 = vmatprep.subr.mxu0 0.0
        %5778 = vmatpush1.msra.mxu0 0.0
        %5779 = vmatprep.subr.mxu0 0.0
        %v5780 = vand.u32 %v362, 4294901760
        %v5781 = vsub.f32 %v362, %v5780
        %v5782 = vand.u32 %v5781, 4294901760
        %v5783 = vsub.f32 %v5781, %v5782
        %v5784 = vand.u32 %v5783, 4294901760
        %5785 = vmatpush1.msra.mxu0 %v5784
        %5786 = vmatprep.subr.mxu0 0.0
        %5787 = vmatpush2.msra.mxu0 0.0
        %5788 = vmatprep.subr.mxu0 0.0
        %5789 = vmatpush2.msra.mxu0 0.0
        %5790 = vmatprep.subr.mxu0 0.0
        %5791 = vmatpush2.msra.mxu0 0.0
        %5792 = vmatprep.subr.mxu0 0.0
        %5793 = vmatpush2.msra.mxu0 0.0
        %5794 = vmatprep.subr.mxu0 0.0
        %5795 = vmatpush2.msra.mxu0 0.0
        %5796 = vmatprep.subr.mxu0 0.0
        %5797 = vmatpush2.msra.mxu0 0.0
        %5798 = vmatprep.subr.mxu0 0.0
        %5799 = vmatpush2.msra.mxu0 0.0
        %5800 = vmatprep.subr.mxu0 0.0
        %5801 = vmatpush2.msra.mxu0 0.0
        %5802 = vmatprep.subr.mxu0 0.0
        %5803 = vmatpush2.msra.mxu0 0.0
        %5804 = vmatprep.subr.mxu0 0.0
        %5805 = vmatpush2.msra.mxu0 0.0
        %5806 = vmatprep.subr.mxu0 0.0
        %5807 = vmatpush2.msra.mxu0 0.0
        %5808 = vmatprep.subr.mxu0 0.0
        %5809 = vmatpush2.msra.mxu0 0.0
        %5810 = vmatprep.subr.mxu0 0.0
        %5811 = vmatpush2.msra.mxu0 0.0
        %5812 = vmatprep.subr.mxu0 0.0
        %5813 = vmatpush2.msra.mxu0 0.0
        %5814 = vmatprep.subr.mxu0 0.0
        %5815 = vmatpush2.msra.mxu0 0.0
        %5816 = vmatprep.subr.mxu0 0.0
        %5817 = vmatpush2.msra.mxu0 0.0
        %5818 = vmatprep.mubr.f32.mxu0 0.0
        %v5819 = vand.u32 %v5671, 4294901760
        %5820 = vmatmul.mubr.f32.gmra.mxu0 %v5819
        %v5821 = vpop.f32.mrf.mxu0
        %v5822 = vadd.f32 %v5746, %v5821
        %v5823 = vpop.f32.mrf.mxu0
        %5824 = vdwg.mxu0
        %5825 = vmatprep.subr.mxu0 0.0
        %5826 = vmatpush1.msra.mxu0 0.0
        %5827 = vmatprep.subr.mxu0 0.0
        %5828 = vmatpush1.msra.mxu0 0.0
        %5829 = vmatprep.subr.mxu0 0.0
        %5830 = vmatpush1.msra.mxu0 0.0
        %5831 = vmatprep.subr.mxu0 0.0
        %5832 = vmatpush1.msra.mxu0 0.0
        %5833 = vmatprep.subr.mxu0 0.0
        %5834 = vmatpush1.msra.mxu0 0.0
        %5835 = vmatprep.subr.mxu0 0.0
        %5836 = vmatpush1.msra.mxu0 0.0
        %5837 = vmatprep.subr.mxu0 0.0
        %5838 = vmatpush1.msra.mxu0 0.0
        %5839 = vmatprep.subr.mxu0 0.0
        %5840 = vmatpush1.msra.mxu0 0.0
        %5841 = vmatprep.subr.mxu0 0.0
        %5842 = vmatpush1.msra.mxu0 0.0
        %5843 = vmatprep.subr.mxu0 0.0
        %5844 = vmatpush1.msra.mxu0 0.0
        %5845 = vmatprep.subr.mxu0 0.0
        %5846 = vmatpush1.msra.mxu0 0.0
        %5847 = vmatprep.subr.mxu0 0.0
        %5848 = vmatpush1.msra.mxu0 0.0
        %5849 = vmatprep.subr.mxu0 0.0
        %5850 = vmatpush1.msra.mxu0 0.0
        %5851 = vmatprep.subr.mxu0 0.0
        %5852 = vmatpush1.msra.mxu0 0.0
        %5853 = vmatprep.subr.mxu0 0.0
        %5854 = vmatpush1.msra.mxu0 0.0
        %5855 = vmatprep.subr.mxu0 0.0
        %v5856 = vand.u32 %v362, 4294901760
        %v5857 = vsub.f32 %v362, %v5856
        %5858 = vmatpush1.msra.mxu0 %v5857
        %5859 = vmatprep.subr.mxu0 0.0
        %5860 = vmatpush2.msra.mxu0 0.0
        %5861 = vmatprep.subr.mxu0 0.0
        %5862 = vmatpush2.msra.mxu0 0.0
        %5863 = vmatprep.subr.mxu0 0.0
        %5864 = vmatpush2.msra.mxu0 0.0
        %5865 = vmatprep.subr.mxu0 0.0
        %5866 = vmatpush2.msra.mxu0 0.0
        %5867 = vmatprep.subr.mxu0 0.0
        %5868 = vmatpush2.msra.mxu0 0.0
        %5869 = vmatprep.subr.mxu0 0.0
        %5870 = vmatpush2.msra.mxu0 0.0
        %5871 = vmatprep.subr.mxu0 0.0
        %5872 = vmatpush2.msra.mxu0 0.0
        %5873 = vmatprep.subr.mxu0 0.0
        %5874 = vmatpush2.msra.mxu0 0.0
        %5875 = vmatprep.subr.mxu0 0.0
        %5876 = vmatpush2.msra.mxu0 0.0
        %5877 = vmatprep.subr.mxu0 0.0
        %5878 = vmatpush2.msra.mxu0 0.0
        %5879 = vmatprep.subr.mxu0 0.0
        %5880 = vmatpush2.msra.mxu0 0.0
        %5881 = vmatprep.subr.mxu0 0.0
        %5882 = vmatpush2.msra.mxu0 0.0
        %5883 = vmatprep.subr.mxu0 0.0
        %5884 = vmatpush2.msra.mxu0 0.0
        %5885 = vmatprep.subr.mxu0 0.0
        %5886 = vmatpush2.msra.mxu0 0.0
        %5887 = vmatprep.subr.mxu0 0.0
        %5888 = vmatpush2.msra.mxu0 0.0
        %5889 = vmatprep.subr.mxu0 0.0
        %5890 = vmatpush2.msra.mxu0 0.0
        %5891 = vmatprep.mubr.f32.mxu0 0.0
        %v5892 = vand.u32 %v5671, 4294901760
        %v5893 = vsub.f32 %v5671, %v5892
        %5894 = vmatmul.mubr.f32.gmra.mxu0 %v5893
        %v5895 = vpop.f32.mrf.mxu0
        %v5896 = vadd.f32 %v5822, %v5895
        %v5897 = vpop.f32.mrf.mxu0
        %5898 = vdwg.mxu0
        %5899 = vmatprep.subr.mxu0 0.0
        %5900 = vmatpush1.msra.mxu0 0.0
        %5901 = vmatprep.subr.mxu0 0.0
        %5902 = vmatpush1.msra.mxu0 0.0
        %5903 = vmatprep.subr.mxu0 0.0
        %5904 = vmatpush1.msra.mxu0 0.0
        %5905 = vmatprep.subr.mxu0 0.0
        %5906 = vmatpush1.msra.mxu0 0.0
        %5907 = vmatprep.subr.mxu0 0.0
        %5908 = vmatpush1.msra.mxu0 0.0
        %5909 = vmatprep.subr.mxu0 0.0
        %5910 = vmatpush1.msra.mxu0 0.0
        %5911 = vmatprep.subr.mxu0 0.0
        %5912 = vmatpush1.msra.mxu0 0.0
        %5913 = vmatprep.subr.mxu0 0.0
        %5914 = vmatpush1.msra.mxu0 0.0
        %5915 = vmatprep.subr.mxu0 0.0
        %5916 = vmatpush1.msra.mxu0 0.0
        %5917 = vmatprep.subr.mxu0 0.0
        %5918 = vmatpush1.msra.mxu0 0.0
        %5919 = vmatprep.subr.mxu0 0.0
        %5920 = vmatpush1.msra.mxu0 0.0
        %5921 = vmatprep.subr.mxu0 0.0
        %5922 = vmatpush1.msra.mxu0 0.0
        %5923 = vmatprep.subr.mxu0 0.0
        %5924 = vmatpush1.msra.mxu0 0.0
        %5925 = vmatprep.subr.mxu0 0.0
        %5926 = vmatpush1.msra.mxu0 0.0
        %5927 = vmatprep.subr.mxu0 0.0
        %5928 = vmatpush1.msra.mxu0 0.0
        %5929 = vmatprep.subr.mxu0 0.0
        %v5930 = vand.u32 %v362, 4294901760
        %5931 = vmatpush1.msra.mxu0 %v5930
        %5932 = vmatprep.subr.mxu0 0.0
        %5933 = vmatpush2.msra.mxu0 0.0
        %5934 = vmatprep.subr.mxu0 0.0
        %5935 = vmatpush2.msra.mxu0 0.0
        %5936 = vmatprep.subr.mxu0 0.0
        %5937 = vmatpush2.msra.mxu0 0.0
        %5938 = vmatprep.subr.mxu0 0.0
        %5939 = vmatpush2.msra.mxu0 0.0
        %5940 = vmatprep.subr.mxu0 0.0
        %5941 = vmatpush2.msra.mxu0 0.0
        %5942 = vmatprep.subr.mxu0 0.0
        %5943 = vmatpush2.msra.mxu0 0.0
        %5944 = vmatprep.subr.mxu0 0.0
        %5945 = vmatpush2.msra.mxu0 0.0
        %5946 = vmatprep.subr.mxu0 0.0
        %5947 = vmatpush2.msra.mxu0 0.0
        %5948 = vmatprep.subr.mxu0 0.0
        %5949 = vmatpush2.msra.mxu0 0.0
        %5950 = vmatprep.subr.mxu0 0.0
        %5951 = vmatpush2.msra.mxu0 0.0
        %5952 = vmatprep.subr.mxu0 0.0
        %5953 = vmatpush2.msra.mxu0 0.0
        %5954 = vmatprep.subr.mxu0 0.0
        %5955 = vmatpush2.msra.mxu0 0.0
        %5956 = vmatprep.subr.mxu0 0.0
        %5957 = vmatpush2.msra.mxu0 0.0
        %5958 = vmatprep.subr.mxu0 0.0
        %5959 = vmatpush2.msra.mxu0 0.0
        %5960 = vmatprep.subr.mxu0 0.0
        %5961 = vmatpush2.msra.mxu0 0.0
        %5962 = vmatprep.subr.mxu0 0.0
        %5963 = vmatpush2.msra.mxu0 0.0
        %5964 = vmatprep.mubr.f32.mxu0 0.0
        %v5965 = vand.u32 %v5671, 4294901760
        %v5966 = vsub.f32 %v5671, %v5965
        %v5967 = vand.u32 %v5966, 4294901760
        %5968 = vmatmul.mubr.f32.gmra.mxu0 %v5967
        %v5969 = vpop.f32.mrf.mxu0
        %v5970 = vadd.f32 %v5896, %v5969
        %v5971 = vpop.f32.mrf.mxu0
        %5972 = vdwg.mxu0
        %5973 = vmatprep.subr.mxu0 0.0
        %5974 = vmatpush1.msra.mxu0 0.0
        %5975 = vmatprep.subr.mxu0 0.0
        %5976 = vmatpush1.msra.mxu0 0.0
        %5977 = vmatprep.subr.mxu0 0.0
        %5978 = vmatpush1.msra.mxu0 0.0
        %5979 = vmatprep.subr.mxu0 0.0
        %5980 = vmatpush1.msra.mxu0 0.0
        %5981 = vmatprep.subr.mxu0 0.0
        %5982 = vmatpush1.msra.mxu0 0.0
        %5983 = vmatprep.subr.mxu0 0.0
        %5984 = vmatpush1.msra.mxu0 0.0
        %5985 = vmatprep.subr.mxu0 0.0
        %5986 = vmatpush1.msra.mxu0 0.0
        %5987 = vmatprep.subr.mxu0 0.0
        %5988 = vmatpush1.msra.mxu0 0.0
        %5989 = vmatprep.subr.mxu0 0.0
        %5990 = vmatpush1.msra.mxu0 0.0
        %5991 = vmatprep.subr.mxu0 0.0
        %5992 = vmatpush1.msra.mxu0 0.0
        %5993 = vmatprep.subr.mxu0 0.0
        %5994 = vmatpush1.msra.mxu0 0.0
        %5995 = vmatprep.subr.mxu0 0.0
        %5996 = vmatpush1.msra.mxu0 0.0
        %5997 = vmatprep.subr.mxu0 0.0
        %5998 = vmatpush1.msra.mxu0 0.0
        %5999 = vmatprep.subr.mxu0 0.0
        %6000 = vmatpush1.msra.mxu0 0.0
        %6001 = vmatprep.subr.mxu0 0.0
        %6002 = vmatpush1.msra.mxu0 0.0
        %6003 = vmatprep.subr.mxu0 0.0
        %v6004 = vand.u32 %v362, 4294901760
        %v6005 = vsub.f32 %v362, %v6004
        %v6006 = vand.u32 %v6005, 4294901760
        %6007 = vmatpush1.msra.mxu0 %v6006
        %6008 = vmatprep.subr.mxu0 0.0
        %6009 = vmatpush2.msra.mxu0 0.0
        %6010 = vmatprep.subr.mxu0 0.0
        %6011 = vmatpush2.msra.mxu0 0.0
        %6012 = vmatprep.subr.mxu0 0.0
        %6013 = vmatpush2.msra.mxu0 0.0
        %6014 = vmatprep.subr.mxu0 0.0
        %6015 = vmatpush2.msra.mxu0 0.0
        %6016 = vmatprep.subr.mxu0 0.0
        %6017 = vmatpush2.msra.mxu0 0.0
        %6018 = vmatprep.subr.mxu0 0.0
        %6019 = vmatpush2.msra.mxu0 0.0
        %6020 = vmatprep.subr.mxu0 0.0
        %6021 = vmatpush2.msra.mxu0 0.0
        %6022 = vmatprep.subr.mxu0 0.0
        %6023 = vmatpush2.msra.mxu0 0.0
        %6024 = vmatprep.subr.mxu0 0.0
        %6025 = vmatpush2.msra.mxu0 0.0
        %6026 = vmatprep.subr.mxu0 0.0
        %6027 = vmatpush2.msra.mxu0 0.0
        %6028 = vmatprep.subr.mxu0 0.0
        %6029 = vmatpush2.msra.mxu0 0.0
        %6030 = vmatprep.subr.mxu0 0.0
        %6031 = vmatpush2.msra.mxu0 0.0
        %6032 = vmatprep.subr.mxu0 0.0
        %6033 = vmatpush2.msra.mxu0 0.0
        %6034 = vmatprep.subr.mxu0 0.0
        %6035 = vmatpush2.msra.mxu0 0.0
        %6036 = vmatprep.subr.mxu0 0.0
        %6037 = vmatpush2.msra.mxu0 0.0
        %6038 = vmatprep.subr.mxu0 0.0
        %6039 = vmatpush2.msra.mxu0 0.0
        %6040 = vmatprep.mubr.f32.mxu0 0.0
        %v6041 = vand.u32 %v5671, 4294901760
        %6042 = vmatmul.mubr.f32.gmra.mxu0 %v6041
        %v6043 = vpop.f32.mrf.mxu0
        %v6044 = vadd.f32 %v5970, %v6043
        %v6045 = vpop.f32.mrf.mxu0
        %6046 = vdwg.mxu0
        %6047 = vmatprep.subr.mxu0 0.0
        %6048 = vmatpush1.msra.mxu0 0.0
        %6049 = vmatprep.subr.mxu0 0.0
        %6050 = vmatpush1.msra.mxu0 0.0
        %6051 = vmatprep.subr.mxu0 0.0
        %6052 = vmatpush1.msra.mxu0 0.0
        %6053 = vmatprep.subr.mxu0 0.0
        %6054 = vmatpush1.msra.mxu0 0.0
        %6055 = vmatprep.subr.mxu0 0.0
        %6056 = vmatpush1.msra.mxu0 0.0
        %6057 = vmatprep.subr.mxu0 0.0
        %6058 = vmatpush1.msra.mxu0 0.0
        %6059 = vmatprep.subr.mxu0 0.0
        %6060 = vmatpush1.msra.mxu0 0.0
        %6061 = vmatprep.subr.mxu0 0.0
        %6062 = vmatpush1.msra.mxu0 0.0
        %6063 = vmatprep.subr.mxu0 0.0
        %6064 = vmatpush1.msra.mxu0 0.0
        %6065 = vmatprep.subr.mxu0 0.0
        %6066 = vmatpush1.msra.mxu0 0.0
        %6067 = vmatprep.subr.mxu0 0.0
        %6068 = vmatpush1.msra.mxu0 0.0
        %6069 = vmatprep.subr.mxu0 0.0
        %6070 = vmatpush1.msra.mxu0 0.0
        %6071 = vmatprep.subr.mxu0 0.0
        %6072 = vmatpush1.msra.mxu0 0.0
        %6073 = vmatprep.subr.mxu0 0.0
        %6074 = vmatpush1.msra.mxu0 0.0
        %6075 = vmatprep.subr.mxu0 0.0
        %6076 = vmatpush1.msra.mxu0 0.0
        %6077 = vmatprep.subr.mxu0 0.0
        %v6078 = vand.u32 %v362, 4294901760
        %6079 = vmatpush1.msra.mxu0 %v6078
        %6080 = vmatprep.subr.mxu0 0.0
        %6081 = vmatpush2.msra.mxu0 0.0
        %6082 = vmatprep.subr.mxu0 0.0
        %6083 = vmatpush2.msra.mxu0 0.0
        %6084 = vmatprep.subr.mxu0 0.0
        %6085 = vmatpush2.msra.mxu0 0.0
        %6086 = vmatprep.subr.mxu0 0.0
        %6087 = vmatpush2.msra.mxu0 0.0
        %6088 = vmatprep.subr.mxu0 0.0
        %6089 = vmatpush2.msra.mxu0 0.0
        %6090 = vmatprep.subr.mxu0 0.0
        %6091 = vmatpush2.msra.mxu0 0.0
        %6092 = vmatprep.subr.mxu0 0.0
        %6093 = vmatpush2.msra.mxu0 0.0
        %6094 = vmatprep.subr.mxu0 0.0
        %6095 = vmatpush2.msra.mxu0 0.0
        %6096 = vmatprep.subr.mxu0 0.0
        %6097 = vmatpush2.msra.mxu0 0.0
        %6098 = vmatprep.subr.mxu0 0.0
        %6099 = vmatpush2.msra.mxu0 0.0
        %6100 = vmatprep.subr.mxu0 0.0
        %6101 = vmatpush2.msra.mxu0 0.0
        %6102 = vmatprep.subr.mxu0 0.0
        %6103 = vmatpush2.msra.mxu0 0.0
        %6104 = vmatprep.subr.mxu0 0.0
        %6105 = vmatpush2.msra.mxu0 0.0
        %6106 = vmatprep.subr.mxu0 0.0
        %6107 = vmatpush2.msra.mxu0 0.0
        %6108 = vmatprep.subr.mxu0 0.0
        %6109 = vmatpush2.msra.mxu0 0.0
        %6110 = vmatprep.subr.mxu0 0.0
        %6111 = vmatpush2.msra.mxu0 0.0
        %6112 = vmatprep.mubr.f32.mxu0 0.0
        %v6113 = vand.u32 %v5671, 4294901760
        %6114 = vmatmul.mubr.f32.gmra.mxu0 %v6113
        %v6115 = vpop.f32.mrf.mxu0
        %v6116 = vadd.f32 %v6044, %v6115
        %v6117 = vpop.f32.mrf.mxu0
        %6118 = vdwg.mxu0
        %v6119 = vsub.f32 %v5026, %v6116
        %v6120 = vmul.f32 %v6119, %v6119
        %6121 = vmatprep.subr.mxu0 0.0
        %v6122 = vand.u32 %v361, 4294901760
        %6123 = vmatpush1.msra.mxu0 %v6122
        %6124 = vmatprep.subr.mxu0 0.0
        %v6125 = vand.u32 %v360, 4294901760
        %6126 = vmatpush1.msra.mxu0 %v6125
        %6127 = vmatprep.subr.mxu0 0.0
        %v6128 = vand.u32 %v359, 4294901760
        %6129 = vmatpush1.msra.mxu0 %v6128
        %6130 = vmatprep.subr.mxu0 0.0
        %v6131 = vand.u32 %v358, 4294901760
        %6132 = vmatpush1.msra.mxu0 %v6131
        %6133 = vmatprep.subr.mxu0 0.0
        %v6134 = vand.u32 %v357, 4294901760
        %6135 = vmatpush1.msra.mxu0 %v6134
        %6136 = vmatprep.subr.mxu0 0.0
        %v6137 = vand.u32 %v356, 4294901760
        %6138 = vmatpush1.msra.mxu0 %v6137
        %6139 = vmatprep.subr.mxu0 0.0
        %v6140 = vand.u32 %v355, 4294901760
        %6141 = vmatpush1.msra.mxu0 %v6140
        %6142 = vmatprep.subr.mxu0 0.0
        %v6143 = vand.u32 %v354, 4294901760
        %6144 = vmatpush1.msra.mxu0 %v6143
        %6145 = vmatprep.subr.mxu0 0.0
        %v6146 = vand.u32 %v353, 4294901760
        %6147 = vmatpush1.msra.mxu0 %v6146
        %6148 = vmatprep.subr.mxu0 0.0
        %v6149 = vand.u32 %v352, 4294901760
        %6150 = vmatpush1.msra.mxu0 %v6149
        %6151 = vmatprep.subr.mxu0 0.0
        %v6152 = vand.u32 %v351, 4294901760
        %6153 = vmatpush1.msra.mxu0 %v6152
        %6154 = vmatprep.subr.mxu0 0.0
        %v6155 = vand.u32 %v350, 4294901760
        %6156 = vmatpush1.msra.mxu0 %v6155
        %6157 = vmatprep.subr.mxu0 0.0
        %v6158 = vand.u32 %v349, 4294901760
        %6159 = vmatpush1.msra.mxu0 %v6158
        %6160 = vmatprep.subr.mxu0 0.0
        %v6161 = vand.u32 %v348, 4294901760
        %6162 = vmatpush1.msra.mxu0 %v6161
        %6163 = vmatprep.subr.mxu0 0.0
        %v6164 = vand.u32 %v347, 4294901760
        %6165 = vmatpush1.msra.mxu0 %v6164
        %6166 = vmatprep.subr.mxu0 0.0
        %v6167 = vand.u32 %v346, 4294901760
        %6168 = vmatpush1.msra.mxu0 %v6167
        %6169 = vmatprep.subr.mxu0 0.0
        %6170 = vmatpush2.msra.mxu0 0.0
        %6171 = vmatprep.subr.mxu0 0.0
        %6172 = vmatpush2.msra.mxu0 0.0
        %6173 = vmatprep.subr.mxu0 0.0
        %6174 = vmatpush2.msra.mxu0 0.0
        %6175 = vmatprep.subr.mxu0 0.0
        %6176 = vmatpush2.msra.mxu0 0.0
        %6177 = vmatprep.subr.mxu0 0.0
        %6178 = vmatpush2.msra.mxu0 0.0
        %6179 = vmatprep.subr.mxu0 0.0
        %6180 = vmatpush2.msra.mxu0 0.0
        %6181 = vmatprep.subr.mxu0 0.0
        %6182 = vmatpush2.msra.mxu0 0.0
        %6183 = vmatprep.subr.mxu0 0.0
        %6184 = vmatpush2.msra.mxu0 0.0
        %6185 = vmatprep.subr.mxu0 0.0
        %6186 = vmatpush2.msra.mxu0 0.0
        %6187 = vmatprep.subr.mxu0 0.0
        %6188 = vmatpush2.msra.mxu0 0.0
        %6189 = vmatprep.subr.mxu0 0.0
        %6190 = vmatpush2.msra.mxu0 0.0
        %6191 = vmatprep.subr.mxu0 0.0
        %6192 = vmatpush2.msra.mxu0 0.0
        %6193 = vmatprep.subr.mxu0 0.0
        %6194 = vmatpush2.msra.mxu0 0.0
        %6195 = vmatprep.subr.mxu0 0.0
        %6196 = vmatpush2.msra.mxu0 0.0
        %6197 = vmatprep.subr.mxu0 0.0
        %6198 = vmatpush2.msra.mxu0 0.0
        %6199 = vmatprep.subr.mxu0 0.0
        %6200 = vmatpush2.msra.mxu0 0.0
        %6201 = vmatprep.mubr.f32.mxu0 0.0
        %v6202 = vand.u32 %v6120, 4294901760
        %v6203 = vsub.f32 %v6120, %v6202
        %v6204 = vand.u32 %v6203, 4294901760
        %v6205 = vsub.f32 %v6203, %v6204
        %v6206 = vand.u32 %v6205, 4294901760
        %6207 = vmatmul.mubr.f32.gmra.mxu0 %v6206
        %v6208 = vpop.f32.mrf.mxu0
        %v6209 = vadd.f32 1e-05, %v6208
        %v6210 = vpop.f32.mrf.mxu0
        %6211 = vdwg.mxu0
        %6212 = vmatprep.subr.mxu0 0.0
        %v6213 = vand.u32 %v361, 4294901760
        %v6214 = vsub.f32 %v361, %v6213
        %v6215 = vand.u32 %v6214, 4294901760
        %v6216 = vsub.f32 %v6214, %v6215
        %v6217 = vand.u32 %v6216, 4294901760
        %6218 = vmatpush1.msra.mxu0 %v6217
        %6219 = vmatprep.subr.mxu0 0.0
        %v6220 = vand.u32 %v360, 4294901760
        %v6221 = vsub.f32 %v360, %v6220
        %v6222 = vand.u32 %v6221, 4294901760
        %v6223 = vsub.f32 %v6221, %v6222
        %v6224 = vand.u32 %v6223, 4294901760
        %6225 = vmatpush1.msra.mxu0 %v6224
        %6226 = vmatprep.subr.mxu0 0.0
        %v6227 = vand.u32 %v359, 4294901760
        %v6228 = vsub.f32 %v359, %v6227
        %v6229 = vand.u32 %v6228, 4294901760
        %v6230 = vsub.f32 %v6228, %v6229
        %v6231 = vand.u32 %v6230, 4294901760
        %6232 = vmatpush1.msra.mxu0 %v6231
        %6233 = vmatprep.subr.mxu0 0.0
        %v6234 = vand.u32 %v358, 4294901760
        %v6235 = vsub.f32 %v358, %v6234
        %v6236 = vand.u32 %v6235, 4294901760
        %v6237 = vsub.f32 %v6235, %v6236
        %v6238 = vand.u32 %v6237, 4294901760
        %6239 = vmatpush1.msra.mxu0 %v6238
        %6240 = vmatprep.subr.mxu0 0.0
        %v6241 = vand.u32 %v357, 4294901760
        %v6242 = vsub.f32 %v357, %v6241
        %v6243 = vand.u32 %v6242, 4294901760
        %v6244 = vsub.f32 %v6242, %v6243
        %v6245 = vand.u32 %v6244, 4294901760
        %6246 = vmatpush1.msra.mxu0 %v6245
        %6247 = vmatprep.subr.mxu0 0.0
        %v6248 = vand.u32 %v356, 4294901760
        %v6249 = vsub.f32 %v356, %v6248
        %v6250 = vand.u32 %v6249, 4294901760
        %v6251 = vsub.f32 %v6249, %v6250
        %v6252 = vand.u32 %v6251, 4294901760
        %6253 = vmatpush1.msra.mxu0 %v6252
        %6254 = vmatprep.subr.mxu0 0.0
        %v6255 = vand.u32 %v355, 4294901760
        %v6256 = vsub.f32 %v355, %v6255
        %v6257 = vand.u32 %v6256, 4294901760
        %v6258 = vsub.f32 %v6256, %v6257
        %v6259 = vand.u32 %v6258, 4294901760
        %6260 = vmatpush1.msra.mxu0 %v6259
        %6261 = vmatprep.subr.mxu0 0.0
        %v6262 = vand.u32 %v354, 4294901760
        %v6263 = vsub.f32 %v354, %v6262
        %v6264 = vand.u32 %v6263, 4294901760
        %v6265 = vsub.f32 %v6263, %v6264
        %v6266 = vand.u32 %v6265, 4294901760
        %6267 = vmatpush1.msra.mxu0 %v6266
        %6268 = vmatprep.subr.mxu0 0.0
        %v6269 = vand.u32 %v353, 4294901760
        %v6270 = vsub.f32 %v353, %v6269
        %v6271 = vand.u32 %v6270, 4294901760
        %v6272 = vsub.f32 %v6270, %v6271
        %v6273 = vand.u32 %v6272, 4294901760
        %6274 = vmatpush1.msra.mxu0 %v6273
        %6275 = vmatprep.subr.mxu0 0.0
        %v6276 = vand.u32 %v352, 4294901760
        %v6277 = vsub.f32 %v352, %v6276
        %v6278 = vand.u32 %v6277, 4294901760
        %v6279 = vsub.f32 %v6277, %v6278
        %v6280 = vand.u32 %v6279, 4294901760
        %6281 = vmatpush1.msra.mxu0 %v6280
        %6282 = vmatprep.subr.mxu0 0.0
        %v6283 = vand.u32 %v351, 4294901760
        %v6284 = vsub.f32 %v351, %v6283
        %v6285 = vand.u32 %v6284, 4294901760
        %v6286 = vsub.f32 %v6284, %v6285
        %v6287 = vand.u32 %v6286, 4294901760
        %6288 = vmatpush1.msra.mxu0 %v6287
        %6289 = vmatprep.subr.mxu0 0.0
        %v6290 = vand.u32 %v350, 4294901760
        %v6291 = vsub.f32 %v350, %v6290
        %v6292 = vand.u32 %v6291, 4294901760
        %v6293 = vsub.f32 %v6291, %v6292
        %v6294 = vand.u32 %v6293, 4294901760
        %6295 = vmatpush1.msra.mxu0 %v6294
        %6296 = vmatprep.subr.mxu0 0.0
        %v6297 = vand.u32 %v349, 4294901760
        %v6298 = vsub.f32 %v349, %v6297
        %v6299 = vand.u32 %v6298, 4294901760
        %v6300 = vsub.f32 %v6298, %v6299
        %v6301 = vand.u32 %v6300, 4294901760
        %6302 = vmatpush1.msra.mxu0 %v6301
        %6303 = vmatprep.subr.mxu0 0.0
        %v6304 = vand.u32 %v348, 4294901760
        %v6305 = vsub.f32 %v348, %v6304
        %v6306 = vand.u32 %v6305, 4294901760
        %v6307 = vsub.f32 %v6305, %v6306
        %v6308 = vand.u32 %v6307, 4294901760
        %6309 = vmatpush1.msra.mxu0 %v6308
        %6310 = vmatprep.subr.mxu0 0.0
        %v6311 = vand.u32 %v347, 4294901760
        %v6312 = vsub.f32 %v347, %v6311
        %v6313 = vand.u32 %v6312, 4294901760
        %v6314 = vsub.f32 %v6312, %v6313
        %v6315 = vand.u32 %v6314, 4294901760
        %6316 = vmatpush1.msra.mxu0 %v6315
        %6317 = vmatprep.subr.mxu0 0.0
        %v6318 = vand.u32 %v346, 4294901760
        %v6319 = vsub.f32 %v346, %v6318
        %v6320 = vand.u32 %v6319, 4294901760
        %v6321 = vsub.f32 %v6319, %v6320
        %v6322 = vand.u32 %v6321, 4294901760
        %6323 = vmatpush1.msra.mxu0 %v6322
        %6324 = vmatprep.subr.mxu0 0.0
        %6325 = vmatpush2.msra.mxu0 0.0
        %6326 = vmatprep.subr.mxu0 0.0
        %6327 = vmatpush2.msra.mxu0 0.0
        %6328 = vmatprep.subr.mxu0 0.0
        %6329 = vmatpush2.msra.mxu0 0.0
        %6330 = vmatprep.subr.mxu0 0.0
        %6331 = vmatpush2.msra.mxu0 0.0
        %6332 = vmatprep.subr.mxu0 0.0
        %6333 = vmatpush2.msra.mxu0 0.0
        %6334 = vmatprep.subr.mxu0 0.0
        %6335 = vmatpush2.msra.mxu0 0.0
        %6336 = vmatprep.subr.mxu0 0.0
        %6337 = vmatpush2.msra.mxu0 0.0
        %6338 = vmatprep.subr.mxu0 0.0
        %6339 = vmatpush2.msra.mxu0 0.0
        %6340 = vmatprep.subr.mxu0 0.0
        %6341 = vmatpush2.msra.mxu0 0.0
        %6342 = vmatprep.subr.mxu0 0.0
        %6343 = vmatpush2.msra.mxu0 0.0
        %6344 = vmatprep.subr.mxu0 0.0
        %6345 = vmatpush2.msra.mxu0 0.0
        %6346 = vmatprep.subr.mxu0 0.0
        %6347 = vmatpush2.msra.mxu0 0.0
        %6348 = vmatprep.subr.mxu0 0.0
        %6349 = vmatpush2.msra.mxu0 0.0
        %6350 = vmatprep.subr.mxu0 0.0
        %6351 = vmatpush2.msra.mxu0 0.0
        %6352 = vmatprep.subr.mxu0 0.0
        %6353 = vmatpush2.msra.mxu0 0.0
        %6354 = vmatprep.subr.mxu0 0.0
        %6355 = vmatpush2.msra.mxu0 0.0
        %6356 = vmatprep.mubr.f32.mxu0 0.0
        %v6357 = vand.u32 %v6120, 4294901760
        %6358 = vmatmul.mubr.f32.gmra.mxu0 %v6357
        %v6359 = vpop.f32.mrf.mxu0
        %v6360 = vadd.f32 %v6209, %v6359
        %v6361 = vpop.f32.mrf.mxu0
        %6362 = vdwg.mxu0
        %6363 = vmatprep.subr.mxu0 0.0
        %v6364 = vand.u32 %v361, 4294901760
        %v6365 = vsub.f32 %v361, %v6364
        %6366 = vmatpush1.msra.mxu0 %v6365
        %6367 = vmatprep.subr.mxu0 0.0
        %v6368 = vand.u32 %v360, 4294901760
        %v6369 = vsub.f32 %v360, %v6368
        %6370 = vmatpush1.msra.mxu0 %v6369
        %6371 = vmatprep.subr.mxu0 0.0
        %v6372 = vand.u32 %v359, 4294901760
        %v6373 = vsub.f32 %v359, %v6372
        %6374 = vmatpush1.msra.mxu0 %v6373
        %6375 = vmatprep.subr.mxu0 0.0
        %v6376 = vand.u32 %v358, 4294901760
        %v6377 = vsub.f32 %v358, %v6376
        %6378 = vmatpush1.msra.mxu0 %v6377
        %6379 = vmatprep.subr.mxu0 0.0
        %v6380 = vand.u32 %v357, 4294901760
        %v6381 = vsub.f32 %v357, %v6380
        %6382 = vmatpush1.msra.mxu0 %v6381
        %6383 = vmatprep.subr.mxu0 0.0
        %v6384 = vand.u32 %v356, 4294901760
        %v6385 = vsub.f32 %v356, %v6384
        %6386 = vmatpush1.msra.mxu0 %v6385
        %6387 = vmatprep.subr.mxu0 0.0
        %v6388 = vand.u32 %v355, 4294901760
        %v6389 = vsub.f32 %v355, %v6388
        %6390 = vmatpush1.msra.mxu0 %v6389
        %6391 = vmatprep.subr.mxu0 0.0
        %v6392 = vand.u32 %v354, 4294901760
        %v6393 = vsub.f32 %v354, %v6392
        %6394 = vmatpush1.msra.mxu0 %v6393
        %6395 = vmatprep.subr.mxu0 0.0
        %v6396 = vand.u32 %v353, 4294901760
        %v6397 = vsub.f32 %v353, %v6396
        %6398 = vmatpush1.msra.mxu0 %v6397
        %6399 = vmatprep.subr.mxu0 0.0
        %v6400 = vand.u32 %v352, 4294901760
        %v6401 = vsub.f32 %v352, %v6400
        %6402 = vmatpush1.msra.mxu0 %v6401
        %6403 = vmatprep.subr.mxu0 0.0
        %v6404 = vand.u32 %v351, 4294901760
        %v6405 = vsub.f32 %v351, %v6404
        %6406 = vmatpush1.msra.mxu0 %v6405
        %6407 = vmatprep.subr.mxu0 0.0
        %v6408 = vand.u32 %v350, 4294901760
        %v6409 = vsub.f32 %v350, %v6408
        %6410 = vmatpush1.msra.mxu0 %v6409
        %6411 = vmatprep.subr.mxu0 0.0
        %v6412 = vand.u32 %v349, 4294901760
        %v6413 = vsub.f32 %v349, %v6412
        %6414 = vmatpush1.msra.mxu0 %v6413
        %6415 = vmatprep.subr.mxu0 0.0
        %v6416 = vand.u32 %v348, 4294901760
        %v6417 = vsub.f32 %v348, %v6416
        %6418 = vmatpush1.msra.mxu0 %v6417
        %6419 = vmatprep.subr.mxu0 0.0
        %v6420 = vand.u32 %v347, 4294901760
        %v6421 = vsub.f32 %v347, %v6420
        %6422 = vmatpush1.msra.mxu0 %v6421
        %6423 = vmatprep.subr.mxu0 0.0
        %v6424 = vand.u32 %v346, 4294901760
        %v6425 = vsub.f32 %v346, %v6424
        %6426 = vmatpush1.msra.mxu0 %v6425
        %6427 = vmatprep.subr.mxu0 0.0
        %6428 = vmatpush2.msra.mxu0 0.0
        %6429 = vmatprep.subr.mxu0 0.0
        %6430 = vmatpush2.msra.mxu0 0.0
        %6431 = vmatprep.subr.mxu0 0.0
        %6432 = vmatpush2.msra.mxu0 0.0
        %6433 = vmatprep.subr.mxu0 0.0
        %6434 = vmatpush2.msra.mxu0 0.0
        %6435 = vmatprep.subr.mxu0 0.0
        %6436 = vmatpush2.msra.mxu0 0.0
        %6437 = vmatprep.subr.mxu0 0.0
        %6438 = vmatpush2.msra.mxu0 0.0
        %6439 = vmatprep.subr.mxu0 0.0
        %6440 = vmatpush2.msra.mxu0 0.0
        %6441 = vmatprep.subr.mxu0 0.0
        %6442 = vmatpush2.msra.mxu0 0.0
        %6443 = vmatprep.subr.mxu0 0.0
        %6444 = vmatpush2.msra.mxu0 0.0
        %6445 = vmatprep.subr.mxu0 0.0
        %6446 = vmatpush2.msra.mxu0 0.0
        %6447 = vmatprep.subr.mxu0 0.0
        %6448 = vmatpush2.msra.mxu0 0.0
        %6449 = vmatprep.subr.mxu0 0.0
        %6450 = vmatpush2.msra.mxu0 0.0
        %6451 = vmatprep.subr.mxu0 0.0
        %6452 = vmatpush2.msra.mxu0 0.0
        %6453 = vmatprep.subr.mxu0 0.0
        %6454 = vmatpush2.msra.mxu0 0.0
        %6455 = vmatprep.subr.mxu0 0.0
        %6456 = vmatpush2.msra.mxu0 0.0
        %6457 = vmatprep.subr.mxu0 0.0
        %6458 = vmatpush2.msra.mxu0 0.0
        %6459 = vmatprep.mubr.f32.mxu0 0.0
        %v6460 = vand.u32 %v6120, 4294901760
        %v6461 = vsub.f32 %v6120, %v6460
        %6462 = vmatmul.mubr.f32.gmra.mxu0 %v6461
        %v6463 = vpop.f32.mrf.mxu0
        %v6464 = vadd.f32 %v6360, %v6463
        %v6465 = vpop.f32.mrf.mxu0
        %6466 = vdwg.mxu0
        %6467 = vmatprep.subr.mxu0 0.0
        %v6468 = vand.u32 %v361, 4294901760
        %6469 = vmatpush1.msra.mxu0 %v6468
        %6470 = vmatprep.subr.mxu0 0.0
        %v6471 = vand.u32 %v360, 4294901760
        %6472 = vmatpush1.msra.mxu0 %v6471
        %6473 = vmatprep.subr.mxu0 0.0
        %v6474 = vand.u32 %v359, 4294901760
        %6475 = vmatpush1.msra.mxu0 %v6474
        %6476 = vmatprep.subr.mxu0 0.0
        %v6477 = vand.u32 %v358, 4294901760
        %6478 = vmatpush1.msra.mxu0 %v6477
        %6479 = vmatprep.subr.mxu0 0.0
        %v6480 = vand.u32 %v357, 4294901760
        %6481 = vmatpush1.msra.mxu0 %v6480
        %6482 = vmatprep.subr.mxu0 0.0
        %v6483 = vand.u32 %v356, 4294901760
        %6484 = vmatpush1.msra.mxu0 %v6483
        %6485 = vmatprep.subr.mxu0 0.0
        %v6486 = vand.u32 %v355, 4294901760
        %6487 = vmatpush1.msra.mxu0 %v6486
        %6488 = vmatprep.subr.mxu0 0.0
        %v6489 = vand.u32 %v354, 4294901760
        %6490 = vmatpush1.msra.mxu0 %v6489
        %6491 = vmatprep.subr.mxu0 0.0
        %v6492 = vand.u32 %v353, 4294901760
        %6493 = vmatpush1.msra.mxu0 %v6492
        %6494 = vmatprep.subr.mxu0 0.0
        %v6495 = vand.u32 %v352, 4294901760
        %6496 = vmatpush1.msra.mxu0 %v6495
        %6497 = vmatprep.subr.mxu0 0.0
        %v6498 = vand.u32 %v351, 4294901760
        %6499 = vmatpush1.msra.mxu0 %v6498
        %6500 = vmatprep.subr.mxu0 0.0
        %v6501 = vand.u32 %v350, 4294901760
        %6502 = vmatpush1.msra.mxu0 %v6501
        %6503 = vmatprep.subr.mxu0 0.0
        %v6504 = vand.u32 %v349, 4294901760
        %6505 = vmatpush1.msra.mxu0 %v6504
        %6506 = vmatprep.subr.mxu0 0.0
        %v6507 = vand.u32 %v348, 4294901760
        %6508 = vmatpush1.msra.mxu0 %v6507
        %6509 = vmatprep.subr.mxu0 0.0
        %v6510 = vand.u32 %v347, 4294901760
        %6511 = vmatpush1.msra.mxu0 %v6510
        %6512 = vmatprep.subr.mxu0 0.0
        %v6513 = vand.u32 %v346, 4294901760
        %6514 = vmatpush1.msra.mxu0 %v6513
        %6515 = vmatprep.subr.mxu0 0.0
        %6516 = vmatpush2.msra.mxu0 0.0
        %6517 = vmatprep.subr.mxu0 0.0
        %6518 = vmatpush2.msra.mxu0 0.0
        %6519 = vmatprep.subr.mxu0 0.0
        %6520 = vmatpush2.msra.mxu0 0.0
        %6521 = vmatprep.subr.mxu0 0.0
        %6522 = vmatpush2.msra.mxu0 0.0
        %6523 = vmatprep.subr.mxu0 0.0
        %6524 = vmatpush2.msra.mxu0 0.0
        %6525 = vmatprep.subr.mxu0 0.0
        %6526 = vmatpush2.msra.mxu0 0.0
        %6527 = vmatprep.subr.mxu0 0.0
        %6528 = vmatpush2.msra.mxu0 0.0
        %6529 = vmatprep.subr.mxu0 0.0
        %6530 = vmatpush2.msra.mxu0 0.0
        %6531 = vmatprep.subr.mxu0 0.0
        %6532 = vmatpush2.msra.mxu0 0.0
        %6533 = vmatprep.subr.mxu0 0.0
        %6534 = vmatpush2.msra.mxu0 0.0
        %6535 = vmatprep.subr.mxu0 0.0
        %6536 = vmatpush2.msra.mxu0 0.0
        %6537 = vmatprep.subr.mxu0 0.0
        %6538 = vmatpush2.msra.mxu0 0.0
        %6539 = vmatprep.subr.mxu0 0.0
        %6540 = vmatpush2.msra.mxu0 0.0
        %6541 = vmatprep.subr.mxu0 0.0
        %6542 = vmatpush2.msra.mxu0 0.0
        %6543 = vmatprep.subr.mxu0 0.0
        %6544 = vmatpush2.msra.mxu0 0.0
        %6545 = vmatprep.subr.mxu0 0.0
        %6546 = vmatpush2.msra.mxu0 0.0
        %6547 = vmatprep.mubr.f32.mxu0 0.0
        %v6548 = vand.u32 %v6120, 4294901760
        %v6549 = vsub.f32 %v6120, %v6548
        %v6550 = vand.u32 %v6549, 4294901760
        %6551 = vmatmul.mubr.f32.gmra.mxu0 %v6550
        %v6552 = vpop.f32.mrf.mxu0
        %v6553 = vadd.f32 %v6464, %v6552
        %v6554 = vpop.f32.mrf.mxu0
        %6555 = vdwg.mxu0
        %6556 = vmatprep.subr.mxu0 0.0
        %v6557 = vand.u32 %v361, 4294901760
        %v6558 = vsub.f32 %v361, %v6557
        %v6559 = vand.u32 %v6558, 4294901760
        %6560 = vmatpush1.msra.mxu0 %v6559
        %6561 = vmatprep.subr.mxu0 0.0
        %v6562 = vand.u32 %v360, 4294901760
        %v6563 = vsub.f32 %v360, %v6562
        %v6564 = vand.u32 %v6563, 4294901760
        %6565 = vmatpush1.msra.mxu0 %v6564
        %6566 = vmatprep.subr.mxu0 0.0
        %v6567 = vand.u32 %v359, 4294901760
        %v6568 = vsub.f32 %v359, %v6567
        %v6569 = vand.u32 %v6568, 4294901760
        %6570 = vmatpush1.msra.mxu0 %v6569
        %6571 = vmatprep.subr.mxu0 0.0
        %v6572 = vand.u32 %v358, 4294901760
        %v6573 = vsub.f32 %v358, %v6572
        %v6574 = vand.u32 %v6573, 4294901760
        %6575 = vmatpush1.msra.mxu0 %v6574
        %6576 = vmatprep.subr.mxu0 0.0
        %v6577 = vand.u32 %v357, 4294901760
        %v6578 = vsub.f32 %v357, %v6577
        %v6579 = vand.u32 %v6578, 4294901760
        %6580 = vmatpush1.msra.mxu0 %v6579
        %6581 = vmatprep.subr.mxu0 0.0
        %v6582 = vand.u32 %v356, 4294901760
        %v6583 = vsub.f32 %v356, %v6582
        %v6584 = vand.u32 %v6583, 4294901760
        %6585 = vmatpush1.msra.mxu0 %v6584
        %6586 = vmatprep.subr.mxu0 0.0
        %v6587 = vand.u32 %v355, 4294901760
        %v6588 = vsub.f32 %v355, %v6587
        %v6589 = vand.u32 %v6588, 4294901760
        %6590 = vmatpush1.msra.mxu0 %v6589
        %6591 = vmatprep.subr.mxu0 0.0
        %v6592 = vand.u32 %v354, 4294901760
        %v6593 = vsub.f32 %v354, %v6592
        %v6594 = vand.u32 %v6593, 4294901760
        %6595 = vmatpush1.msra.mxu0 %v6594
        %6596 = vmatprep.subr.mxu0 0.0
        %v6597 = vand.u32 %v353, 4294901760
        %v6598 = vsub.f32 %v353, %v6597
        %v6599 = vand.u32 %v6598, 4294901760
        %6600 = vmatpush1.msra.mxu0 %v6599
        %6601 = vmatprep.subr.mxu0 0.0
        %v6602 = vand.u32 %v352, 4294901760
        %v6603 = vsub.f32 %v352, %v6602
        %v6604 = vand.u32 %v6603, 4294901760
        %6605 = vmatpush1.msra.mxu0 %v6604
        %6606 = vmatprep.subr.mxu0 0.0
        %v6607 = vand.u32 %v351, 4294901760
        %v6608 = vsub.f32 %v351, %v6607
        %v6609 = vand.u32 %v6608, 4294901760
        %6610 = vmatpush1.msra.mxu0 %v6609
        %6611 = vmatprep.subr.mxu0 0.0
        %v6612 = vand.u32 %v350, 4294901760
        %v6613 = vsub.f32 %v350, %v6612
        %v6614 = vand.u32 %v6613, 4294901760
        %6615 = vmatpush1.msra.mxu0 %v6614
        %6616 = vmatprep.subr.mxu0 0.0
        %v6617 = vand.u32 %v349, 4294901760
        %v6618 = vsub.f32 %v349, %v6617
        %v6619 = vand.u32 %v6618, 4294901760
        %6620 = vmatpush1.msra.mxu0 %v6619
        %6621 = vmatprep.subr.mxu0 0.0
        %v6622 = vand.u32 %v348, 4294901760
        %v6623 = vsub.f32 %v348, %v6622
        %v6624 = vand.u32 %v6623, 4294901760
        %6625 = vmatpush1.msra.mxu0 %v6624
        %6626 = vmatprep.subr.mxu0 0.0
        %v6627 = vand.u32 %v347, 4294901760
        %v6628 = vsub.f32 %v347, %v6627
        %v6629 = vand.u32 %v6628, 4294901760
        %6630 = vmatpush1.msra.mxu0 %v6629
        %6631 = vmatprep.subr.mxu0 0.0
        %v6632 = vand.u32 %v346, 4294901760
        %v6633 = vsub.f32 %v346, %v6632
        %v6634 = vand.u32 %v6633, 4294901760
        %6635 = vmatpush1.msra.mxu0 %v6634
        %6636 = vmatprep.subr.mxu0 0.0
        %6637 = vmatpush2.msra.mxu0 0.0
        %6638 = vmatprep.subr.mxu0 0.0
        %6639 = vmatpush2.msra.mxu0 0.0
        %6640 = vmatprep.subr.mxu0 0.0
        %6641 = vmatpush2.msra.mxu0 0.0
        %6642 = vmatprep.subr.mxu0 0.0
        %6643 = vmatpush2.msra.mxu0 0.0
        %6644 = vmatprep.subr.mxu0 0.0
        %6645 = vmatpush2.msra.mxu0 0.0
        %6646 = vmatprep.subr.mxu0 0.0
        %6647 = vmatpush2.msra.mxu0 0.0
        %6648 = vmatprep.subr.mxu0 0.0
        %6649 = vmatpush2.msra.mxu0 0.0
        %6650 = vmatprep.subr.mxu0 0.0
        %6651 = vmatpush2.msra.mxu0 0.0
        %6652 = vmatprep.subr.mxu0 0.0
        %6653 = vmatpush2.msra.mxu0 0.0
        %6654 = vmatprep.subr.mxu0 0.0
        %6655 = vmatpush2.msra.mxu0 0.0
        %6656 = vmatprep.subr.mxu0 0.0
        %6657 = vmatpush2.msra.mxu0 0.0
        %6658 = vmatprep.subr.mxu0 0.0
        %6659 = vmatpush2.msra.mxu0 0.0
        %6660 = vmatprep.subr.mxu0 0.0
        %6661 = vmatpush2.msra.mxu0 0.0
        %6662 = vmatprep.subr.mxu0 0.0
        %6663 = vmatpush2.msra.mxu0 0.0
        %6664 = vmatprep.subr.mxu0 0.0
        %6665 = vmatpush2.msra.mxu0 0.0
        %6666 = vmatprep.subr.mxu0 0.0
        %6667 = vmatpush2.msra.mxu0 0.0
        %6668 = vmatprep.mubr.f32.mxu0 0.0
        %v6669 = vand.u32 %v6120, 4294901760
        %6670 = vmatmul.mubr.f32.gmra.mxu0 %v6669
        %v6671 = vpop.f32.mrf.mxu0
        %v6672 = vadd.f32 %v6553, %v6671
        %v6673 = vpop.f32.mrf.mxu0
        %6674 = vdwg.mxu0
        %6675 = vmatprep.subr.mxu0 0.0
        %v6676 = vand.u32 %v361, 4294901760
        %6677 = vmatpush1.msra.mxu0 %v6676
        %6678 = vmatprep.subr.mxu0 0.0
        %v6679 = vand.u32 %v360, 4294901760
        %6680 = vmatpush1.msra.mxu0 %v6679
        %6681 = vmatprep.subr.mxu0 0.0
        %v6682 = vand.u32 %v359, 4294901760
        %6683 = vmatpush1.msra.mxu0 %v6682
        %6684 = vmatprep.subr.mxu0 0.0
        %v6685 = vand.u32 %v358, 4294901760
        %6686 = vmatpush1.msra.mxu0 %v6685
        %6687 = vmatprep.subr.mxu0 0.0
        %v6688 = vand.u32 %v357, 4294901760
        %6689 = vmatpush1.msra.mxu0 %v6688
        %6690 = vmatprep.subr.mxu0 0.0
        %v6691 = vand.u32 %v356, 4294901760
        %6692 = vmatpush1.msra.mxu0 %v6691
        %6693 = vmatprep.subr.mxu0 0.0
        %v6694 = vand.u32 %v355, 4294901760
        %6695 = vmatpush1.msra.mxu0 %v6694
        %6696 = vmatprep.subr.mxu0 0.0
        %v6697 = vand.u32 %v354, 4294901760
        %6698 = vmatpush1.msra.mxu0 %v6697
        %6699 = vmatprep.subr.mxu0 0.0
        %v6700 = vand.u32 %v353, 4294901760
        %6701 = vmatpush1.msra.mxu0 %v6700
        %6702 = vmatprep.subr.mxu0 0.0
        %v6703 = vand.u32 %v352, 4294901760
        %6704 = vmatpush1.msra.mxu0 %v6703
        %6705 = vmatprep.subr.mxu0 0.0
        %v6706 = vand.u32 %v351, 4294901760
        %6707 = vmatpush1.msra.mxu0 %v6706
        %6708 = vmatprep.subr.mxu0 0.0
        %v6709 = vand.u32 %v350, 4294901760
        %6710 = vmatpush1.msra.mxu0 %v6709
        %6711 = vmatprep.subr.mxu0 0.0
        %v6712 = vand.u32 %v349, 4294901760
        %6713 = vmatpush1.msra.mxu0 %v6712
        %6714 = vmatprep.subr.mxu0 0.0
        %v6715 = vand.u32 %v348, 4294901760
        %6716 = vmatpush1.msra.mxu0 %v6715
        %6717 = vmatprep.subr.mxu0 0.0
        %v6718 = vand.u32 %v347, 4294901760
        %6719 = vmatpush1.msra.mxu0 %v6718
        %6720 = vmatprep.subr.mxu0 0.0
        %v6721 = vand.u32 %v346, 4294901760
        %6722 = vmatpush1.msra.mxu0 %v6721
        %6723 = vmatprep.subr.mxu0 0.0
        %6724 = vmatpush2.msra.mxu0 0.0
        %6725 = vmatprep.subr.mxu0 0.0
        %6726 = vmatpush2.msra.mxu0 0.0
        %6727 = vmatprep.subr.mxu0 0.0
        %6728 = vmatpush2.msra.mxu0 0.0
        %6729 = vmatprep.subr.mxu0 0.0
        %6730 = vmatpush2.msra.mxu0 0.0
        %6731 = vmatprep.subr.mxu0 0.0
        %6732 = vmatpush2.msra.mxu0 0.0
        %6733 = vmatprep.subr.mxu0 0.0
        %6734 = vmatpush2.msra.mxu0 0.0
        %6735 = vmatprep.subr.mxu0 0.0
        %6736 = vmatpush2.msra.mxu0 0.0
        %6737 = vmatprep.subr.mxu0 0.0
        %6738 = vmatpush2.msra.mxu0 0.0
        %6739 = vmatprep.subr.mxu0 0.0
        %6740 = vmatpush2.msra.mxu0 0.0
        %6741 = vmatprep.subr.mxu0 0.0
        %6742 = vmatpush2.msra.mxu0 0.0
        %6743 = vmatprep.subr.mxu0 0.0
        %6744 = vmatpush2.msra.mxu0 0.0
        %6745 = vmatprep.subr.mxu0 0.0
        %6746 = vmatpush2.msra.mxu0 0.0
        %6747 = vmatprep.subr.mxu0 0.0
        %6748 = vmatpush2.msra.mxu0 0.0
        %6749 = vmatprep.subr.mxu0 0.0
        %6750 = vmatpush2.msra.mxu0 0.0
        %6751 = vmatprep.subr.mxu0 0.0
        %6752 = vmatpush2.msra.mxu0 0.0
        %6753 = vmatprep.subr.mxu0 0.0
        %6754 = vmatpush2.msra.mxu0 0.0
        %6755 = vmatprep.mubr.f32.mxu0 0.0
        %v6756 = vand.u32 %v6120, 4294901760
        %6757 = vmatmul.mubr.f32.gmra.mxu0 %v6756
        %v6758 = vpop.f32.mrf.mxu0
        %v6759 = vadd.f32 %v6672, %v6758
        %v6760 = vpop.f32.mrf.mxu0
        %6761 = vdwg.mxu0
        %v6762 = vrsqrt.pop %v6759
        %v6764 = vsel %vm1090, %v6762, 0
        %6766 = vmatprep.subr.mxu0 0.0
        %6767 = vmatpush1.msra.mxu0 0.0
        %6768 = vmatprep.subr.mxu0 0.0
        %6769 = vmatpush1.msra.mxu0 0.0
        %6770 = vmatprep.subr.mxu0 0.0
        %6771 = vmatpush1.msra.mxu0 0.0
        %6772 = vmatprep.subr.mxu0 0.0
        %6773 = vmatpush1.msra.mxu0 0.0
        %6774 = vmatprep.subr.mxu0 0.0
        %6775 = vmatpush1.msra.mxu0 0.0
        %6776 = vmatprep.subr.mxu0 0.0
        %6777 = vmatpush1.msra.mxu0 0.0
        %6778 = vmatprep.subr.mxu0 0.0
        %6779 = vmatpush1.msra.mxu0 0.0
        %6780 = vmatprep.subr.mxu0 0.0
        %6781 = vmatpush1.msra.mxu0 0.0
        %6782 = vmatprep.subr.mxu0 0.0
        %6783 = vmatpush1.msra.mxu0 0.0
        %6784 = vmatprep.subr.mxu0 0.0
        %6785 = vmatpush1.msra.mxu0 0.0
        %6786 = vmatprep.subr.mxu0 0.0
        %6787 = vmatpush1.msra.mxu0 0.0
        %6788 = vmatprep.subr.mxu0 0.0
        %6789 = vmatpush1.msra.mxu0 0.0
        %6790 = vmatprep.subr.mxu0 0.0
        %6791 = vmatpush1.msra.mxu0 0.0
        %6792 = vmatprep.subr.mxu0 0.0
        %6793 = vmatpush1.msra.mxu0 0.0
        %6794 = vmatprep.subr.mxu0 0.0
        %6795 = vmatpush1.msra.mxu0 0.0
        %6796 = vmatprep.subr.mxu0 0.0
        %v6797 = vand.u32 %v363, 4294901760
        %6798 = vmatpush1.msra.mxu0 %v6797
        %6799 = vmatprep.subr.mxu0 0.0
        %6800 = vmatpush2.msra.mxu0 0.0
        %6801 = vmatprep.subr.mxu0 0.0
        %6802 = vmatpush2.msra.mxu0 0.0
        %6803 = vmatprep.subr.mxu0 0.0
        %6804 = vmatpush2.msra.mxu0 0.0
        %6805 = vmatprep.subr.mxu0 0.0
        %6806 = vmatpush2.msra.mxu0 0.0
        %6807 = vmatprep.subr.mxu0 0.0
        %6808 = vmatpush2.msra.mxu0 0.0
        %6809 = vmatprep.subr.mxu0 0.0
        %6810 = vmatpush2.msra.mxu0 0.0
        %6811 = vmatprep.subr.mxu0 0.0
        %6812 = vmatpush2.msra.mxu0 0.0
        %6813 = vmatprep.subr.mxu0 0.0
        %6814 = vmatpush2.msra.mxu0 0.0
        %6815 = vmatprep.subr.mxu0 0.0
        %6816 = vmatpush2.msra.mxu0 0.0
        %6817 = vmatprep.subr.mxu0 0.0
        %6818 = vmatpush2.msra.mxu0 0.0
        %6819 = vmatprep.subr.mxu0 0.0
        %6820 = vmatpush2.msra.mxu0 0.0
        %6821 = vmatprep.subr.mxu0 0.0
        %6822 = vmatpush2.msra.mxu0 0.0
        %6823 = vmatprep.subr.mxu0 0.0
        %6824 = vmatpush2.msra.mxu0 0.0
        %6825 = vmatprep.subr.mxu0 0.0
        %6826 = vmatpush2.msra.mxu0 0.0
        %6827 = vmatprep.subr.mxu0 0.0
        %6828 = vmatpush2.msra.mxu0 0.0
        %6829 = vmatprep.subr.mxu0 0.0
        %6830 = vmatpush2.msra.mxu0 0.0
        %6831 = vmatprep.mubr.f32.mxu0 0.0
        %v6832 = vand.u32 %v6764, 4294901760
        %v6833 = vsub.f32 %v6764, %v6832
        %v6834 = vand.u32 %v6833, 4294901760
        %v6835 = vsub.f32 %v6833, %v6834
        %v6836 = vand.u32 %v6835, 4294901760
        %6837 = vmatmul.mubr.f32.gmra.mxu0 %v6836
        %v6838 = vpop.f32.mrf.mxu0
        %v6839 = vadd.f32 0.0, %v6838
        %v6840 = vpop.f32.mrf.mxu0
        %6841 = vdwg.mxu0
        %6842 = vmatprep.subr.mxu0 0.0
        %6843 = vmatpush1.msra.mxu0 0.0
        %6844 = vmatprep.subr.mxu0 0.0
        %6845 = vmatpush1.msra.mxu0 0.0
        %6846 = vmatprep.subr.mxu0 0.0
        %6847 = vmatpush1.msra.mxu0 0.0
        %6848 = vmatprep.subr.mxu0 0.0
        %6849 = vmatpush1.msra.mxu0 0.0
        %6850 = vmatprep.subr.mxu0 0.0
        %6851 = vmatpush1.msra.mxu0 0.0
        %6852 = vmatprep.subr.mxu0 0.0
        %6853 = vmatpush1.msra.mxu0 0.0
        %6854 = vmatprep.subr.mxu0 0.0
        %6855 = vmatpush1.msra.mxu0 0.0
        %6856 = vmatprep.subr.mxu0 0.0
        %6857 = vmatpush1.msra.mxu0 0.0
        %6858 = vmatprep.subr.mxu0 0.0
        %6859 = vmatpush1.msra.mxu0 0.0
        %6860 = vmatprep.subr.mxu0 0.0
        %6861 = vmatpush1.msra.mxu0 0.0
        %6862 = vmatprep.subr.mxu0 0.0
        %6863 = vmatpush1.msra.mxu0 0.0
        %6864 = vmatprep.subr.mxu0 0.0
        %6865 = vmatpush1.msra.mxu0 0.0
        %6866 = vmatprep.subr.mxu0 0.0
        %6867 = vmatpush1.msra.mxu0 0.0
        %6868 = vmatprep.subr.mxu0 0.0
        %6869 = vmatpush1.msra.mxu0 0.0
        %6870 = vmatprep.subr.mxu0 0.0
        %6871 = vmatpush1.msra.mxu0 0.0
        %6872 = vmatprep.subr.mxu0 0.0
        %v6873 = vand.u32 %v363, 4294901760
        %v6874 = vsub.f32 %v363, %v6873
        %v6875 = vand.u32 %v6874, 4294901760
        %v6876 = vsub.f32 %v6874, %v6875
        %v6877 = vand.u32 %v6876, 4294901760
        %6878 = vmatpush1.msra.mxu0 %v6877
        %6879 = vmatprep.subr.mxu0 0.0
        %6880 = vmatpush2.msra.mxu0 0.0
        %6881 = vmatprep.subr.mxu0 0.0
        %6882 = vmatpush2.msra.mxu0 0.0
        %6883 = vmatprep.subr.mxu0 0.0
        %6884 = vmatpush2.msra.mxu0 0.0
        %6885 = vmatprep.subr.mxu0 0.0
        %6886 = vmatpush2.msra.mxu0 0.0
        %6887 = vmatprep.subr.mxu0 0.0
        %6888 = vmatpush2.msra.mxu0 0.0
        %6889 = vmatprep.subr.mxu0 0.0
        %6890 = vmatpush2.msra.mxu0 0.0
        %6891 = vmatprep.subr.mxu0 0.0
        %6892 = vmatpush2.msra.mxu0 0.0
        %6893 = vmatprep.subr.mxu0 0.0
        %6894 = vmatpush2.msra.mxu0 0.0
        %6895 = vmatprep.subr.mxu0 0.0
        %6896 = vmatpush2.msra.mxu0 0.0
        %6897 = vmatprep.subr.mxu0 0.0
        %6898 = vmatpush2.msra.mxu0 0.0
        %6899 = vmatprep.subr.mxu0 0.0
        %6900 = vmatpush2.msra.mxu0 0.0
        %6901 = vmatprep.subr.mxu0 0.0
        %6902 = vmatpush2.msra.mxu0 0.0
        %6903 = vmatprep.subr.mxu0 0.0
        %6904 = vmatpush2.msra.mxu0 0.0
        %6905 = vmatprep.subr.mxu0 0.0
        %6906 = vmatpush2.msra.mxu0 0.0
        %6907 = vmatprep.subr.mxu0 0.0
        %6908 = vmatpush2.msra.mxu0 0.0
        %6909 = vmatprep.subr.mxu0 0.0
        %6910 = vmatpush2.msra.mxu0 0.0
        %6911 = vmatprep.mubr.f32.mxu0 0.0
        %v6912 = vand.u32 %v6764, 4294901760
        %6913 = vmatmul.mubr.f32.gmra.mxu0 %v6912
        %v6914 = vpop.f32.mrf.mxu0
        %v6915 = vadd.f32 %v6839, %v6914
        %v6916 = vpop.f32.mrf.mxu0
        %6917 = vdwg.mxu0
        %6918 = vmatprep.subr.mxu0 0.0
        %6919 = vmatpush1.msra.mxu0 0.0
        %6920 = vmatprep.subr.mxu0 0.0
        %6921 = vmatpush1.msra.mxu0 0.0
        %6922 = vmatprep.subr.mxu0 0.0
        %6923 = vmatpush1.msra.mxu0 0.0
        %6924 = vmatprep.subr.mxu0 0.0
        %6925 = vmatpush1.msra.mxu0 0.0
        %6926 = vmatprep.subr.mxu0 0.0
        %6927 = vmatpush1.msra.mxu0 0.0
        %6928 = vmatprep.subr.mxu0 0.0
        %6929 = vmatpush1.msra.mxu0 0.0
        %6930 = vmatprep.subr.mxu0 0.0
        %6931 = vmatpush1.msra.mxu0 0.0
        %6932 = vmatprep.subr.mxu0 0.0
        %6933 = vmatpush1.msra.mxu0 0.0
        %6934 = vmatprep.subr.mxu0 0.0
        %6935 = vmatpush1.msra.mxu0 0.0
        %6936 = vmatprep.subr.mxu0 0.0
        %6937 = vmatpush1.msra.mxu0 0.0
        %6938 = vmatprep.subr.mxu0 0.0
        %6939 = vmatpush1.msra.mxu0 0.0
        %6940 = vmatprep.subr.mxu0 0.0
        %6941 = vmatpush1.msra.mxu0 0.0
        %6942 = vmatprep.subr.mxu0 0.0
        %6943 = vmatpush1.msra.mxu0 0.0
        %6944 = vmatprep.subr.mxu0 0.0
        %6945 = vmatpush1.msra.mxu0 0.0
        %6946 = vmatprep.subr.mxu0 0.0
        %6947 = vmatpush1.msra.mxu0 0.0
        %6948 = vmatprep.subr.mxu0 0.0
        %v6949 = vand.u32 %v363, 4294901760
        %v6950 = vsub.f32 %v363, %v6949
        %6951 = vmatpush1.msra.mxu0 %v6950
        %6952 = vmatprep.subr.mxu0 0.0
        %6953 = vmatpush2.msra.mxu0 0.0
        %6954 = vmatprep.subr.mxu0 0.0
        %6955 = vmatpush2.msra.mxu0 0.0
        %6956 = vmatprep.subr.mxu0 0.0
        %6957 = vmatpush2.msra.mxu0 0.0
        %6958 = vmatprep.subr.mxu0 0.0
        %6959 = vmatpush2.msra.mxu0 0.0
        %6960 = vmatprep.subr.mxu0 0.0
        %6961 = vmatpush2.msra.mxu0 0.0
        %6962 = vmatprep.subr.mxu0 0.0
        %6963 = vmatpush2.msra.mxu0 0.0
        %6964 = vmatprep.subr.mxu0 0.0
        %6965 = vmatpush2.msra.mxu0 0.0
        %6966 = vmatprep.subr.mxu0 0.0
        %6967 = vmatpush2.msra.mxu0 0.0
        %6968 = vmatprep.subr.mxu0 0.0
        %6969 = vmatpush2.msra.mxu0 0.0
        %6970 = vmatprep.subr.mxu0 0.0
        %6971 = vmatpush2.msra.mxu0 0.0
        %6972 = vmatprep.subr.mxu0 0.0
        %6973 = vmatpush2.msra.mxu0 0.0
        %6974 = vmatprep.subr.mxu0 0.0
        %6975 = vmatpush2.msra.mxu0 0.0
        %6976 = vmatprep.subr.mxu0 0.0
        %6977 = vmatpush2.msra.mxu0 0.0
        %6978 = vmatprep.subr.mxu0 0.0
        %6979 = vmatpush2.msra.mxu0 0.0
        %6980 = vmatprep.subr.mxu0 0.0
        %6981 = vmatpush2.msra.mxu0 0.0
        %6982 = vmatprep.subr.mxu0 0.0
        %6983 = vmatpush2.msra.mxu0 0.0
        %6984 = vmatprep.mubr.f32.mxu0 0.0
        %v6985 = vand.u32 %v6764, 4294901760
        %v6986 = vsub.f32 %v6764, %v6985
        %6987 = vmatmul.mubr.f32.gmra.mxu0 %v6986
        %v6988 = vpop.f32.mrf.mxu0
        %v6989 = vadd.f32 %v6915, %v6988
        %v6990 = vpop.f32.mrf.mxu0
        %6991 = vdwg.mxu0
        %6992 = vmatprep.subr.mxu0 0.0
        %6993 = vmatpush1.msra.mxu0 0.0
        %6994 = vmatprep.subr.mxu0 0.0
        %6995 = vmatpush1.msra.mxu0 0.0
        %6996 = vmatprep.subr.mxu0 0.0
        %6997 = vmatpush1.msra.mxu0 0.0
        %6998 = vmatprep.subr.mxu0 0.0
        %6999 = vmatpush1.msra.mxu0 0.0
        %7000 = vmatprep.subr.mxu0 0.0
        %7001 = vmatpush1.msra.mxu0 0.0
        %7002 = vmatprep.subr.mxu0 0.0
        %7003 = vmatpush1.msra.mxu0 0.0
        %7004 = vmatprep.subr.mxu0 0.0
        %7005 = vmatpush1.msra.mxu0 0.0
        %7006 = vmatprep.subr.mxu0 0.0
        %7007 = vmatpush1.msra.mxu0 0.0
        %7008 = vmatprep.subr.mxu0 0.0
        %7009 = vmatpush1.msra.mxu0 0.0
        %7010 = vmatprep.subr.mxu0 0.0
        %7011 = vmatpush1.msra.mxu0 0.0
        %7012 = vmatprep.subr.mxu0 0.0
        %7013 = vmatpush1.msra.mxu0 0.0
        %7014 = vmatprep.subr.mxu0 0.0
        %7015 = vmatpush1.msra.mxu0 0.0
        %7016 = vmatprep.subr.mxu0 0.0
        %7017 = vmatpush1.msra.mxu0 0.0
        %7018 = vmatprep.subr.mxu0 0.0
        %7019 = vmatpush1.msra.mxu0 0.0
        %7020 = vmatprep.subr.mxu0 0.0
        %7021 = vmatpush1.msra.mxu0 0.0
        %7022 = vmatprep.subr.mxu0 0.0
        %v7023 = vand.u32 %v363, 4294901760
        %7024 = vmatpush1.msra.mxu0 %v7023
        %7025 = vmatprep.subr.mxu0 0.0
        %7026 = vmatpush2.msra.mxu0 0.0
        %7027 = vmatprep.subr.mxu0 0.0
        %7028 = vmatpush2.msra.mxu0 0.0
        %7029 = vmatprep.subr.mxu0 0.0
        %7030 = vmatpush2.msra.mxu0 0.0
        %7031 = vmatprep.subr.mxu0 0.0
        %7032 = vmatpush2.msra.mxu0 0.0
        %7033 = vmatprep.subr.mxu0 0.0
        %7034 = vmatpush2.msra.mxu0 0.0
        %7035 = vmatprep.subr.mxu0 0.0
        %7036 = vmatpush2.msra.mxu0 0.0
        %7037 = vmatprep.subr.mxu0 0.0
        %7038 = vmatpush2.msra.mxu0 0.0
        %7039 = vmatprep.subr.mxu0 0.0
        %7040 = vmatpush2.msra.mxu0 0.0
        %7041 = vmatprep.subr.mxu0 0.0
        %7042 = vmatpush2.msra.mxu0 0.0
        %7043 = vmatprep.subr.mxu0 0.0
        %7044 = vmatpush2.msra.mxu0 0.0
        %7045 = vmatprep.subr.mxu0 0.0
        %7046 = vmatpush2.msra.mxu0 0.0
        %7047 = vmatprep.subr.mxu0 0.0
        %7048 = vmatpush2.msra.mxu0 0.0
        %7049 = vmatprep.subr.mxu0 0.0
        %7050 = vmatpush2.msra.mxu0 0.0
        %7051 = vmatprep.subr.mxu0 0.0
        %7052 = vmatpush2.msra.mxu0 0.0
        %7053 = vmatprep.subr.mxu0 0.0
        %7054 = vmatpush2.msra.mxu0 0.0
        %7055 = vmatprep.subr.mxu0 0.0
        %7056 = vmatpush2.msra.mxu0 0.0
        %7057 = vmatprep.mubr.f32.mxu0 0.0
        %v7058 = vand.u32 %v6764, 4294901760
        %v7059 = vsub.f32 %v6764, %v7058
        %v7060 = vand.u32 %v7059, 4294901760
        %7061 = vmatmul.mubr.f32.gmra.mxu0 %v7060
        %v7062 = vpop.f32.mrf.mxu0
        %v7063 = vadd.f32 %v6989, %v7062
        %v7064 = vpop.f32.mrf.mxu0
        %7065 = vdwg.mxu0
        %7066 = vmatprep.subr.mxu0 0.0
        %7067 = vmatpush1.msra.mxu0 0.0
        %7068 = vmatprep.subr.mxu0 0.0
        %7069 = vmatpush1.msra.mxu0 0.0
        %7070 = vmatprep.subr.mxu0 0.0
        %7071 = vmatpush1.msra.mxu0 0.0
        %7072 = vmatprep.subr.mxu0 0.0
        %7073 = vmatpush1.msra.mxu0 0.0
        %7074 = vmatprep.subr.mxu0 0.0
        %7075 = vmatpush1.msra.mxu0 0.0
        %7076 = vmatprep.subr.mxu0 0.0
        %7077 = vmatpush1.msra.mxu0 0.0
        %7078 = vmatprep.subr.mxu0 0.0
        %7079 = vmatpush1.msra.mxu0 0.0
        %7080 = vmatprep.subr.mxu0 0.0
        %7081 = vmatpush1.msra.mxu0 0.0
        %7082 = vmatprep.subr.mxu0 0.0
        %7083 = vmatpush1.msra.mxu0 0.0
        %7084 = vmatprep.subr.mxu0 0.0
        %7085 = vmatpush1.msra.mxu0 0.0
        %7086 = vmatprep.subr.mxu0 0.0
        %7087 = vmatpush1.msra.mxu0 0.0
        %7088 = vmatprep.subr.mxu0 0.0
        %7089 = vmatpush1.msra.mxu0 0.0
        %7090 = vmatprep.subr.mxu0 0.0
        %7091 = vmatpush1.msra.mxu0 0.0
        %7092 = vmatprep.subr.mxu0 0.0
        %7093 = vmatpush1.msra.mxu0 0.0
        %7094 = vmatprep.subr.mxu0 0.0
        %7095 = vmatpush1.msra.mxu0 0.0
        %7096 = vmatprep.subr.mxu0 0.0
        %v7097 = vand.u32 %v363, 4294901760
        %v7098 = vsub.f32 %v363, %v7097
        %v7099 = vand.u32 %v7098, 4294901760
        %7100 = vmatpush1.msra.mxu0 %v7099
        %7101 = vmatprep.subr.mxu0 0.0
        %7102 = vmatpush2.msra.mxu0 0.0
        %7103 = vmatprep.subr.mxu0 0.0
        %7104 = vmatpush2.msra.mxu0 0.0
        %7105 = vmatprep.subr.mxu0 0.0
        %7106 = vmatpush2.msra.mxu0 0.0
        %7107 = vmatprep.subr.mxu0 0.0
        %7108 = vmatpush2.msra.mxu0 0.0
        %7109 = vmatprep.subr.mxu0 0.0
        %7110 = vmatpush2.msra.mxu0 0.0
        %7111 = vmatprep.subr.mxu0 0.0
        %7112 = vmatpush2.msra.mxu0 0.0
        %7113 = vmatprep.subr.mxu0 0.0
        %7114 = vmatpush2.msra.mxu0 0.0
        %7115 = vmatprep.subr.mxu0 0.0
        %7116 = vmatpush2.msra.mxu0 0.0
        %7117 = vmatprep.subr.mxu0 0.0
        %7118 = vmatpush2.msra.mxu0 0.0
        %7119 = vmatprep.subr.mxu0 0.0
        %7120 = vmatpush2.msra.mxu0 0.0
        %7121 = vmatprep.subr.mxu0 0.0
        %7122 = vmatpush2.msra.mxu0 0.0
        %7123 = vmatprep.subr.mxu0 0.0
        %7124 = vmatpush2.msra.mxu0 0.0
        %7125 = vmatprep.subr.mxu0 0.0
        %7126 = vmatpush2.msra.mxu0 0.0
        %7127 = vmatprep.subr.mxu0 0.0
        %7128 = vmatpush2.msra.mxu0 0.0
        %7129 = vmatprep.subr.mxu0 0.0
        %7130 = vmatpush2.msra.mxu0 0.0
        %7131 = vmatprep.subr.mxu0 0.0
        %7132 = vmatpush2.msra.mxu0 0.0
        %7133 = vmatprep.mubr.f32.mxu0 0.0
        %v7134 = vand.u32 %v6764, 4294901760
        %7135 = vmatmul.mubr.f32.gmra.mxu0 %v7134
        %v7136 = vpop.f32.mrf.mxu0
        %v7137 = vadd.f32 %v7063, %v7136
        %v7138 = vpop.f32.mrf.mxu0
        %7139 = vdwg.mxu0
        %7140 = vmatprep.subr.mxu0 0.0
        %7141 = vmatpush1.msra.mxu0 0.0
        %7142 = vmatprep.subr.mxu0 0.0
        %7143 = vmatpush1.msra.mxu0 0.0
        %7144 = vmatprep.subr.mxu0 0.0
        %7145 = vmatpush1.msra.mxu0 0.0
        %7146 = vmatprep.subr.mxu0 0.0
        %7147 = vmatpush1.msra.mxu0 0.0
        %7148 = vmatprep.subr.mxu0 0.0
        %7149 = vmatpush1.msra.mxu0 0.0
        %7150 = vmatprep.subr.mxu0 0.0
        %7151 = vmatpush1.msra.mxu0 0.0
        %7152 = vmatprep.subr.mxu0 0.0
        %7153 = vmatpush1.msra.mxu0 0.0
        %7154 = vmatprep.subr.mxu0 0.0
        %7155 = vmatpush1.msra.mxu0 0.0
        %7156 = vmatprep.subr.mxu0 0.0
        %7157 = vmatpush1.msra.mxu0 0.0
        %7158 = vmatprep.subr.mxu0 0.0
        %7159 = vmatpush1.msra.mxu0 0.0
        %7160 = vmatprep.subr.mxu0 0.0
        %7161 = vmatpush1.msra.mxu0 0.0
        %7162 = vmatprep.subr.mxu0 0.0
        %7163 = vmatpush1.msra.mxu0 0.0
        %7164 = vmatprep.subr.mxu0 0.0
        %7165 = vmatpush1.msra.mxu0 0.0
        %7166 = vmatprep.subr.mxu0 0.0
        %7167 = vmatpush1.msra.mxu0 0.0
        %7168 = vmatprep.subr.mxu0 0.0
        %7169 = vmatpush1.msra.mxu0 0.0
        %7170 = vmatprep.subr.mxu0 0.0
        %v7171 = vand.u32 %v363, 4294901760
        %7172 = vmatpush1.msra.mxu0 %v7171
        %7173 = vmatprep.subr.mxu0 0.0
        %7174 = vmatpush2.msra.mxu0 0.0
        %7175 = vmatprep.subr.mxu0 0.0
        %7176 = vmatpush2.msra.mxu0 0.0
        %7177 = vmatprep.subr.mxu0 0.0
        %7178 = vmatpush2.msra.mxu0 0.0
        %7179 = vmatprep.subr.mxu0 0.0
        %7180 = vmatpush2.msra.mxu0 0.0
        %7181 = vmatprep.subr.mxu0 0.0
        %7182 = vmatpush2.msra.mxu0 0.0
        %7183 = vmatprep.subr.mxu0 0.0
        %7184 = vmatpush2.msra.mxu0 0.0
        %7185 = vmatprep.subr.mxu0 0.0
        %7186 = vmatpush2.msra.mxu0 0.0
        %7187 = vmatprep.subr.mxu0 0.0
        %7188 = vmatpush2.msra.mxu0 0.0
        %7189 = vmatprep.subr.mxu0 0.0
        %7190 = vmatpush2.msra.mxu0 0.0
        %7191 = vmatprep.subr.mxu0 0.0
        %7192 = vmatpush2.msra.mxu0 0.0
        %7193 = vmatprep.subr.mxu0 0.0
        %7194 = vmatpush2.msra.mxu0 0.0
        %7195 = vmatprep.subr.mxu0 0.0
        %7196 = vmatpush2.msra.mxu0 0.0
        %7197 = vmatprep.subr.mxu0 0.0
        %7198 = vmatpush2.msra.mxu0 0.0
        %7199 = vmatprep.subr.mxu0 0.0
        %7200 = vmatpush2.msra.mxu0 0.0
        %7201 = vmatprep.subr.mxu0 0.0
        %7202 = vmatpush2.msra.mxu0 0.0
        %7203 = vmatprep.subr.mxu0 0.0
        %7204 = vmatpush2.msra.mxu0 0.0
        %7205 = vmatprep.mubr.f32.mxu0 0.0
        %v7206 = vand.u32 %v6764, 4294901760
        %7207 = vmatmul.mubr.f32.gmra.mxu0 %v7206
        %v7208 = vpop.f32.mrf.mxu0
        %v7209 = vadd.f32 %v7137, %v7208
        %v7210 = vpop.f32.mrf.mxu0
        %7211 = vdwg.mxu0
        %v7212 = vmul.f32 %v6119, %v7209
        %v7213 = vadd.f32 %v7212, %v369
        %v7216 = vunpack.c.l.s4 1966171168
        %v7217 = vunpack.c.0.s8 %v7216
        %v7218 = vlaneseq
        %v7219 = vshrl.u32 %v7218, 7
        %v7220 = vsub.s32 %v7217, %v7219
        %v7221 = vrot.slane %v7213, %v7220
        %v7222 = vcombine.high %v7221, %v7221
        %v7224 = vunpack.c.l.s4 1966171168
        %v7225 = vunpack.c.0.s8 %v7224
        %v7226 = vlaneseq
        %v7227 = vshrl.u32 %v7226, 7
        %v7228 = vsub.s32 %v7225, %v7227
        %v7229 = vrot.slane %v7221, %v7228
        %v7231 = vunpack.c.l.s4 1966171168
        %v7232 = vunpack.c.0.s8 %v7231
        %v7233 = vlaneseq
        %v7234 = vshrl.u32 %v7233, 7
        %v7235 = vsub.s32 %v7232, %v7234
        %v7236 = vrot.slane %v7222, %v7235
        %7239 = vst [vmem:[%s311 + $0x1] sm:$0x1] %v7229
        %7240 = vst [vmem:[%s311 + $0x5] sm:$0x1] %v7236
        %v7241 = vld [vmem:[%s277 + $0x1] sm:$0x1]
        %v7242 = vld [vmem:[%s277 + $0x3] sm:$0x1]
        %v7245 = vrot.slane %v7242, 7
        %v7246 = vsel %vm376, %v7245, %v7241
        %7248 = vmatprep.subr.mxu0 0.0
        %7249 = vmatpush1.msra.mxu0 %v345
        %7250 = vmatprep.subr.mxu0 0.0
        %7251 = vmatpush1.msra.mxu0 %v344
        %7252 = vmatprep.subr.mxu0 0.0
        %7253 = vmatpush1.msra.mxu0 %v343
        %7254 = vmatprep.subr.mxu0 0.0
        %7255 = vmatpush1.msra.mxu0 %v342
        %7256 = vmatprep.subr.mxu0 0.0
        %7257 = vmatpush1.msra.mxu0 %v341
        %7258 = vmatprep.subr.mxu0 0.0
        %7259 = vmatpush1.msra.mxu0 %v340
        %7260 = vmatprep.subr.mxu0 0.0
        %7261 = vmatpush1.msra.mxu0 %v339
        %7262 = vmatprep.subr.mxu0 0.0
        %7263 = vmatpush1.msra.mxu0 %v338
        %7264 = vmatprep.subr.mxu0 0.0
        %7265 = vmatpush1.msra.mxu0 %v337
        %7266 = vmatprep.subr.mxu0 0.0
        %7267 = vmatpush1.msra.mxu0 %v336
        %7268 = vmatprep.subr.mxu0 0.0
        %7269 = vmatpush1.msra.mxu0 %v335
        %7270 = vmatprep.subr.mxu0 0.0
        %7271 = vmatpush1.msra.mxu0 %v334
        %7272 = vmatprep.subr.mxu0 0.0
        %7273 = vmatpush1.msra.mxu0 %v333
        %7274 = vmatprep.subr.mxu0 0.0
        %7275 = vmatpush1.msra.mxu0 %v332
        %7276 = vmatprep.subr.mxu0 0.0
        %7277 = vmatpush1.msra.mxu0 %v331
        %7278 = vmatprep.subr.mxu0 0.0
        %7279 = vmatpush1.msra.mxu0 %v330
        %7280 = vmatprep.subr.mxu0 0.0
        %7281 = vmatpush2.msra.mxu0 0.0
        %7282 = vmatprep.subr.mxu0 0.0
        %7283 = vmatpush2.msra.mxu0 0.0
        %7284 = vmatprep.subr.mxu0 0.0
        %7285 = vmatpush2.msra.mxu0 0.0
        %7286 = vmatprep.subr.mxu0 0.0
        %7287 = vmatpush2.msra.mxu0 0.0
        %7288 = vmatprep.subr.mxu0 0.0
        %7289 = vmatpush2.msra.mxu0 0.0
        %7290 = vmatprep.subr.mxu0 0.0
        %7291 = vmatpush2.msra.mxu0 0.0
        %7292 = vmatprep.subr.mxu0 0.0
        %7293 = vmatpush2.msra.mxu0 0.0
        %7294 = vmatprep.subr.mxu0 0.0
        %7295 = vmatpush2.msra.mxu0 0.0
        %7296 = vmatprep.subr.mxu0 0.0
        %7297 = vmatpush2.msra.mxu0 0.0
        %7298 = vmatprep.subr.mxu0 0.0
        %7299 = vmatpush2.msra.mxu0 0.0
        %7300 = vmatprep.subr.mxu0 0.0
        %7301 = vmatpush2.msra.mxu0 0.0
        %7302 = vmatprep.subr.mxu0 0.0
        %7303 = vmatpush2.msra.mxu0 0.0
        %7304 = vmatprep.subr.mxu0 0.0
        %7305 = vmatpush2.msra.mxu0 0.0
        %7306 = vmatprep.subr.mxu0 0.0
        %7307 = vmatpush2.msra.mxu0 0.0
        %7308 = vmatprep.subr.mxu0 0.0
        %7309 = vmatpush2.msra.mxu0 0.0
        %7310 = vmatprep.subr.mxu0 0.0
        %7311 = vmatpush2.msra.mxu0 0.0
        %7312 = vmatprep.mubr.f32.mxu0 0.0
        %7313 = vmatmul.mubr.f32.gmra.mxu0 %v7246
        %v7314 = vpop.f32.mrf.mxu0
        %v7315 = vadd.f32 0.0, %v7314
        %v7316 = vpop.f32.mrf.mxu0
        %7317 = vdwg.mxu0
        %7318 = vmatprep.subr.mxu0 0.0
        %v7319 = vand.u32 %v361, 4294901760
        %7320 = vmatpush1.msra.mxu0 %v7319
        %7321 = vmatprep.subr.mxu0 0.0
        %v7322 = vand.u32 %v360, 4294901760
        %7323 = vmatpush1.msra.mxu0 %v7322
        %7324 = vmatprep.subr.mxu0 0.0
        %v7325 = vand.u32 %v359, 4294901760
        %7326 = vmatpush1.msra.mxu0 %v7325
        %7327 = vmatprep.subr.mxu0 0.0
        %v7328 = vand.u32 %v358, 4294901760
        %7329 = vmatpush1.msra.mxu0 %v7328
        %7330 = vmatprep.subr.mxu0 0.0
        %v7331 = vand.u32 %v357, 4294901760
        %7332 = vmatpush1.msra.mxu0 %v7331
        %7333 = vmatprep.subr.mxu0 0.0
        %v7334 = vand.u32 %v356, 4294901760
        %7335 = vmatpush1.msra.mxu0 %v7334
        %7336 = vmatprep.subr.mxu0 0.0
        %v7337 = vand.u32 %v355, 4294901760
        %7338 = vmatpush1.msra.mxu0 %v7337
        %7339 = vmatprep.subr.mxu0 0.0
        %v7340 = vand.u32 %v354, 4294901760
        %7341 = vmatpush1.msra.mxu0 %v7340
        %7342 = vmatprep.subr.mxu0 0.0
        %v7343 = vand.u32 %v353, 4294901760
        %7344 = vmatpush1.msra.mxu0 %v7343
        %7345 = vmatprep.subr.mxu0 0.0
        %v7346 = vand.u32 %v352, 4294901760
        %7347 = vmatpush1.msra.mxu0 %v7346
        %7348 = vmatprep.subr.mxu0 0.0
        %v7349 = vand.u32 %v351, 4294901760
        %7350 = vmatpush1.msra.mxu0 %v7349
        %7351 = vmatprep.subr.mxu0 0.0
        %v7352 = vand.u32 %v350, 4294901760
        %7353 = vmatpush1.msra.mxu0 %v7352
        %7354 = vmatprep.subr.mxu0 0.0
        %v7355 = vand.u32 %v349, 4294901760
        %7356 = vmatpush1.msra.mxu0 %v7355
        %7357 = vmatprep.subr.mxu0 0.0
        %v7358 = vand.u32 %v348, 4294901760
        %7359 = vmatpush1.msra.mxu0 %v7358
        %7360 = vmatprep.subr.mxu0 0.0
        %v7361 = vand.u32 %v347, 4294901760
        %7362 = vmatpush1.msra.mxu0 %v7361
        %7363 = vmatprep.subr.mxu0 0.0
        %v7364 = vand.u32 %v346, 4294901760
        %7365 = vmatpush1.msra.mxu0 %v7364
        %7366 = vmatprep.subr.mxu0 0.0
        %7367 = vmatpush2.msra.mxu0 0.0
        %7368 = vmatprep.subr.mxu0 0.0
        %7369 = vmatpush2.msra.mxu0 0.0
        %7370 = vmatprep.subr.mxu0 0.0
        %7371 = vmatpush2.msra.mxu0 0.0
        %7372 = vmatprep.subr.mxu0 0.0
        %7373 = vmatpush2.msra.mxu0 0.0
        %7374 = vmatprep.subr.mxu0 0.0
        %7375 = vmatpush2.msra.mxu0 0.0
        %7376 = vmatprep.subr.mxu0 0.0
        %7377 = vmatpush2.msra.mxu0 0.0
        %7378 = vmatprep.subr.mxu0 0.0
        %7379 = vmatpush2.msra.mxu0 0.0
        %7380 = vmatprep.subr.mxu0 0.0
        %7381 = vmatpush2.msra.mxu0 0.0
        %7382 = vmatprep.subr.mxu0 0.0
        %7383 = vmatpush2.msra.mxu0 0.0
        %7384 = vmatprep.subr.mxu0 0.0
        %7385 = vmatpush2.msra.mxu0 0.0
        %7386 = vmatprep.subr.mxu0 0.0
        %7387 = vmatpush2.msra.mxu0 0.0
        %7388 = vmatprep.subr.mxu0 0.0
        %7389 = vmatpush2.msra.mxu0 0.0
        %7390 = vmatprep.subr.mxu0 0.0
        %7391 = vmatpush2.msra.mxu0 0.0
        %7392 = vmatprep.subr.mxu0 0.0
        %7393 = vmatpush2.msra.mxu0 0.0
        %7394 = vmatprep.subr.mxu0 0.0
        %7395 = vmatpush2.msra.mxu0 0.0
        %7396 = vmatprep.subr.mxu0 0.0
        %7397 = vmatpush2.msra.mxu0 0.0
        %7398 = vmatprep.mubr.f32.mxu0 0.0
        %v7399 = vand.u32 %v7315, 4294901760
        %v7400 = vsub.f32 %v7315, %v7399
        %v7401 = vand.u32 %v7400, 4294901760
        %v7402 = vsub.f32 %v7400, %v7401
        %v7403 = vand.u32 %v7402, 4294901760
        %7404 = vmatmul.mubr.f32.gmra.mxu0 %v7403
        %v7405 = vpop.f32.mrf.mxu0
        %v7406 = vadd.f32 0.0, %v7405
        %v7407 = vpop.f32.mrf.mxu0
        %7408 = vdwg.mxu0
        %7409 = vmatprep.subr.mxu0 0.0
        %v7410 = vand.u32 %v361, 4294901760
        %v7411 = vsub.f32 %v361, %v7410
        %v7412 = vand.u32 %v7411, 4294901760
        %v7413 = vsub.f32 %v7411, %v7412
        %v7414 = vand.u32 %v7413, 4294901760
        %7415 = vmatpush1.msra.mxu0 %v7414
        %7416 = vmatprep.subr.mxu0 0.0
        %v7417 = vand.u32 %v360, 4294901760
        %v7418 = vsub.f32 %v360, %v7417
        %v7419 = vand.u32 %v7418, 4294901760
        %v7420 = vsub.f32 %v7418, %v7419
        %v7421 = vand.u32 %v7420, 4294901760
        %7422 = vmatpush1.msra.mxu0 %v7421
        %7423 = vmatprep.subr.mxu0 0.0
        %v7424 = vand.u32 %v359, 4294901760
        %v7425 = vsub.f32 %v359, %v7424
        %v7426 = vand.u32 %v7425, 4294901760
        %v7427 = vsub.f32 %v7425, %v7426
        %v7428 = vand.u32 %v7427, 4294901760
        %7429 = vmatpush1.msra.mxu0 %v7428
        %7430 = vmatprep.subr.mxu0 0.0
        %v7431 = vand.u32 %v358, 4294901760
        %v7432 = vsub.f32 %v358, %v7431
        %v7433 = vand.u32 %v7432, 4294901760
        %v7434 = vsub.f32 %v7432, %v7433
        %v7435 = vand.u32 %v7434, 4294901760
        %7436 = vmatpush1.msra.mxu0 %v7435
        %7437 = vmatprep.subr.mxu0 0.0
        %v7438 = vand.u32 %v357, 4294901760
        %v7439 = vsub.f32 %v357, %v7438
        %v7440 = vand.u32 %v7439, 4294901760
        %v7441 = vsub.f32 %v7439, %v7440
        %v7442 = vand.u32 %v7441, 4294901760
        %7443 = vmatpush1.msra.mxu0 %v7442
        %7444 = vmatprep.subr.mxu0 0.0
        %v7445 = vand.u32 %v356, 4294901760
        %v7446 = vsub.f32 %v356, %v7445
        %v7447 = vand.u32 %v7446, 4294901760
        %v7448 = vsub.f32 %v7446, %v7447
        %v7449 = vand.u32 %v7448, 4294901760
        %7450 = vmatpush1.msra.mxu0 %v7449
        %7451 = vmatprep.subr.mxu0 0.0
        %v7452 = vand.u32 %v355, 4294901760
        %v7453 = vsub.f32 %v355, %v7452
        %v7454 = vand.u32 %v7453, 4294901760
        %v7455 = vsub.f32 %v7453, %v7454
        %v7456 = vand.u32 %v7455, 4294901760
        %7457 = vmatpush1.msra.mxu0 %v7456
        %7458 = vmatprep.subr.mxu0 0.0
        %v7459 = vand.u32 %v354, 4294901760
        %v7460 = vsub.f32 %v354, %v7459
        %v7461 = vand.u32 %v7460, 4294901760
        %v7462 = vsub.f32 %v7460, %v7461
        %v7463 = vand.u32 %v7462, 4294901760
        %7464 = vmatpush1.msra.mxu0 %v7463
        %7465 = vmatprep.subr.mxu0 0.0
        %v7466 = vand.u32 %v353, 4294901760
        %v7467 = vsub.f32 %v353, %v7466
        %v7468 = vand.u32 %v7467, 4294901760
        %v7469 = vsub.f32 %v7467, %v7468
        %v7470 = vand.u32 %v7469, 4294901760
        %7471 = vmatpush1.msra.mxu0 %v7470
        %7472 = vmatprep.subr.mxu0 0.0
        %v7473 = vand.u32 %v352, 4294901760
        %v7474 = vsub.f32 %v352, %v7473
        %v7475 = vand.u32 %v7474, 4294901760
        %v7476 = vsub.f32 %v7474, %v7475
        %v7477 = vand.u32 %v7476, 4294901760
        %7478 = vmatpush1.msra.mxu0 %v7477
        %7479 = vmatprep.subr.mxu0 0.0
        %v7480 = vand.u32 %v351, 4294901760
        %v7481 = vsub.f32 %v351, %v7480
        %v7482 = vand.u32 %v7481, 4294901760
        %v7483 = vsub.f32 %v7481, %v7482
        %v7484 = vand.u32 %v7483, 4294901760
        %7485 = vmatpush1.msra.mxu0 %v7484
        %7486 = vmatprep.subr.mxu0 0.0
        %v7487 = vand.u32 %v350, 4294901760
        %v7488 = vsub.f32 %v350, %v7487
        %v7489 = vand.u32 %v7488, 4294901760
        %v7490 = vsub.f32 %v7488, %v7489
        %v7491 = vand.u32 %v7490, 4294901760
        %7492 = vmatpush1.msra.mxu0 %v7491
        %7493 = vmatprep.subr.mxu0 0.0
        %v7494 = vand.u32 %v349, 4294901760
        %v7495 = vsub.f32 %v349, %v7494
        %v7496 = vand.u32 %v7495, 4294901760
        %v7497 = vsub.f32 %v7495, %v7496
        %v7498 = vand.u32 %v7497, 4294901760
        %7499 = vmatpush1.msra.mxu0 %v7498
        %7500 = vmatprep.subr.mxu0 0.0
        %v7501 = vand.u32 %v348, 4294901760
        %v7502 = vsub.f32 %v348, %v7501
        %v7503 = vand.u32 %v7502, 4294901760
        %v7504 = vsub.f32 %v7502, %v7503
        %v7505 = vand.u32 %v7504, 4294901760
        %7506 = vmatpush1.msra.mxu0 %v7505
        %7507 = vmatprep.subr.mxu0 0.0
        %v7508 = vand.u32 %v347, 4294901760
        %v7509 = vsub.f32 %v347, %v7508
        %v7510 = vand.u32 %v7509, 4294901760
        %v7511 = vsub.f32 %v7509, %v7510
        %v7512 = vand.u32 %v7511, 4294901760
        %7513 = vmatpush1.msra.mxu0 %v7512
        %7514 = vmatprep.subr.mxu0 0.0
        %v7515 = vand.u32 %v346, 4294901760
        %v7516 = vsub.f32 %v346, %v7515
        %v7517 = vand.u32 %v7516, 4294901760
        %v7518 = vsub.f32 %v7516, %v7517
        %v7519 = vand.u32 %v7518, 4294901760
        %7520 = vmatpush1.msra.mxu0 %v7519
        %7521 = vmatprep.subr.mxu0 0.0
        %7522 = vmatpush2.msra.mxu0 0.0
        %7523 = vmatprep.subr.mxu0 0.0
        %7524 = vmatpush2.msra.mxu0 0.0
        %7525 = vmatprep.subr.mxu0 0.0
        %7526 = vmatpush2.msra.mxu0 0.0
        %7527 = vmatprep.subr.mxu0 0.0
        %7528 = vmatpush2.msra.mxu0 0.0
        %7529 = vmatprep.subr.mxu0 0.0
        %7530 = vmatpush2.msra.mxu0 0.0
        %7531 = vmatprep.subr.mxu0 0.0
        %7532 = vmatpush2.msra.mxu0 0.0
        %7533 = vmatprep.subr.mxu0 0.0
        %7534 = vmatpush2.msra.mxu0 0.0
        %7535 = vmatprep.subr.mxu0 0.0
        %7536 = vmatpush2.msra.mxu0 0.0
        %7537 = vmatprep.subr.mxu0 0.0
        %7538 = vmatpush2.msra.mxu0 0.0
        %7539 = vmatprep.subr.mxu0 0.0
        %7540 = vmatpush2.msra.mxu0 0.0
        %7541 = vmatprep.subr.mxu0 0.0
        %7542 = vmatpush2.msra.mxu0 0.0
        %7543 = vmatprep.subr.mxu0 0.0
        %7544 = vmatpush2.msra.mxu0 0.0
        %7545 = vmatprep.subr.mxu0 0.0
        %7546 = vmatpush2.msra.mxu0 0.0
        %7547 = vmatprep.subr.mxu0 0.0
        %7548 = vmatpush2.msra.mxu0 0.0
        %7549 = vmatprep.subr.mxu0 0.0
        %7550 = vmatpush2.msra.mxu0 0.0
        %7551 = vmatprep.subr.mxu0 0.0
        %7552 = vmatpush2.msra.mxu0 0.0
        %7553 = vmatprep.mubr.f32.mxu0 0.0
        %v7554 = vand.u32 %v7315, 4294901760
        %7555 = vmatmul.mubr.f32.gmra.mxu0 %v7554
        %v7556 = vpop.f32.mrf.mxu0
        %v7557 = vadd.f32 %v7406, %v7556
        %v7558 = vpop.f32.mrf.mxu0
        %7559 = vdwg.mxu0
        %7560 = vmatprep.subr.mxu0 0.0
        %v7561 = vand.u32 %v361, 4294901760
        %v7562 = vsub.f32 %v361, %v7561
        %7563 = vmatpush1.msra.mxu0 %v7562
        %7564 = vmatprep.subr.mxu0 0.0
        %v7565 = vand.u32 %v360, 4294901760
        %v7566 = vsub.f32 %v360, %v7565
        %7567 = vmatpush1.msra.mxu0 %v7566
        %7568 = vmatprep.subr.mxu0 0.0
        %v7569 = vand.u32 %v359, 4294901760
        %v7570 = vsub.f32 %v359, %v7569
        %7571 = vmatpush1.msra.mxu0 %v7570
        %7572 = vmatprep.subr.mxu0 0.0
        %v7573 = vand.u32 %v358, 4294901760
        %v7574 = vsub.f32 %v358, %v7573
        %7575 = vmatpush1.msra.mxu0 %v7574
        %7576 = vmatprep.subr.mxu0 0.0
        %v7577 = vand.u32 %v357, 4294901760
        %v7578 = vsub.f32 %v357, %v7577
        %7579 = vmatpush1.msra.mxu0 %v7578
        %7580 = vmatprep.subr.mxu0 0.0
        %v7581 = vand.u32 %v356, 4294901760
        %v7582 = vsub.f32 %v356, %v7581
        %7583 = vmatpush1.msra.mxu0 %v7582
        %7584 = vmatprep.subr.mxu0 0.0
        %v7585 = vand.u32 %v355, 4294901760
        %v7586 = vsub.f32 %v355, %v7585
        %7587 = vmatpush1.msra.mxu0 %v7586
        %7588 = vmatprep.subr.mxu0 0.0
        %v7589 = vand.u32 %v354, 4294901760
        %v7590 = vsub.f32 %v354, %v7589
        %7591 = vmatpush1.msra.mxu0 %v7590
        %7592 = vmatprep.subr.mxu0 0.0
        %v7593 = vand.u32 %v353, 4294901760
        %v7594 = vsub.f32 %v353, %v7593
        %7595 = vmatpush1.msra.mxu0 %v7594
        %7596 = vmatprep.subr.mxu0 0.0
        %v7597 = vand.u32 %v352, 4294901760
        %v7598 = vsub.f32 %v352, %v7597
        %7599 = vmatpush1.msra.mxu0 %v7598
        %7600 = vmatprep.subr.mxu0 0.0
        %v7601 = vand.u32 %v351, 4294901760
        %v7602 = vsub.f32 %v351, %v7601
        %7603 = vmatpush1.msra.mxu0 %v7602
        %7604 = vmatprep.subr.mxu0 0.0
        %v7605 = vand.u32 %v350, 4294901760
        %v7606 = vsub.f32 %v350, %v7605
        %7607 = vmatpush1.msra.mxu0 %v7606
        %7608 = vmatprep.subr.mxu0 0.0
        %v7609 = vand.u32 %v349, 4294901760
        %v7610 = vsub.f32 %v349, %v7609
        %7611 = vmatpush1.msra.mxu0 %v7610
        %7612 = vmatprep.subr.mxu0 0.0
        %v7613 = vand.u32 %v348, 4294901760
        %v7614 = vsub.f32 %v348, %v7613
        %7615 = vmatpush1.msra.mxu0 %v7614
        %7616 = vmatprep.subr.mxu0 0.0
        %v7617 = vand.u32 %v347, 4294901760
        %v7618 = vsub.f32 %v347, %v7617
        %7619 = vmatpush1.msra.mxu0 %v7618
        %7620 = vmatprep.subr.mxu0 0.0
        %v7621 = vand.u32 %v346, 4294901760
        %v7622 = vsub.f32 %v346, %v7621
        %7623 = vmatpush1.msra.mxu0 %v7622
        %7624 = vmatprep.subr.mxu0 0.0
        %7625 = vmatpush2.msra.mxu0 0.0
        %7626 = vmatprep.subr.mxu0 0.0
        %7627 = vmatpush2.msra.mxu0 0.0
        %7628 = vmatprep.subr.mxu0 0.0
        %7629 = vmatpush2.msra.mxu0 0.0
        %7630 = vmatprep.subr.mxu0 0.0
        %7631 = vmatpush2.msra.mxu0 0.0
        %7632 = vmatprep.subr.mxu0 0.0
        %7633 = vmatpush2.msra.mxu0 0.0
        %7634 = vmatprep.subr.mxu0 0.0
        %7635 = vmatpush2.msra.mxu0 0.0
        %7636 = vmatprep.subr.mxu0 0.0
        %7637 = vmatpush2.msra.mxu0 0.0
        %7638 = vmatprep.subr.mxu0 0.0
        %7639 = vmatpush2.msra.mxu0 0.0
        %7640 = vmatprep.subr.mxu0 0.0
        %7641 = vmatpush2.msra.mxu0 0.0
        %7642 = vmatprep.subr.mxu0 0.0
        %7643 = vmatpush2.msra.mxu0 0.0
        %7644 = vmatprep.subr.mxu0 0.0
        %7645 = vmatpush2.msra.mxu0 0.0
        %7646 = vmatprep.subr.mxu0 0.0
        %7647 = vmatpush2.msra.mxu0 0.0
        %7648 = vmatprep.subr.mxu0 0.0
        %7649 = vmatpush2.msra.mxu0 0.0
        %7650 = vmatprep.subr.mxu0 0.0
        %7651 = vmatpush2.msra.mxu0 0.0
        %7652 = vmatprep.subr.mxu0 0.0
        %7653 = vmatpush2.msra.mxu0 0.0
        %7654 = vmatprep.subr.mxu0 0.0
        %7655 = vmatpush2.msra.mxu0 0.0
        %7656 = vmatprep.mubr.f32.mxu0 0.0
        %v7657 = vand.u32 %v7315, 4294901760
        %v7658 = vsub.f32 %v7315, %v7657
        %7659 = vmatmul.mubr.f32.gmra.mxu0 %v7658
        %v7660 = vpop.f32.mrf.mxu0
        %v7661 = vadd.f32 %v7557, %v7660
        %v7662 = vpop.f32.mrf.mxu0
        %7663 = vdwg.mxu0
        %7664 = vmatprep.subr.mxu0 0.0
        %v7665 = vand.u32 %v361, 4294901760
        %7666 = vmatpush1.msra.mxu0 %v7665
        %7667 = vmatprep.subr.mxu0 0.0
        %v7668 = vand.u32 %v360, 4294901760
        %7669 = vmatpush1.msra.mxu0 %v7668
        %7670 = vmatprep.subr.mxu0 0.0
        %v7671 = vand.u32 %v359, 4294901760
        %7672 = vmatpush1.msra.mxu0 %v7671
        %7673 = vmatprep.subr.mxu0 0.0
        %v7674 = vand.u32 %v358, 4294901760
        %7675 = vmatpush1.msra.mxu0 %v7674
        %7676 = vmatprep.subr.mxu0 0.0
        %v7677 = vand.u32 %v357, 4294901760
        %7678 = vmatpush1.msra.mxu0 %v7677
        %7679 = vmatprep.subr.mxu0 0.0
        %v7680 = vand.u32 %v356, 4294901760
        %7681 = vmatpush1.msra.mxu0 %v7680
        %7682 = vmatprep.subr.mxu0 0.0
        %v7683 = vand.u32 %v355, 4294901760
        %7684 = vmatpush1.msra.mxu0 %v7683
        %7685 = vmatprep.subr.mxu0 0.0
        %v7686 = vand.u32 %v354, 4294901760
        %7687 = vmatpush1.msra.mxu0 %v7686
        %7688 = vmatprep.subr.mxu0 0.0
        %v7689 = vand.u32 %v353, 4294901760
        %7690 = vmatpush1.msra.mxu0 %v7689
        %7691 = vmatprep.subr.mxu0 0.0
        %v7692 = vand.u32 %v352, 4294901760
        %7693 = vmatpush1.msra.mxu0 %v7692
        %7694 = vmatprep.subr.mxu0 0.0
        %v7695 = vand.u32 %v351, 4294901760
        %7696 = vmatpush1.msra.mxu0 %v7695
        %7697 = vmatprep.subr.mxu0 0.0
        %v7698 = vand.u32 %v350, 4294901760
        %7699 = vmatpush1.msra.mxu0 %v7698
        %7700 = vmatprep.subr.mxu0 0.0
        %v7701 = vand.u32 %v349, 4294901760
        %7702 = vmatpush1.msra.mxu0 %v7701
        %7703 = vmatprep.subr.mxu0 0.0
        %v7704 = vand.u32 %v348, 4294901760
        %7705 = vmatpush1.msra.mxu0 %v7704
        %7706 = vmatprep.subr.mxu0 0.0
        %v7707 = vand.u32 %v347, 4294901760
        %7708 = vmatpush1.msra.mxu0 %v7707
        %7709 = vmatprep.subr.mxu0 0.0
        %v7710 = vand.u32 %v346, 4294901760
        %7711 = vmatpush1.msra.mxu0 %v7710
        %7712 = vmatprep.subr.mxu0 0.0
        %7713 = vmatpush2.msra.mxu0 0.0
        %7714 = vmatprep.subr.mxu0 0.0
        %7715 = vmatpush2.msra.mxu0 0.0
        %7716 = vmatprep.subr.mxu0 0.0
        %7717 = vmatpush2.msra.mxu0 0.0
        %7718 = vmatprep.subr.mxu0 0.0
        %7719 = vmatpush2.msra.mxu0 0.0
        %7720 = vmatprep.subr.mxu0 0.0
        %7721 = vmatpush2.msra.mxu0 0.0
        %7722 = vmatprep.subr.mxu0 0.0
        %7723 = vmatpush2.msra.mxu0 0.0
        %7724 = vmatprep.subr.mxu0 0.0
        %7725 = vmatpush2.msra.mxu0 0.0
        %7726 = vmatprep.subr.mxu0 0.0
        %7727 = vmatpush2.msra.mxu0 0.0
        %7728 = vmatprep.subr.mxu0 0.0
        %7729 = vmatpush2.msra.mxu0 0.0
        %7730 = vmatprep.subr.mxu0 0.0
        %7731 = vmatpush2.msra.mxu0 0.0
        %7732 = vmatprep.subr.mxu0 0.0
        %7733 = vmatpush2.msra.mxu0 0.0
        %7734 = vmatprep.subr.mxu0 0.0
        %7735 = vmatpush2.msra.mxu0 0.0
        %7736 = vmatprep.subr.mxu0 0.0
        %7737 = vmatpush2.msra.mxu0 0.0
        %7738 = vmatprep.subr.mxu0 0.0
        %7739 = vmatpush2.msra.mxu0 0.0
        %7740 = vmatprep.subr.mxu0 0.0
        %7741 = vmatpush2.msra.mxu0 0.0
        %7742 = vmatprep.subr.mxu0 0.0
        %7743 = vmatpush2.msra.mxu0 0.0
        %7744 = vmatprep.mubr.f32.mxu0 0.0
        %v7745 = vand.u32 %v7315, 4294901760
        %v7746 = vsub.f32 %v7315, %v7745
        %v7747 = vand.u32 %v7746, 4294901760
        %7748 = vmatmul.mubr.f32.gmra.mxu0 %v7747
        %v7749 = vpop.f32.mrf.mxu0
        %v7750 = vadd.f32 %v7661, %v7749
        %v7751 = vpop.f32.mrf.mxu0
        %7752 = vdwg.mxu0
        %7753 = vmatprep.subr.mxu0 0.0
        %v7754 = vand.u32 %v361, 4294901760
        %v7755 = vsub.f32 %v361, %v7754
        %v7756 = vand.u32 %v7755, 4294901760
        %7757 = vmatpush1.msra.mxu0 %v7756
        %7758 = vmatprep.subr.mxu0 0.0
        %v7759 = vand.u32 %v360, 4294901760
        %v7760 = vsub.f32 %v360, %v7759
        %v7761 = vand.u32 %v7760, 4294901760
        %7762 = vmatpush1.msra.mxu0 %v7761
        %7763 = vmatprep.subr.mxu0 0.0
        %v7764 = vand.u32 %v359, 4294901760
        %v7765 = vsub.f32 %v359, %v7764
        %v7766 = vand.u32 %v7765, 4294901760
        %7767 = vmatpush1.msra.mxu0 %v7766
        %7768 = vmatprep.subr.mxu0 0.0
        %v7769 = vand.u32 %v358, 4294901760
        %v7770 = vsub.f32 %v358, %v7769
        %v7771 = vand.u32 %v7770, 4294901760
        %7772 = vmatpush1.msra.mxu0 %v7771
        %7773 = vmatprep.subr.mxu0 0.0
        %v7774 = vand.u32 %v357, 4294901760
        %v7775 = vsub.f32 %v357, %v7774
        %v7776 = vand.u32 %v7775, 4294901760
        %7777 = vmatpush1.msra.mxu0 %v7776
        %7778 = vmatprep.subr.mxu0 0.0
        %v7779 = vand.u32 %v356, 4294901760
        %v7780 = vsub.f32 %v356, %v7779
        %v7781 = vand.u32 %v7780, 4294901760
        %7782 = vmatpush1.msra.mxu0 %v7781
        %7783 = vmatprep.subr.mxu0 0.0
        %v7784 = vand.u32 %v355, 4294901760
        %v7785 = vsub.f32 %v355, %v7784
        %v7786 = vand.u32 %v7785, 4294901760
        %7787 = vmatpush1.msra.mxu0 %v7786
        %7788 = vmatprep.subr.mxu0 0.0
        %v7789 = vand.u32 %v354, 4294901760
        %v7790 = vsub.f32 %v354, %v7789
        %v7791 = vand.u32 %v7790, 4294901760
        %7792 = vmatpush1.msra.mxu0 %v7791
        %7793 = vmatprep.subr.mxu0 0.0
        %v7794 = vand.u32 %v353, 4294901760
        %v7795 = vsub.f32 %v353, %v7794
        %v7796 = vand.u32 %v7795, 4294901760
        %7797 = vmatpush1.msra.mxu0 %v7796
        %7798 = vmatprep.subr.mxu0 0.0
        %v7799 = vand.u32 %v352, 4294901760
        %v7800 = vsub.f32 %v352, %v7799
        %v7801 = vand.u32 %v7800, 4294901760
        %7802 = vmatpush1.msra.mxu0 %v7801
        %7803 = vmatprep.subr.mxu0 0.0
        %v7804 = vand.u32 %v351, 4294901760
        %v7805 = vsub.f32 %v351, %v7804
        %v7806 = vand.u32 %v7805, 4294901760
        %7807 = vmatpush1.msra.mxu0 %v7806
        %7808 = vmatprep.subr.mxu0 0.0
        %v7809 = vand.u32 %v350, 4294901760
        %v7810 = vsub.f32 %v350, %v7809
        %v7811 = vand.u32 %v7810, 4294901760
        %7812 = vmatpush1.msra.mxu0 %v7811
        %7813 = vmatprep.subr.mxu0 0.0
        %v7814 = vand.u32 %v349, 4294901760
        %v7815 = vsub.f32 %v349, %v7814
        %v7816 = vand.u32 %v7815, 4294901760
        %7817 = vmatpush1.msra.mxu0 %v7816
        %7818 = vmatprep.subr.mxu0 0.0
        %v7819 = vand.u32 %v348, 4294901760
        %v7820 = vsub.f32 %v348, %v7819
        %v7821 = vand.u32 %v7820, 4294901760
        %7822 = vmatpush1.msra.mxu0 %v7821
        %7823 = vmatprep.subr.mxu0 0.0
        %v7824 = vand.u32 %v347, 4294901760
        %v7825 = vsub.f32 %v347, %v7824
        %v7826 = vand.u32 %v7825, 4294901760
        %7827 = vmatpush1.msra.mxu0 %v7826
        %7828 = vmatprep.subr.mxu0 0.0
        %v7829 = vand.u32 %v346, 4294901760
        %v7830 = vsub.f32 %v346, %v7829
        %v7831 = vand.u32 %v7830, 4294901760
        %7832 = vmatpush1.msra.mxu0 %v7831
        %7833 = vmatprep.subr.mxu0 0.0
        %7834 = vmatpush2.msra.mxu0 0.0
        %7835 = vmatprep.subr.mxu0 0.0
        %7836 = vmatpush2.msra.mxu0 0.0
        %7837 = vmatprep.subr.mxu0 0.0
        %7838 = vmatpush2.msra.mxu0 0.0
        %7839 = vmatprep.subr.mxu0 0.0
        %7840 = vmatpush2.msra.mxu0 0.0
        %7841 = vmatprep.subr.mxu0 0.0
        %7842 = vmatpush2.msra.mxu0 0.0
        %7843 = vmatprep.subr.mxu0 0.0
        %7844 = vmatpush2.msra.mxu0 0.0
        %7845 = vmatprep.subr.mxu0 0.0
        %7846 = vmatpush2.msra.mxu0 0.0
        %7847 = vmatprep.subr.mxu0 0.0
        %7848 = vmatpush2.msra.mxu0 0.0
        %7849 = vmatprep.subr.mxu0 0.0
        %7850 = vmatpush2.msra.mxu0 0.0
        %7851 = vmatprep.subr.mxu0 0.0
        %7852 = vmatpush2.msra.mxu0 0.0
        %7853 = vmatprep.subr.mxu0 0.0
        %7854 = vmatpush2.msra.mxu0 0.0
        %7855 = vmatprep.subr.mxu0 0.0
        %7856 = vmatpush2.msra.mxu0 0.0
        %7857 = vmatprep.subr.mxu0 0.0
        %7858 = vmatpush2.msra.mxu0 0.0
        %7859 = vmatprep.subr.mxu0 0.0
        %7860 = vmatpush2.msra.mxu0 0.0
        %7861 = vmatprep.subr.mxu0 0.0
        %7862 = vmatpush2.msra.mxu0 0.0
        %7863 = vmatprep.subr.mxu0 0.0
        %7864 = vmatpush2.msra.mxu0 0.0
        %7865 = vmatprep.mubr.f32.mxu0 0.0
        %v7866 = vand.u32 %v7315, 4294901760
        %7867 = vmatmul.mubr.f32.gmra.mxu0 %v7866
        %v7868 = vpop.f32.mrf.mxu0
        %v7869 = vadd.f32 %v7750, %v7868
        %v7870 = vpop.f32.mrf.mxu0
        %7871 = vdwg.mxu0
        %7872 = vmatprep.subr.mxu0 0.0
        %v7873 = vand.u32 %v361, 4294901760
        %7874 = vmatpush1.msra.mxu0 %v7873
        %7875 = vmatprep.subr.mxu0 0.0
        %v7876 = vand.u32 %v360, 4294901760
        %7877 = vmatpush1.msra.mxu0 %v7876
        %7878 = vmatprep.subr.mxu0 0.0
        %v7879 = vand.u32 %v359, 4294901760
        %7880 = vmatpush1.msra.mxu0 %v7879
        %7881 = vmatprep.subr.mxu0 0.0
        %v7882 = vand.u32 %v358, 4294901760
        %7883 = vmatpush1.msra.mxu0 %v7882
        %7884 = vmatprep.subr.mxu0 0.0
        %v7885 = vand.u32 %v357, 4294901760
        %7886 = vmatpush1.msra.mxu0 %v7885
        %7887 = vmatprep.subr.mxu0 0.0
        %v7888 = vand.u32 %v356, 4294901760
        %7889 = vmatpush1.msra.mxu0 %v7888
        %7890 = vmatprep.subr.mxu0 0.0
        %v7891 = vand.u32 %v355, 4294901760
        %7892 = vmatpush1.msra.mxu0 %v7891
        %7893 = vmatprep.subr.mxu0 0.0
        %v7894 = vand.u32 %v354, 4294901760
        %7895 = vmatpush1.msra.mxu0 %v7894
        %7896 = vmatprep.subr.mxu0 0.0
        %v7897 = vand.u32 %v353, 4294901760
        %7898 = vmatpush1.msra.mxu0 %v7897
        %7899 = vmatprep.subr.mxu0 0.0
        %v7900 = vand.u32 %v352, 4294901760
        %7901 = vmatpush1.msra.mxu0 %v7900
        %7902 = vmatprep.subr.mxu0 0.0
        %v7903 = vand.u32 %v351, 4294901760
        %7904 = vmatpush1.msra.mxu0 %v7903
        %7905 = vmatprep.subr.mxu0 0.0
        %v7906 = vand.u32 %v350, 4294901760
        %7907 = vmatpush1.msra.mxu0 %v7906
        %7908 = vmatprep.subr.mxu0 0.0
        %v7909 = vand.u32 %v349, 4294901760
        %7910 = vmatpush1.msra.mxu0 %v7909
        %7911 = vmatprep.subr.mxu0 0.0
        %v7912 = vand.u32 %v348, 4294901760
        %7913 = vmatpush1.msra.mxu0 %v7912
        %7914 = vmatprep.subr.mxu0 0.0
        %v7915 = vand.u32 %v347, 4294901760
        %7916 = vmatpush1.msra.mxu0 %v7915
        %7917 = vmatprep.subr.mxu0 0.0
        %v7918 = vand.u32 %v346, 4294901760
        %7919 = vmatpush1.msra.mxu0 %v7918
        %7920 = vmatprep.subr.mxu0 0.0
        %7921 = vmatpush2.msra.mxu0 0.0
        %7922 = vmatprep.subr.mxu0 0.0
        %7923 = vmatpush2.msra.mxu0 0.0
        %7924 = vmatprep.subr.mxu0 0.0
        %7925 = vmatpush2.msra.mxu0 0.0
        %7926 = vmatprep.subr.mxu0 0.0
        %7927 = vmatpush2.msra.mxu0 0.0
        %7928 = vmatprep.subr.mxu0 0.0
        %7929 = vmatpush2.msra.mxu0 0.0
        %7930 = vmatprep.subr.mxu0 0.0
        %7931 = vmatpush2.msra.mxu0 0.0
        %7932 = vmatprep.subr.mxu0 0.0
        %7933 = vmatpush2.msra.mxu0 0.0
        %7934 = vmatprep.subr.mxu0 0.0
        %7935 = vmatpush2.msra.mxu0 0.0
        %7936 = vmatprep.subr.mxu0 0.0
        %7937 = vmatpush2.msra.mxu0 0.0
        %7938 = vmatprep.subr.mxu0 0.0
        %7939 = vmatpush2.msra.mxu0 0.0
        %7940 = vmatprep.subr.mxu0 0.0
        %7941 = vmatpush2.msra.mxu0 0.0
        %7942 = vmatprep.subr.mxu0 0.0
        %7943 = vmatpush2.msra.mxu0 0.0
        %7944 = vmatprep.subr.mxu0 0.0
        %7945 = vmatpush2.msra.mxu0 0.0
        %7946 = vmatprep.subr.mxu0 0.0
        %7947 = vmatpush2.msra.mxu0 0.0
        %7948 = vmatprep.subr.mxu0 0.0
        %7949 = vmatpush2.msra.mxu0 0.0
        %7950 = vmatprep.subr.mxu0 0.0
        %7951 = vmatpush2.msra.mxu0 0.0
        %7952 = vmatprep.mubr.f32.mxu0 0.0
        %v7953 = vand.u32 %v7315, 4294901760
        %7954 = vmatmul.mubr.f32.gmra.mxu0 %v7953
        %v7955 = vpop.f32.mrf.mxu0
        %v7956 = vadd.f32 %v7869, %v7955
        %v7957 = vpop.f32.mrf.mxu0
        %7958 = vdwg.mxu0
        %v7960 = vsel %vm1090, %v7956, 0
        %7962 = vmatprep.subr.mxu0 0.0
        %7963 = vmatpush1.msra.mxu0 0.0
        %7964 = vmatprep.subr.mxu0 0.0
        %7965 = vmatpush1.msra.mxu0 0.0
        %7966 = vmatprep.subr.mxu0 0.0
        %7967 = vmatpush1.msra.mxu0 0.0
        %7968 = vmatprep.subr.mxu0 0.0
        %7969 = vmatpush1.msra.mxu0 0.0
        %7970 = vmatprep.subr.mxu0 0.0
        %7971 = vmatpush1.msra.mxu0 0.0
        %7972 = vmatprep.subr.mxu0 0.0
        %7973 = vmatpush1.msra.mxu0 0.0
        %7974 = vmatprep.subr.mxu0 0.0
        %7975 = vmatpush1.msra.mxu0 0.0
        %7976 = vmatprep.subr.mxu0 0.0
        %7977 = vmatpush1.msra.mxu0 0.0
        %7978 = vmatprep.subr.mxu0 0.0
        %7979 = vmatpush1.msra.mxu0 0.0
        %7980 = vmatprep.subr.mxu0 0.0
        %7981 = vmatpush1.msra.mxu0 0.0
        %7982 = vmatprep.subr.mxu0 0.0
        %7983 = vmatpush1.msra.mxu0 0.0
        %7984 = vmatprep.subr.mxu0 0.0
        %7985 = vmatpush1.msra.mxu0 0.0
        %7986 = vmatprep.subr.mxu0 0.0
        %7987 = vmatpush1.msra.mxu0 0.0
        %7988 = vmatprep.subr.mxu0 0.0
        %7989 = vmatpush1.msra.mxu0 0.0
        %7990 = vmatprep.subr.mxu0 0.0
        %7991 = vmatpush1.msra.mxu0 0.0
        %7992 = vmatprep.subr.mxu0 0.0
        %v7993 = vand.u32 %v362, 4294901760
        %7994 = vmatpush1.msra.mxu0 %v7993
        %7995 = vmatprep.subr.mxu0 0.0
        %7996 = vmatpush2.msra.mxu0 0.0
        %7997 = vmatprep.subr.mxu0 0.0
        %7998 = vmatpush2.msra.mxu0 0.0
        %7999 = vmatprep.subr.mxu0 0.0
        %8000 = vmatpush2.msra.mxu0 0.0
        %8001 = vmatprep.subr.mxu0 0.0
        %8002 = vmatpush2.msra.mxu0 0.0
        %8003 = vmatprep.subr.mxu0 0.0
        %8004 = vmatpush2.msra.mxu0 0.0
        %8005 = vmatprep.subr.mxu0 0.0
        %8006 = vmatpush2.msra.mxu0 0.0
        %8007 = vmatprep.subr.mxu0 0.0
        %8008 = vmatpush2.msra.mxu0 0.0
        %8009 = vmatprep.subr.mxu0 0.0
        %8010 = vmatpush2.msra.mxu0 0.0
        %8011 = vmatprep.subr.mxu0 0.0
        %8012 = vmatpush2.msra.mxu0 0.0
        %8013 = vmatprep.subr.mxu0 0.0
        %8014 = vmatpush2.msra.mxu0 0.0
        %8015 = vmatprep.subr.mxu0 0.0
        %8016 = vmatpush2.msra.mxu0 0.0
        %8017 = vmatprep.subr.mxu0 0.0
        %8018 = vmatpush2.msra.mxu0 0.0
        %8019 = vmatprep.subr.mxu0 0.0
        %8020 = vmatpush2.msra.mxu0 0.0
        %8021 = vmatprep.subr.mxu0 0.0
        %8022 = vmatpush2.msra.mxu0 0.0
        %8023 = vmatprep.subr.mxu0 0.0
        %8024 = vmatpush2.msra.mxu0 0.0
        %8025 = vmatprep.subr.mxu0 0.0
        %8026 = vmatpush2.msra.mxu0 0.0
        %8027 = vmatprep.mubr.f32.mxu0 0.0
        %v8028 = vand.u32 %v7960, 4294901760
        %v8029 = vsub.f32 %v7960, %v8028
        %v8030 = vand.u32 %v8029, 4294901760
        %v8031 = vsub.f32 %v8029, %v8030
        %v8032 = vand.u32 %v8031, 4294901760
        %8033 = vmatmul.mubr.f32.gmra.mxu0 %v8032
        %v8034 = vpop.f32.mrf.mxu0
        %v8035 = vadd.f32 0.0, %v8034
        %v8036 = vpop.f32.mrf.mxu0
        %8037 = vdwg.mxu0
        %8038 = vmatprep.subr.mxu0 0.0
        %8039 = vmatpush1.msra.mxu0 0.0
        %8040 = vmatprep.subr.mxu0 0.0
        %8041 = vmatpush1.msra.mxu0 0.0
        %8042 = vmatprep.subr.mxu0 0.0
        %8043 = vmatpush1.msra.mxu0 0.0
        %8044 = vmatprep.subr.mxu0 0.0
        %8045 = vmatpush1.msra.mxu0 0.0
        %8046 = vmatprep.subr.mxu0 0.0
        %8047 = vmatpush1.msra.mxu0 0.0
        %8048 = vmatprep.subr.mxu0 0.0
        %8049 = vmatpush1.msra.mxu0 0.0
        %8050 = vmatprep.subr.mxu0 0.0
        %8051 = vmatpush1.msra.mxu0 0.0
        %8052 = vmatprep.subr.mxu0 0.0
        %8053 = vmatpush1.msra.mxu0 0.0
        %8054 = vmatprep.subr.mxu0 0.0
        %8055 = vmatpush1.msra.mxu0 0.0
        %8056 = vmatprep.subr.mxu0 0.0
        %8057 = vmatpush1.msra.mxu0 0.0
        %8058 = vmatprep.subr.mxu0 0.0
        %8059 = vmatpush1.msra.mxu0 0.0
        %8060 = vmatprep.subr.mxu0 0.0
        %8061 = vmatpush1.msra.mxu0 0.0
        %8062 = vmatprep.subr.mxu0 0.0
        %8063 = vmatpush1.msra.mxu0 0.0
        %8064 = vmatprep.subr.mxu0 0.0
        %8065 = vmatpush1.msra.mxu0 0.0
        %8066 = vmatprep.subr.mxu0 0.0
        %8067 = vmatpush1.msra.mxu0 0.0
        %8068 = vmatprep.subr.mxu0 0.0
        %v8069 = vand.u32 %v362, 4294901760
        %v8070 = vsub.f32 %v362, %v8069
        %v8071 = vand.u32 %v8070, 4294901760
        %v8072 = vsub.f32 %v8070, %v8071
        %v8073 = vand.u32 %v8072, 4294901760
        %8074 = vmatpush1.msra.mxu0 %v8073
        %8075 = vmatprep.subr.mxu0 0.0
        %8076 = vmatpush2.msra.mxu0 0.0
        %8077 = vmatprep.subr.mxu0 0.0
        %8078 = vmatpush2.msra.mxu0 0.0
        %8079 = vmatprep.subr.mxu0 0.0
        %8080 = vmatpush2.msra.mxu0 0.0
        %8081 = vmatprep.subr.mxu0 0.0
        %8082 = vmatpush2.msra.mxu0 0.0
        %8083 = vmatprep.subr.mxu0 0.0
        %8084 = vmatpush2.msra.mxu0 0.0
        %8085 = vmatprep.subr.mxu0 0.0
        %8086 = vmatpush2.msra.mxu0 0.0
        %8087 = vmatprep.subr.mxu0 0.0
        %8088 = vmatpush2.msra.mxu0 0.0
        %8089 = vmatprep.subr.mxu0 0.0
        %8090 = vmatpush2.msra.mxu0 0.0
        %8091 = vmatprep.subr.mxu0 0.0
        %8092 = vmatpush2.msra.mxu0 0.0
        %8093 = vmatprep.subr.mxu0 0.0
        %8094 = vmatpush2.msra.mxu0 0.0
        %8095 = vmatprep.subr.mxu0 0.0
        %8096 = vmatpush2.msra.mxu0 0.0
        %8097 = vmatprep.subr.mxu0 0.0
        %8098 = vmatpush2.msra.mxu0 0.0
        %8099 = vmatprep.subr.mxu0 0.0
        %8100 = vmatpush2.msra.mxu0 0.0
        %8101 = vmatprep.subr.mxu0 0.0
        %8102 = vmatpush2.msra.mxu0 0.0
        %8103 = vmatprep.subr.mxu0 0.0
        %8104 = vmatpush2.msra.mxu0 0.0
        %8105 = vmatprep.subr.mxu0 0.0
        %8106 = vmatpush2.msra.mxu0 0.0
        %8107 = vmatprep.mubr.f32.mxu0 0.0
        %v8108 = vand.u32 %v7960, 4294901760
        %8109 = vmatmul.mubr.f32.gmra.mxu0 %v8108
        %v8110 = vpop.f32.mrf.mxu0
        %v8111 = vadd.f32 %v8035, %v8110
        %v8112 = vpop.f32.mrf.mxu0
        %8113 = vdwg.mxu0
        %8114 = vmatprep.subr.mxu0 0.0
        %8115 = vmatpush1.msra.mxu0 0.0
        %8116 = vmatprep.subr.mxu0 0.0
        %8117 = vmatpush1.msra.mxu0 0.0
        %8118 = vmatprep.subr.mxu0 0.0
        %8119 = vmatpush1.msra.mxu0 0.0
        %8120 = vmatprep.subr.mxu0 0.0
        %8121 = vmatpush1.msra.mxu0 0.0
        %8122 = vmatprep.subr.mxu0 0.0
        %8123 = vmatpush1.msra.mxu0 0.0
        %8124 = vmatprep.subr.mxu0 0.0
        %8125 = vmatpush1.msra.mxu0 0.0
        %8126 = vmatprep.subr.mxu0 0.0
        %8127 = vmatpush1.msra.mxu0 0.0
        %8128 = vmatprep.subr.mxu0 0.0
        %8129 = vmatpush1.msra.mxu0 0.0
        %8130 = vmatprep.subr.mxu0 0.0
        %8131 = vmatpush1.msra.mxu0 0.0
        %8132 = vmatprep.subr.mxu0 0.0
        %8133 = vmatpush1.msra.mxu0 0.0
        %8134 = vmatprep.subr.mxu0 0.0
        %8135 = vmatpush1.msra.mxu0 0.0
        %8136 = vmatprep.subr.mxu0 0.0
        %8137 = vmatpush1.msra.mxu0 0.0
        %8138 = vmatprep.subr.mxu0 0.0
        %8139 = vmatpush1.msra.mxu0 0.0
        %8140 = vmatprep.subr.mxu0 0.0
        %8141 = vmatpush1.msra.mxu0 0.0
        %8142 = vmatprep.subr.mxu0 0.0
        %8143 = vmatpush1.msra.mxu0 0.0
        %8144 = vmatprep.subr.mxu0 0.0
        %v8145 = vand.u32 %v362, 4294901760
        %v8146 = vsub.f32 %v362, %v8145
        %8147 = vmatpush1.msra.mxu0 %v8146
        %8148 = vmatprep.subr.mxu0 0.0
        %8149 = vmatpush2.msra.mxu0 0.0
        %8150 = vmatprep.subr.mxu0 0.0
        %8151 = vmatpush2.msra.mxu0 0.0
        %8152 = vmatprep.subr.mxu0 0.0
        %8153 = vmatpush2.msra.mxu0 0.0
        %8154 = vmatprep.subr.mxu0 0.0
        %8155 = vmatpush2.msra.mxu0 0.0
        %8156 = vmatprep.subr.mxu0 0.0
        %8157 = vmatpush2.msra.mxu0 0.0
        %8158 = vmatprep.subr.mxu0 0.0
        %8159 = vmatpush2.msra.mxu0 0.0
        %8160 = vmatprep.subr.mxu0 0.0
        %8161 = vmatpush2.msra.mxu0 0.0
        %8162 = vmatprep.subr.mxu0 0.0
        %8163 = vmatpush2.msra.mxu0 0.0
        %8164 = vmatprep.subr.mxu0 0.0
        %8165 = vmatpush2.msra.mxu0 0.0
        %8166 = vmatprep.subr.mxu0 0.0
        %8167 = vmatpush2.msra.mxu0 0.0
        %8168 = vmatprep.subr.mxu0 0.0
        %8169 = vmatpush2.msra.mxu0 0.0
        %8170 = vmatprep.subr.mxu0 0.0
        %8171 = vmatpush2.msra.mxu0 0.0
        %8172 = vmatprep.subr.mxu0 0.0
        %8173 = vmatpush2.msra.mxu0 0.0
        %8174 = vmatprep.subr.mxu0 0.0
        %8175 = vmatpush2.msra.mxu0 0.0
        %8176 = vmatprep.subr.mxu0 0.0
        %8177 = vmatpush2.msra.mxu0 0.0
        %8178 = vmatprep.subr.mxu0 0.0
        %8179 = vmatpush2.msra.mxu0 0.0
        %8180 = vmatprep.mubr.f32.mxu0 0.0
        %v8181 = vand.u32 %v7960, 4294901760
        %v8182 = vsub.f32 %v7960, %v8181
        %8183 = vmatmul.mubr.f32.gmra.mxu0 %v8182
        %v8184 = vpop.f32.mrf.mxu0
        %v8185 = vadd.f32 %v8111, %v8184
        %v8186 = vpop.f32.mrf.mxu0
        %8187 = vdwg.mxu0
        %8188 = vmatprep.subr.mxu0 0.0
        %8189 = vmatpush1.msra.mxu0 0.0
        %8190 = vmatprep.subr.mxu0 0.0
        %8191 = vmatpush1.msra.mxu0 0.0
        %8192 = vmatprep.subr.mxu0 0.0
        %8193 = vmatpush1.msra.mxu0 0.0
        %8194 = vmatprep.subr.mxu0 0.0
        %8195 = vmatpush1.msra.mxu0 0.0
        %8196 = vmatprep.subr.mxu0 0.0
        %8197 = vmatpush1.msra.mxu0 0.0
        %8198 = vmatprep.subr.mxu0 0.0
        %8199 = vmatpush1.msra.mxu0 0.0
        %8200 = vmatprep.subr.mxu0 0.0
        %8201 = vmatpush1.msra.mxu0 0.0
        %8202 = vmatprep.subr.mxu0 0.0
        %8203 = vmatpush1.msra.mxu0 0.0
        %8204 = vmatprep.subr.mxu0 0.0
        %8205 = vmatpush1.msra.mxu0 0.0
        %8206 = vmatprep.subr.mxu0 0.0
        %8207 = vmatpush1.msra.mxu0 0.0
        %8208 = vmatprep.subr.mxu0 0.0
        %8209 = vmatpush1.msra.mxu0 0.0
        %8210 = vmatprep.subr.mxu0 0.0
        %8211 = vmatpush1.msra.mxu0 0.0
        %8212 = vmatprep.subr.mxu0 0.0
        %8213 = vmatpush1.msra.mxu0 0.0
        %8214 = vmatprep.subr.mxu0 0.0
        %8215 = vmatpush1.msra.mxu0 0.0
        %8216 = vmatprep.subr.mxu0 0.0
        %8217 = vmatpush1.msra.mxu0 0.0
        %8218 = vmatprep.subr.mxu0 0.0
        %v8219 = vand.u32 %v362, 4294901760
        %8220 = vmatpush1.msra.mxu0 %v8219
        %8221 = vmatprep.subr.mxu0 0.0
        %8222 = vmatpush2.msra.mxu0 0.0
        %8223 = vmatprep.subr.mxu0 0.0
        %8224 = vmatpush2.msra.mxu0 0.0
        %8225 = vmatprep.subr.mxu0 0.0
        %8226 = vmatpush2.msra.mxu0 0.0
        %8227 = vmatprep.subr.mxu0 0.0
        %8228 = vmatpush2.msra.mxu0 0.0
        %8229 = vmatprep.subr.mxu0 0.0
        %8230 = vmatpush2.msra.mxu0 0.0
        %8231 = vmatprep.subr.mxu0 0.0
        %8232 = vmatpush2.msra.mxu0 0.0
        %8233 = vmatprep.subr.mxu0 0.0
        %8234 = vmatpush2.msra.mxu0 0.0
        %8235 = vmatprep.subr.mxu0 0.0
        %8236 = vmatpush2.msra.mxu0 0.0
        %8237 = vmatprep.subr.mxu0 0.0
        %8238 = vmatpush2.msra.mxu0 0.0
        %8239 = vmatprep.subr.mxu0 0.0
        %8240 = vmatpush2.msra.mxu0 0.0
        %8241 = vmatprep.subr.mxu0 0.0
        %8242 = vmatpush2.msra.mxu0 0.0
        %8243 = vmatprep.subr.mxu0 0.0
        %8244 = vmatpush2.msra.mxu0 0.0
        %8245 = vmatprep.subr.mxu0 0.0
        %8246 = vmatpush2.msra.mxu0 0.0
        %8247 = vmatprep.subr.mxu0 0.0
        %8248 = vmatpush2.msra.mxu0 0.0
        %8249 = vmatprep.subr.mxu0 0.0
        %8250 = vmatpush2.msra.mxu0 0.0
        %8251 = vmatprep.subr.mxu0 0.0
        %8252 = vmatpush2.msra.mxu0 0.0
        %8253 = vmatprep.mubr.f32.mxu0 0.0
        %v8254 = vand.u32 %v7960, 4294901760
        %v8255 = vsub.f32 %v7960, %v8254
        %v8256 = vand.u32 %v8255, 4294901760
        %8257 = vmatmul.mubr.f32.gmra.mxu0 %v8256
        %v8258 = vpop.f32.mrf.mxu0
        %v8259 = vadd.f32 %v8185, %v8258
        %v8260 = vpop.f32.mrf.mxu0
        %8261 = vdwg.mxu0
        %8262 = vmatprep.subr.mxu0 0.0
        %8263 = vmatpush1.msra.mxu0 0.0
        %8264 = vmatprep.subr.mxu0 0.0
        %8265 = vmatpush1.msra.mxu0 0.0
        %8266 = vmatprep.subr.mxu0 0.0
        %8267 = vmatpush1.msra.mxu0 0.0
        %8268 = vmatprep.subr.mxu0 0.0
        %8269 = vmatpush1.msra.mxu0 0.0
        %8270 = vmatprep.subr.mxu0 0.0
        %8271 = vmatpush1.msra.mxu0 0.0
        %8272 = vmatprep.subr.mxu0 0.0
        %8273 = vmatpush1.msra.mxu0 0.0
        %8274 = vmatprep.subr.mxu0 0.0
        %8275 = vmatpush1.msra.mxu0 0.0
        %8276 = vmatprep.subr.mxu0 0.0
        %8277 = vmatpush1.msra.mxu0 0.0
        %8278 = vmatprep.subr.mxu0 0.0
        %8279 = vmatpush1.msra.mxu0 0.0
        %8280 = vmatprep.subr.mxu0 0.0
        %8281 = vmatpush1.msra.mxu0 0.0
        %8282 = vmatprep.subr.mxu0 0.0
        %8283 = vmatpush1.msra.mxu0 0.0
        %8284 = vmatprep.subr.mxu0 0.0
        %8285 = vmatpush1.msra.mxu0 0.0
        %8286 = vmatprep.subr.mxu0 0.0
        %8287 = vmatpush1.msra.mxu0 0.0
        %8288 = vmatprep.subr.mxu0 0.0
        %8289 = vmatpush1.msra.mxu0 0.0
        %8290 = vmatprep.subr.mxu0 0.0
        %8291 = vmatpush1.msra.mxu0 0.0
        %8292 = vmatprep.subr.mxu0 0.0
        %v8293 = vand.u32 %v362, 4294901760
        %v8294 = vsub.f32 %v362, %v8293
        %v8295 = vand.u32 %v8294, 4294901760
        %8296 = vmatpush1.msra.mxu0 %v8295
        %8297 = vmatprep.subr.mxu0 0.0
        %8298 = vmatpush2.msra.mxu0 0.0
        %8299 = vmatprep.subr.mxu0 0.0
        %8300 = vmatpush2.msra.mxu0 0.0
        %8301 = vmatprep.subr.mxu0 0.0
        %8302 = vmatpush2.msra.mxu0 0.0
        %8303 = vmatprep.subr.mxu0 0.0
        %8304 = vmatpush2.msra.mxu0 0.0
        %8305 = vmatprep.subr.mxu0 0.0
        %8306 = vmatpush2.msra.mxu0 0.0
        %8307 = vmatprep.subr.mxu0 0.0
        %8308 = vmatpush2.msra.mxu0 0.0
        %8309 = vmatprep.subr.mxu0 0.0
        %8310 = vmatpush2.msra.mxu0 0.0
        %8311 = vmatprep.subr.mxu0 0.0
        %8312 = vmatpush2.msra.mxu0 0.0
        %8313 = vmatprep.subr.mxu0 0.0
        %8314 = vmatpush2.msra.mxu0 0.0
        %8315 = vmatprep.subr.mxu0 0.0
        %8316 = vmatpush2.msra.mxu0 0.0
        %8317 = vmatprep.subr.mxu0 0.0
        %8318 = vmatpush2.msra.mxu0 0.0
        %8319 = vmatprep.subr.mxu0 0.0
        %8320 = vmatpush2.msra.mxu0 0.0
        %8321 = vmatprep.subr.mxu0 0.0
        %8322 = vmatpush2.msra.mxu0 0.0
        %8323 = vmatprep.subr.mxu0 0.0
        %8324 = vmatpush2.msra.mxu0 0.0
        %8325 = vmatprep.subr.mxu0 0.0
        %8326 = vmatpush2.msra.mxu0 0.0
        %8327 = vmatprep.subr.mxu0 0.0
        %8328 = vmatpush2.msra.mxu0 0.0
        %8329 = vmatprep.mubr.f32.mxu0 0.0
        %v8330 = vand.u32 %v7960, 4294901760
        %8331 = vmatmul.mubr.f32.gmra.mxu0 %v8330
        %v8332 = vpop.f32.mrf.mxu0
        %v8333 = vadd.f32 %v8259, %v8332
        %v8334 = vpop.f32.mrf.mxu0
        %8335 = vdwg.mxu0
        %8336 = vmatprep.subr.mxu0 0.0
        %8337 = vmatpush1.msra.mxu0 0.0
        %8338 = vmatprep.subr.mxu0 0.0
        %8339 = vmatpush1.msra.mxu0 0.0
        %8340 = vmatprep.subr.mxu0 0.0
        %8341 = vmatpush1.msra.mxu0 0.0
        %8342 = vmatprep.subr.mxu0 0.0
        %8343 = vmatpush1.msra.mxu0 0.0
        %8344 = vmatprep.subr.mxu0 0.0
        %8345 = vmatpush1.msra.mxu0 0.0
        %8346 = vmatprep.subr.mxu0 0.0
        %8347 = vmatpush1.msra.mxu0 0.0
        %8348 = vmatprep.subr.mxu0 0.0
        %8349 = vmatpush1.msra.mxu0 0.0
        %8350 = vmatprep.subr.mxu0 0.0
        %8351 = vmatpush1.msra.mxu0 0.0
        %8352 = vmatprep.subr.mxu0 0.0
        %8353 = vmatpush1.msra.mxu0 0.0
        %8354 = vmatprep.subr.mxu0 0.0
        %8355 = vmatpush1.msra.mxu0 0.0
        %8356 = vmatprep.subr.mxu0 0.0
        %8357 = vmatpush1.msra.mxu0 0.0
        %8358 = vmatprep.subr.mxu0 0.0
        %8359 = vmatpush1.msra.mxu0 0.0
        %8360 = vmatprep.subr.mxu0 0.0
        %8361 = vmatpush1.msra.mxu0 0.0
        %8362 = vmatprep.subr.mxu0 0.0
        %8363 = vmatpush1.msra.mxu0 0.0
        %8364 = vmatprep.subr.mxu0 0.0
        %8365 = vmatpush1.msra.mxu0 0.0
        %8366 = vmatprep.subr.mxu0 0.0
        %v8367 = vand.u32 %v362, 4294901760
        %8368 = vmatpush1.msra.mxu0 %v8367
        %8369 = vmatprep.subr.mxu0 0.0
        %8370 = vmatpush2.msra.mxu0 0.0
        %8371 = vmatprep.subr.mxu0 0.0
        %8372 = vmatpush2.msra.mxu0 0.0
        %8373 = vmatprep.subr.mxu0 0.0
        %8374 = vmatpush2.msra.mxu0 0.0
        %8375 = vmatprep.subr.mxu0 0.0
        %8376 = vmatpush2.msra.mxu0 0.0
        %8377 = vmatprep.subr.mxu0 0.0
        %8378 = vmatpush2.msra.mxu0 0.0
        %8379 = vmatprep.subr.mxu0 0.0
        %8380 = vmatpush2.msra.mxu0 0.0
        %8381 = vmatprep.subr.mxu0 0.0
        %8382 = vmatpush2.msra.mxu0 0.0
        %8383 = vmatprep.subr.mxu0 0.0
        %8384 = vmatpush2.msra.mxu0 0.0
        %8385 = vmatprep.subr.mxu0 0.0
        %8386 = vmatpush2.msra.mxu0 0.0
        %8387 = vmatprep.subr.mxu0 0.0
        %8388 = vmatpush2.msra.mxu0 0.0
        %8389 = vmatprep.subr.mxu0 0.0
        %8390 = vmatpush2.msra.mxu0 0.0
        %8391 = vmatprep.subr.mxu0 0.0
        %8392 = vmatpush2.msra.mxu0 0.0
        %8393 = vmatprep.subr.mxu0 0.0
        %8394 = vmatpush2.msra.mxu0 0.0
        %8395 = vmatprep.subr.mxu0 0.0
        %8396 = vmatpush2.msra.mxu0 0.0
        %8397 = vmatprep.subr.mxu0 0.0
        %8398 = vmatpush2.msra.mxu0 0.0
        %8399 = vmatprep.subr.mxu0 0.0
        %8400 = vmatpush2.msra.mxu0 0.0
        %8401 = vmatprep.mubr.f32.mxu0 0.0
        %v8402 = vand.u32 %v7960, 4294901760
        %8403 = vmatmul.mubr.f32.gmra.mxu0 %v8402
        %v8404 = vpop.f32.mrf.mxu0
        %v8405 = vadd.f32 %v8333, %v8404
        %v8406 = vpop.f32.mrf.mxu0
        %8407 = vdwg.mxu0
        %v8408 = vsub.f32 %v7315, %v8405
        %v8409 = vmul.f32 %v8408, %v8408
        %8410 = vmatprep.subr.mxu0 0.0
        %v8411 = vand.u32 %v361, 4294901760
        %8412 = vmatpush1.msra.mxu0 %v8411
        %8413 = vmatprep.subr.mxu0 0.0
        %v8414 = vand.u32 %v360, 4294901760
        %8415 = vmatpush1.msra.mxu0 %v8414
        %8416 = vmatprep.subr.mxu0 0.0
        %v8417 = vand.u32 %v359, 4294901760
        %8418 = vmatpush1.msra.mxu0 %v8417
        %8419 = vmatprep.subr.mxu0 0.0
        %v8420 = vand.u32 %v358, 4294901760
        %8421 = vmatpush1.msra.mxu0 %v8420
        %8422 = vmatprep.subr.mxu0 0.0
        %v8423 = vand.u32 %v357, 4294901760
        %8424 = vmatpush1.msra.mxu0 %v8423
        %8425 = vmatprep.subr.mxu0 0.0
        %v8426 = vand.u32 %v356, 4294901760
        %8427 = vmatpush1.msra.mxu0 %v8426
        %8428 = vmatprep.subr.mxu0 0.0
        %v8429 = vand.u32 %v355, 4294901760
        %8430 = vmatpush1.msra.mxu0 %v8429
        %8431 = vmatprep.subr.mxu0 0.0
        %v8432 = vand.u32 %v354, 4294901760
        %8433 = vmatpush1.msra.mxu0 %v8432
        %8434 = vmatprep.subr.mxu0 0.0
        %v8435 = vand.u32 %v353, 4294901760
        %8436 = vmatpush1.msra.mxu0 %v8435
        %8437 = vmatprep.subr.mxu0 0.0
        %v8438 = vand.u32 %v352, 4294901760
        %8439 = vmatpush1.msra.mxu0 %v8438
        %8440 = vmatprep.subr.mxu0 0.0
        %v8441 = vand.u32 %v351, 4294901760
        %8442 = vmatpush1.msra.mxu0 %v8441
        %8443 = vmatprep.subr.mxu0 0.0
        %v8444 = vand.u32 %v350, 4294901760
        %8445 = vmatpush1.msra.mxu0 %v8444
        %8446 = vmatprep.subr.mxu0 0.0
        %v8447 = vand.u32 %v349, 4294901760
        %8448 = vmatpush1.msra.mxu0 %v8447
        %8449 = vmatprep.subr.mxu0 0.0
        %v8450 = vand.u32 %v348, 4294901760
        %8451 = vmatpush1.msra.mxu0 %v8450
        %8452 = vmatprep.subr.mxu0 0.0
        %v8453 = vand.u32 %v347, 4294901760
        %8454 = vmatpush1.msra.mxu0 %v8453
        %8455 = vmatprep.subr.mxu0 0.0
        %v8456 = vand.u32 %v346, 4294901760
        %8457 = vmatpush1.msra.mxu0 %v8456
        %8458 = vmatprep.subr.mxu0 0.0
        %8459 = vmatpush2.msra.mxu0 0.0
        %8460 = vmatprep.subr.mxu0 0.0
        %8461 = vmatpush2.msra.mxu0 0.0
        %8462 = vmatprep.subr.mxu0 0.0
        %8463 = vmatpush2.msra.mxu0 0.0
        %8464 = vmatprep.subr.mxu0 0.0
        %8465 = vmatpush2.msra.mxu0 0.0
        %8466 = vmatprep.subr.mxu0 0.0
        %8467 = vmatpush2.msra.mxu0 0.0
        %8468 = vmatprep.subr.mxu0 0.0
        %8469 = vmatpush2.msra.mxu0 0.0
        %8470 = vmatprep.subr.mxu0 0.0
        %8471 = vmatpush2.msra.mxu0 0.0
        %8472 = vmatprep.subr.mxu0 0.0
        %8473 = vmatpush2.msra.mxu0 0.0
        %8474 = vmatprep.subr.mxu0 0.0
        %8475 = vmatpush2.msra.mxu0 0.0
        %8476 = vmatprep.subr.mxu0 0.0
        %8477 = vmatpush2.msra.mxu0 0.0
        %8478 = vmatprep.subr.mxu0 0.0
        %8479 = vmatpush2.msra.mxu0 0.0
        %8480 = vmatprep.subr.mxu0 0.0
        %8481 = vmatpush2.msra.mxu0 0.0
        %8482 = vmatprep.subr.mxu0 0.0
        %8483 = vmatpush2.msra.mxu0 0.0
        %8484 = vmatprep.subr.mxu0 0.0
        %8485 = vmatpush2.msra.mxu0 0.0
        %8486 = vmatprep.subr.mxu0 0.0
        %8487 = vmatpush2.msra.mxu0 0.0
        %8488 = vmatprep.subr.mxu0 0.0
        %8489 = vmatpush2.msra.mxu0 0.0
        %8490 = vmatprep.mubr.f32.mxu0 0.0
        %v8491 = vand.u32 %v8409, 4294901760
        %v8492 = vsub.f32 %v8409, %v8491
        %v8493 = vand.u32 %v8492, 4294901760
        %v8494 = vsub.f32 %v8492, %v8493
        %v8495 = vand.u32 %v8494, 4294901760
        %8496 = vmatmul.mubr.f32.gmra.mxu0 %v8495
        %v8497 = vpop.f32.mrf.mxu0
        %v8498 = vadd.f32 1e-05, %v8497
        %v8499 = vpop.f32.mrf.mxu0
        %8500 = vdwg.mxu0
        %8501 = vmatprep.subr.mxu0 0.0
        %v8502 = vand.u32 %v361, 4294901760
        %v8503 = vsub.f32 %v361, %v8502
        %v8504 = vand.u32 %v8503, 4294901760
        %v8505 = vsub.f32 %v8503, %v8504
        %v8506 = vand.u32 %v8505, 4294901760
        %8507 = vmatpush1.msra.mxu0 %v8506
        %8508 = vmatprep.subr.mxu0 0.0
        %v8509 = vand.u32 %v360, 4294901760
        %v8510 = vsub.f32 %v360, %v8509
        %v8511 = vand.u32 %v8510, 4294901760
        %v8512 = vsub.f32 %v8510, %v8511
        %v8513 = vand.u32 %v8512, 4294901760
        %8514 = vmatpush1.msra.mxu0 %v8513
        %8515 = vmatprep.subr.mxu0 0.0
        %v8516 = vand.u32 %v359, 4294901760
        %v8517 = vsub.f32 %v359, %v8516
        %v8518 = vand.u32 %v8517, 4294901760
        %v8519 = vsub.f32 %v8517, %v8518
        %v8520 = vand.u32 %v8519, 4294901760
        %8521 = vmatpush1.msra.mxu0 %v8520
        %8522 = vmatprep.subr.mxu0 0.0
        %v8523 = vand.u32 %v358, 4294901760
        %v8524 = vsub.f32 %v358, %v8523
        %v8525 = vand.u32 %v8524, 4294901760
        %v8526 = vsub.f32 %v8524, %v8525
        %v8527 = vand.u32 %v8526, 4294901760
        %8528 = vmatpush1.msra.mxu0 %v8527
        %8529 = vmatprep.subr.mxu0 0.0
        %v8530 = vand.u32 %v357, 4294901760
        %v8531 = vsub.f32 %v357, %v8530
        %v8532 = vand.u32 %v8531, 4294901760
        %v8533 = vsub.f32 %v8531, %v8532
        %v8534 = vand.u32 %v8533, 4294901760
        %8535 = vmatpush1.msra.mxu0 %v8534
        %8536 = vmatprep.subr.mxu0 0.0
        %v8537 = vand.u32 %v356, 4294901760
        %v8538 = vsub.f32 %v356, %v8537
        %v8539 = vand.u32 %v8538, 4294901760
        %v8540 = vsub.f32 %v8538, %v8539
        %v8541 = vand.u32 %v8540, 4294901760
        %8542 = vmatpush1.msra.mxu0 %v8541
        %8543 = vmatprep.subr.mxu0 0.0
        %v8544 = vand.u32 %v355, 4294901760
        %v8545 = vsub.f32 %v355, %v8544
        %v8546 = vand.u32 %v8545, 4294901760
        %v8547 = vsub.f32 %v8545, %v8546
        %v8548 = vand.u32 %v8547, 4294901760
        %8549 = vmatpush1.msra.mxu0 %v8548
        %8550 = vmatprep.subr.mxu0 0.0
        %v8551 = vand.u32 %v354, 4294901760
        %v8552 = vsub.f32 %v354, %v8551
        %v8553 = vand.u32 %v8552, 4294901760
        %v8554 = vsub.f32 %v8552, %v8553
        %v8555 = vand.u32 %v8554, 4294901760
        %8556 = vmatpush1.msra.mxu0 %v8555
        %8557 = vmatprep.subr.mxu0 0.0
        %v8558 = vand.u32 %v353, 4294901760
        %v8559 = vsub.f32 %v353, %v8558
        %v8560 = vand.u32 %v8559, 4294901760
        %v8561 = vsub.f32 %v8559, %v8560
        %v8562 = vand.u32 %v8561, 4294901760
        %8563 = vmatpush1.msra.mxu0 %v8562
        %8564 = vmatprep.subr.mxu0 0.0
        %v8565 = vand.u32 %v352, 4294901760
        %v8566 = vsub.f32 %v352, %v8565
        %v8567 = vand.u32 %v8566, 4294901760
        %v8568 = vsub.f32 %v8566, %v8567
        %v8569 = vand.u32 %v8568, 4294901760
        %8570 = vmatpush1.msra.mxu0 %v8569
        %8571 = vmatprep.subr.mxu0 0.0
        %v8572 = vand.u32 %v351, 4294901760
        %v8573 = vsub.f32 %v351, %v8572
        %v8574 = vand.u32 %v8573, 4294901760
        %v8575 = vsub.f32 %v8573, %v8574
        %v8576 = vand.u32 %v8575, 4294901760
        %8577 = vmatpush1.msra.mxu0 %v8576
        %8578 = vmatprep.subr.mxu0 0.0
        %v8579 = vand.u32 %v350, 4294901760
        %v8580 = vsub.f32 %v350, %v8579
        %v8581 = vand.u32 %v8580, 4294901760
        %v8582 = vsub.f32 %v8580, %v8581
        %v8583 = vand.u32 %v8582, 4294901760
        %8584 = vmatpush1.msra.mxu0 %v8583
        %8585 = vmatprep.subr.mxu0 0.0
        %v8586 = vand.u32 %v349, 4294901760
        %v8587 = vsub.f32 %v349, %v8586
        %v8588 = vand.u32 %v8587, 4294901760
        %v8589 = vsub.f32 %v8587, %v8588
        %v8590 = vand.u32 %v8589, 4294901760
        %8591 = vmatpush1.msra.mxu0 %v8590
        %8592 = vmatprep.subr.mxu0 0.0
        %v8593 = vand.u32 %v348, 4294901760
        %v8594 = vsub.f32 %v348, %v8593
        %v8595 = vand.u32 %v8594, 4294901760
        %v8596 = vsub.f32 %v8594, %v8595
        %v8597 = vand.u32 %v8596, 4294901760
        %8598 = vmatpush1.msra.mxu0 %v8597
        %8599 = vmatprep.subr.mxu0 0.0
        %v8600 = vand.u32 %v347, 4294901760
        %v8601 = vsub.f32 %v347, %v8600
        %v8602 = vand.u32 %v8601, 4294901760
        %v8603 = vsub.f32 %v8601, %v8602
        %v8604 = vand.u32 %v8603, 4294901760
        %8605 = vmatpush1.msra.mxu0 %v8604
        %8606 = vmatprep.subr.mxu0 0.0
        %v8607 = vand.u32 %v346, 4294901760
        %v8608 = vsub.f32 %v346, %v8607
        %v8609 = vand.u32 %v8608, 4294901760
        %v8610 = vsub.f32 %v8608, %v8609
        %v8611 = vand.u32 %v8610, 4294901760
        %8612 = vmatpush1.msra.mxu0 %v8611
        %8613 = vmatprep.subr.mxu0 0.0
        %8614 = vmatpush2.msra.mxu0 0.0
        %8615 = vmatprep.subr.mxu0 0.0
        %8616 = vmatpush2.msra.mxu0 0.0
        %8617 = vmatprep.subr.mxu0 0.0
        %8618 = vmatpush2.msra.mxu0 0.0
        %8619 = vmatprep.subr.mxu0 0.0
        %8620 = vmatpush2.msra.mxu0 0.0
        %8621 = vmatprep.subr.mxu0 0.0
        %8622 = vmatpush2.msra.mxu0 0.0
        %8623 = vmatprep.subr.mxu0 0.0
        %8624 = vmatpush2.msra.mxu0 0.0
        %8625 = vmatprep.subr.mxu0 0.0
        %8626 = vmatpush2.msra.mxu0 0.0
        %8627 = vmatprep.subr.mxu0 0.0
        %8628 = vmatpush2.msra.mxu0 0.0
        %8629 = vmatprep.subr.mxu0 0.0
        %8630 = vmatpush2.msra.mxu0 0.0
        %8631 = vmatprep.subr.mxu0 0.0
        %8632 = vmatpush2.msra.mxu0 0.0
        %8633 = vmatprep.subr.mxu0 0.0
        %8634 = vmatpush2.msra.mxu0 0.0
        %8635 = vmatprep.subr.mxu0 0.0
        %8636 = vmatpush2.msra.mxu0 0.0
        %8637 = vmatprep.subr.mxu0 0.0
        %8638 = vmatpush2.msra.mxu0 0.0
        %8639 = vmatprep.subr.mxu0 0.0
        %8640 = vmatpush2.msra.mxu0 0.0
        %8641 = vmatprep.subr.mxu0 0.0
        %8642 = vmatpush2.msra.mxu0 0.0
        %8643 = vmatprep.subr.mxu0 0.0
        %8644 = vmatpush2.msra.mxu0 0.0
        %8645 = vmatprep.mubr.f32.mxu0 0.0
        %v8646 = vand.u32 %v8409, 4294901760
        %8647 = vmatmul.mubr.f32.gmra.mxu0 %v8646
        %v8648 = vpop.f32.mrf.mxu0
        %v8649 = vadd.f32 %v8498, %v8648
        %v8650 = vpop.f32.mrf.mxu0
        %8651 = vdwg.mxu0
        %8652 = vmatprep.subr.mxu0 0.0
        %v8653 = vand.u32 %v361, 4294901760
        %v8654 = vsub.f32 %v361, %v8653
        %8655 = vmatpush1.msra.mxu0 %v8654
        %8656 = vmatprep.subr.mxu0 0.0
        %v8657 = vand.u32 %v360, 4294901760
        %v8658 = vsub.f32 %v360, %v8657
        %8659 = vmatpush1.msra.mxu0 %v8658
        %8660 = vmatprep.subr.mxu0 0.0
        %v8661 = vand.u32 %v359, 4294901760
        %v8662 = vsub.f32 %v359, %v8661
        %8663 = vmatpush1.msra.mxu0 %v8662
        %8664 = vmatprep.subr.mxu0 0.0
        %v8665 = vand.u32 %v358, 4294901760
        %v8666 = vsub.f32 %v358, %v8665
        %8667 = vmatpush1.msra.mxu0 %v8666
        %8668 = vmatprep.subr.mxu0 0.0
        %v8669 = vand.u32 %v357, 4294901760
        %v8670 = vsub.f32 %v357, %v8669
        %8671 = vmatpush1.msra.mxu0 %v8670
        %8672 = vmatprep.subr.mxu0 0.0
        %v8673 = vand.u32 %v356, 4294901760
        %v8674 = vsub.f32 %v356, %v8673
        %8675 = vmatpush1.msra.mxu0 %v8674
        %8676 = vmatprep.subr.mxu0 0.0
        %v8677 = vand.u32 %v355, 4294901760
        %v8678 = vsub.f32 %v355, %v8677
        %8679 = vmatpush1.msra.mxu0 %v8678
        %8680 = vmatprep.subr.mxu0 0.0
        %v8681 = vand.u32 %v354, 4294901760
        %v8682 = vsub.f32 %v354, %v8681
        %8683 = vmatpush1.msra.mxu0 %v8682
        %8684 = vmatprep.subr.mxu0 0.0
        %v8685 = vand.u32 %v353, 4294901760
        %v8686 = vsub.f32 %v353, %v8685
        %8687 = vmatpush1.msra.mxu0 %v8686
        %8688 = vmatprep.subr.mxu0 0.0
        %v8689 = vand.u32 %v352, 4294901760
        %v8690 = vsub.f32 %v352, %v8689
        %8691 = vmatpush1.msra.mxu0 %v8690
        %8692 = vmatprep.subr.mxu0 0.0
        %v8693 = vand.u32 %v351, 4294901760
        %v8694 = vsub.f32 %v351, %v8693
        %8695 = vmatpush1.msra.mxu0 %v8694
        %8696 = vmatprep.subr.mxu0 0.0
        %v8697 = vand.u32 %v350, 4294901760
        %v8698 = vsub.f32 %v350, %v8697
        %8699 = vmatpush1.msra.mxu0 %v8698
        %8700 = vmatprep.subr.mxu0 0.0
        %v8701 = vand.u32 %v349, 4294901760
        %v8702 = vsub.f32 %v349, %v8701
        %8703 = vmatpush1.msra.mxu0 %v8702
        %8704 = vmatprep.subr.mxu0 0.0
        %v8705 = vand.u32 %v348, 4294901760
        %v8706 = vsub.f32 %v348, %v8705
        %8707 = vmatpush1.msra.mxu0 %v8706
        %8708 = vmatprep.subr.mxu0 0.0
        %v8709 = vand.u32 %v347, 4294901760
        %v8710 = vsub.f32 %v347, %v8709
        %8711 = vmatpush1.msra.mxu0 %v8710
        %8712 = vmatprep.subr.mxu0 0.0
        %v8713 = vand.u32 %v346, 4294901760
        %v8714 = vsub.f32 %v346, %v8713
        %8715 = vmatpush1.msra.mxu0 %v8714
        %8716 = vmatprep.subr.mxu0 0.0
        %8717 = vmatpush2.msra.mxu0 0.0
        %8718 = vmatprep.subr.mxu0 0.0
        %8719 = vmatpush2.msra.mxu0 0.0
        %8720 = vmatprep.subr.mxu0 0.0
        %8721 = vmatpush2.msra.mxu0 0.0
        %8722 = vmatprep.subr.mxu0 0.0
        %8723 = vmatpush2.msra.mxu0 0.0
        %8724 = vmatprep.subr.mxu0 0.0
        %8725 = vmatpush2.msra.mxu0 0.0
        %8726 = vmatprep.subr.mxu0 0.0
        %8727 = vmatpush2.msra.mxu0 0.0
        %8728 = vmatprep.subr.mxu0 0.0
        %8729 = vmatpush2.msra.mxu0 0.0
        %8730 = vmatprep.subr.mxu0 0.0
        %8731 = vmatpush2.msra.mxu0 0.0
        %8732 = vmatprep.subr.mxu0 0.0
        %8733 = vmatpush2.msra.mxu0 0.0
        %8734 = vmatprep.subr.mxu0 0.0
        %8735 = vmatpush2.msra.mxu0 0.0
        %8736 = vmatprep.subr.mxu0 0.0
        %8737 = vmatpush2.msra.mxu0 0.0
        %8738 = vmatprep.subr.mxu0 0.0
        %8739 = vmatpush2.msra.mxu0 0.0
        %8740 = vmatprep.subr.mxu0 0.0
        %8741 = vmatpush2.msra.mxu0 0.0
        %8742 = vmatprep.subr.mxu0 0.0
        %8743 = vmatpush2.msra.mxu0 0.0
        %8744 = vmatprep.subr.mxu0 0.0
        %8745 = vmatpush2.msra.mxu0 0.0
        %8746 = vmatprep.subr.mxu0 0.0
        %8747 = vmatpush2.msra.mxu0 0.0
        %8748 = vmatprep.mubr.f32.mxu0 0.0
        %v8749 = vand.u32 %v8409, 4294901760
        %v8750 = vsub.f32 %v8409, %v8749
        %8751 = vmatmul.mubr.f32.gmra.mxu0 %v8750
        %v8752 = vpop.f32.mrf.mxu0
        %v8753 = vadd.f32 %v8649, %v8752
        %v8754 = vpop.f32.mrf.mxu0
        %8755 = vdwg.mxu0
        %8756 = vmatprep.subr.mxu0 0.0
        %v8757 = vand.u32 %v361, 4294901760
        %8758 = vmatpush1.msra.mxu0 %v8757
        %8759 = vmatprep.subr.mxu0 0.0
        %v8760 = vand.u32 %v360, 4294901760
        %8761 = vmatpush1.msra.mxu0 %v8760
        %8762 = vmatprep.subr.mxu0 0.0
        %v8763 = vand.u32 %v359, 4294901760
        %8764 = vmatpush1.msra.mxu0 %v8763
        %8765 = vmatprep.subr.mxu0 0.0
        %v8766 = vand.u32 %v358, 4294901760
        %8767 = vmatpush1.msra.mxu0 %v8766
        %8768 = vmatprep.subr.mxu0 0.0
        %v8769 = vand.u32 %v357, 4294901760
        %8770 = vmatpush1.msra.mxu0 %v8769
        %8771 = vmatprep.subr.mxu0 0.0
        %v8772 = vand.u32 %v356, 4294901760
        %8773 = vmatpush1.msra.mxu0 %v8772
        %8774 = vmatprep.subr.mxu0 0.0
        %v8775 = vand.u32 %v355, 4294901760
        %8776 = vmatpush1.msra.mxu0 %v8775
        %8777 = vmatprep.subr.mxu0 0.0
        %v8778 = vand.u32 %v354, 4294901760
        %8779 = vmatpush1.msra.mxu0 %v8778
        %8780 = vmatprep.subr.mxu0 0.0
        %v8781 = vand.u32 %v353, 4294901760
        %8782 = vmatpush1.msra.mxu0 %v8781
        %8783 = vmatprep.subr.mxu0 0.0
        %v8784 = vand.u32 %v352, 4294901760
        %8785 = vmatpush1.msra.mxu0 %v8784
        %8786 = vmatprep.subr.mxu0 0.0
        %v8787 = vand.u32 %v351, 4294901760
        %8788 = vmatpush1.msra.mxu0 %v8787
        %8789 = vmatprep.subr.mxu0 0.0
        %v8790 = vand.u32 %v350, 4294901760
        %8791 = vmatpush1.msra.mxu0 %v8790
        %8792 = vmatprep.subr.mxu0 0.0
        %v8793 = vand.u32 %v349, 4294901760
        %8794 = vmatpush1.msra.mxu0 %v8793
        %8795 = vmatprep.subr.mxu0 0.0
        %v8796 = vand.u32 %v348, 4294901760
        %8797 = vmatpush1.msra.mxu0 %v8796
        %8798 = vmatprep.subr.mxu0 0.0
        %v8799 = vand.u32 %v347, 4294901760
        %8800 = vmatpush1.msra.mxu0 %v8799
        %8801 = vmatprep.subr.mxu0 0.0
        %v8802 = vand.u32 %v346, 4294901760
        %8803 = vmatpush1.msra.mxu0 %v8802
        %8804 = vmatprep.subr.mxu0 0.0
        %8805 = vmatpush2.msra.mxu0 0.0
        %8806 = vmatprep.subr.mxu0 0.0
        %8807 = vmatpush2.msra.mxu0 0.0
        %8808 = vmatprep.subr.mxu0 0.0
        %8809 = vmatpush2.msra.mxu0 0.0
        %8810 = vmatprep.subr.mxu0 0.0
        %8811 = vmatpush2.msra.mxu0 0.0
        %8812 = vmatprep.subr.mxu0 0.0
        %8813 = vmatpush2.msra.mxu0 0.0
        %8814 = vmatprep.subr.mxu0 0.0
        %8815 = vmatpush2.msra.mxu0 0.0
        %8816 = vmatprep.subr.mxu0 0.0
        %8817 = vmatpush2.msra.mxu0 0.0
        %8818 = vmatprep.subr.mxu0 0.0
        %8819 = vmatpush2.msra.mxu0 0.0
        %8820 = vmatprep.subr.mxu0 0.0
        %8821 = vmatpush2.msra.mxu0 0.0
        %8822 = vmatprep.subr.mxu0 0.0
        %8823 = vmatpush2.msra.mxu0 0.0
        %8824 = vmatprep.subr.mxu0 0.0
        %8825 = vmatpush2.msra.mxu0 0.0
        %8826 = vmatprep.subr.mxu0 0.0
        %8827 = vmatpush2.msra.mxu0 0.0
        %8828 = vmatprep.subr.mxu0 0.0
        %8829 = vmatpush2.msra.mxu0 0.0
        %8830 = vmatprep.subr.mxu0 0.0
        %8831 = vmatpush2.msra.mxu0 0.0
        %8832 = vmatprep.subr.mxu0 0.0
        %8833 = vmatpush2.msra.mxu0 0.0
        %8834 = vmatprep.subr.mxu0 0.0
        %8835 = vmatpush2.msra.mxu0 0.0
        %8836 = vmatprep.mubr.f32.mxu0 0.0
        %v8837 = vand.u32 %v8409, 4294901760
        %v8838 = vsub.f32 %v8409, %v8837
        %v8839 = vand.u32 %v8838, 4294901760
        %8840 = vmatmul.mubr.f32.gmra.mxu0 %v8839
        %v8841 = vpop.f32.mrf.mxu0
        %v8842 = vadd.f32 %v8753, %v8841
        %v8843 = vpop.f32.mrf.mxu0
        %8844 = vdwg.mxu0
        %8845 = vmatprep.subr.mxu0 0.0
        %v8846 = vand.u32 %v361, 4294901760
        %v8847 = vsub.f32 %v361, %v8846
        %v8848 = vand.u32 %v8847, 4294901760
        %8849 = vmatpush1.msra.mxu0 %v8848
        %8850 = vmatprep.subr.mxu0 0.0
        %v8851 = vand.u32 %v360, 4294901760
        %v8852 = vsub.f32 %v360, %v8851
        %v8853 = vand.u32 %v8852, 4294901760
        %8854 = vmatpush1.msra.mxu0 %v8853
        %8855 = vmatprep.subr.mxu0 0.0
        %v8856 = vand.u32 %v359, 4294901760
        %v8857 = vsub.f32 %v359, %v8856
        %v8858 = vand.u32 %v8857, 4294901760
        %8859 = vmatpush1.msra.mxu0 %v8858
        %8860 = vmatprep.subr.mxu0 0.0
        %v8861 = vand.u32 %v358, 4294901760
        %v8862 = vsub.f32 %v358, %v8861
        %v8863 = vand.u32 %v8862, 4294901760
        %8864 = vmatpush1.msra.mxu0 %v8863
        %8865 = vmatprep.subr.mxu0 0.0
        %v8866 = vand.u32 %v357, 4294901760
        %v8867 = vsub.f32 %v357, %v8866
        %v8868 = vand.u32 %v8867, 4294901760
        %8869 = vmatpush1.msra.mxu0 %v8868
        %8870 = vmatprep.subr.mxu0 0.0
        %v8871 = vand.u32 %v356, 4294901760
        %v8872 = vsub.f32 %v356, %v8871
        %v8873 = vand.u32 %v8872, 4294901760
        %8874 = vmatpush1.msra.mxu0 %v8873
        %8875 = vmatprep.subr.mxu0 0.0
        %v8876 = vand.u32 %v355, 4294901760
        %v8877 = vsub.f32 %v355, %v8876
        %v8878 = vand.u32 %v8877, 4294901760
        %8879 = vmatpush1.msra.mxu0 %v8878
        %8880 = vmatprep.subr.mxu0 0.0
        %v8881 = vand.u32 %v354, 4294901760
        %v8882 = vsub.f32 %v354, %v8881
        %v8883 = vand.u32 %v8882, 4294901760
        %8884 = vmatpush1.msra.mxu0 %v8883
        %8885 = vmatprep.subr.mxu0 0.0
        %v8886 = vand.u32 %v353, 4294901760
        %v8887 = vsub.f32 %v353, %v8886
        %v8888 = vand.u32 %v8887, 4294901760
        %8889 = vmatpush1.msra.mxu0 %v8888
        %8890 = vmatprep.subr.mxu0 0.0
        %v8891 = vand.u32 %v352, 4294901760
        %v8892 = vsub.f32 %v352, %v8891
        %v8893 = vand.u32 %v8892, 4294901760
        %8894 = vmatpush1.msra.mxu0 %v8893
        %8895 = vmatprep.subr.mxu0 0.0
        %v8896 = vand.u32 %v351, 4294901760
        %v8897 = vsub.f32 %v351, %v8896
        %v8898 = vand.u32 %v8897, 4294901760
        %8899 = vmatpush1.msra.mxu0 %v8898
        %8900 = vmatprep.subr.mxu0 0.0
        %v8901 = vand.u32 %v350, 4294901760
        %v8902 = vsub.f32 %v350, %v8901
        %v8903 = vand.u32 %v8902, 4294901760
        %8904 = vmatpush1.msra.mxu0 %v8903
        %8905 = vmatprep.subr.mxu0 0.0
        %v8906 = vand.u32 %v349, 4294901760
        %v8907 = vsub.f32 %v349, %v8906
        %v8908 = vand.u32 %v8907, 4294901760
        %8909 = vmatpush1.msra.mxu0 %v8908
        %8910 = vmatprep.subr.mxu0 0.0
        %v8911 = vand.u32 %v348, 4294901760
        %v8912 = vsub.f32 %v348, %v8911
        %v8913 = vand.u32 %v8912, 4294901760
        %8914 = vmatpush1.msra.mxu0 %v8913
        %8915 = vmatprep.subr.mxu0 0.0
        %v8916 = vand.u32 %v347, 4294901760
        %v8917 = vsub.f32 %v347, %v8916
        %v8918 = vand.u32 %v8917, 4294901760
        %8919 = vmatpush1.msra.mxu0 %v8918
        %8920 = vmatprep.subr.mxu0 0.0
        %v8921 = vand.u32 %v346, 4294901760
        %v8922 = vsub.f32 %v346, %v8921
        %v8923 = vand.u32 %v8922, 4294901760
        %8924 = vmatpush1.msra.mxu0 %v8923
        %8925 = vmatprep.subr.mxu0 0.0
        %8926 = vmatpush2.msra.mxu0 0.0
        %8927 = vmatprep.subr.mxu0 0.0
        %8928 = vmatpush2.msra.mxu0 0.0
        %8929 = vmatprep.subr.mxu0 0.0
        %8930 = vmatpush2.msra.mxu0 0.0
        %8931 = vmatprep.subr.mxu0 0.0
        %8932 = vmatpush2.msra.mxu0 0.0
        %8933 = vmatprep.subr.mxu0 0.0
        %8934 = vmatpush2.msra.mxu0 0.0
        %8935 = vmatprep.subr.mxu0 0.0
        %8936 = vmatpush2.msra.mxu0 0.0
        %8937 = vmatprep.subr.mxu0 0.0
        %8938 = vmatpush2.msra.mxu0 0.0
        %8939 = vmatprep.subr.mxu0 0.0
        %8940 = vmatpush2.msra.mxu0 0.0
        %8941 = vmatprep.subr.mxu0 0.0
        %8942 = vmatpush2.msra.mxu0 0.0
        %8943 = vmatprep.subr.mxu0 0.0
        %8944 = vmatpush2.msra.mxu0 0.0
        %8945 = vmatprep.subr.mxu0 0.0
        %8946 = vmatpush2.msra.mxu0 0.0
        %8947 = vmatprep.subr.mxu0 0.0
        %8948 = vmatpush2.msra.mxu0 0.0
        %8949 = vmatprep.subr.mxu0 0.0
        %8950 = vmatpush2.msra.mxu0 0.0
        %8951 = vmatprep.subr.mxu0 0.0
        %8952 = vmatpush2.msra.mxu0 0.0
        %8953 = vmatprep.subr.mxu0 0.0
        %8954 = vmatpush2.msra.mxu0 0.0
        %8955 = vmatprep.subr.mxu0 0.0
        %8956 = vmatpush2.msra.mxu0 0.0
        %8957 = vmatprep.mubr.f32.mxu0 0.0
        %v8958 = vand.u32 %v8409, 4294901760
        %8959 = vmatmul.mubr.f32.gmra.mxu0 %v8958
        %v8960 = vpop.f32.mrf.mxu0
        %v8961 = vadd.f32 %v8842, %v8960
        %v8962 = vpop.f32.mrf.mxu0
        %8963 = vdwg.mxu0
        %8964 = vmatprep.subr.mxu0 0.0
        %v8965 = vand.u32 %v361, 4294901760
        %8966 = vmatpush1.msra.mxu0 %v8965
        %8967 = vmatprep.subr.mxu0 0.0
        %v8968 = vand.u32 %v360, 4294901760
        %8969 = vmatpush1.msra.mxu0 %v8968
        %8970 = vmatprep.subr.mxu0 0.0
        %v8971 = vand.u32 %v359, 4294901760
        %8972 = vmatpush1.msra.mxu0 %v8971
        %8973 = vmatprep.subr.mxu0 0.0
        %v8974 = vand.u32 %v358, 4294901760
        %8975 = vmatpush1.msra.mxu0 %v8974
        %8976 = vmatprep.subr.mxu0 0.0
        %v8977 = vand.u32 %v357, 4294901760
        %8978 = vmatpush1.msra.mxu0 %v8977
        %8979 = vmatprep.subr.mxu0 0.0
        %v8980 = vand.u32 %v356, 4294901760
        %8981 = vmatpush1.msra.mxu0 %v8980
        %8982 = vmatprep.subr.mxu0 0.0
        %v8983 = vand.u32 %v355, 4294901760
        %8984 = vmatpush1.msra.mxu0 %v8983
        %8985 = vmatprep.subr.mxu0 0.0
        %v8986 = vand.u32 %v354, 4294901760
        %8987 = vmatpush1.msra.mxu0 %v8986
        %8988 = vmatprep.subr.mxu0 0.0
        %v8989 = vand.u32 %v353, 4294901760
        %8990 = vmatpush1.msra.mxu0 %v8989
        %8991 = vmatprep.subr.mxu0 0.0
        %v8992 = vand.u32 %v352, 4294901760
        %8993 = vmatpush1.msra.mxu0 %v8992
        %8994 = vmatprep.subr.mxu0 0.0
        %v8995 = vand.u32 %v351, 4294901760
        %8996 = vmatpush1.msra.mxu0 %v8995
        %8997 = vmatprep.subr.mxu0 0.0
        %v8998 = vand.u32 %v350, 4294901760
        %8999 = vmatpush1.msra.mxu0 %v8998
        %9000 = vmatprep.subr.mxu0 0.0
        %v9001 = vand.u32 %v349, 4294901760
        %9002 = vmatpush1.msra.mxu0 %v9001
        %9003 = vmatprep.subr.mxu0 0.0
        %v9004 = vand.u32 %v348, 4294901760
        %9005 = vmatpush1.msra.mxu0 %v9004
        %9006 = vmatprep.subr.mxu0 0.0
        %v9007 = vand.u32 %v347, 4294901760
        %9008 = vmatpush1.msra.mxu0 %v9007
        %9009 = vmatprep.subr.mxu0 0.0
        %v9010 = vand.u32 %v346, 4294901760
        %9011 = vmatpush1.msra.mxu0 %v9010
        %9012 = vmatprep.subr.mxu0 0.0
        %9013 = vmatpush2.msra.mxu0 0.0
        %9014 = vmatprep.subr.mxu0 0.0
        %9015 = vmatpush2.msra.mxu0 0.0
        %9016 = vmatprep.subr.mxu0 0.0
        %9017 = vmatpush2.msra.mxu0 0.0
        %9018 = vmatprep.subr.mxu0 0.0
        %9019 = vmatpush2.msra.mxu0 0.0
        %9020 = vmatprep.subr.mxu0 0.0
        %9021 = vmatpush2.msra.mxu0 0.0
        %9022 = vmatprep.subr.mxu0 0.0
        %9023 = vmatpush2.msra.mxu0 0.0
        %9024 = vmatprep.subr.mxu0 0.0
        %9025 = vmatpush2.msra.mxu0 0.0
        %9026 = vmatprep.subr.mxu0 0.0
        %9027 = vmatpush2.msra.mxu0 0.0
        %9028 = vmatprep.subr.mxu0 0.0
        %9029 = vmatpush2.msra.mxu0 0.0
        %9030 = vmatprep.subr.mxu0 0.0
        %9031 = vmatpush2.msra.mxu0 0.0
        %9032 = vmatprep.subr.mxu0 0.0
        %9033 = vmatpush2.msra.mxu0 0.0
        %9034 = vmatprep.subr.mxu0 0.0
        %9035 = vmatpush2.msra.mxu0 0.0
        %9036 = vmatprep.subr.mxu0 0.0
        %9037 = vmatpush2.msra.mxu0 0.0
        %9038 = vmatprep.subr.mxu0 0.0
        %9039 = vmatpush2.msra.mxu0 0.0
        %9040 = vmatprep.subr.mxu0 0.0
        %9041 = vmatpush2.msra.mxu0 0.0
        %9042 = vmatprep.subr.mxu0 0.0
        %9043 = vmatpush2.msra.mxu0 0.0
        %9044 = vmatprep.mubr.f32.mxu0 0.0
        %v9045 = vand.u32 %v8409, 4294901760
        %9046 = vmatmul.mubr.f32.gmra.mxu0 %v9045
        %v9047 = vpop.f32.mrf.mxu0
        %v9048 = vadd.f32 %v8961, %v9047
        %v9049 = vpop.f32.mrf.mxu0
        %9050 = vdwg.mxu0
        %v9051 = vrsqrt.pop %v9048
        %v9053 = vsel %vm1090, %v9051, 0
        %9055 = vmatprep.subr.mxu0 0.0
        %9056 = vmatpush1.msra.mxu0 0.0
        %9057 = vmatprep.subr.mxu0 0.0
        %9058 = vmatpush1.msra.mxu0 0.0
        %9059 = vmatprep.subr.mxu0 0.0
        %9060 = vmatpush1.msra.mxu0 0.0
        %9061 = vmatprep.subr.mxu0 0.0
        %9062 = vmatpush1.msra.mxu0 0.0
        %9063 = vmatprep.subr.mxu0 0.0
        %9064 = vmatpush1.msra.mxu0 0.0
        %9065 = vmatprep.subr.mxu0 0.0
        %9066 = vmatpush1.msra.mxu0 0.0
        %9067 = vmatprep.subr.mxu0 0.0
        %9068 = vmatpush1.msra.mxu0 0.0
        %9069 = vmatprep.subr.mxu0 0.0
        %9070 = vmatpush1.msra.mxu0 0.0
        %9071 = vmatprep.subr.mxu0 0.0
        %9072 = vmatpush1.msra.mxu0 0.0
        %9073 = vmatprep.subr.mxu0 0.0
        %9074 = vmatpush1.msra.mxu0 0.0
        %9075 = vmatprep.subr.mxu0 0.0
        %9076 = vmatpush1.msra.mxu0 0.0
        %9077 = vmatprep.subr.mxu0 0.0
        %9078 = vmatpush1.msra.mxu0 0.0
        %9079 = vmatprep.subr.mxu0 0.0
        %9080 = vmatpush1.msra.mxu0 0.0
        %9081 = vmatprep.subr.mxu0 0.0
        %9082 = vmatpush1.msra.mxu0 0.0
        %9083 = vmatprep.subr.mxu0 0.0
        %9084 = vmatpush1.msra.mxu0 0.0
        %9085 = vmatprep.subr.mxu0 0.0
        %v9086 = vand.u32 %v363, 4294901760
        %9087 = vmatpush1.msra.mxu0 %v9086
        %9088 = vmatprep.subr.mxu0 0.0
        %9089 = vmatpush2.msra.mxu0 0.0
        %9090 = vmatprep.subr.mxu0 0.0
        %9091 = vmatpush2.msra.mxu0 0.0
        %9092 = vmatprep.subr.mxu0 0.0
        %9093 = vmatpush2.msra.mxu0 0.0
        %9094 = vmatprep.subr.mxu0 0.0
        %9095 = vmatpush2.msra.mxu0 0.0
        %9096 = vmatprep.subr.mxu0 0.0
        %9097 = vmatpush2.msra.mxu0 0.0
        %9098 = vmatprep.subr.mxu0 0.0
        %9099 = vmatpush2.msra.mxu0 0.0
        %9100 = vmatprep.subr.mxu0 0.0
        %9101 = vmatpush2.msra.mxu0 0.0
        %9102 = vmatprep.subr.mxu0 0.0
        %9103 = vmatpush2.msra.mxu0 0.0
        %9104 = vmatprep.subr.mxu0 0.0
        %9105 = vmatpush2.msra.mxu0 0.0
        %9106 = vmatprep.subr.mxu0 0.0
        %9107 = vmatpush2.msra.mxu0 0.0
        %9108 = vmatprep.subr.mxu0 0.0
        %9109 = vmatpush2.msra.mxu0 0.0
        %9110 = vmatprep.subr.mxu0 0.0
        %9111 = vmatpush2.msra.mxu0 0.0
        %9112 = vmatprep.subr.mxu0 0.0
        %9113 = vmatpush2.msra.mxu0 0.0
        %9114 = vmatprep.subr.mxu0 0.0
        %9115 = vmatpush2.msra.mxu0 0.0
        %9116 = vmatprep.subr.mxu0 0.0
        %9117 = vmatpush2.msra.mxu0 0.0
        %9118 = vmatprep.subr.mxu0 0.0
        %9119 = vmatpush2.msra.mxu0 0.0
        %9120 = vmatprep.mubr.f32.mxu0 0.0
        %v9121 = vand.u32 %v9053, 4294901760
        %v9122 = vsub.f32 %v9053, %v9121
        %v9123 = vand.u32 %v9122, 4294901760
        %v9124 = vsub.f32 %v9122, %v9123
        %v9125 = vand.u32 %v9124, 4294901760
        %9126 = vmatmul.mubr.f32.gmra.mxu0 %v9125
        %v9127 = vpop.f32.mrf.mxu0
        %v9128 = vadd.f32 0.0, %v9127
        %v9129 = vpop.f32.mrf.mxu0
        %9130 = vdwg.mxu0
        %9131 = vmatprep.subr.mxu0 0.0
        %9132 = vmatpush1.msra.mxu0 0.0
        %9133 = vmatprep.subr.mxu0 0.0
        %9134 = vmatpush1.msra.mxu0 0.0
        %9135 = vmatprep.subr.mxu0 0.0
        %9136 = vmatpush1.msra.mxu0 0.0
        %9137 = vmatprep.subr.mxu0 0.0
        %9138 = vmatpush1.msra.mxu0 0.0
        %9139 = vmatprep.subr.mxu0 0.0
        %9140 = vmatpush1.msra.mxu0 0.0
        %9141 = vmatprep.subr.mxu0 0.0
        %9142 = vmatpush1.msra.mxu0 0.0
        %9143 = vmatprep.subr.mxu0 0.0
        %9144 = vmatpush1.msra.mxu0 0.0
        %9145 = vmatprep.subr.mxu0 0.0
        %9146 = vmatpush1.msra.mxu0 0.0
        %9147 = vmatprep.subr.mxu0 0.0
        %9148 = vmatpush1.msra.mxu0 0.0
        %9149 = vmatprep.subr.mxu0 0.0
        %9150 = vmatpush1.msra.mxu0 0.0
        %9151 = vmatprep.subr.mxu0 0.0
        %9152 = vmatpush1.msra.mxu0 0.0
        %9153 = vmatprep.subr.mxu0 0.0
        %9154 = vmatpush1.msra.mxu0 0.0
        %9155 = vmatprep.subr.mxu0 0.0
        %9156 = vmatpush1.msra.mxu0 0.0
        %9157 = vmatprep.subr.mxu0 0.0
        %9158 = vmatpush1.msra.mxu0 0.0
        %9159 = vmatprep.subr.mxu0 0.0
        %9160 = vmatpush1.msra.mxu0 0.0
        %9161 = vmatprep.subr.mxu0 0.0
        %v9162 = vand.u32 %v363, 4294901760
        %v9163 = vsub.f32 %v363, %v9162
        %v9164 = vand.u32 %v9163, 4294901760
        %v9165 = vsub.f32 %v9163, %v9164
        %v9166 = vand.u32 %v9165, 4294901760
        %9167 = vmatpush1.msra.mxu0 %v9166
        %9168 = vmatprep.subr.mxu0 0.0
        %9169 = vmatpush2.msra.mxu0 0.0
        %9170 = vmatprep.subr.mxu0 0.0
        %9171 = vmatpush2.msra.mxu0 0.0
        %9172 = vmatprep.subr.mxu0 0.0
        %9173 = vmatpush2.msra.mxu0 0.0
        %9174 = vmatprep.subr.mxu0 0.0
        %9175 = vmatpush2.msra.mxu0 0.0
        %9176 = vmatprep.subr.mxu0 0.0
        %9177 = vmatpush2.msra.mxu0 0.0
        %9178 = vmatprep.subr.mxu0 0.0
        %9179 = vmatpush2.msra.mxu0 0.0
        %9180 = vmatprep.subr.mxu0 0.0
        %9181 = vmatpush2.msra.mxu0 0.0
        %9182 = vmatprep.subr.mxu0 0.0
        %9183 = vmatpush2.msra.mxu0 0.0
        %9184 = vmatprep.subr.mxu0 0.0
        %9185 = vmatpush2.msra.mxu0 0.0
        %9186 = vmatprep.subr.mxu0 0.0
        %9187 = vmatpush2.msra.mxu0 0.0
        %9188 = vmatprep.subr.mxu0 0.0
        %9189 = vmatpush2.msra.mxu0 0.0
        %9190 = vmatprep.subr.mxu0 0.0
        %9191 = vmatpush2.msra.mxu0 0.0
        %9192 = vmatprep.subr.mxu0 0.0
        %9193 = vmatpush2.msra.mxu0 0.0
        %9194 = vmatprep.subr.mxu0 0.0
        %9195 = vmatpush2.msra.mxu0 0.0
        %9196 = vmatprep.subr.mxu0 0.0
        %9197 = vmatpush2.msra.mxu0 0.0
        %9198 = vmatprep.subr.mxu0 0.0
        %9199 = vmatpush2.msra.mxu0 0.0
        %9200 = vmatprep.mubr.f32.mxu0 0.0
        %v9201 = vand.u32 %v9053, 4294901760
        %9202 = vmatmul.mubr.f32.gmra.mxu0 %v9201
        %v9203 = vpop.f32.mrf.mxu0
        %v9204 = vadd.f32 %v9128, %v9203
        %v9205 = vpop.f32.mrf.mxu0
        %9206 = vdwg.mxu0
        %9207 = vmatprep.subr.mxu0 0.0
        %9208 = vmatpush1.msra.mxu0 0.0
        %9209 = vmatprep.subr.mxu0 0.0
        %9210 = vmatpush1.msra.mxu0 0.0
        %9211 = vmatprep.subr.mxu0 0.0
        %9212 = vmatpush1.msra.mxu0 0.0
        %9213 = vmatprep.subr.mxu0 0.0
        %9214 = vmatpush1.msra.mxu0 0.0
        %9215 = vmatprep.subr.mxu0 0.0
        %9216 = vmatpush1.msra.mxu0 0.0
        %9217 = vmatprep.subr.mxu0 0.0
        %9218 = vmatpush1.msra.mxu0 0.0
        %9219 = vmatprep.subr.mxu0 0.0
        %9220 = vmatpush1.msra.mxu0 0.0
        %9221 = vmatprep.subr.mxu0 0.0
        %9222 = vmatpush1.msra.mxu0 0.0
        %9223 = vmatprep.subr.mxu0 0.0
        %9224 = vmatpush1.msra.mxu0 0.0
        %9225 = vmatprep.subr.mxu0 0.0
        %9226 = vmatpush1.msra.mxu0 0.0
        %9227 = vmatprep.subr.mxu0 0.0
        %9228 = vmatpush1.msra.mxu0 0.0
        %9229 = vmatprep.subr.mxu0 0.0
        %9230 = vmatpush1.msra.mxu0 0.0
        %9231 = vmatprep.subr.mxu0 0.0
        %9232 = vmatpush1.msra.mxu0 0.0
        %9233 = vmatprep.subr.mxu0 0.0
        %9234 = vmatpush1.msra.mxu0 0.0
        %9235 = vmatprep.subr.mxu0 0.0
        %9236 = vmatpush1.msra.mxu0 0.0
        %9237 = vmatprep.subr.mxu0 0.0
        %v9238 = vand.u32 %v363, 4294901760
        %v9239 = vsub.f32 %v363, %v9238
        %9240 = vmatpush1.msra.mxu0 %v9239
        %9241 = vmatprep.subr.mxu0 0.0
        %9242 = vmatpush2.msra.mxu0 0.0
        %9243 = vmatprep.subr.mxu0 0.0
        %9244 = vmatpush2.msra.mxu0 0.0
        %9245 = vmatprep.subr.mxu0 0.0
        %9246 = vmatpush2.msra.mxu0 0.0
        %9247 = vmatprep.subr.mxu0 0.0
        %9248 = vmatpush2.msra.mxu0 0.0
        %9249 = vmatprep.subr.mxu0 0.0
        %9250 = vmatpush2.msra.mxu0 0.0
        %9251 = vmatprep.subr.mxu0 0.0
        %9252 = vmatpush2.msra.mxu0 0.0
        %9253 = vmatprep.subr.mxu0 0.0
        %9254 = vmatpush2.msra.mxu0 0.0
        %9255 = vmatprep.subr.mxu0 0.0
        %9256 = vmatpush2.msra.mxu0 0.0
        %9257 = vmatprep.subr.mxu0 0.0
        %9258 = vmatpush2.msra.mxu0 0.0
        %9259 = vmatprep.subr.mxu0 0.0
        %9260 = vmatpush2.msra.mxu0 0.0
        %9261 = vmatprep.subr.mxu0 0.0
        %9262 = vmatpush2.msra.mxu0 0.0
        %9263 = vmatprep.subr.mxu0 0.0
        %9264 = vmatpush2.msra.mxu0 0.0
        %9265 = vmatprep.subr.mxu0 0.0
        %9266 = vmatpush2.msra.mxu0 0.0
        %9267 = vmatprep.subr.mxu0 0.0
        %9268 = vmatpush2.msra.mxu0 0.0
        %9269 = vmatprep.subr.mxu0 0.0
        %9270 = vmatpush2.msra.mxu0 0.0
        %9271 = vmatprep.subr.mxu0 0.0
        %9272 = vmatpush2.msra.mxu0 0.0
        %9273 = vmatprep.mubr.f32.mxu0 0.0
        %v9274 = vand.u32 %v9053, 4294901760
        %v9275 = vsub.f32 %v9053, %v9274
        %9276 = vmatmul.mubr.f32.gmra.mxu0 %v9275
        %v9277 = vpop.f32.mrf.mxu0
        %v9278 = vadd.f32 %v9204, %v9277
        %v9279 = vpop.f32.mrf.mxu0
        %9280 = vdwg.mxu0
        %9281 = vmatprep.subr.mxu0 0.0
        %9282 = vmatpush1.msra.mxu0 0.0
        %9283 = vmatprep.subr.mxu0 0.0
        %9284 = vmatpush1.msra.mxu0 0.0
        %9285 = vmatprep.subr.mxu0 0.0
        %9286 = vmatpush1.msra.mxu0 0.0
        %9287 = vmatprep.subr.mxu0 0.0
        %9288 = vmatpush1.msra.mxu0 0.0
        %9289 = vmatprep.subr.mxu0 0.0
        %9290 = vmatpush1.msra.mxu0 0.0
        %9291 = vmatprep.subr.mxu0 0.0
        %9292 = vmatpush1.msra.mxu0 0.0
        %9293 = vmatprep.subr.mxu0 0.0
        %9294 = vmatpush1.msra.mxu0 0.0
        %9295 = vmatprep.subr.mxu0 0.0
        %9296 = vmatpush1.msra.mxu0 0.0
        %9297 = vmatprep.subr.mxu0 0.0
        %9298 = vmatpush1.msra.mxu0 0.0
        %9299 = vmatprep.subr.mxu0 0.0
        %9300 = vmatpush1.msra.mxu0 0.0
        %9301 = vmatprep.subr.mxu0 0.0
        %9302 = vmatpush1.msra.mxu0 0.0
        %9303 = vmatprep.subr.mxu0 0.0
        %9304 = vmatpush1.msra.mxu0 0.0
        %9305 = vmatprep.subr.mxu0 0.0
        %9306 = vmatpush1.msra.mxu0 0.0
        %9307 = vmatprep.subr.mxu0 0.0
        %9308 = vmatpush1.msra.mxu0 0.0
        %9309 = vmatprep.subr.mxu0 0.0
        %9310 = vmatpush1.msra.mxu0 0.0
        %9311 = vmatprep.subr.mxu0 0.0
        %v9312 = vand.u32 %v363, 4294901760
        %9313 = vmatpush1.msra.mxu0 %v9312
        %9314 = vmatprep.subr.mxu0 0.0
        %9315 = vmatpush2.msra.mxu0 0.0
        %9316 = vmatprep.subr.mxu0 0.0
        %9317 = vmatpush2.msra.mxu0 0.0
        %9318 = vmatprep.subr.mxu0 0.0
        %9319 = vmatpush2.msra.mxu0 0.0
        %9320 = vmatprep.subr.mxu0 0.0
        %9321 = vmatpush2.msra.mxu0 0.0
        %9322 = vmatprep.subr.mxu0 0.0
        %9323 = vmatpush2.msra.mxu0 0.0
        %9324 = vmatprep.subr.mxu0 0.0
        %9325 = vmatpush2.msra.mxu0 0.0
        %9326 = vmatprep.subr.mxu0 0.0
        %9327 = vmatpush2.msra.mxu0 0.0
        %9328 = vmatprep.subr.mxu0 0.0
        %9329 = vmatpush2.msra.mxu0 0.0
        %9330 = vmatprep.subr.mxu0 0.0
        %9331 = vmatpush2.msra.mxu0 0.0
        %9332 = vmatprep.subr.mxu0 0.0
        %9333 = vmatpush2.msra.mxu0 0.0
        %9334 = vmatprep.subr.mxu0 0.0
        %9335 = vmatpush2.msra.mxu0 0.0
        %9336 = vmatprep.subr.mxu0 0.0
        %9337 = vmatpush2.msra.mxu0 0.0
        %9338 = vmatprep.subr.mxu0 0.0
        %9339 = vmatpush2.msra.mxu0 0.0
        %9340 = vmatprep.subr.mxu0 0.0
        %9341 = vmatpush2.msra.mxu0 0.0
        %9342 = vmatprep.subr.mxu0 0.0
        %9343 = vmatpush2.msra.mxu0 0.0
        %9344 = vmatprep.subr.mxu0 0.0
        %9345 = vmatpush2.msra.mxu0 0.0
        %9346 = vmatprep.mubr.f32.mxu0 0.0
        %v9347 = vand.u32 %v9053, 4294901760
        %v9348 = vsub.f32 %v9053, %v9347
        %v9349 = vand.u32 %v9348, 4294901760
        %9350 = vmatmul.mubr.f32.gmra.mxu0 %v9349
        %v9351 = vpop.f32.mrf.mxu0
        %v9352 = vadd.f32 %v9278, %v9351
        %v9353 = vpop.f32.mrf.mxu0
        %9354 = vdwg.mxu0
        %9355 = vmatprep.subr.mxu0 0.0
        %9356 = vmatpush1.msra.mxu0 0.0
        %9357 = vmatprep.subr.mxu0 0.0
        %9358 = vmatpush1.msra.mxu0 0.0
        %9359 = vmatprep.subr.mxu0 0.0
        %9360 = vmatpush1.msra.mxu0 0.0
        %9361 = vmatprep.subr.mxu0 0.0
        %9362 = vmatpush1.msra.mxu0 0.0
        %9363 = vmatprep.subr.mxu0 0.0
        %9364 = vmatpush1.msra.mxu0 0.0
        %9365 = vmatprep.subr.mxu0 0.0
        %9366 = vmatpush1.msra.mxu0 0.0
        %9367 = vmatprep.subr.mxu0 0.0
        %9368 = vmatpush1.msra.mxu0 0.0
        %9369 = vmatprep.subr.mxu0 0.0
        %9370 = vmatpush1.msra.mxu0 0.0
        %9371 = vmatprep.subr.mxu0 0.0
        %9372 = vmatpush1.msra.mxu0 0.0
        %9373 = vmatprep.subr.mxu0 0.0
        %9374 = vmatpush1.msra.mxu0 0.0
        %9375 = vmatprep.subr.mxu0 0.0
        %9376 = vmatpush1.msra.mxu0 0.0
        %9377 = vmatprep.subr.mxu0 0.0
        %9378 = vmatpush1.msra.mxu0 0.0
        %9379 = vmatprep.subr.mxu0 0.0
        %9380 = vmatpush1.msra.mxu0 0.0
        %9381 = vmatprep.subr.mxu0 0.0
        %9382 = vmatpush1.msra.mxu0 0.0
        %9383 = vmatprep.subr.mxu0 0.0
        %9384 = vmatpush1.msra.mxu0 0.0
        %9385 = vmatprep.subr.mxu0 0.0
        %v9386 = vand.u32 %v363, 4294901760
        %v9387 = vsub.f32 %v363, %v9386
        %v9388 = vand.u32 %v9387, 4294901760
        %9389 = vmatpush1.msra.mxu0 %v9388
        %9390 = vmatprep.subr.mxu0 0.0
        %9391 = vmatpush2.msra.mxu0 0.0
        %9392 = vmatprep.subr.mxu0 0.0
        %9393 = vmatpush2.msra.mxu0 0.0
        %9394 = vmatprep.subr.mxu0 0.0
        %9395 = vmatpush2.msra.mxu0 0.0
        %9396 = vmatprep.subr.mxu0 0.0
        %9397 = vmatpush2.msra.mxu0 0.0
        %9398 = vmatprep.subr.mxu0 0.0
        %9399 = vmatpush2.msra.mxu0 0.0
        %9400 = vmatprep.subr.mxu0 0.0
        %9401 = vmatpush2.msra.mxu0 0.0
        %9402 = vmatprep.subr.mxu0 0.0
        %9403 = vmatpush2.msra.mxu0 0.0
        %9404 = vmatprep.subr.mxu0 0.0
        %9405 = vmatpush2.msra.mxu0 0.0
        %9406 = vmatprep.subr.mxu0 0.0
        %9407 = vmatpush2.msra.mxu0 0.0
        %9408 = vmatprep.subr.mxu0 0.0
        %9409 = vmatpush2.msra.mxu0 0.0
        %9410 = vmatprep.subr.mxu0 0.0
        %9411 = vmatpush2.msra.mxu0 0.0
        %9412 = vmatprep.subr.mxu0 0.0
        %9413 = vmatpush2.msra.mxu0 0.0
        %9414 = vmatprep.subr.mxu0 0.0
        %9415 = vmatpush2.msra.mxu0 0.0
        %9416 = vmatprep.subr.mxu0 0.0
        %9417 = vmatpush2.msra.mxu0 0.0
        %9418 = vmatprep.subr.mxu0 0.0
        %9419 = vmatpush2.msra.mxu0 0.0
        %9420 = vmatprep.subr.mxu0 0.0
        %9421 = vmatpush2.msra.mxu0 0.0
        %9422 = vmatprep.mubr.f32.mxu0 0.0
        %v9423 = vand.u32 %v9053, 4294901760
        %9424 = vmatmul.mubr.f32.gmra.mxu0 %v9423
        %v9425 = vpop.f32.mrf.mxu0
        %v9426 = vadd.f32 %v9352, %v9425
        %v9427 = vpop.f32.mrf.mxu0
        %9428 = vdwg.mxu0
        %9429 = vmatprep.subr.mxu0 0.0
        %9430 = vmatpush1.msra.mxu0 0.0
        %9431 = vmatprep.subr.mxu0 0.0
        %9432 = vmatpush1.msra.mxu0 0.0
        %9433 = vmatprep.subr.mxu0 0.0
        %9434 = vmatpush1.msra.mxu0 0.0
        %9435 = vmatprep.subr.mxu0 0.0
        %9436 = vmatpush1.msra.mxu0 0.0
        %9437 = vmatprep.subr.mxu0 0.0
        %9438 = vmatpush1.msra.mxu0 0.0
        %9439 = vmatprep.subr.mxu0 0.0
        %9440 = vmatpush1.msra.mxu0 0.0
        %9441 = vmatprep.subr.mxu0 0.0
        %9442 = vmatpush1.msra.mxu0 0.0
        %9443 = vmatprep.subr.mxu0 0.0
        %9444 = vmatpush1.msra.mxu0 0.0
        %9445 = vmatprep.subr.mxu0 0.0
        %9446 = vmatpush1.msra.mxu0 0.0
        %9447 = vmatprep.subr.mxu0 0.0
        %9448 = vmatpush1.msra.mxu0 0.0
        %9449 = vmatprep.subr.mxu0 0.0
        %9450 = vmatpush1.msra.mxu0 0.0
        %9451 = vmatprep.subr.mxu0 0.0
        %9452 = vmatpush1.msra.mxu0 0.0
        %9453 = vmatprep.subr.mxu0 0.0
        %9454 = vmatpush1.msra.mxu0 0.0
        %9455 = vmatprep.subr.mxu0 0.0
        %9456 = vmatpush1.msra.mxu0 0.0
        %9457 = vmatprep.subr.mxu0 0.0
        %9458 = vmatpush1.msra.mxu0 0.0
        %9459 = vmatprep.subr.mxu0 0.0
        %v9460 = vand.u32 %v363, 4294901760
        %9461 = vmatpush1.msra.mxu0 %v9460
        %9462 = vmatprep.subr.mxu0 0.0
        %9463 = vmatpush2.msra.mxu0 0.0
        %9464 = vmatprep.subr.mxu0 0.0
        %9465 = vmatpush2.msra.mxu0 0.0
        %9466 = vmatprep.subr.mxu0 0.0
        %9467 = vmatpush2.msra.mxu0 0.0
        %9468 = vmatprep.subr.mxu0 0.0
        %9469 = vmatpush2.msra.mxu0 0.0
        %9470 = vmatprep.subr.mxu0 0.0
        %9471 = vmatpush2.msra.mxu0 0.0
        %9472 = vmatprep.subr.mxu0 0.0
        %9473 = vmatpush2.msra.mxu0 0.0
        %9474 = vmatprep.subr.mxu0 0.0
        %9475 = vmatpush2.msra.mxu0 0.0
        %9476 = vmatprep.subr.mxu0 0.0
        %9477 = vmatpush2.msra.mxu0 0.0
        %9478 = vmatprep.subr.mxu0 0.0
        %9479 = vmatpush2.msra.mxu0 0.0
        %9480 = vmatprep.subr.mxu0 0.0
        %9481 = vmatpush2.msra.mxu0 0.0
        %9482 = vmatprep.subr.mxu0 0.0
        %9483 = vmatpush2.msra.mxu0 0.0
        %9484 = vmatprep.subr.mxu0 0.0
        %9485 = vmatpush2.msra.mxu0 0.0
        %9486 = vmatprep.subr.mxu0 0.0
        %9487 = vmatpush2.msra.mxu0 0.0
        %9488 = vmatprep.subr.mxu0 0.0
        %9489 = vmatpush2.msra.mxu0 0.0
        %9490 = vmatprep.subr.mxu0 0.0
        %9491 = vmatpush2.msra.mxu0 0.0
        %9492 = vmatprep.subr.mxu0 0.0
        %9493 = vmatpush2.msra.mxu0 0.0
        %9494 = vmatprep.mubr.f32.mxu0 0.0
        %v9495 = vand.u32 %v9053, 4294901760
        %9496 = vmatmul.mubr.f32.gmra.mxu0 %v9495
        %v9497 = vpop.f32.mrf.mxu0
        %v9498 = vadd.f32 %v9426, %v9497
        %v9499 = vpop.f32.mrf.mxu0
        %9500 = vdwg.mxu0
        %v9501 = vmul.f32 %v8408, %v9498
        %v9502 = vadd.f32 %v9501, %v369
        %v9505 = vunpack.c.l.s4 1966171168
        %v9506 = vunpack.c.0.s8 %v9505
        %v9507 = vlaneseq
        %v9508 = vshrl.u32 %v9507, 7
        %v9509 = vsub.s32 %v9506, %v9508
        %v9510 = vrot.slane %v9502, %v9509
        %v9511 = vcombine.high %v9510, %v9510
        %v9513 = vunpack.c.l.s4 1966171168
        %v9514 = vunpack.c.0.s8 %v9513
        %v9515 = vlaneseq
        %v9516 = vshrl.u32 %v9515, 7
        %v9517 = vsub.s32 %v9514, %v9516
        %v9518 = vrot.slane %v9510, %v9517
        %v9520 = vunpack.c.l.s4 1966171168
        %v9521 = vunpack.c.0.s8 %v9520
        %v9522 = vlaneseq
        %v9523 = vshrl.u32 %v9522, 7
        %v9524 = vsub.s32 %v9521, %v9523
        %v9525 = vrot.slane %v9511, %v9524
        %9528 = vst [vmem:[%s4949 + $0x1] sm:$0x1] %v9518
        %9529 = vst [vmem:[%s4949 + $0x5] sm:$0x1] %v9525
        %s9530 = sand.u32 %s185, 1
        %s9531 = scalar_lea.sflag [#allocation4], %s9530
        %s9532 = sand.u32 %s185, 1
        %s9533 = smul.addr %s9532, 8
        %s9534 = scalar_lea.vmem [#allocation7], %s9533
        // Predicated region
        $region57: #{tpu_custom_call.1} parent=47 // pred_check
          %p9535 = pneg %p195
        $region58: #{tpu_custom_call.1} parent=47 // pred_check_branch
          %9537 = sbr.rel (%p9535) target = $region60
        $region59: #{tpu_custom_call.1} parent=47 // pred_region
          %s9538 = smul.u32 2, %s25
          %s9540 = ssub.s32 128, 128
          %9541 = vsyncadd %s9531, %s9540
          %s9542 = smul.addr %s9538, 2
          %s9543 = smul.addr %s9542, 32
          %s9544 = scalar_lea.hbm %s7, %s9543
          %s9545 = sshll.u32 %s9534, 4
          %s9546 = int_to_ptr.vmem [resolvable:$true] %s9545
          %9551 = dma.vmem_to_hbm [thread:$0]  %s9546, 128, %s9544, %s9531, 32, 32, 2
        $region60: #{tpu_custom_call.1} parent=47 // pred_fallthru
          _
      $region48: #{tpu_custom_call.1} parent=5 // pred_fallthru
        _
      %p9552 = scmp.le.s32.totalorder 2, %s20
      // Predicated region
      $region61: #{tpu_custom_call.1} parent=5 // pred_check
        %p9553 = pneg %p9552
      $region62: #{tpu_custom_call.1} parent=5 // pred_check_branch
        %9555 = sbr.rel (%p9553) target = $region64
      $region63: #{tpu_custom_call.1} parent=5 // pred_region
        %s9556 = ssub.s32 %s20, 2
        // Predicated region
        $region65: #{tpu_custom_call.1} parent=63 // pred_check
          %p9557 = pneg %p201
        $region66: #{tpu_custom_call.1} parent=63 // pred_check_branch
          %9559 = sbr.rel (%p9557) target = $region68
        $region67: #{tpu_custom_call.1} parent=63 // pred_region
          %s9560 = sand.u32 %s186, 1
          %s9561 = scalar_lea.sflag [#allocation4], %s9560
          %s9562 = sand.u32 %s186, 1
          %s9563 = smul.addr %s9562, 8
          %s9564 = scalar_lea.vmem [#allocation7], %s9563
          %9565 = dma.done %s9561, 128
        $region68: #{tpu_custom_call.1} parent=63 // pred_fallthru
          _
      $region64: #{tpu_custom_call.1} parent=5 // pred_fallthru
        _
    $region6: #{tpu_custom_call.1} parent=1 // loop_footer
      %s24 = sadd.s32 1, %s20
    $region7: #{tpu_custom_call.1} parent=1 // loop_footer_branch
      %19 = sbr.rel target = $region3
    $region8: #{tpu_custom_call.1} parent=1 // loop_exit
      _
    %9566 = vsyncpa [#allocation3], 1
    %s9567 = scalar_lea.sflag [#allocation3], 1
    %9568 = vsyncpa %s9567, 1
    %9569 = vsyncpa [#allocation6], 1
    %9570 = vsyncpa [#allocation4], 1
    %s9571 = scalar_lea.sflag [#allocation4], 1
    %9572 = vsyncpa %s9571, 1

</llo_original>
